<compile_context>
chip_gen: v7x
topology: tpu7x:2x2x1
jax: 0.10.0
libtpu: 0.0.40
codegen_flags: <defaults>
</compile_context>

<pallas_src>
import functools

import jax
import jax.numpy as jnp
import numpy as np
from jax.experimental import pallas as pl
from jax.experimental.pallas import tpu as pltpu

NUM_LAYERS = 8  # fixed in the PyTorch module


# ---------------------------------------------------------------------------
# Pallas kernel
# ---------------------------------------------------------------------------
def tfilm_kernel(x_ref, w_ih0_ref, w_ih_ref, w_hh_bd_ref, b_cat_ref,
                 h0_ref, c0_ref, w_out_bd_ref, b_out_ref,
                 y_ref, *, block_num, block_size, hidden):
    """Single-invocation kernel (no grid): pooling + 8-layer LSTM + Linear.

    x_ref      : (B, T_signal)                    f32
    w_ih0_ref  : (1, 4H)                          layer-0 input weights (input_dim == 1)
    w_ih_ref   : (NUM_LAYERS-1, H, 4H)            layers 1..7 input weights (transposed)
    w_hh_bd_ref: (NUM_LAYERS*H, NUM_LAYERS*4H)    block-diagonal hidden weights
    b_cat_ref  : (1, NUM_LAYERS*4H)               b_ih + b_hh, all layers concatenated
    h0_ref     : (B, NUM_LAYERS*H)                initial h, lane-concatenated per layer
    c0_ref     : (NUM_LAYERS, B, H)               initial c
    w_out_bd_ref: (block_num*H, block_num*2H)     final Linear, block-diag over timesteps
    b_out_ref  : (1, block_num*2H)                final Linear bias, tiled over timesteps
    y_ref      : (B, block_num*2H)                lane-dense output (single store)
    """
    H = hidden
    L = NUM_LAYERS

    # ---- hoisted small loads (live in vregs across the unrolled recurrence) ----
    w_ih0 = w_ih0_ref[...]          # (1, 4H)
    b_cat = b_cat_ref[...]          # (1, L*4H)

    # ---- MaxPool1d(block_size, stride=block_size) hoisted out of the time loop ----
    xv = x_ref[...]                                                      # (B, T)
    xp = [jnp.max(xv[:, t * block_size:(t + 1) * block_size],
                  axis=-1, keepdims=True) for t in range(block_num)]     # block_num x (B, 1)

    # ---- LSTM state stays in vregs (no VMEM scratch) ----
    h_cat = h0_ref[...]                            # (B, L*H), layer l at lanes [l*H, (l+1)*H)
    c = [c0_ref[l] for l in range(L)]              # L x (B, H)

    tops = []
    for t in range(block_num):  # block_num is small (8): static unroll of the recurrence
        # One fused block-diagonal MXU op computes every layer's hidden->gate
        # contribution for this timestep; LSTM biases are folded in here.
        hh_all = jnp.dot(h_cat, w_hh_bd_ref[...],
                         preferred_element_type=jnp.float32) + b_cat     # (B, L*4H)

        layer_in = xp[t]                           # (B, 1)
        new_h = []
        for l in range(L):
            if l == 0:
                # input_dim == 1: (B,1) @ (1,4H) is a broadcasted multiply
                ih = layer_in * w_ih0                                    # (B, 4H)
            else:
                ih = jnp.dot(layer_in, w_ih_ref[l - 1],
                             preferred_element_type=jnp.float32)         # (B, 4H)
            gates = ih + hh_all[:, l * 4 * H:(l + 1) * 4 * H]            # (B, 4H)

            # Whole-vreg non-linearities (PyTorch gate order: i, f, g, o)
            sg = jax.nn.sigmoid(gates)
            th = jnp.tanh(gates)
            i_g = sg[:, 0 * H:1 * H]
            f_g = sg[:, 1 * H:2 * H]
            g_g = th[:, 2 * H:3 * H]
            o_g = sg[:, 3 * H:4 * H]

            c_new = f_g * c[l] + i_g * g_g
            h_new = o_g * jnp.tanh(c_new)
            c[l] = c_new
            new_h.append(h_new)
            layer_in = h_new

        h_cat = jnp.concatenate(new_h, axis=-1)    # (B, L*H) for the next timestep
        tops.append(layer_in)                      # top-layer h at step t

    # ---- final Linear(H -> 2H) hoisted out of the loop: one matmul + one store ----
    tops_cat = jnp.concatenate(tops, axis=-1)                            # (B, block_num*H)
    out = jnp.dot(tops_cat, w_out_bd_ref[...],
                  preferred_element_type=jnp.float32) + b_out_ref[...]   # (B, block_num*2H)
    y_ref[...] = out


# ---------------------------------------------------------------------------
# Wrapper
# ---------------------------------------------------------------------------
def tfilm_forward(x, params, h0, c0, *, block_num, hidden):
    B, T_sig = x.shape
    # PyTorch: block_size = x.shape[-1] // block_num  (assume divisible)
    block_size = T_sig // block_num
    assert block_size * block_num == T_sig, "signal length must divide block_num"
    H = hidden
    L = NUM_LAYERS

    # --- one-time parameter packing (plain JAX glue) ---
    w_hh_bd = jax.scipy.linalg.block_diag(
        *[params["w_hh"][l] for l in range(L)])                 # (L*H, L*4H)
    b_cat = params["b"].reshape(1, L * 4 * H)                   # (1, L*4H)
    w_out_bd = jax.scipy.linalg.block_diag(
        *([params["w_out"]] * block_num))                       # (block_num*H, block_num*2H)
    b_out_t = jnp.tile(params["b_out"], (1, block_num))         # (1, block_num*2H)
    h0_cat = jnp.transpose(h0, (1, 0, 2)).reshape(B, L * H)     # (B, L*H)

    kernel = functools.partial(tfilm_kernel, block_num=block_num,
                               block_size=block_size, hidden=hidden)
    vmem = lambda: pl.BlockSpec(memory_space=pltpu.MemorySpace.VMEM)

    y = pl.pallas_call(
        kernel,
        out_shape=jax.ShapeDtypeStruct((B, block_num * 2 * H), jnp.float32),
        in_specs=[vmem() for _ in range(9)],
        out_specs=vmem(),
        compiler_params=pltpu.CompilerParams(vmem_limit_bytes=32 * 1024 * 1024),
    )(x, params["w_ih0"], params["w_ih"], w_hh_bd, b_cat,
      h0_cat, c0, w_out_bd, b_out_t)

    # (B, block_num*2H) -> (B, 2H, block_num)  == permute(0, 2, 1), then chunk(2, dim=1)
    y = y.reshape(B, block_num, 2 * H).transpose(0, 2, 1)
    gamma = y[:, :H, :]
    beta = y[:, H:, :]
    return gamma, beta


# ---------------------------------------------------------------------------
# Deterministic parameter init (matches shapes of the PyTorch module)
# ---------------------------------------------------------------------------
def init_params(key, input_dim, hidden):
    assert input_dim == 1, "TFilm feeds x.unsqueeze(-1) to the LSTM => input_dim must be 1"
    H = hidden
    bound = 1.0 / np.sqrt(H)
    ks = jax.random.split(key, 7)
    u = lambda kk, shape: jax.random.uniform(kk, shape, jnp.float32, -bound, bound)

    w_ih0 = u(ks[0], (1, 4 * H))                     # weight_ih_l0.T  (input_dim=1)
    w_ih = u(ks[1], (NUM_LAYERS - 1, H, 4 * H))      # weight_ih_l{1..7}.T
    w_hh = u(ks[2], (NUM_LAYERS, H, 4 * H))          # weight_hh_l*.T
    b = u(ks[3], (NUM_LAYERS, 1, 4 * H)) + u(ks[4], (NUM_LAYERS, 1, 4 * H))  # b_ih + b_hh
    w_out = u(ks[5], (H, 2 * H))                     # Linear weight.T
    b_out = u(ks[6], (1, 2 * H))                     # Linear bias
    return dict(w_ih0=w_ih0, w_ih=w_ih, w_hh=w_hh, b=b, w_out=w_out, b_out=b_out)


# ---------------------------------------------------------------------------
# Pure-JAX reference (same math, no Pallas) for a correctness check
# ---------------------------------------------------------------------------
def ref_forward(x, params, h0, c0, *, block_num, hidden):
    B, T_sig = x.shape
    bs = T_sig // block_num
    H = hidden
    xp = jnp.max(x.reshape(B, block_num, bs), axis=-1)   # (B, block_num)
    h = [h0[l] for l in range(NUM_LAYERS)]
    c = [c0[l] for l in range(NUM_LAYERS)]
    ys = []
    for t in range(block_num):
        layer_in = xp[:, t:t + 1]
        for l in range(NUM_LAYERS):
            ih = layer_in * params["w_ih0"] if l == 0 else layer_in @ params["w_ih"][l - 1]
            gates = ih + h[l] @ params["w_hh"][l] + params["b"][l]
            i = jax.nn.sigmoid(gates[:, :H])
            f = jax.nn.sigmoid(gates[:, H:2 * H])
            g = jnp.tanh(gates[:, 2 * H:3 * H])
            o = jax.nn.sigmoid(gates[:, 3 * H:])
            c[l] = f * c[l] + i * g
            h[l] = o * jnp.tanh(c[l])
            layer_in = h[l]
        ys.append(layer_in @ params["w_out"] + params["b_out"])
    y = jnp.transpose(jnp.stack(ys, axis=0), (1, 2, 0))   # (B, 2H, block_num)
    return y[:, :H, :], y[:, H:, :]


# ---------------------------------------------------------------------------
if __name__ == "__main__":
    BLOCK_NUM = 8        # block_num
    HIDDEN = 32          # output_dim
    INPUT_DIM = 1        # forced by x.unsqueeze(-1) before the LSTM
    B = 2                # batch
    SIG_LEN = 64         # x.shape[-1]  -> block_size = 8

    key = jax.random.PRNGKey(0)
    kx, kp, kh, kc = jax.random.split(key, 4)

    x = jax.random.normal(kx, (B, SIG_LEN), jnp.float32)
    params = init_params(kp, INPUT_DIM, HIDDEN)
    # TODO(synk): PyTorch draws h0/c0 with torch.randn at every forward call; here they
    # are drawn once, deterministically, from PRNGKey(0) splits and passed as inputs.
    h0 = jax.random.normal(kh, (NUM_LAYERS, B, HIDDEN), jnp.float32)
    c0 = jax.random.normal(kc, (NUM_LAYERS, B, HIDDEN), jnp.float32)

    gamma, beta = tfilm_forward(x, params, h0, c0, block_num=BLOCK_NUM, hidden=HIDDEN)
    gamma, beta = jax.block_until_ready((gamma, beta))

    assert gamma.shape == (B, HIDDEN, BLOCK_NUM) and beta.shape == (B, HIDDEN, BLOCK_NUM)

    g_ref, b_ref = ref_forward(x, params, h0, c0, block_num=BLOCK_NUM, hidden=HIDDEN)
    np.testing.assert_allclose(np.asarray(gamma), np.asarray(g_ref), rtol=2e-3, atol=2e-3)
    np.testing.assert_allclose(np.asarray(beta), np.asarray(b_ref), rtol=2e-3, atol=2e-3)

    print("KERNEL_OK")
</pallas_src>

<mosaic_0001>
module attributes {stable_mosaic.version = 11 : i64} {
  func.func @tfilm_kernel(%arg0: memref<2x64xf32, #tpu.memory_space<vmem>>, %arg1: memref<1x128xf32, #tpu.memory_space<vmem>>, %arg2: memref<7x32x128xf32, #tpu.memory_space<vmem>>, %arg3: memref<256x1024xf32, #tpu.memory_space<vmem>>, %arg4: memref<1x1024xf32, #tpu.memory_space<vmem>>, %arg5: memref<2x256xf32, #tpu.memory_space<vmem>>, %arg6: memref<8x2x32xf32, #tpu.memory_space<vmem>>, %arg7: memref<256x512xf32, #tpu.memory_space<vmem>>, %arg8: memref<1x512xf32, #tpu.memory_space<vmem>>, %arg9: memref<2x512xf32, #tpu.memory_space<vmem>>) attributes {dimension_semantics = [], scalar_prefetch = 0 : i64, scratch_operands = 0 : i64, tpu.core_type = #tpu.core_type<tc>} {
    %c0 = arith.constant 0 : index
    %c0_0 = arith.constant 0 : index
    %0 = vector.load %arg1[%c0, %c0_0] : memref<1x128xf32, #tpu.memory_space<vmem>>, vector<1x128xf32>
    %c0_1 = arith.constant 0 : index
    %c0_2 = arith.constant 0 : index
    %1 = vector.load %arg4[%c0_1, %c0_2] : memref<1x1024xf32, #tpu.memory_space<vmem>>, vector<1x1024xf32>
    %c0_3 = arith.constant 0 : index
    %c0_4 = arith.constant 0 : index
    %2 = vector.load %arg0[%c0_3, %c0_4] : memref<2x64xf32, #tpu.memory_space<vmem>>, vector<2x64xf32>
    %3 = vector.extract_strided_slice %2 {offsets = [0, 0], sizes = [2, 8], strides = [1, 1]} : vector<2x64xf32> to vector<2x8xf32>
    %cst = arith.constant dense<0xFF800000> : vector<2xf32>
    %4 = vector.multi_reduction <maximumf>, %3, %cst [1] : vector<2x8xf32> to vector<2xf32>
    %5 = vector.shape_cast %4 : vector<2xf32> to vector<2x1xf32>
    %6 = vector.extract_strided_slice %2 {offsets = [0, 8], sizes = [2, 8], strides = [1, 1]} : vector<2x64xf32> to vector<2x8xf32>
    %cst_5 = arith.constant dense<0xFF800000> : vector<2xf32>
    %7 = vector.multi_reduction <maximumf>, %6, %cst_5 [1] : vector<2x8xf32> to vector<2xf32>
    %8 = vector.shape_cast %7 : vector<2xf32> to vector<2x1xf32>
    %9 = vector.extract_strided_slice %2 {offsets = [0, 16], sizes = [2, 8], strides = [1, 1]} : vector<2x64xf32> to vector<2x8xf32>
    %cst_6 = arith.constant dense<0xFF800000> : vector<2xf32>
    %10 = vector.multi_reduction <maximumf>, %9, %cst_6 [1] : vector<2x8xf32> to vector<2xf32>
    %11 = vector.shape_cast %10 : vector<2xf32> to vector<2x1xf32>
    %12 = vector.extract_strided_slice %2 {offsets = [0, 24], sizes = [2, 8], strides = [1, 1]} : vector<2x64xf32> to vector<2x8xf32>
    %cst_7 = arith.constant dense<0xFF800000> : vector<2xf32>
    %13 = vector.multi_reduction <maximumf>, %12, %cst_7 [1] : vector<2x8xf32> to vector<2xf32>
    %14 = vector.shape_cast %13 : vector<2xf32> to vector<2x1xf32>
    %15 = vector.extract_strided_slice %2 {offsets = [0, 32], sizes = [2, 8], strides = [1, 1]} : vector<2x64xf32> to vector<2x8xf32>
    %cst_8 = arith.constant dense<0xFF800000> : vector<2xf32>
    %16 = vector.multi_reduction <maximumf>, %15, %cst_8 [1] : vector<2x8xf32> to vector<2xf32>
    %17 = vector.shape_cast %16 : vector<2xf32> to vector<2x1xf32>
    %18 = vector.extract_strided_slice %2 {offsets = [0, 40], sizes = [2, 8], strides = [1, 1]} : vector<2x64xf32> to vector<2x8xf32>
    %cst_9 = arith.constant dense<0xFF800000> : vector<2xf32>
    %19 = vector.multi_reduction <maximumf>, %18, %cst_9 [1] : vector<2x8xf32> to vector<2xf32>
    %20 = vector.shape_cast %19 : vector<2xf32> to vector<2x1xf32>
    %21 = vector.extract_strided_slice %2 {offsets = [0, 48], sizes = [2, 8], strides = [1, 1]} : vector<2x64xf32> to vector<2x8xf32>
    %cst_10 = arith.constant dense<0xFF800000> : vector<2xf32>
    %22 = vector.multi_reduction <maximumf>, %21, %cst_10 [1] : vector<2x8xf32> to vector<2xf32>
    %23 = vector.shape_cast %22 : vector<2xf32> to vector<2x1xf32>
    %24 = vector.extract_strided_slice %2 {offsets = [0, 56], sizes = [2, 8], strides = [1, 1]} : vector<2x64xf32> to vector<2x8xf32>
    %cst_11 = arith.constant dense<0xFF800000> : vector<2xf32>
    %25 = vector.multi_reduction <maximumf>, %24, %cst_11 [1] : vector<2x8xf32> to vector<2xf32>
    %26 = vector.shape_cast %25 : vector<2xf32> to vector<2x1xf32>
    %c0_12 = arith.constant 0 : index
    %c0_13 = arith.constant 0 : index
    %27 = vector.load %arg5[%c0_12, %c0_13] : memref<2x256xf32, #tpu.memory_space<vmem>>, vector<2x256xf32>
    %c0_14 = arith.constant 0 : index
    %c0_15 = arith.constant 0 : index
    %c0_16 = arith.constant 0 : index
    %28 = vector.load %arg6[%c0_14, %c0_15, %c0_16] : memref<8x2x32xf32, #tpu.memory_space<vmem>>, vector<1x2x32xf32>
    %29 = vector.shape_cast %28 : vector<1x2x32xf32> to vector<2x32xf32>
    %c1 = arith.constant 1 : index
    %c0_17 = arith.constant 0 : index
    %c0_18 = arith.constant 0 : index
    %30 = vector.load %arg6[%c1, %c0_17, %c0_18] : memref<8x2x32xf32, #tpu.memory_space<vmem>>, vector<1x2x32xf32>
    %31 = vector.shape_cast %30 : vector<1x2x32xf32> to vector<2x32xf32>
    %c2 = arith.constant 2 : index
    %c0_19 = arith.constant 0 : index
    %c0_20 = arith.constant 0 : index
    %32 = vector.load %arg6[%c2, %c0_19, %c0_20] : memref<8x2x32xf32, #tpu.memory_space<vmem>>, vector<1x2x32xf32>
    %33 = vector.shape_cast %32 : vector<1x2x32xf32> to vector<2x32xf32>
    %c3 = arith.constant 3 : index
    %c0_21 = arith.constant 0 : index
    %c0_22 = arith.constant 0 : index
    %34 = vector.load %arg6[%c3, %c0_21, %c0_22] : memref<8x2x32xf32, #tpu.memory_space<vmem>>, vector<1x2x32xf32>
    %35 = vector.shape_cast %34 : vector<1x2x32xf32> to vector<2x32xf32>
    %c4 = arith.constant 4 : index
    %c0_23 = arith.constant 0 : index
    %c0_24 = arith.constant 0 : index
    %36 = vector.load %arg6[%c4, %c0_23, %c0_24] : memref<8x2x32xf32, #tpu.memory_space<vmem>>, vector<1x2x32xf32>
    %37 = vector.shape_cast %36 : vector<1x2x32xf32> to vector<2x32xf32>
    %c5 = arith.constant 5 : index
    %c0_25 = arith.constant 0 : index
    %c0_26 = arith.constant 0 : index
    %38 = vector.load %arg6[%c5, %c0_25, %c0_26] : memref<8x2x32xf32, #tpu.memory_space<vmem>>, vector<1x2x32xf32>
    %39 = vector.shape_cast %38 : vector<1x2x32xf32> to vector<2x32xf32>
    %c6 = arith.constant 6 : index
    %c0_27 = arith.constant 0 : index
    %c0_28 = arith.constant 0 : index
    %40 = vector.load %arg6[%c6, %c0_27, %c0_28] : memref<8x2x32xf32, #tpu.memory_space<vmem>>, vector<1x2x32xf32>
    %41 = vector.shape_cast %40 : vector<1x2x32xf32> to vector<2x32xf32>
    %c7 = arith.constant 7 : index
    %c0_29 = arith.constant 0 : index
    %c0_30 = arith.constant 0 : index
    %42 = vector.load %arg6[%c7, %c0_29, %c0_30] : memref<8x2x32xf32, #tpu.memory_space<vmem>>, vector<1x2x32xf32>
    %43 = vector.shape_cast %42 : vector<1x2x32xf32> to vector<2x32xf32>
    %c0_31 = arith.constant 0 : index
    %c0_32 = arith.constant 0 : index
    %44 = vector.load %arg3[%c0_31, %c0_32] : memref<256x1024xf32, #tpu.memory_space<vmem>>, vector<256x1024xf32>
    %cst_33 = arith.constant dense<0.000000e+00> : vector<2x1024xf32>
    %45 = tpu.matmul %27, %44, %cst_33 {dimension_numbers = #tpu.dot_dimension_numbers<[1], [0], [0], [1], [0, 0, 1, 1], [], []>} : vector<2x256xf32>, vector<256x1024xf32>, vector<2x1024xf32> -> vector<2x1024xf32>
    %46 = vector.broadcast %1 : vector<1x1024xf32> to vector<2x1024xf32>
    %47 = arith.addf %45, %46 : vector<2x1024xf32>
    %48 = vector.broadcast %5 : vector<2x1xf32> to vector<2x128xf32>
    %49 = vector.broadcast %0 : vector<1x128xf32> to vector<2x128xf32>
    %50 = arith.mulf %48, %49 : vector<2x128xf32>
    %51 = vector.extract_strided_slice %47 {offsets = [0, 0], sizes = [2, 128], strides = [1, 1]} : vector<2x1024xf32> to vector<2x128xf32>
    %52 = arith.addf %50, %51 : vector<2x128xf32>
    %53 = arith.negf %52 : vector<2x128xf32>
    %54 = math.exp %53 : vector<2x128xf32>
    %cst_34 = arith.constant 1.000000e+00 : f32
    %55 = vector.broadcast %cst_34 : f32 to vector<2x128xf32>
    %56 = arith.addf %55, %54 : vector<2x128xf32>
    %57 = arith.divf %55, %56 : vector<2x128xf32>
    %58 = math.tanh %52 : vector<2x128xf32>
    %59 = vector.extract_strided_slice %57 {offsets = [0, 0], sizes = [2, 32], strides = [1, 1]} : vector<2x128xf32> to vector<2x32xf32>
    %60 = vector.extract_strided_slice %57 {offsets = [0, 32], sizes = [2, 32], strides = [1, 1]} : vector<2x128xf32> to vector<2x32xf32>
    %61 = vector.extract_strided_slice %58 {offsets = [0, 64], sizes = [2, 32], strides = [1, 1]} : vector<2x128xf32> to vector<2x32xf32>
    %62 = vector.extract_strided_slice %57 {offsets = [0, 96], sizes = [2, 32], strides = [1, 1]} : vector<2x128xf32> to vector<2x32xf32>
    %63 = arith.mulf %60, %29 : vector<2x32xf32>
    %64 = arith.mulf %59, %61 : vector<2x32xf32>
    %65 = arith.addf %63, %64 : vector<2x32xf32>
    %66 = math.tanh %65 : vector<2x32xf32>
    %67 = arith.mulf %62, %66 : vector<2x32xf32>
    %c0_35 = arith.constant 0 : index
    %c0_36 = arith.constant 0 : index
    %c0_37 = arith.constant 0 : index
    %68 = vector.load %arg2[%c0_35, %c0_36, %c0_37] : memref<7x32x128xf32, #tpu.memory_space<vmem>>, vector<1x32x128xf32>
    %69 = vector.shape_cast %68 : vector<1x32x128xf32> to vector<32x128xf32>
    %cst_38 = arith.constant dense<0.000000e+00> : vector<2x128xf32>
    %70 = tpu.matmul %67, %69, %cst_38 {dimension_numbers = #tpu.dot_dimension_numbers<[1], [0], [0], [1], [0, 0, 1, 1], [], []>} : vector<2x32xf32>, vector<32x128xf32>, vector<2x128xf32> -> vector<2x128xf32>
    %71 = vector.extract_strided_slice %47 {offsets = [0, 128], sizes = [2, 128], strides = [1, 1]} : vector<2x1024xf32> to vector<2x128xf32>
    %72 = arith.addf %70, %71 : vector<2x128xf32>
    %73 = arith.negf %72 : vector<2x128xf32>
    %74 = math.exp %73 : vector<2x128xf32>
    %cst_39 = arith.constant 1.000000e+00 : f32
    %75 = vector.broadcast %cst_39 : f32 to vector<2x128xf32>
    %76 = arith.addf %75, %74 : vector<2x128xf32>
    %77 = arith.divf %75, %76 : vector<2x128xf32>
    %78 = math.tanh %72 : vector<2x128xf32>
    %79 = vector.extract_strided_slice %77 {offsets = [0, 0], sizes = [2, 32], strides = [1, 1]} : vector<2x128xf32> to vector<2x32xf32>
    %80 = vector.extract_strided_slice %77 {offsets = [0, 32], sizes = [2, 32], strides = [1, 1]} : vector<2x128xf32> to vector<2x32xf32>
    %81 = vector.extract_strided_slice %78 {offsets = [0, 64], sizes = [2, 32], strides = [1, 1]} : vector<2x128xf32> to vector<2x32xf32>
    %82 = vector.extract_strided_slice %77 {offsets = [0, 96], sizes = [2, 32], strides = [1, 1]} : vector<2x128xf32> to vector<2x32xf32>
    %83 = arith.mulf %80, %31 : vector<2x32xf32>
    %84 = arith.mulf %79, %81 : vector<2x32xf32>
    %85 = arith.addf %83, %84 : vector<2x32xf32>
    %86 = math.tanh %85 : vector<2x32xf32>
    %87 = arith.mulf %82, %86 : vector<2x32xf32>
    %c1_40 = arith.constant 1 : index
    %c0_41 = arith.constant 0 : index
    %c0_42 = arith.constant 0 : index
    %88 = vector.load %arg2[%c1_40, %c0_41, %c0_42] : memref<7x32x128xf32, #tpu.memory_space<vmem>>, vector<1x32x128xf32>
    %89 = vector.shape_cast %88 : vector<1x32x128xf32> to vector<32x128xf32>
    %cst_43 = arith.constant dense<0.000000e+00> : vector<2x128xf32>
    %90 = tpu.matmul %87, %89, %cst_43 {dimension_numbers = #tpu.dot_dimension_numbers<[1], [0], [0], [1], [0, 0, 1, 1], [], []>} : vector<2x32xf32>, vector<32x128xf32>, vector<2x128xf32> -> vector<2x128xf32>
    %91 = vector.extract_strided_slice %47 {offsets = [0, 256], sizes = [2, 128], strides = [1, 1]} : vector<2x1024xf32> to vector<2x128xf32>
    %92 = arith.addf %90, %91 : vector<2x128xf32>
    %93 = arith.negf %92 : vector<2x128xf32>
    %94 = math.exp %93 : vector<2x128xf32>
    %cst_44 = arith.constant 1.000000e+00 : f32
    %95 = vector.broadcast %cst_44 : f32 to vector<2x128xf32>
    %96 = arith.addf %95, %94 : vector<2x128xf32>
    %97 = arith.divf %95, %96 : vector<2x128xf32>
    %98 = math.tanh %92 : vector<2x128xf32>
    %99 = vector.extract_strided_slice %97 {offsets = [0, 0], sizes = [2, 32], strides = [1, 1]} : vector<2x128xf32> to vector<2x32xf32>
    %100 = vector.extract_strided_slice %97 {offsets = [0, 32], sizes = [2, 32], strides = [1, 1]} : vector<2x128xf32> to vector<2x32xf32>
    %101 = vector.extract_strided_slice %98 {offsets = [0, 64], sizes = [2, 32], strides = [1, 1]} : vector<2x128xf32> to vector<2x32xf32>
    %102 = vector.extract_strided_slice %97 {offsets = [0, 96], sizes = [2, 32], strides = [1, 1]} : vector<2x128xf32> to vector<2x32xf32>
    %103 = arith.mulf %100, %33 : vector<2x32xf32>
    %104 = arith.mulf %99, %101 : vector<2x32xf32>
    %105 = arith.addf %103, %104 : vector<2x32xf32>
    %106 = math.tanh %105 : vector<2x32xf32>
    %107 = arith.mulf %102, %106 : vector<2x32xf32>
    %c2_45 = arith.constant 2 : index
    %c0_46 = arith.constant 0 : index
    %c0_47 = arith.constant 0 : index
    %108 = vector.load %arg2[%c2_45, %c0_46, %c0_47] : memref<7x32x128xf32, #tpu.memory_space<vmem>>, vector<1x32x128xf32>
    %109 = vector.shape_cast %108 : vector<1x32x128xf32> to vector<32x128xf32>
    %cst_48 = arith.constant dense<0.000000e+00> : vector<2x128xf32>
    %110 = tpu.matmul %107, %109, %cst_48 {dimension_numbers = #tpu.dot_dimension_numbers<[1], [0], [0], [1], [0, 0, 1, 1], [], []>} : vector<2x32xf32>, vector<32x128xf32>, vector<2x128xf32> -> vector<2x128xf32>
    %111 = vector.extract_strided_slice %47 {offsets = [0, 384], sizes = [2, 128], strides = [1, 1]} : vector<2x1024xf32> to vector<2x128xf32>
    %112 = arith.addf %110, %111 : vector<2x128xf32>
    %113 = arith.negf %112 : vector<2x128xf32>
    %114 = math.exp %113 : vector<2x128xf32>
    %cst_49 = arith.constant 1.000000e+00 : f32
    %115 = vector.broadcast %cst_49 : f32 to vector<2x128xf32>
    %116 = arith.addf %115, %114 : vector<2x128xf32>
    %117 = arith.divf %115, %116 : vector<2x128xf32>
    %118 = math.tanh %112 : vector<2x128xf32>
    %119 = vector.extract_strided_slice %117 {offsets = [0, 0], sizes = [2, 32], strides = [1, 1]} : vector<2x128xf32> to vector<2x32xf32>
    %120 = vector.extract_strided_slice %117 {offsets = [0, 32], sizes = [2, 32], strides = [1, 1]} : vector<2x128xf32> to vector<2x32xf32>
    %121 = vector.extract_strided_slice %118 {offsets = [0, 64], sizes = [2, 32], strides = [1, 1]} : vector<2x128xf32> to vector<2x32xf32>
    %122 = vector.extract_strided_slice %117 {offsets = [0, 96], sizes = [2, 32], strides = [1, 1]} : vector<2x128xf32> to vector<2x32xf32>
    %123 = arith.mulf %120, %35 : vector<2x32xf32>
    %124 = arith.mulf %119, %121 : vector<2x32xf32>
    %125 = arith.addf %123, %124 : vector<2x32xf32>
    %126 = math.tanh %125 : vector<2x32xf32>
    %127 = arith.mulf %122, %126 : vector<2x32xf32>
    %c3_50 = arith.constant 3 : index
    %c0_51 = arith.constant 0 : index
    %c0_52 = arith.constant 0 : index
    %128 = vector.load %arg2[%c3_50, %c0_51, %c0_52] : memref<7x32x128xf32, #tpu.memory_space<vmem>>, vector<1x32x128xf32>
    %129 = vector.shape_cast %128 : vector<1x32x128xf32> to vector<32x128xf32>
    %cst_53 = arith.constant dense<0.000000e+00> : vector<2x128xf32>
    %130 = tpu.matmul %127, %129, %cst_53 {dimension_numbers = #tpu.dot_dimension_numbers<[1], [0], [0], [1], [0, 0, 1, 1], [], []>} : vector<2x32xf32>, vector<32x128xf32>, vector<2x128xf32> -> vector<2x128xf32>
    %131 = vector.extract_strided_slice %47 {offsets = [0, 512], sizes = [2, 128], strides = [1, 1]} : vector<2x1024xf32> to vector<2x128xf32>
    %132 = arith.addf %130, %131 : vector<2x128xf32>
    %133 = arith.negf %132 : vector<2x128xf32>
    %134 = math.exp %133 : vector<2x128xf32>
    %cst_54 = arith.constant 1.000000e+00 : f32
    %135 = vector.broadcast %cst_54 : f32 to vector<2x128xf32>
    %136 = arith.addf %135, %134 : vector<2x128xf32>
    %137 = arith.divf %135, %136 : vector<2x128xf32>
    %138 = math.tanh %132 : vector<2x128xf32>
    %139 = vector.extract_strided_slice %137 {offsets = [0, 0], sizes = [2, 32], strides = [1, 1]} : vector<2x128xf32> to vector<2x32xf32>
    %140 = vector.extract_strided_slice %137 {offsets = [0, 32], sizes = [2, 32], strides = [1, 1]} : vector<2x128xf32> to vector<2x32xf32>
    %141 = vector.extract_strided_slice %138 {offsets = [0, 64], sizes = [2, 32], strides = [1, 1]} : vector<2x128xf32> to vector<2x32xf32>
    %142 = vector.extract_strided_slice %137 {offsets = [0, 96], sizes = [2, 32], strides = [1, 1]} : vector<2x128xf32> to vector<2x32xf32>
    %143 = arith.mulf %140, %37 : vector<2x32xf32>
    %144 = arith.mulf %139, %141 : vector<2x32xf32>
    %145 = arith.addf %143, %144 : vector<2x32xf32>
    %146 = math.tanh %145 : vector<2x32xf32>
    %147 = arith.mulf %142, %146 : vector<2x32xf32>
    %c4_55 = arith.constant 4 : index
    %c0_56 = arith.constant 0 : index
    %c0_57 = arith.constant 0 : index
    %148 = vector.load %arg2[%c4_55, %c0_56, %c0_57] : memref<7x32x128xf32, #tpu.memory_space<vmem>>, vector<1x32x128xf32>
    %149 = vector.shape_cast %148 : vector<1x32x128xf32> to vector<32x128xf32>
    %cst_58 = arith.constant dense<0.000000e+00> : vector<2x128xf32>
    %150 = tpu.matmul %147, %149, %cst_58 {dimension_numbers = #tpu.dot_dimension_numbers<[1], [0], [0], [1], [0, 0, 1, 1], [], []>} : vector<2x32xf32>, vector<32x128xf32>, vector<2x128xf32> -> vector<2x128xf32>
    %151 = vector.extract_strided_slice %47 {offsets = [0, 640], sizes = [2, 128], strides = [1, 1]} : vector<2x1024xf32> to vector<2x128xf32>
    %152 = arith.addf %150, %151 : vector<2x128xf32>
    %153 = arith.negf %152 : vector<2x128xf32>
    %154 = math.exp %153 : vector<2x128xf32>
    %cst_59 = arith.constant 1.000000e+00 : f32
    %155 = vector.broadcast %cst_59 : f32 to vector<2x128xf32>
    %156 = arith.addf %155, %154 : vector<2x128xf32>
    %157 = arith.divf %155, %156 : vector<2x128xf32>
    %158 = math.tanh %152 : vector<2x128xf32>
    %159 = vector.extract_strided_slice %157 {offsets = [0, 0], sizes = [2, 32], strides = [1, 1]} : vector<2x128xf32> to vector<2x32xf32>
    %160 = vector.extract_strided_slice %157 {offsets = [0, 32], sizes = [2, 32], strides = [1, 1]} : vector<2x128xf32> to vector<2x32xf32>
    %161 = vector.extract_strided_slice %158 {offsets = [0, 64], sizes = [2, 32], strides = [1, 1]} : vector<2x128xf32> to vector<2x32xf32>
    %162 = vector.extract_strided_slice %157 {offsets = [0, 96], sizes = [2, 32], strides = [1, 1]} : vector<2x128xf32> to vector<2x32xf32>
    %163 = arith.mulf %160, %39 : vector<2x32xf32>
    %164 = arith.mulf %159, %161 : vector<2x32xf32>
    %165 = arith.addf %163, %164 : vector<2x32xf32>
    %166 = math.tanh %165 : vector<2x32xf32>
    %167 = arith.mulf %162, %166 : vector<2x32xf32>
    %c5_60 = arith.constant 5 : index
    %c0_61 = arith.constant 0 : index
    %c0_62 = arith.constant 0 : index
    %168 = vector.load %arg2[%c5_60, %c0_61, %c0_62] : memref<7x32x128xf32, #tpu.memory_space<vmem>>, vector<1x32x128xf32>
    %169 = vector.shape_cast %168 : vector<1x32x128xf32> to vector<32x128xf32>
    %cst_63 = arith.constant dense<0.000000e+00> : vector<2x128xf32>
    %170 = tpu.matmul %167, %169, %cst_63 {dimension_numbers = #tpu.dot_dimension_numbers<[1], [0], [0], [1], [0, 0, 1, 1], [], []>} : vector<2x32xf32>, vector<32x128xf32>, vector<2x128xf32> -> vector<2x128xf32>
    %171 = vector.extract_strided_slice %47 {offsets = [0, 768], sizes = [2, 128], strides = [1, 1]} : vector<2x1024xf32> to vector<2x128xf32>
    %172 = arith.addf %170, %171 : vector<2x128xf32>
    %173 = arith.negf %172 : vector<2x128xf32>
    %174 = math.exp %173 : vector<2x128xf32>
    %cst_64 = arith.constant 1.000000e+00 : f32
    %175 = vector.broadcast %cst_64 : f32 to vector<2x128xf32>
    %176 = arith.addf %175, %174 : vector<2x128xf32>
    %177 = arith.divf %175, %176 : vector<2x128xf32>
    %178 = math.tanh %172 : vector<2x128xf32>
    %179 = vector.extract_strided_slice %177 {offsets = [0, 0], sizes = [2, 32], strides = [1, 1]} : vector<2x128xf32> to vector<2x32xf32>
    %180 = vector.extract_strided_slice %177 {offsets = [0, 32], sizes = [2, 32], strides = [1, 1]} : vector<2x128xf32> to vector<2x32xf32>
    %181 = vector.extract_strided_slice %178 {offsets = [0, 64], sizes = [2, 32], strides = [1, 1]} : vector<2x128xf32> to vector<2x32xf32>
    %182 = vector.extract_strided_slice %177 {offsets = [0, 96], sizes = [2, 32], strides = [1, 1]} : vector<2x128xf32> to vector<2x32xf32>
    %183 = arith.mulf %180, %41 : vector<2x32xf32>
    %184 = arith.mulf %179, %181 : vector<2x32xf32>
    %185 = arith.addf %183, %184 : vector<2x32xf32>
    %186 = math.tanh %185 : vector<2x32xf32>
    %187 = arith.mulf %182, %186 : vector<2x32xf32>
    %c6_65 = arith.constant 6 : index
    %c0_66 = arith.constant 0 : index
    %c0_67 = arith.constant 0 : index
    %188 = vector.load %arg2[%c6_65, %c0_66, %c0_67] : memref<7x32x128xf32, #tpu.memory_space<vmem>>, vector<1x32x128xf32>
    %189 = vector.shape_cast %188 : vector<1x32x128xf32> to vector<32x128xf32>
    %cst_68 = arith.constant dense<0.000000e+00> : vector<2x128xf32>
    %190 = tpu.matmul %187, %189, %cst_68 {dimension_numbers = #tpu.dot_dimension_numbers<[1], [0], [0], [1], [0, 0, 1, 1], [], []>} : vector<2x32xf32>, vector<32x128xf32>, vector<2x128xf32> -> vector<2x128xf32>
    %191 = vector.extract_strided_slice %47 {offsets = [0, 896], sizes = [2, 128], strides = [1, 1]} : vector<2x1024xf32> to vector<2x128xf32>
    %192 = arith.addf %190, %191 : vector<2x128xf32>
    %193 = arith.negf %192 : vector<2x128xf32>
    %194 = math.exp %193 : vector<2x128xf32>
    %cst_69 = arith.constant 1.000000e+00 : f32
    %195 = vector.broadcast %cst_69 : f32 to vector<2x128xf32>
    %196 = arith.addf %195, %194 : vector<2x128xf32>
    %197 = arith.divf %195, %196 : vector<2x128xf32>
    %198 = math.tanh %192 : vector<2x128xf32>
    %199 = vector.extract_strided_slice %197 {offsets = [0, 0], sizes = [2, 32], strides = [1, 1]} : vector<2x128xf32> to vector<2x32xf32>
    %200 = vector.extract_strided_slice %197 {offsets = [0, 32], sizes = [2, 32], strides = [1, 1]} : vector<2x128xf32> to vector<2x32xf32>
    %201 = vector.extract_strided_slice %198 {offsets = [0, 64], sizes = [2, 32], strides = [1, 1]} : vector<2x128xf32> to vector<2x32xf32>
    %202 = vector.extract_strided_slice %197 {offsets = [0, 96], sizes = [2, 32], strides = [1, 1]} : vector<2x128xf32> to vector<2x32xf32>
    %203 = arith.mulf %200, %43 : vector<2x32xf32>
    %204 = arith.mulf %199, %201 : vector<2x32xf32>
    %205 = arith.addf %203, %204 : vector<2x32xf32>
    %206 = math.tanh %205 : vector<2x32xf32>
    %207 = arith.mulf %202, %206 : vector<2x32xf32>
    %208 = tpu.concatenate %67, %87, %107, %127, %147, %167, %187, %207 in 1 : vector<2x32xf32>, vector<2x32xf32>, vector<2x32xf32>, vector<2x32xf32>, vector<2x32xf32>, vector<2x32xf32>, vector<2x32xf32>, vector<2x32xf32> -> vector<2x256xf32>
    %c0_70 = arith.constant 0 : index
    %c0_71 = arith.constant 0 : index
    %209 = vector.load %arg3[%c0_70, %c0_71] : memref<256x1024xf32, #tpu.memory_space<vmem>>, vector<256x1024xf32>
    %cst_72 = arith.constant dense<0.000000e+00> : vector<2x1024xf32>
    %210 = tpu.matmul %208, %209, %cst_72 {dimension_numbers = #tpu.dot_dimension_numbers<[1], [0], [0], [1], [0, 0, 1, 1], [], []>} : vector<2x256xf32>, vector<256x1024xf32>, vector<2x1024xf32> -> vector<2x1024xf32>
    %211 = vector.broadcast %1 : vector<1x1024xf32> to vector<2x1024xf32>
    %212 = arith.addf %210, %211 : vector<2x1024xf32>
    %213 = vector.broadcast %8 : vector<2x1xf32> to vector<2x128xf32>
    %214 = vector.broadcast %0 : vector<1x128xf32> to vector<2x128xf32>
    %215 = arith.mulf %213, %214 : vector<2x128xf32>
    %216 = vector.extract_strided_slice %212 {offsets = [0, 0], sizes = [2, 128], strides = [1, 1]} : vector<2x1024xf32> to vector<2x128xf32>
    %217 = arith.addf %215, %216 : vector<2x128xf32>
    %218 = arith.negf %217 : vector<2x128xf32>
    %219 = math.exp %218 : vector<2x128xf32>
    %cst_73 = arith.constant 1.000000e+00 : f32
    %220 = vector.broadcast %cst_73 : f32 to vector<2x128xf32>
    %221 = arith.addf %220, %219 : vector<2x128xf32>
    %222 = arith.divf %220, %221 : vector<2x128xf32>
    %223 = math.tanh %217 : vector<2x128xf32>
    %224 = vector.extract_strided_slice %222 {offsets = [0, 0], sizes = [2, 32], strides = [1, 1]} : vector<2x128xf32> to vector<2x32xf32>
    %225 = vector.extract_strided_slice %222 {offsets = [0, 32], sizes = [2, 32], strides = [1, 1]} : vector<2x128xf32> to vector<2x32xf32>
    %226 = vector.extract_strided_slice %223 {offsets = [0, 64], sizes = [2, 32], strides = [1, 1]} : vector<2x128xf32> to vector<2x32xf32>
    %227 = vector.extract_strided_slice %222 {offsets = [0, 96], sizes = [2, 32], strides = [1, 1]} : vector<2x128xf32> to vector<2x32xf32>
    %228 = arith.mulf %225, %65 : vector<2x32xf32>
    %229 = arith.mulf %224, %226 : vector<2x32xf32>
    %230 = arith.addf %228, %229 : vector<2x32xf32>
    %231 = math.tanh %230 : vector<2x32xf32>
    %232 = arith.mulf %227, %231 : vector<2x32xf32>
    %c0_74 = arith.constant 0 : index
    %c0_75 = arith.constant 0 : index
    %c0_76 = arith.constant 0 : index
    %233 = vector.load %arg2[%c0_74, %c0_75, %c0_76] : memref<7x32x128xf32, #tpu.memory_space<vmem>>, vector<1x32x128xf32>
    %234 = vector.shape_cast %233 : vector<1x32x128xf32> to vector<32x128xf32>
    %cst_77 = arith.constant dense<0.000000e+00> : vector<2x128xf32>
    %235 = tpu.matmul %232, %234, %cst_77 {dimension_numbers = #tpu.dot_dimension_numbers<[1], [0], [0], [1], [0, 0, 1, 1], [], []>} : vector<2x32xf32>, vector<32x128xf32>, vector<2x128xf32> -> vector<2x128xf32>
    %236 = vector.extract_strided_slice %212 {offsets = [0, 128], sizes = [2, 128], strides = [1, 1]} : vector<2x1024xf32> to vector<2x128xf32>
    %237 = arith.addf %235, %236 : vector<2x128xf32>
    %238 = arith.negf %237 : vector<2x128xf32>
    %239 = math.exp %238 : vector<2x128xf32>
    %cst_78 = arith.constant 1.000000e+00 : f32
    %240 = vector.broadcast %cst_78 : f32 to vector<2x128xf32>
    %241 = arith.addf %240, %239 : vector<2x128xf32>
    %242 = arith.divf %240, %241 : vector<2x128xf32>
    %243 = math.tanh %237 : vector<2x128xf32>
    %244 = vector.extract_strided_slice %242 {offsets = [0, 0], sizes = [2, 32], strides = [1, 1]} : vector<2x128xf32> to vector<2x32xf32>
    %245 = vector.extract_strided_slice %242 {offsets = [0, 32], sizes = [2, 32], strides = [1, 1]} : vector<2x128xf32> to vector<2x32xf32>
    %246 = vector.extract_strided_slice %243 {offsets = [0, 64], sizes = [2, 32], strides = [1, 1]} : vector<2x128xf32> to vector<2x32xf32>
    %247 = vector.extract_strided_slice %242 {offsets = [0, 96], sizes = [2, 32], strides = [1, 1]} : vector<2x128xf32> to vector<2x32xf32>
    %248 = arith.mulf %245, %85 : vector<2x32xf32>
    %249 = arith.mulf %244, %246 : vector<2x32xf32>
    %250 = arith.addf %248, %249 : vector<2x32xf32>
    %251 = math.tanh %250 : vector<2x32xf32>
    %252 = arith.mulf %247, %251 : vector<2x32xf32>
    %c1_79 = arith.constant 1 : index
    %c0_80 = arith.constant 0 : index
    %c0_81 = arith.constant 0 : index
    %253 = vector.load %arg2[%c1_79, %c0_80, %c0_81] : memref<7x32x128xf32, #tpu.memory_space<vmem>>, vector<1x32x128xf32>
    %254 = vector.shape_cast %253 : vector<1x32x128xf32> to vector<32x128xf32>
    %cst_82 = arith.constant dense<0.000000e+00> : vector<2x128xf32>
    %255 = tpu.matmul %252, %254, %cst_82 {dimension_numbers = #tpu.dot_dimension_numbers<[1], [0], [0], [1], [0, 0, 1, 1], [], []>} : vector<2x32xf32>, vector<32x128xf32>, vector<2x128xf32> -> vector<2x128xf32>
    %256 = vector.extract_strided_slice %212 {offsets = [0, 256], sizes = [2, 128], strides = [1, 1]} : vector<2x1024xf32> to vector<2x128xf32>
    %257 = arith.addf %255, %256 : vector<2x128xf32>
    %258 = arith.negf %257 : vector<2x128xf32>
    %259 = math.exp %258 : vector<2x128xf32>
    %cst_83 = arith.constant 1.000000e+00 : f32
    %260 = vector.broadcast %cst_83 : f32 to vector<2x128xf32>
    %261 = arith.addf %260, %259 : vector<2x128xf32>
    %262 = arith.divf %260, %261 : vector<2x128xf32>
    %263 = math.tanh %257 : vector<2x128xf32>
    %264 = vector.extract_strided_slice %262 {offsets = [0, 0], sizes = [2, 32], strides = [1, 1]} : vector<2x128xf32> to vector<2x32xf32>
    %265 = vector.extract_strided_slice %262 {offsets = [0, 32], sizes = [2, 32], strides = [1, 1]} : vector<2x128xf32> to vector<2x32xf32>
    %266 = vector.extract_strided_slice %263 {offsets = [0, 64], sizes = [2, 32], strides = [1, 1]} : vector<2x128xf32> to vector<2x32xf32>
    %267 = vector.extract_strided_slice %262 {offsets = [0, 96], sizes = [2, 32], strides = [1, 1]} : vector<2x128xf32> to vector<2x32xf32>
    %268 = arith.mulf %265, %105 : vector<2x32xf32>
    %269 = arith.mulf %264, %266 : vector<2x32xf32>
    %270 = arith.addf %268, %269 : vector<2x32xf32>
    %271 = math.tanh %270 : vector<2x32xf32>
    %272 = arith.mulf %267, %271 : vector<2x32xf32>
    %c2_84 = arith.constant 2 : index
    %c0_85 = arith.constant 0 : index
    %c0_86 = arith.constant 0 : index
    %273 = vector.load %arg2[%c2_84, %c0_85, %c0_86] : memref<7x32x128xf32, #tpu.memory_space<vmem>>, vector<1x32x128xf32>
    %274 = vector.shape_cast %273 : vector<1x32x128xf32> to vector<32x128xf32>
    %cst_87 = arith.constant dense<0.000000e+00> : vector<2x128xf32>
    %275 = tpu.matmul %272, %274, %cst_87 {dimension_numbers = #tpu.dot_dimension_numbers<[1], [0], [0], [1], [0, 0, 1, 1], [], []>} : vector<2x32xf32>, vector<32x128xf32>, vector<2x128xf32> -> vector<2x128xf32>
    %276 = vector.extract_strided_slice %212 {offsets = [0, 384], sizes = [2, 128], strides = [1, 1]} : vector<2x1024xf32> to vector<2x128xf32>
    %277 = arith.addf %275, %276 : vector<2x128xf32>
    %278 = arith.negf %277 : vector<2x128xf32>
    %279 = math.exp %278 : vector<2x128xf32>
    %cst_88 = arith.constant 1.000000e+00 : f32
    %280 = vector.broadcast %cst_88 : f32 to vector<2x128xf32>
    %281 = arith.addf %280, %279 : vector<2x128xf32>
    %282 = arith.divf %280, %281 : vector<2x128xf32>
    %283 = math.tanh %277 : vector<2x128xf32>
    %284 = vector.extract_strided_slice %282 {offsets = [0, 0], sizes = [2, 32], strides = [1, 1]} : vector<2x128xf32> to vector<2x32xf32>
    %285 = vector.extract_strided_slice %282 {offsets = [0, 32], sizes = [2, 32], strides = [1, 1]} : vector<2x128xf32> to vector<2x32xf32>
    %286 = vector.extract_strided_slice %283 {offsets = [0, 64], sizes = [2, 32], strides = [1, 1]} : vector<2x128xf32> to vector<2x32xf32>
    %287 = vector.extract_strided_slice %282 {offsets = [0, 96], sizes = [2, 32], strides = [1, 1]} : vector<2x128xf32> to vector<2x32xf32>
    %288 = arith.mulf %285, %125 : vector<2x32xf32>
    %289 = arith.mulf %284, %286 : vector<2x32xf32>
    %290 = arith.addf %288, %289 : vector<2x32xf32>
    %291 = math.tanh %290 : vector<2x32xf32>
    %292 = arith.mulf %287, %291 : vector<2x32xf32>
    %c3_89 = arith.constant 3 : index
    %c0_90 = arith.constant 0 : index
    %c0_91 = arith.constant 0 : index
    %293 = vector.load %arg2[%c3_89, %c0_90, %c0_91] : memref<7x32x128xf32, #tpu.memory_space<vmem>>, vector<1x32x128xf32>
    %294 = vector.shape_cast %293 : vector<1x32x128xf32> to vector<32x128xf32>
    %cst_92 = arith.constant dense<0.000000e+00> : vector<2x128xf32>
    %295 = tpu.matmul %292, %294, %cst_92 {dimension_numbers = #tpu.dot_dimension_numbers<[1], [0], [0], [1], [0, 0, 1, 1], [], []>} : vector<2x32xf32>, vector<32x128xf32>, vector<2x128xf32> -> vector<2x128xf32>
    %296 = vector.extract_strided_slice %212 {offsets = [0, 512], sizes = [2, 128], strides = [1, 1]} : vector<2x1024xf32> to vector<2x128xf32>
    %297 = arith.addf %295, %296 : vector<2x128xf32>
    %298 = arith.negf %297 : vector<2x128xf32>
    %299 = math.exp %298 : vector<2x128xf32>
    %cst_93 = arith.constant 1.000000e+00 : f32
    %300 = vector.broadcast %cst_93 : f32 to vector<2x128xf32>
    %301 = arith.addf %300, %299 : vector<2x128xf32>
    %302 = arith.divf %300, %301 : vector<2x128xf32>
    %303 = math.tanh %297 : vector<2x128xf32>
    %304 = vector.extract_strided_slice %302 {offsets = [0, 0], sizes = [2, 32], strides = [1, 1]} : vector<2x128xf32> to vector<2x32xf32>
    %305 = vector.extract_strided_slice %302 {offsets = [0, 32], sizes = [2, 32], strides = [1, 1]} : vector<2x128xf32> to vector<2x32xf32>
    %306 = vector.extract_strided_slice %303 {offsets = [0, 64], sizes = [2, 32], strides = [1, 1]} : vector<2x128xf32> to vector<2x32xf32>
    %307 = vector.extract_strided_slice %302 {offsets = [0, 96], sizes = [2, 32], strides = [1, 1]} : vector<2x128xf32> to vector<2x32xf32>
    %308 = arith.mulf %305, %145 : vector<2x32xf32>
    %309 = arith.mulf %304, %306 : vector<2x32xf32>
    %310 = arith.addf %308, %309 : vector<2x32xf32>
    %311 = math.tanh %310 : vector<2x32xf32>
    %312 = arith.mulf %307, %311 : vector<2x32xf32>
    %c4_94 = arith.constant 4 : index
    %c0_95 = arith.constant 0 : index
    %c0_96 = arith.constant 0 : index
    %313 = vector.load %arg2[%c4_94, %c0_95, %c0_96] : memref<7x32x128xf32, #tpu.memory_space<vmem>>, vector<1x32x128xf32>
    %314 = vector.shape_cast %313 : vector<1x32x128xf32> to vector<32x128xf32>
    %cst_97 = arith.constant dense<0.000000e+00> : vector<2x128xf32>
    %315 = tpu.matmul %312, %314, %cst_97 {dimension_numbers = #tpu.dot_dimension_numbers<[1], [0], [0], [1], [0, 0, 1, 1], [], []>} : vector<2x32xf32>, vector<32x128xf32>, vector<2x128xf32> -> vector<2x128xf32>
    %316 = vector.extract_strided_slice %212 {offsets = [0, 640], sizes = [2, 128], strides = [1, 1]} : vector<2x1024xf32> to vector<2x128xf32>
    %317 = arith.addf %315, %316 : vector<2x128xf32>
    %318 = arith.negf %317 : vector<2x128xf32>
    %319 = math.exp %318 : vector<2x128xf32>
    %cst_98 = arith.constant 1.000000e+00 : f32
    %320 = vector.broadcast %cst_98 : f32 to vector<2x128xf32>
    %321 = arith.addf %320, %319 : vector<2x128xf32>
    %322 = arith.divf %320, %321 : vector<2x128xf32>
    %323 = math.tanh %317 : vector<2x128xf32>
    %324 = vector.extract_strided_slice %322 {offsets = [0, 0], sizes = [2, 32], strides = [1, 1]} : vector<2x128xf32> to vector<2x32xf32>
    %325 = vector.extract_strided_slice %322 {offsets = [0, 32], sizes = [2, 32], strides = [1, 1]} : vector<2x128xf32> to vector<2x32xf32>
    %326 = vector.extract_strided_slice %323 {offsets = [0, 64], sizes = [2, 32], strides = [1, 1]} : vector<2x128xf32> to vector<2x32xf32>
    %327 = vector.extract_strided_slice %322 {offsets = [0, 96], sizes = [2, 32], strides = [1, 1]} : vector<2x128xf32> to vector<2x32xf32>
    %328 = arith.mulf %325, %165 : vector<2x32xf32>
    %329 = arith.mulf %324, %326 : vector<2x32xf32>
    %330 = arith.addf %328, %329 : vector<2x32xf32>
    %331 = math.tanh %330 : vector<2x32xf32>
    %332 = arith.mulf %327, %331 : vector<2x32xf32>
    %c5_99 = arith.constant 5 : index
    %c0_100 = arith.constant 0 : index
    %c0_101 = arith.constant 0 : index
    %333 = vector.load %arg2[%c5_99, %c0_100, %c0_101] : memref<7x32x128xf32, #tpu.memory_space<vmem>>, vector<1x32x128xf32>
    %334 = vector.shape_cast %333 : vector<1x32x128xf32> to vector<32x128xf32>
    %cst_102 = arith.constant dense<0.000000e+00> : vector<2x128xf32>
    %335 = tpu.matmul %332, %334, %cst_102 {dimension_numbers = #tpu.dot_dimension_numbers<[1], [0], [0], [1], [0, 0, 1, 1], [], []>} : vector<2x32xf32>, vector<32x128xf32>, vector<2x128xf32> -> vector<2x128xf32>
    %336 = vector.extract_strided_slice %212 {offsets = [0, 768], sizes = [2, 128], strides = [1, 1]} : vector<2x1024xf32> to vector<2x128xf32>
    %337 = arith.addf %335, %336 : vector<2x128xf32>
    %338 = arith.negf %337 : vector<2x128xf32>
    %339 = math.exp %338 : vector<2x128xf32>
    %cst_103 = arith.constant 1.000000e+00 : f32
    %340 = vector.broadcast %cst_103 : f32 to vector<2x128xf32>
    %341 = arith.addf %340, %339 : vector<2x128xf32>
    %342 = arith.divf %340, %341 : vector<2x128xf32>
    %343 = math.tanh %337 : vector<2x128xf32>
    %344 = vector.extract_strided_slice %342 {offsets = [0, 0], sizes = [2, 32], strides = [1, 1]} : vector<2x128xf32> to vector<2x32xf32>
    %345 = vector.extract_strided_slice %342 {offsets = [0, 32], sizes = [2, 32], strides = [1, 1]} : vector<2x128xf32> to vector<2x32xf32>
    %346 = vector.extract_strided_slice %343 {offsets = [0, 64], sizes = [2, 32], strides = [1, 1]} : vector<2x128xf32> to vector<2x32xf32>
    %347 = vector.extract_strided_slice %342 {offsets = [0, 96], sizes = [2, 32], strides = [1, 1]} : vector<2x128xf32> to vector<2x32xf32>
    %348 = arith.mulf %345, %185 : vector<2x32xf32>
    %349 = arith.mulf %344, %346 : vector<2x32xf32>
    %350 = arith.addf %348, %349 : vector<2x32xf32>
    %351 = math.tanh %350 : vector<2x32xf32>
    %352 = arith.mulf %347, %351 : vector<2x32xf32>
    %c6_104 = arith.constant 6 : index
    %c0_105 = arith.constant 0 : index
    %c0_106 = arith.constant 0 : index
    %353 = vector.load %arg2[%c6_104, %c0_105, %c0_106] : memref<7x32x128xf32, #tpu.memory_space<vmem>>, vector<1x32x128xf32>
    %354 = vector.shape_cast %353 : vector<1x32x128xf32> to vector<32x128xf32>
    %cst_107 = arith.constant dense<0.000000e+00> : vector<2x128xf32>
    %355 = tpu.matmul %352, %354, %cst_107 {dimension_numbers = #tpu.dot_dimension_numbers<[1], [0], [0], [1], [0, 0, 1, 1], [], []>} : vector<2x32xf32>, vector<32x128xf32>, vector<2x128xf32> -> vector<2x128xf32>
    %356 = vector.extract_strided_slice %212 {offsets = [0, 896], sizes = [2, 128], strides = [1, 1]} : vector<2x1024xf32> to vector<2x128xf32>
    %357 = arith.addf %355, %356 : vector<2x128xf32>
    %358 = arith.negf %357 : vector<2x128xf32>
    %359 = math.exp %358 : vector<2x128xf32>
    %cst_108 = arith.constant 1.000000e+00 : f32
    %360 = vector.broadcast %cst_108 : f32 to vector<2x128xf32>
    %361 = arith.addf %360, %359 : vector<2x128xf32>
    %362 = arith.divf %360, %361 : vector<2x128xf32>
    %363 = math.tanh %357 : vector<2x128xf32>
    %364 = vector.extract_strided_slice %362 {offsets = [0, 0], sizes = [2, 32], strides = [1, 1]} : vector<2x128xf32> to vector<2x32xf32>
    %365 = vector.extract_strided_slice %362 {offsets = [0, 32], sizes = [2, 32], strides = [1, 1]} : vector<2x128xf32> to vector<2x32xf32>
    %366 = vector.extract_strided_slice %363 {offsets = [0, 64], sizes = [2, 32], strides = [1, 1]} : vector<2x128xf32> to vector<2x32xf32>
    %367 = vector.extract_strided_slice %362 {offsets = [0, 96], sizes = [2, 32], strides = [1, 1]} : vector<2x128xf32> to vector<2x32xf32>
    %368 = arith.mulf %365, %205 : vector<2x32xf32>
    %369 = arith.mulf %364, %366 : vector<2x32xf32>
    %370 = arith.addf %368, %369 : vector<2x32xf32>
    %371 = math.tanh %370 : vector<2x32xf32>
    %372 = arith.mulf %367, %371 : vector<2x32xf32>
    %373 = tpu.concatenate %232, %252, %272, %292, %312, %332, %352, %372 in 1 : vector<2x32xf32>, vector<2x32xf32>, vector<2x32xf32>, vector<2x32xf32>, vector<2x32xf32>, vector<2x32xf32>, vector<2x32xf32>, vector<2x32xf32> -> vector<2x256xf32>
    %c0_109 = arith.constant 0 : index
    %c0_110 = arith.constant 0 : index
    %374 = vector.load %arg3[%c0_109, %c0_110] : memref<256x1024xf32, #tpu.memory_space<vmem>>, vector<256x1024xf32>
    %cst_111 = arith.constant dense<0.000000e+00> : vector<2x1024xf32>
    %375 = tpu.matmul %373, %374, %cst_111 {dimension_numbers = #tpu.dot_dimension_numbers<[1], [0], [0], [1], [0, 0, 1, 1], [], []>} : vector<2x256xf32>, vector<256x1024xf32>, vector<2x1024xf32> -> vector<2x1024xf32>
    %376 = vector.broadcast %1 : vector<1x1024xf32> to vector<2x1024xf32>
    %377 = arith.addf %375, %376 : vector<2x1024xf32>
    %378 = vector.broadcast %11 : vector<2x1xf32> to vector<2x128xf32>
    %379 = vector.broadcast %0 : vector<1x128xf32> to vector<2x128xf32>
    %380 = arith.mulf %378, %379 : vector<2x128xf32>
    %381 = vector.extract_strided_slice %377 {offsets = [0, 0], sizes = [2, 128], strides = [1, 1]} : vector<2x1024xf32> to vector<2x128xf32>
    %382 = arith.addf %380, %381 : vector<2x128xf32>
    %383 = arith.negf %382 : vector<2x128xf32>
    %384 = math.exp %383 : vector<2x128xf32>
    %cst_112 = arith.constant 1.000000e+00 : f32
    %385 = vector.broadcast %cst_112 : f32 to vector<2x128xf32>
    %386 = arith.addf %385, %384 : vector<2x128xf32>
    %387 = arith.divf %385, %386 : vector<2x128xf32>
    %388 = math.tanh %382 : vector<2x128xf32>
    %389 = vector.extract_strided_slice %387 {offsets = [0, 0], sizes = [2, 32], strides = [1, 1]} : vector<2x128xf32> to vector<2x32xf32>
    %390 = vector.extract_strided_slice %387 {offsets = [0, 32], sizes = [2, 32], strides = [1, 1]} : vector<2x128xf32> to vector<2x32xf32>
    %391 = vector.extract_strided_slice %388 {offsets = [0, 64], sizes = [2, 32], strides = [1, 1]} : vector<2x128xf32> to vector<2x32xf32>
    %392 = vector.extract_strided_slice %387 {offsets = [0, 96], sizes = [2, 32], strides = [1, 1]} : vector<2x128xf32> to vector<2x32xf32>
    %393 = arith.mulf %390, %230 : vector<2x32xf32>
    %394 = arith.mulf %389, %391 : vector<2x32xf32>
    %395 = arith.addf %393, %394 : vector<2x32xf32>
    %396 = math.tanh %395 : vector<2x32xf32>
    %397 = arith.mulf %392, %396 : vector<2x32xf32>
    %c0_113 = arith.constant 0 : index
    %c0_114 = arith.constant 0 : index
    %c0_115 = arith.constant 0 : index
    %398 = vector.load %arg2[%c0_113, %c0_114, %c0_115] : memref<7x32x128xf32, #tpu.memory_space<vmem>>, vector<1x32x128xf32>
    %399 = vector.shape_cast %398 : vector<1x32x128xf32> to vector<32x128xf32>
    %cst_116 = arith.constant dense<0.000000e+00> : vector<2x128xf32>
    %400 = tpu.matmul %397, %399, %cst_116 {dimension_numbers = #tpu.dot_dimension_numbers<[1], [0], [0], [1], [0, 0, 1, 1], [], []>} : vector<2x32xf32>, vector<32x128xf32>, vector<2x128xf32> -> vector<2x128xf32>
    %401 = vector.extract_strided_slice %377 {offsets = [0, 128], sizes = [2, 128], strides = [1, 1]} : vector<2x1024xf32> to vector<2x128xf32>
    %402 = arith.addf %400, %401 : vector<2x128xf32>
    %403 = arith.negf %402 : vector<2x128xf32>
    %404 = math.exp %403 : vector<2x128xf32>
    %cst_117 = arith.constant 1.000000e+00 : f32
    %405 = vector.broadcast %cst_117 : f32 to vector<2x128xf32>
    %406 = arith.addf %405, %404 : vector<2x128xf32>
    %407 = arith.divf %405, %406 : vector<2x128xf32>
    %408 = math.tanh %402 : vector<2x128xf32>
    %409 = vector.extract_strided_slice %407 {offsets = [0, 0], sizes = [2, 32], strides = [1, 1]} : vector<2x128xf32> to vector<2x32xf32>
    %410 = vector.extract_strided_slice %407 {offsets = [0, 32], sizes = [2, 32], strides = [1, 1]} : vector<2x128xf32> to vector<2x32xf32>
    %411 = vector.extract_strided_slice %408 {offsets = [0, 64], sizes = [2, 32], strides = [1, 1]} : vector<2x128xf32> to vector<2x32xf32>
    %412 = vector.extract_strided_slice %407 {offsets = [0, 96], sizes = [2, 32], strides = [1, 1]} : vector<2x128xf32> to vector<2x32xf32>
    %413 = arith.mulf %410, %250 : vector<2x32xf32>
    %414 = arith.mulf %409, %411 : vector<2x32xf32>
    %415 = arith.addf %413, %414 : vector<2x32xf32>
    %416 = math.tanh %415 : vector<2x32xf32>
    %417 = arith.mulf %412, %416 : vector<2x32xf32>
    %c1_118 = arith.constant 1 : index
    %c0_119 = arith.constant 0 : index
    %c0_120 = arith.constant 0 : index
    %418 = vector.load %arg2[%c1_118, %c0_119, %c0_120] : memref<7x32x128xf32, #tpu.memory_space<vmem>>, vector<1x32x128xf32>
    %419 = vector.shape_cast %418 : vector<1x32x128xf32> to vector<32x128xf32>
    %cst_121 = arith.constant dense<0.000000e+00> : vector<2x128xf32>
    %420 = tpu.matmul %417, %419, %cst_121 {dimension_numbers = #tpu.dot_dimension_numbers<[1], [0], [0], [1], [0, 0, 1, 1], [], []>} : vector<2x32xf32>, vector<32x128xf32>, vector<2x128xf32> -> vector<2x128xf32>
    %421 = vector.extract_strided_slice %377 {offsets = [0, 256], sizes = [2, 128], strides = [1, 1]} : vector<2x1024xf32> to vector<2x128xf32>
    %422 = arith.addf %420, %421 : vector<2x128xf32>
    %423 = arith.negf %422 : vector<2x128xf32>
    %424 = math.exp %423 : vector<2x128xf32>
    %cst_122 = arith.constant 1.000000e+00 : f32
    %425 = vector.broadcast %cst_122 : f32 to vector<2x128xf32>
    %426 = arith.addf %425, %424 : vector<2x128xf32>
    %427 = arith.divf %425, %426 : vector<2x128xf32>
    %428 = math.tanh %422 : vector<2x128xf32>
    %429 = vector.extract_strided_slice %427 {offsets = [0, 0], sizes = [2, 32], strides = [1, 1]} : vector<2x128xf32> to vector<2x32xf32>
    %430 = vector.extract_strided_slice %427 {offsets = [0, 32], sizes = [2, 32], strides = [1, 1]} : vector<2x128xf32> to vector<2x32xf32>
    %431 = vector.extract_strided_slice %428 {offsets = [0, 64], sizes = [2, 32], strides = [1, 1]} : vector<2x128xf32> to vector<2x32xf32>
    %432 = vector.extract_strided_slice %427 {offsets = [0, 96], sizes = [2, 32], strides = [1, 1]} : vector<2x128xf32> to vector<2x32xf32>
    %433 = arith.mulf %430, %270 : vector<2x32xf32>
    %434 = arith.mulf %429, %431 : vector<2x32xf32>
    %435 = arith.addf %433, %434 : vector<2x32xf32>
    %436 = math.tanh %435 : vector<2x32xf32>
    %437 = arith.mulf %432, %436 : vector<2x32xf32>
    %c2_123 = arith.constant 2 : index
    %c0_124 = arith.constant 0 : index
    %c0_125 = arith.constant 0 : index
    %438 = vector.load %arg2[%c2_123, %c0_124, %c0_125] : memref<7x32x128xf32, #tpu.memory_space<vmem>>, vector<1x32x128xf32>
    %439 = vector.shape_cast %438 : vector<1x32x128xf32> to vector<32x128xf32>
    %cst_126 = arith.constant dense<0.000000e+00> : vector<2x128xf32>
    %440 = tpu.matmul %437, %439, %cst_126 {dimension_numbers = #tpu.dot_dimension_numbers<[1], [0], [0], [1], [0, 0, 1, 1], [], []>} : vector<2x32xf32>, vector<32x128xf32>, vector<2x128xf32> -> vector<2x128xf32>
    %441 = vector.extract_strided_slice %377 {offsets = [0, 384], sizes = [2, 128], strides = [1, 1]} : vector<2x1024xf32> to vector<2x128xf32>
    %442 = arith.addf %440, %441 : vector<2x128xf32>
    %443 = arith.negf %442 : vector<2x128xf32>
    %444 = math.exp %443 : vector<2x128xf32>
    %cst_127 = arith.constant 1.000000e+00 : f32
    %445 = vector.broadcast %cst_127 : f32 to vector<2x128xf32>
    %446 = arith.addf %445, %444 : vector<2x128xf32>
    %447 = arith.divf %445, %446 : vector<2x128xf32>
    %448 = math.tanh %442 : vector<2x128xf32>
    %449 = vector.extract_strided_slice %447 {offsets = [0, 0], sizes = [2, 32], strides = [1, 1]} : vector<2x128xf32> to vector<2x32xf32>
    %450 = vector.extract_strided_slice %447 {offsets = [0, 32], sizes = [2, 32], strides = [1, 1]} : vector<2x128xf32> to vector<2x32xf32>
    %451 = vector.extract_strided_slice %448 {offsets = [0, 64], sizes = [2, 32], strides = [1, 1]} : vector<2x128xf32> to vector<2x32xf32>
    %452 = vector.extract_strided_slice %447 {offsets = [0, 96], sizes = [2, 32], strides = [1, 1]} : vector<2x128xf32> to vector<2x32xf32>
    %453 = arith.mulf %450, %290 : vector<2x32xf32>
    %454 = arith.mulf %449, %451 : vector<2x32xf32>
    %455 = arith.addf %453, %454 : vector<2x32xf32>
    %456 = math.tanh %455 : vector<2x32xf32>
    %457 = arith.mulf %452, %456 : vector<2x32xf32>
    %c3_128 = arith.constant 3 : index
    %c0_129 = arith.constant 0 : index
    %c0_130 = arith.constant 0 : index
    %458 = vector.load %arg2[%c3_128, %c0_129, %c0_130] : memref<7x32x128xf32, #tpu.memory_space<vmem>>, vector<1x32x128xf32>
    %459 = vector.shape_cast %458 : vector<1x32x128xf32> to vector<32x128xf32>
    %cst_131 = arith.constant dense<0.000000e+00> : vector<2x128xf32>
    %460 = tpu.matmul %457, %459, %cst_131 {dimension_numbers = #tpu.dot_dimension_numbers<[1], [0], [0], [1], [0, 0, 1, 1], [], []>} : vector<2x32xf32>, vector<32x128xf32>, vector<2x128xf32> -> vector<2x128xf32>
    %461 = vector.extract_strided_slice %377 {offsets = [0, 512], sizes = [2, 128], strides = [1, 1]} : vector<2x1024xf32> to vector<2x128xf32>
    %462 = arith.addf %460, %461 : vector<2x128xf32>
    %463 = arith.negf %462 : vector<2x128xf32>
    %464 = math.exp %463 : vector<2x128xf32>
    %cst_132 = arith.constant 1.000000e+00 : f32
    %465 = vector.broadcast %cst_132 : f32 to vector<2x128xf32>
    %466 = arith.addf %465, %464 : vector<2x128xf32>
    %467 = arith.divf %465, %466 : vector<2x128xf32>
    %468 = math.tanh %462 : vector<2x128xf32>
    %469 = vector.extract_strided_slice %467 {offsets = [0, 0], sizes = [2, 32], strides = [1, 1]} : vector<2x128xf32> to vector<2x32xf32>
    %470 = vector.extract_strided_slice %467 {offsets = [0, 32], sizes = [2, 32], strides = [1, 1]} : vector<2x128xf32> to vector<2x32xf32>
    %471 = vector.extract_strided_slice %468 {offsets = [0, 64], sizes = [2, 32], strides = [1, 1]} : vector<2x128xf32> to vector<2x32xf32>
    %472 = vector.extract_strided_slice %467 {offsets = [0, 96], sizes = [2, 32], strides = [1, 1]} : vector<2x128xf32> to vector<2x32xf32>
    %473 = arith.mulf %470, %310 : vector<2x32xf32>
    %474 = arith.mulf %469, %471 : vector<2x32xf32>
    %475 = arith.addf %473, %474 : vector<2x32xf32>
    %476 = math.tanh %475 : vector<2x32xf32>
    %477 = arith.mulf %472, %476 : vector<2x32xf32>
    %c4_133 = arith.constant 4 : index
    %c0_134 = arith.constant 0 : index
    %c0_135 = arith.constant 0 : index
    %478 = vector.load %arg2[%c4_133, %c0_134, %c0_135] : memref<7x32x128xf32, #tpu.memory_space<vmem>>, vector<1x32x128xf32>
    %479 = vector.shape_cast %478 : vector<1x32x128xf32> to vector<32x128xf32>
    %cst_136 = arith.constant dense<0.000000e+00> : vector<2x128xf32>
    %480 = tpu.matmul %477, %479, %cst_136 {dimension_numbers = #tpu.dot_dimension_numbers<[1], [0], [0], [1], [0, 0, 1, 1], [], []>} : vector<2x32xf32>, vector<32x128xf32>, vector<2x128xf32> -> vector<2x128xf32>
    %481 = vector.extract_strided_slice %377 {offsets = [0, 640], sizes = [2, 128], strides = [1, 1]} : vector<2x1024xf32> to vector<2x128xf32>
    %482 = arith.addf %480, %481 : vector<2x128xf32>
    %483 = arith.negf %482 : vector<2x128xf32>
    %484 = math.exp %483 : vector<2x128xf32>
    %cst_137 = arith.constant 1.000000e+00 : f32
    %485 = vector.broadcast %cst_137 : f32 to vector<2x128xf32>
    %486 = arith.addf %485, %484 : vector<2x128xf32>
    %487 = arith.divf %485, %486 : vector<2x128xf32>
    %488 = math.tanh %482 : vector<2x128xf32>
    %489 = vector.extract_strided_slice %487 {offsets = [0, 0], sizes = [2, 32], strides = [1, 1]} : vector<2x128xf32> to vector<2x32xf32>
    %490 = vector.extract_strided_slice %487 {offsets = [0, 32], sizes = [2, 32], strides = [1, 1]} : vector<2x128xf32> to vector<2x32xf32>
    %491 = vector.extract_strided_slice %488 {offsets = [0, 64], sizes = [2, 32], strides = [1, 1]} : vector<2x128xf32> to vector<2x32xf32>
    %492 = vector.extract_strided_slice %487 {offsets = [0, 96], sizes = [2, 32], strides = [1, 1]} : vector<2x128xf32> to vector<2x32xf32>
    %493 = arith.mulf %490, %330 : vector<2x32xf32>
    %494 = arith.mulf %489, %491 : vector<2x32xf32>
    %495 = arith.addf %493, %494 : vector<2x32xf32>
    %496 = math.tanh %495 : vector<2x32xf32>
    %497 = arith.mulf %492, %496 : vector<2x32xf32>
    %c5_138 = arith.constant 5 : index
    %c0_139 = arith.constant 0 : index
    %c0_140 = arith.constant 0 : index
    %498 = vector.load %arg2[%c5_138, %c0_139, %c0_140] : memref<7x32x128xf32, #tpu.memory_space<vmem>>, vector<1x32x128xf32>
    %499 = vector.shape_cast %498 : vector<1x32x128xf32> to vector<32x128xf32>
    %cst_141 = arith.constant dense<0.000000e+00> : vector<2x128xf32>
    %500 = tpu.matmul %497, %499, %cst_141 {dimension_numbers = #tpu.dot_dimension_numbers<[1], [0], [0], [1], [0, 0, 1, 1], [], []>} : vector<2x32xf32>, vector<32x128xf32>, vector<2x128xf32> -> vector<2x128xf32>
    %501 = vector.extract_strided_slice %377 {offsets = [0, 768], sizes = [2, 128], strides = [1, 1]} : vector<2x1024xf32> to vector<2x128xf32>
    %502 = arith.addf %500, %501 : vector<2x128xf32>
    %503 = arith.negf %502 : vector<2x128xf32>
    %504 = math.exp %503 : vector<2x128xf32>
    %cst_142 = arith.constant 1.000000e+00 : f32
    %505 = vector.broadcast %cst_142 : f32 to vector<2x128xf32>
    %506 = arith.addf %505, %504 : vector<2x128xf32>
    %507 = arith.divf %505, %506 : vector<2x128xf32>
    %508 = math.tanh %502 : vector<2x128xf32>
    %509 = vector.extract_strided_slice %507 {offsets = [0, 0], sizes = [2, 32], strides = [1, 1]} : vector<2x128xf32> to vector<2x32xf32>
    %510 = vector.extract_strided_slice %507 {offsets = [0, 32], sizes = [2, 32], strides = [1, 1]} : vector<2x128xf32> to vector<2x32xf32>
    %511 = vector.extract_strided_slice %508 {offsets = [0, 64], sizes = [2, 32], strides = [1, 1]} : vector<2x128xf32> to vector<2x32xf32>
    %512 = vector.extract_strided_slice %507 {offsets = [0, 96], sizes = [2, 32], strides = [1, 1]} : vector<2x128xf32> to vector<2x32xf32>
    %513 = arith.mulf %510, %350 : vector<2x32xf32>
    %514 = arith.mulf %509, %511 : vector<2x32xf32>
    %515 = arith.addf %513, %514 : vector<2x32xf32>
    %516 = math.tanh %515 : vector<2x32xf32>
    %517 = arith.mulf %512, %516 : vector<2x32xf32>
    %c6_143 = arith.constant 6 : index
    %c0_144 = arith.constant 0 : index
    %c0_145 = arith.constant 0 : index
    %518 = vector.load %arg2[%c6_143, %c0_144, %c0_145] : memref<7x32x128xf32, #tpu.memory_space<vmem>>, vector<1x32x128xf32>
    %519 = vector.shape_cast %518 : vector<1x32x128xf32> to vector<32x128xf32>
    %cst_146 = arith.constant dense<0.000000e+00> : vector<2x128xf32>
    %520 = tpu.matmul %517, %519, %cst_146 {dimension_numbers = #tpu.dot_dimension_numbers<[1], [0], [0], [1], [0, 0, 1, 1], [], []>} : vector<2x32xf32>, vector<32x128xf32>, vector<2x128xf32> -> vector<2x128xf32>
    %521 = vector.extract_strided_slice %377 {offsets = [0, 896], sizes = [2, 128], strides = [1, 1]} : vector<2x1024xf32> to vector<2x128xf32>
    %522 = arith.addf %520, %521 : vector<2x128xf32>
    %523 = arith.negf %522 : vector<2x128xf32>
    %524 = math.exp %523 : vector<2x128xf32>
    %cst_147 = arith.constant 1.000000e+00 : f32
    %525 = vector.broadcast %cst_147 : f32 to vector<2x128xf32>
    %526 = arith.addf %525, %524 : vector<2x128xf32>
    %527 = arith.divf %525, %526 : vector<2x128xf32>
    %528 = math.tanh %522 : vector<2x128xf32>
    %529 = vector.extract_strided_slice %527 {offsets = [0, 0], sizes = [2, 32], strides = [1, 1]} : vector<2x128xf32> to vector<2x32xf32>
    %530 = vector.extract_strided_slice %527 {offsets = [0, 32], sizes = [2, 32], strides = [1, 1]} : vector<2x128xf32> to vector<2x32xf32>
    %531 = vector.extract_strided_slice %528 {offsets = [0, 64], sizes = [2, 32], strides = [1, 1]} : vector<2x128xf32> to vector<2x32xf32>
    %532 = vector.extract_strided_slice %527 {offsets = [0, 96], sizes = [2, 32], strides = [1, 1]} : vector<2x128xf32> to vector<2x32xf32>
    %533 = arith.mulf %530, %370 : vector<2x32xf32>
    %534 = arith.mulf %529, %531 : vector<2x32xf32>
    %535 = arith.addf %533, %534 : vector<2x32xf32>
    %536 = math.tanh %535 : vector<2x32xf32>
    %537 = arith.mulf %532, %536 : vector<2x32xf32>
    %538 = tpu.concatenate %397, %417, %437, %457, %477, %497, %517, %537 in 1 : vector<2x32xf32>, vector<2x32xf32>, vector<2x32xf32>, vector<2x32xf32>, vector<2x32xf32>, vector<2x32xf32>, vector<2x32xf32>, vector<2x32xf32> -> vector<2x256xf32>
    %c0_148 = arith.constant 0 : index
    %c0_149 = arith.constant 0 : index
    %539 = vector.load %arg3[%c0_148, %c0_149] : memref<256x1024xf32, #tpu.memory_space<vmem>>, vector<256x1024xf32>
    %cst_150 = arith.constant dense<0.000000e+00> : vector<2x1024xf32>
    %540 = tpu.matmul %538, %539, %cst_150 {dimension_numbers = #tpu.dot_dimension_numbers<[1], [0], [0], [1], [0, 0, 1, 1], [], []>} : vector<2x256xf32>, vector<256x1024xf32>, vector<2x1024xf32> -> vector<2x1024xf32>
    %541 = vector.broadcast %1 : vector<1x1024xf32> to vector<2x1024xf32>
    %542 = arith.addf %540, %541 : vector<2x1024xf32>
    %543 = vector.broadcast %14 : vector<2x1xf32> to vector<2x128xf32>
    %544 = vector.broadcast %0 : vector<1x128xf32> to vector<2x128xf32>
    %545 = arith.mulf %543, %544 : vector<2x128xf32>
    %546 = vector.extract_strided_slice %542 {offsets = [0, 0], sizes = [2, 128], strides = [1, 1]} : vector<2x1024xf32> to vector<2x128xf32>
    %547 = arith.addf %545, %546 : vector<2x128xf32>
    %548 = arith.negf %547 : vector<2x128xf32>
    %549 = math.exp %548 : vector<2x128xf32>
    %cst_151 = arith.constant 1.000000e+00 : f32
    %550 = vector.broadcast %cst_151 : f32 to vector<2x128xf32>
    %551 = arith.addf %550, %549 : vector<2x128xf32>
    %552 = arith.divf %550, %551 : vector<2x128xf32>
    %553 = math.tanh %547 : vector<2x128xf32>
    %554 = vector.extract_strided_slice %552 {offsets = [0, 0], sizes = [2, 32], strides = [1, 1]} : vector<2x128xf32> to vector<2x32xf32>
    %555 = vector.extract_strided_slice %552 {offsets = [0, 32], sizes = [2, 32], strides = [1, 1]} : vector<2x128xf32> to vector<2x32xf32>
    %556 = vector.extract_strided_slice %553 {offsets = [0, 64], sizes = [2, 32], strides = [1, 1]} : vector<2x128xf32> to vector<2x32xf32>
    %557 = vector.extract_strided_slice %552 {offsets = [0, 96], sizes = [2, 32], strides = [1, 1]} : vector<2x128xf32> to vector<2x32xf32>
    %558 = arith.mulf %555, %395 : vector<2x32xf32>
    %559 = arith.mulf %554, %556 : vector<2x32xf32>
    %560 = arith.addf %558, %559 : vector<2x32xf32>
    %561 = math.tanh %560 : vector<2x32xf32>
    %562 = arith.mulf %557, %561 : vector<2x32xf32>
    %c0_152 = arith.constant 0 : index
    %c0_153 = arith.constant 0 : index
    %c0_154 = arith.constant 0 : index
    %563 = vector.load %arg2[%c0_152, %c0_153, %c0_154] : memref<7x32x128xf32, #tpu.memory_space<vmem>>, vector<1x32x128xf32>
    %564 = vector.shape_cast %563 : vector<1x32x128xf32> to vector<32x128xf32>
    %cst_155 = arith.constant dense<0.000000e+00> : vector<2x128xf32>
    %565 = tpu.matmul %562, %564, %cst_155 {dimension_numbers = #tpu.dot_dimension_numbers<[1], [0], [0], [1], [0, 0, 1, 1], [], []>} : vector<2x32xf32>, vector<32x128xf32>, vector<2x128xf32> -> vector<2x128xf32>
    %566 = vector.extract_strided_slice %542 {offsets = [0, 128], sizes = [2, 128], strides = [1, 1]} : vector<2x1024xf32> to vector<2x128xf32>
    %567 = arith.addf %565, %566 : vector<2x128xf32>
    %568 = arith.negf %567 : vector<2x128xf32>
    %569 = math.exp %568 : vector<2x128xf32>
    %cst_156 = arith.constant 1.000000e+00 : f32
    %570 = vector.broadcast %cst_156 : f32 to vector<2x128xf32>
    %571 = arith.addf %570, %569 : vector<2x128xf32>
    %572 = arith.divf %570, %571 : vector<2x128xf32>
    %573 = math.tanh %567 : vector<2x128xf32>
    %574 = vector.extract_strided_slice %572 {offsets = [0, 0], sizes = [2, 32], strides = [1, 1]} : vector<2x128xf32> to vector<2x32xf32>
    %575 = vector.extract_strided_slice %572 {offsets = [0, 32], sizes = [2, 32], strides = [1, 1]} : vector<2x128xf32> to vector<2x32xf32>
    %576 = vector.extract_strided_slice %573 {offsets = [0, 64], sizes = [2, 32], strides = [1, 1]} : vector<2x128xf32> to vector<2x32xf32>
    %577 = vector.extract_strided_slice %572 {offsets = [0, 96], sizes = [2, 32], strides = [1, 1]} : vector<2x128xf32> to vector<2x32xf32>
    %578 = arith.mulf %575, %415 : vector<2x32xf32>
    %579 = arith.mulf %574, %576 : vector<2x32xf32>
    %580 = arith.addf %578, %579 : vector<2x32xf32>
    %581 = math.tanh %580 : vector<2x32xf32>
    %582 = arith.mulf %577, %581 : vector<2x32xf32>
    %c1_157 = arith.constant 1 : index
    %c0_158 = arith.constant 0 : index
    %c0_159 = arith.constant 0 : index
    %583 = vector.load %arg2[%c1_157, %c0_158, %c0_159] : memref<7x32x128xf32, #tpu.memory_space<vmem>>, vector<1x32x128xf32>
    %584 = vector.shape_cast %583 : vector<1x32x128xf32> to vector<32x128xf32>
    %cst_160 = arith.constant dense<0.000000e+00> : vector<2x128xf32>
    %585 = tpu.matmul %582, %584, %cst_160 {dimension_numbers = #tpu.dot_dimension_numbers<[1], [0], [0], [1], [0, 0, 1, 1], [], []>} : vector<2x32xf32>, vector<32x128xf32>, vector<2x128xf32> -> vector<2x128xf32>
    %586 = vector.extract_strided_slice %542 {offsets = [0, 256], sizes = [2, 128], strides = [1, 1]} : vector<2x1024xf32> to vector<2x128xf32>
    %587 = arith.addf %585, %586 : vector<2x128xf32>
    %588 = arith.negf %587 : vector<2x128xf32>
    %589 = math.exp %588 : vector<2x128xf32>
    %cst_161 = arith.constant 1.000000e+00 : f32
    %590 = vector.broadcast %cst_161 : f32 to vector<2x128xf32>
    %591 = arith.addf %590, %589 : vector<2x128xf32>
    %592 = arith.divf %590, %591 : vector<2x128xf32>
    %593 = math.tanh %587 : vector<2x128xf32>
    %594 = vector.extract_strided_slice %592 {offsets = [0, 0], sizes = [2, 32], strides = [1, 1]} : vector<2x128xf32> to vector<2x32xf32>
    %595 = vector.extract_strided_slice %592 {offsets = [0, 32], sizes = [2, 32], strides = [1, 1]} : vector<2x128xf32> to vector<2x32xf32>
    %596 = vector.extract_strided_slice %593 {offsets = [0, 64], sizes = [2, 32], strides = [1, 1]} : vector<2x128xf32> to vector<2x32xf32>
    %597 = vector.extract_strided_slice %592 {offsets = [0, 96], sizes = [2, 32], strides = [1, 1]} : vector<2x128xf32> to vector<2x32xf32>
    %598 = arith.mulf %595, %435 : vector<2x32xf32>
    %599 = arith.mulf %594, %596 : vector<2x32xf32>
    %600 = arith.addf %598, %599 : vector<2x32xf32>
    %601 = math.tanh %600 : vector<2x32xf32>
    %602 = arith.mulf %597, %601 : vector<2x32xf32>
    %c2_162 = arith.constant 2 : index
    %c0_163 = arith.constant 0 : index
    %c0_164 = arith.constant 0 : index
    %603 = vector.load %arg2[%c2_162, %c0_163, %c0_164] : memref<7x32x128xf32, #tpu.memory_space<vmem>>, vector<1x32x128xf32>
    %604 = vector.shape_cast %603 : vector<1x32x128xf32> to vector<32x128xf32>
    %cst_165 = arith.constant dense<0.000000e+00> : vector<2x128xf32>
    %605 = tpu.matmul %602, %604, %cst_165 {dimension_numbers = #tpu.dot_dimension_numbers<[1], [0], [0], [1], [0, 0, 1, 1], [], []>} : vector<2x32xf32>, vector<32x128xf32>, vector<2x128xf32> -> vector<2x128xf32>
    %606 = vector.extract_strided_slice %542 {offsets = [0, 384], sizes = [2, 128], strides = [1, 1]} : vector<2x1024xf32> to vector<2x128xf32>
    %607 = arith.addf %605, %606 : vector<2x128xf32>
    %608 = arith.negf %607 : vector<2x128xf32>
    %609 = math.exp %608 : vector<2x128xf32>
    %cst_166 = arith.constant 1.000000e+00 : f32
    %610 = vector.broadcast %cst_166 : f32 to vector<2x128xf32>
    %611 = arith.addf %610, %609 : vector<2x128xf32>
    %612 = arith.divf %610, %611 : vector<2x128xf32>
    %613 = math.tanh %607 : vector<2x128xf32>
    %614 = vector.extract_strided_slice %612 {offsets = [0, 0], sizes = [2, 32], strides = [1, 1]} : vector<2x128xf32> to vector<2x32xf32>
    %615 = vector.extract_strided_slice %612 {offsets = [0, 32], sizes = [2, 32], strides = [1, 1]} : vector<2x128xf32> to vector<2x32xf32>
    %616 = vector.extract_strided_slice %613 {offsets = [0, 64], sizes = [2, 32], strides = [1, 1]} : vector<2x128xf32> to vector<2x32xf32>
    %617 = vector.extract_strided_slice %612 {offsets = [0, 96], sizes = [2, 32], strides = [1, 1]} : vector<2x128xf32> to vector<2x32xf32>
    %618 = arith.mulf %615, %455 : vector<2x32xf32>
    %619 = arith.mulf %614, %616 : vector<2x32xf32>
    %620 = arith.addf %618, %619 : vector<2x32xf32>
    %621 = math.tanh %620 : vector<2x32xf32>
    %622 = arith.mulf %617, %621 : vector<2x32xf32>
    %c3_167 = arith.constant 3 : index
    %c0_168 = arith.constant 0 : index
    %c0_169 = arith.constant 0 : index
    %623 = vector.load %arg2[%c3_167, %c0_168, %c0_169] : memref<7x32x128xf32, #tpu.memory_space<vmem>>, vector<1x32x128xf32>
    %624 = vector.shape_cast %623 : vector<1x32x128xf32> to vector<32x128xf32>
    %cst_170 = arith.constant dense<0.000000e+00> : vector<2x128xf32>
    %625 = tpu.matmul %622, %624, %cst_170 {dimension_numbers = #tpu.dot_dimension_numbers<[1], [0], [0], [1], [0, 0, 1, 1], [], []>} : vector<2x32xf32>, vector<32x128xf32>, vector<2x128xf32> -> vector<2x128xf32>
    %626 = vector.extract_strided_slice %542 {offsets = [0, 512], sizes = [2, 128], strides = [1, 1]} : vector<2x1024xf32> to vector<2x128xf32>
    %627 = arith.addf %625, %626 : vector<2x128xf32>
    %628 = arith.negf %627 : vector<2x128xf32>
    %629 = math.exp %628 : vector<2x128xf32>
    %cst_171 = arith.constant 1.000000e+00 : f32
    %630 = vector.broadcast %cst_171 : f32 to vector<2x128xf32>
    %631 = arith.addf %630, %629 : vector<2x128xf32>
    %632 = arith.divf %630, %631 : vector<2x128xf32>
    %633 = math.tanh %627 : vector<2x128xf32>
    %634 = vector.extract_strided_slice %632 {offsets = [0, 0], sizes = [2, 32], strides = [1, 1]} : vector<2x128xf32> to vector<2x32xf32>
    %635 = vector.extract_strided_slice %632 {offsets = [0, 32], sizes = [2, 32], strides = [1, 1]} : vector<2x128xf32> to vector<2x32xf32>
    %636 = vector.extract_strided_slice %633 {offsets = [0, 64], sizes = [2, 32], strides = [1, 1]} : vector<2x128xf32> to vector<2x32xf32>
    %637 = vector.extract_strided_slice %632 {offsets = [0, 96], sizes = [2, 32], strides = [1, 1]} : vector<2x128xf32> to vector<2x32xf32>
    %638 = arith.mulf %635, %475 : vector<2x32xf32>
    %639 = arith.mulf %634, %636 : vector<2x32xf32>
    %640 = arith.addf %638, %639 : vector<2x32xf32>
    %641 = math.tanh %640 : vector<2x32xf32>
    %642 = arith.mulf %637, %641 : vector<2x32xf32>
    %c4_172 = arith.constant 4 : index
    %c0_173 = arith.constant 0 : index
    %c0_174 = arith.constant 0 : index
    %643 = vector.load %arg2[%c4_172, %c0_173, %c0_174] : memref<7x32x128xf32, #tpu.memory_space<vmem>>, vector<1x32x128xf32>
    %644 = vector.shape_cast %643 : vector<1x32x128xf32> to vector<32x128xf32>
    %cst_175 = arith.constant dense<0.000000e+00> : vector<2x128xf32>
    %645 = tpu.matmul %642, %644, %cst_175 {dimension_numbers = #tpu.dot_dimension_numbers<[1], [0], [0], [1], [0, 0, 1, 1], [], []>} : vector<2x32xf32>, vector<32x128xf32>, vector<2x128xf32> -> vector<2x128xf32>
    %646 = vector.extract_strided_slice %542 {offsets = [0, 640], sizes = [2, 128], strides = [1, 1]} : vector<2x1024xf32> to vector<2x128xf32>
    %647 = arith.addf %645, %646 : vector<2x128xf32>
    %648 = arith.negf %647 : vector<2x128xf32>
    %649 = math.exp %648 : vector<2x128xf32>
    %cst_176 = arith.constant 1.000000e+00 : f32
    %650 = vector.broadcast %cst_176 : f32 to vector<2x128xf32>
    %651 = arith.addf %650, %649 : vector<2x128xf32>
    %652 = arith.divf %650, %651 : vector<2x128xf32>
    %653 = math.tanh %647 : vector<2x128xf32>
    %654 = vector.extract_strided_slice %652 {offsets = [0, 0], sizes = [2, 32], strides = [1, 1]} : vector<2x128xf32> to vector<2x32xf32>
    %655 = vector.extract_strided_slice %652 {offsets = [0, 32], sizes = [2, 32], strides = [1, 1]} : vector<2x128xf32> to vector<2x32xf32>
    %656 = vector.extract_strided_slice %653 {offsets = [0, 64], sizes = [2, 32], strides = [1, 1]} : vector<2x128xf32> to vector<2x32xf32>
    %657 = vector.extract_strided_slice %652 {offsets = [0, 96], sizes = [2, 32], strides = [1, 1]} : vector<2x128xf32> to vector<2x32xf32>
    %658 = arith.mulf %655, %495 : vector<2x32xf32>
    %659 = arith.mulf %654, %656 : vector<2x32xf32>
    %660 = arith.addf %658, %659 : vector<2x32xf32>
    %661 = math.tanh %660 : vector<2x32xf32>
    %662 = arith.mulf %657, %661 : vector<2x32xf32>
    %c5_177 = arith.constant 5 : index
    %c0_178 = arith.constant 0 : index
    %c0_179 = arith.constant 0 : index
    %663 = vector.load %arg2[%c5_177, %c0_178, %c0_179] : memref<7x32x128xf32, #tpu.memory_space<vmem>>, vector<1x32x128xf32>
    %664 = vector.shape_cast %663 : vector<1x32x128xf32> to vector<32x128xf32>
    %cst_180 = arith.constant dense<0.000000e+00> : vector<2x128xf32>
    %665 = tpu.matmul %662, %664, %cst_180 {dimension_numbers = #tpu.dot_dimension_numbers<[1], [0], [0], [1], [0, 0, 1, 1], [], []>} : vector<2x32xf32>, vector<32x128xf32>, vector<2x128xf32> -> vector<2x128xf32>
    %666 = vector.extract_strided_slice %542 {offsets = [0, 768], sizes = [2, 128], strides = [1, 1]} : vector<2x1024xf32> to vector<2x128xf32>
    %667 = arith.addf %665, %666 : vector<2x128xf32>
    %668 = arith.negf %667 : vector<2x128xf32>
    %669 = math.exp %668 : vector<2x128xf32>
    %cst_181 = arith.constant 1.000000e+00 : f32
    %670 = vector.broadcast %cst_181 : f32 to vector<2x128xf32>
    %671 = arith.addf %670, %669 : vector<2x128xf32>
    %672 = arith.divf %670, %671 : vector<2x128xf32>
    %673 = math.tanh %667 : vector<2x128xf32>
    %674 = vector.extract_strided_slice %672 {offsets = [0, 0], sizes = [2, 32], strides = [1, 1]} : vector<2x128xf32> to vector<2x32xf32>
    %675 = vector.extract_strided_slice %672 {offsets = [0, 32], sizes = [2, 32], strides = [1, 1]} : vector<2x128xf32> to vector<2x32xf32>
    %676 = vector.extract_strided_slice %673 {offsets = [0, 64], sizes = [2, 32], strides = [1, 1]} : vector<2x128xf32> to vector<2x32xf32>
    %677 = vector.extract_strided_slice %672 {offsets = [0, 96], sizes = [2, 32], strides = [1, 1]} : vector<2x128xf32> to vector<2x32xf32>
    %678 = arith.mulf %675, %515 : vector<2x32xf32>
    %679 = arith.mulf %674, %676 : vector<2x32xf32>
    %680 = arith.addf %678, %679 : vector<2x32xf32>
    %681 = math.tanh %680 : vector<2x32xf32>
    %682 = arith.mulf %677, %681 : vector<2x32xf32>
    %c6_182 = arith.constant 6 : index
    %c0_183 = arith.constant 0 : index
    %c0_184 = arith.constant 0 : index
    %683 = vector.load %arg2[%c6_182, %c0_183, %c0_184] : memref<7x32x128xf32, #tpu.memory_space<vmem>>, vector<1x32x128xf32>
    %684 = vector.shape_cast %683 : vector<1x32x128xf32> to vector<32x128xf32>
    %cst_185 = arith.constant dense<0.000000e+00> : vector<2x128xf32>
    %685 = tpu.matmul %682, %684, %cst_185 {dimension_numbers = #tpu.dot_dimension_numbers<[1], [0], [0], [1], [0, 0, 1, 1], [], []>} : vector<2x32xf32>, vector<32x128xf32>, vector<2x128xf32> -> vector<2x128xf32>
    %686 = vector.extract_strided_slice %542 {offsets = [0, 896], sizes = [2, 128], strides = [1, 1]} : vector<2x1024xf32> to vector<2x128xf32>
    %687 = arith.addf %685, %686 : vector<2x128xf32>
    %688 = arith.negf %687 : vector<2x128xf32>
    %689 = math.exp %688 : vector<2x128xf32>
    %cst_186 = arith.constant 1.000000e+00 : f32
    %690 = vector.broadcast %cst_186 : f32 to vector<2x128xf32>
    %691 = arith.addf %690, %689 : vector<2x128xf32>
    %692 = arith.divf %690, %691 : vector<2x128xf32>
    %693 = math.tanh %687 : vector<2x128xf32>
    %694 = vector.extract_strided_slice %692 {offsets = [0, 0], sizes = [2, 32], strides = [1, 1]} : vector<2x128xf32> to vector<2x32xf32>
    %695 = vector.extract_strided_slice %692 {offsets = [0, 32], sizes = [2, 32], strides = [1, 1]} : vector<2x128xf32> to vector<2x32xf32>
    %696 = vector.extract_strided_slice %693 {offsets = [0, 64], sizes = [2, 32], strides = [1, 1]} : vector<2x128xf32> to vector<2x32xf32>
    %697 = vector.extract_strided_slice %692 {offsets = [0, 96], sizes = [2, 32], strides = [1, 1]} : vector<2x128xf32> to vector<2x32xf32>
    %698 = arith.mulf %695, %535 : vector<2x32xf32>
    %699 = arith.mulf %694, %696 : vector<2x32xf32>
    %700 = arith.addf %698, %699 : vector<2x32xf32>
    %701 = math.tanh %700 : vector<2x32xf32>
    %702 = arith.mulf %697, %701 : vector<2x32xf32>
    %703 = tpu.concatenate %562, %582, %602, %622, %642, %662, %682, %702 in 1 : vector<2x32xf32>, vector<2x32xf32>, vector<2x32xf32>, vector<2x32xf32>, vector<2x32xf32>, vector<2x32xf32>, vector<2x32xf32>, vector<2x32xf32> -> vector<2x256xf32>
    %c0_187 = arith.constant 0 : index
    %c0_188 = arith.constant 0 : index
    %704 = vector.load %arg3[%c0_187, %c0_188] : memref<256x1024xf32, #tpu.memory_space<vmem>>, vector<256x1024xf32>
    %cst_189 = arith.constant dense<0.000000e+00> : vector<2x1024xf32>
    %705 = tpu.matmul %703, %704, %cst_189 {dimension_numbers = #tpu.dot_dimension_numbers<[1], [0], [0], [1], [0, 0, 1, 1], [], []>} : vector<2x256xf32>, vector<256x1024xf32>, vector<2x1024xf32> -> vector<2x1024xf32>
    %706 = vector.broadcast %1 : vector<1x1024xf32> to vector<2x1024xf32>
    %707 = arith.addf %705, %706 : vector<2x1024xf32>
    %708 = vector.broadcast %17 : vector<2x1xf32> to vector<2x128xf32>
    %709 = vector.broadcast %0 : vector<1x128xf32> to vector<2x128xf32>
    %710 = arith.mulf %708, %709 : vector<2x128xf32>
    %711 = vector.extract_strided_slice %707 {offsets = [0, 0], sizes = [2, 128], strides = [1, 1]} : vector<2x1024xf32> to vector<2x128xf32>
    %712 = arith.addf %710, %711 : vector<2x128xf32>
    %713 = arith.negf %712 : vector<2x128xf32>
    %714 = math.exp %713 : vector<2x128xf32>
    %cst_190 = arith.constant 1.000000e+00 : f32
    %715 = vector.broadcast %cst_190 : f32 to vector<2x128xf32>
    %716 = arith.addf %715, %714 : vector<2x128xf32>
    %717 = arith.divf %715, %716 : vector<2x128xf32>
    %718 = math.tanh %712 : vector<2x128xf32>
    %719 = vector.extract_strided_slice %717 {offsets = [0, 0], sizes = [2, 32], strides = [1, 1]} : vector<2x128xf32> to vector<2x32xf32>
    %720 = vector.extract_strided_slice %717 {offsets = [0, 32], sizes = [2, 32], strides = [1, 1]} : vector<2x128xf32> to vector<2x32xf32>
    %721 = vector.extract_strided_slice %718 {offsets = [0, 64], sizes = [2, 32], strides = [1, 1]} : vector<2x128xf32> to vector<2x32xf32>
    %722 = vector.extract_strided_slice %717 {offsets = [0, 96], sizes = [2, 32], strides = [1, 1]} : vector<2x128xf32> to vector<2x32xf32>
    %723 = arith.mulf %720, %560 : vector<2x32xf32>
    %724 = arith.mulf %719, %721 : vector<2x32xf32>
    %725 = arith.addf %723, %724 : vector<2x32xf32>
    %726 = math.tanh %725 : vector<2x32xf32>
    %727 = arith.mulf %722, %726 : vector<2x32xf32>
    %c0_191 = arith.constant 0 : index
    %c0_192 = arith.constant 0 : index
    %c0_193 = arith.constant 0 : index
    %728 = vector.load %arg2[%c0_191, %c0_192, %c0_193] : memref<7x32x128xf32, #tpu.memory_space<vmem>>, vector<1x32x128xf32>
    %729 = vector.shape_cast %728 : vector<1x32x128xf32> to vector<32x128xf32>
    %cst_194 = arith.constant dense<0.000000e+00> : vector<2x128xf32>
    %730 = tpu.matmul %727, %729, %cst_194 {dimension_numbers = #tpu.dot_dimension_numbers<[1], [0], [0], [1], [0, 0, 1, 1], [], []>} : vector<2x32xf32>, vector<32x128xf32>, vector<2x128xf32> -> vector<2x128xf32>
    %731 = vector.extract_strided_slice %707 {offsets = [0, 128], sizes = [2, 128], strides = [1, 1]} : vector<2x1024xf32> to vector<2x128xf32>
    %732 = arith.addf %730, %731 : vector<2x128xf32>
    %733 = arith.negf %732 : vector<2x128xf32>
    %734 = math.exp %733 : vector<2x128xf32>
    %cst_195 = arith.constant 1.000000e+00 : f32
    %735 = vector.broadcast %cst_195 : f32 to vector<2x128xf32>
    %736 = arith.addf %735, %734 : vector<2x128xf32>
    %737 = arith.divf %735, %736 : vector<2x128xf32>
    %738 = math.tanh %732 : vector<2x128xf32>
    %739 = vector.extract_strided_slice %737 {offsets = [0, 0], sizes = [2, 32], strides = [1, 1]} : vector<2x128xf32> to vector<2x32xf32>
    %740 = vector.extract_strided_slice %737 {offsets = [0, 32], sizes = [2, 32], strides = [1, 1]} : vector<2x128xf32> to vector<2x32xf32>
    %741 = vector.extract_strided_slice %738 {offsets = [0, 64], sizes = [2, 32], strides = [1, 1]} : vector<2x128xf32> to vector<2x32xf32>
    %742 = vector.extract_strided_slice %737 {offsets = [0, 96], sizes = [2, 32], strides = [1, 1]} : vector<2x128xf32> to vector<2x32xf32>
    %743 = arith.mulf %740, %580 : vector<2x32xf32>
    %744 = arith.mulf %739, %741 : vector<2x32xf32>
    %745 = arith.addf %743, %744 : vector<2x32xf32>
    %746 = math.tanh %745 : vector<2x32xf32>
    %747 = arith.mulf %742, %746 : vector<2x32xf32>
    %c1_196 = arith.constant 1 : index
    %c0_197 = arith.constant 0 : index
    %c0_198 = arith.constant 0 : index
    %748 = vector.load %arg2[%c1_196, %c0_197, %c0_198] : memref<7x32x128xf32, #tpu.memory_space<vmem>>, vector<1x32x128xf32>
    %749 = vector.shape_cast %748 : vector<1x32x128xf32> to vector<32x128xf32>
    %cst_199 = arith.constant dense<0.000000e+00> : vector<2x128xf32>
    %750 = tpu.matmul %747, %749, %cst_199 {dimension_numbers = #tpu.dot_dimension_numbers<[1], [0], [0], [1], [0, 0, 1, 1], [], []>} : vector<2x32xf32>, vector<32x128xf32>, vector<2x128xf32> -> vector<2x128xf32>
    %751 = vector.extract_strided_slice %707 {offsets = [0, 256], sizes = [2, 128], strides = [1, 1]} : vector<2x1024xf32> to vector<2x128xf32>
    %752 = arith.addf %750, %751 : vector<2x128xf32>
    %753 = arith.negf %752 : vector<2x128xf32>
    %754 = math.exp %753 : vector<2x128xf32>
    %cst_200 = arith.constant 1.000000e+00 : f32
    %755 = vector.broadcast %cst_200 : f32 to vector<2x128xf32>
    %756 = arith.addf %755, %754 : vector<2x128xf32>
    %757 = arith.divf %755, %756 : vector<2x128xf32>
    %758 = math.tanh %752 : vector<2x128xf32>
    %759 = vector.extract_strided_slice %757 {offsets = [0, 0], sizes = [2, 32], strides = [1, 1]} : vector<2x128xf32> to vector<2x32xf32>
    %760 = vector.extract_strided_slice %757 {offsets = [0, 32], sizes = [2, 32], strides = [1, 1]} : vector<2x128xf32> to vector<2x32xf32>
    %761 = vector.extract_strided_slice %758 {offsets = [0, 64], sizes = [2, 32], strides = [1, 1]} : vector<2x128xf32> to vector<2x32xf32>
    %762 = vector.extract_strided_slice %757 {offsets = [0, 96], sizes = [2, 32], strides = [1, 1]} : vector<2x128xf32> to vector<2x32xf32>
    %763 = arith.mulf %760, %600 : vector<2x32xf32>
    %764 = arith.mulf %759, %761 : vector<2x32xf32>
    %765 = arith.addf %763, %764 : vector<2x32xf32>
    %766 = math.tanh %765 : vector<2x32xf32>
    %767 = arith.mulf %762, %766 : vector<2x32xf32>
    %c2_201 = arith.constant 2 : index
    %c0_202 = arith.constant 0 : index
    %c0_203 = arith.constant 0 : index
    %768 = vector.load %arg2[%c2_201, %c0_202, %c0_203] : memref<7x32x128xf32, #tpu.memory_space<vmem>>, vector<1x32x128xf32>
    %769 = vector.shape_cast %768 : vector<1x32x128xf32> to vector<32x128xf32>
    %cst_204 = arith.constant dense<0.000000e+00> : vector<2x128xf32>
    %770 = tpu.matmul %767, %769, %cst_204 {dimension_numbers = #tpu.dot_dimension_numbers<[1], [0], [0], [1], [0, 0, 1, 1], [], []>} : vector<2x32xf32>, vector<32x128xf32>, vector<2x128xf32> -> vector<2x128xf32>
    %771 = vector.extract_strided_slice %707 {offsets = [0, 384], sizes = [2, 128], strides = [1, 1]} : vector<2x1024xf32> to vector<2x128xf32>
    %772 = arith.addf %770, %771 : vector<2x128xf32>
    %773 = arith.negf %772 : vector<2x128xf32>
    %774 = math.exp %773 : vector<2x128xf32>
    %cst_205 = arith.constant 1.000000e+00 : f32
    %775 = vector.broadcast %cst_205 : f32 to vector<2x128xf32>
    %776 = arith.addf %775, %774 : vector<2x128xf32>
    %777 = arith.divf %775, %776 : vector<2x128xf32>
    %778 = math.tanh %772 : vector<2x128xf32>
    %779 = vector.extract_strided_slice %777 {offsets = [0, 0], sizes = [2, 32], strides = [1, 1]} : vector<2x128xf32> to vector<2x32xf32>
    %780 = vector.extract_strided_slice %777 {offsets = [0, 32], sizes = [2, 32], strides = [1, 1]} : vector<2x128xf32> to vector<2x32xf32>
    %781 = vector.extract_strided_slice %778 {offsets = [0, 64], sizes = [2, 32], strides = [1, 1]} : vector<2x128xf32> to vector<2x32xf32>
    %782 = vector.extract_strided_slice %777 {offsets = [0, 96], sizes = [2, 32], strides = [1, 1]} : vector<2x128xf32> to vector<2x32xf32>
    %783 = arith.mulf %780, %620 : vector<2x32xf32>
    %784 = arith.mulf %779, %781 : vector<2x32xf32>
    %785 = arith.addf %783, %784 : vector<2x32xf32>
    %786 = math.tanh %785 : vector<2x32xf32>
    %787 = arith.mulf %782, %786 : vector<2x32xf32>
    %c3_206 = arith.constant 3 : index
    %c0_207 = arith.constant 0 : index
    %c0_208 = arith.constant 0 : index
    %788 = vector.load %arg2[%c3_206, %c0_207, %c0_208] : memref<7x32x128xf32, #tpu.memory_space<vmem>>, vector<1x32x128xf32>
    %789 = vector.shape_cast %788 : vector<1x32x128xf32> to vector<32x128xf32>
    %cst_209 = arith.constant dense<0.000000e+00> : vector<2x128xf32>
    %790 = tpu.matmul %787, %789, %cst_209 {dimension_numbers = #tpu.dot_dimension_numbers<[1], [0], [0], [1], [0, 0, 1, 1], [], []>} : vector<2x32xf32>, vector<32x128xf32>, vector<2x128xf32> -> vector<2x128xf32>
    %791 = vector.extract_strided_slice %707 {offsets = [0, 512], sizes = [2, 128], strides = [1, 1]} : vector<2x1024xf32> to vector<2x128xf32>
    %792 = arith.addf %790, %791 : vector<2x128xf32>
    %793 = arith.negf %792 : vector<2x128xf32>
    %794 = math.exp %793 : vector<2x128xf32>
    %cst_210 = arith.constant 1.000000e+00 : f32
    %795 = vector.broadcast %cst_210 : f32 to vector<2x128xf32>
    %796 = arith.addf %795, %794 : vector<2x128xf32>
    %797 = arith.divf %795, %796 : vector<2x128xf32>
    %798 = math.tanh %792 : vector<2x128xf32>
    %799 = vector.extract_strided_slice %797 {offsets = [0, 0], sizes = [2, 32], strides = [1, 1]} : vector<2x128xf32> to vector<2x32xf32>
    %800 = vector.extract_strided_slice %797 {offsets = [0, 32], sizes = [2, 32], strides = [1, 1]} : vector<2x128xf32> to vector<2x32xf32>
    %801 = vector.extract_strided_slice %798 {offsets = [0, 64], sizes = [2, 32], strides = [1, 1]} : vector<2x128xf32> to vector<2x32xf32>
    %802 = vector.extract_strided_slice %797 {offsets = [0, 96], sizes = [2, 32], strides = [1, 1]} : vector<2x128xf32> to vector<2x32xf32>
    %803 = arith.mulf %800, %640 : vector<2x32xf32>
    %804 = arith.mulf %799, %801 : vector<2x32xf32>
    %805 = arith.addf %803, %804 : vector<2x32xf32>
    %806 = math.tanh %805 : vector<2x32xf32>
    %807 = arith.mulf %802, %806 : vector<2x32xf32>
    %c4_211 = arith.constant 4 : index
    %c0_212 = arith.constant 0 : index
    %c0_213 = arith.constant 0 : index
    %808 = vector.load %arg2[%c4_211, %c0_212, %c0_213] : memref<7x32x128xf32, #tpu.memory_space<vmem>>, vector<1x32x128xf32>
    %809 = vector.shape_cast %808 : vector<1x32x128xf32> to vector<32x128xf32>
    %cst_214 = arith.constant dense<0.000000e+00> : vector<2x128xf32>
    %810 = tpu.matmul %807, %809, %cst_214 {dimension_numbers = #tpu.dot_dimension_numbers<[1], [0], [0], [1], [0, 0, 1, 1], [], []>} : vector<2x32xf32>, vector<32x128xf32>, vector<2x128xf32> -> vector<2x128xf32>
    %811 = vector.extract_strided_slice %707 {offsets = [0, 640], sizes = [2, 128], strides = [1, 1]} : vector<2x1024xf32> to vector<2x128xf32>
    %812 = arith.addf %810, %811 : vector<2x128xf32>
    %813 = arith.negf %812 : vector<2x128xf32>
    %814 = math.exp %813 : vector<2x128xf32>
    %cst_215 = arith.constant 1.000000e+00 : f32
    %815 = vector.broadcast %cst_215 : f32 to vector<2x128xf32>
    %816 = arith.addf %815, %814 : vector<2x128xf32>
    %817 = arith.divf %815, %816 : vector<2x128xf32>
    %818 = math.tanh %812 : vector<2x128xf32>
    %819 = vector.extract_strided_slice %817 {offsets = [0, 0], sizes = [2, 32], strides = [1, 1]} : vector<2x128xf32> to vector<2x32xf32>
    %820 = vector.extract_strided_slice %817 {offsets = [0, 32], sizes = [2, 32], strides = [1, 1]} : vector<2x128xf32> to vector<2x32xf32>
    %821 = vector.extract_strided_slice %818 {offsets = [0, 64], sizes = [2, 32], strides = [1, 1]} : vector<2x128xf32> to vector<2x32xf32>
    %822 = vector.extract_strided_slice %817 {offsets = [0, 96], sizes = [2, 32], strides = [1, 1]} : vector<2x128xf32> to vector<2x32xf32>
    %823 = arith.mulf %820, %660 : vector<2x32xf32>
    %824 = arith.mulf %819, %821 : vector<2x32xf32>
    %825 = arith.addf %823, %824 : vector<2x32xf32>
    %826 = math.tanh %825 : vector<2x32xf32>
    %827 = arith.mulf %822, %826 : vector<2x32xf32>
    %c5_216 = arith.constant 5 : index
    %c0_217 = arith.constant 0 : index
    %c0_218 = arith.constant 0 : index
    %828 = vector.load %arg2[%c5_216, %c0_217, %c0_218] : memref<7x32x128xf32, #tpu.memory_space<vmem>>, vector<1x32x128xf32>
    %829 = vector.shape_cast %828 : vector<1x32x128xf32> to vector<32x128xf32>
    %cst_219 = arith.constant dense<0.000000e+00> : vector<2x128xf32>
    %830 = tpu.matmul %827, %829, %cst_219 {dimension_numbers = #tpu.dot_dimension_numbers<[1], [0], [0], [1], [0, 0, 1, 1], [], []>} : vector<2x32xf32>, vector<32x128xf32>, vector<2x128xf32> -> vector<2x128xf32>
    %831 = vector.extract_strided_slice %707 {offsets = [0, 768], sizes = [2, 128], strides = [1, 1]} : vector<2x1024xf32> to vector<2x128xf32>
    %832 = arith.addf %830, %831 : vector<2x128xf32>
    %833 = arith.negf %832 : vector<2x128xf32>
    %834 = math.exp %833 : vector<2x128xf32>
    %cst_220 = arith.constant 1.000000e+00 : f32
    %835 = vector.broadcast %cst_220 : f32 to vector<2x128xf32>
    %836 = arith.addf %835, %834 : vector<2x128xf32>
    %837 = arith.divf %835, %836 : vector<2x128xf32>
    %838 = math.tanh %832 : vector<2x128xf32>
    %839 = vector.extract_strided_slice %837 {offsets = [0, 0], sizes = [2, 32], strides = [1, 1]} : vector<2x128xf32> to vector<2x32xf32>
    %840 = vector.extract_strided_slice %837 {offsets = [0, 32], sizes = [2, 32], strides = [1, 1]} : vector<2x128xf32> to vector<2x32xf32>
    %841 = vector.extract_strided_slice %838 {offsets = [0, 64], sizes = [2, 32], strides = [1, 1]} : vector<2x128xf32> to vector<2x32xf32>
    %842 = vector.extract_strided_slice %837 {offsets = [0, 96], sizes = [2, 32], strides = [1, 1]} : vector<2x128xf32> to vector<2x32xf32>
    %843 = arith.mulf %840, %680 : vector<2x32xf32>
    %844 = arith.mulf %839, %841 : vector<2x32xf32>
    %845 = arith.addf %843, %844 : vector<2x32xf32>
    %846 = math.tanh %845 : vector<2x32xf32>
    %847 = arith.mulf %842, %846 : vector<2x32xf32>
    %c6_221 = arith.constant 6 : index
    %c0_222 = arith.constant 0 : index
    %c0_223 = arith.constant 0 : index
    %848 = vector.load %arg2[%c6_221, %c0_222, %c0_223] : memref<7x32x128xf32, #tpu.memory_space<vmem>>, vector<1x32x128xf32>
    %849 = vector.shape_cast %848 : vector<1x32x128xf32> to vector<32x128xf32>
    %cst_224 = arith.constant dense<0.000000e+00> : vector<2x128xf32>
    %850 = tpu.matmul %847, %849, %cst_224 {dimension_numbers = #tpu.dot_dimension_numbers<[1], [0], [0], [1], [0, 0, 1, 1], [], []>} : vector<2x32xf32>, vector<32x128xf32>, vector<2x128xf32> -> vector<2x128xf32>
    %851 = vector.extract_strided_slice %707 {offsets = [0, 896], sizes = [2, 128], strides = [1, 1]} : vector<2x1024xf32> to vector<2x128xf32>
    %852 = arith.addf %850, %851 : vector<2x128xf32>
    %853 = arith.negf %852 : vector<2x128xf32>
    %854 = math.exp %853 : vector<2x128xf32>
    %cst_225 = arith.constant 1.000000e+00 : f32
    %855 = vector.broadcast %cst_225 : f32 to vector<2x128xf32>
    %856 = arith.addf %855, %854 : vector<2x128xf32>
    %857 = arith.divf %855, %856 : vector<2x128xf32>
    %858 = math.tanh %852 : vector<2x128xf32>
    %859 = vector.extract_strided_slice %857 {offsets = [0, 0], sizes = [2, 32], strides = [1, 1]} : vector<2x128xf32> to vector<2x32xf32>
    %860 = vector.extract_strided_slice %857 {offsets = [0, 32], sizes = [2, 32], strides = [1, 1]} : vector<2x128xf32> to vector<2x32xf32>
    %861 = vector.extract_strided_slice %858 {offsets = [0, 64], sizes = [2, 32], strides = [1, 1]} : vector<2x128xf32> to vector<2x32xf32>
    %862 = vector.extract_strided_slice %857 {offsets = [0, 96], sizes = [2, 32], strides = [1, 1]} : vector<2x128xf32> to vector<2x32xf32>
    %863 = arith.mulf %860, %700 : vector<2x32xf32>
    %864 = arith.mulf %859, %861 : vector<2x32xf32>
    %865 = arith.addf %863, %864 : vector<2x32xf32>
    %866 = math.tanh %865 : vector<2x32xf32>
    %867 = arith.mulf %862, %866 : vector<2x32xf32>
    %868 = tpu.concatenate %727, %747, %767, %787, %807, %827, %847, %867 in 1 : vector<2x32xf32>, vector<2x32xf32>, vector<2x32xf32>, vector<2x32xf32>, vector<2x32xf32>, vector<2x32xf32>, vector<2x32xf32>, vector<2x32xf32> -> vector<2x256xf32>
    %c0_226 = arith.constant 0 : index
    %c0_227 = arith.constant 0 : index
    %869 = vector.load %arg3[%c0_226, %c0_227] : memref<256x1024xf32, #tpu.memory_space<vmem>>, vector<256x1024xf32>
    %cst_228 = arith.constant dense<0.000000e+00> : vector<2x1024xf32>
    %870 = tpu.matmul %868, %869, %cst_228 {dimension_numbers = #tpu.dot_dimension_numbers<[1], [0], [0], [1], [0, 0, 1, 1], [], []>} : vector<2x256xf32>, vector<256x1024xf32>, vector<2x1024xf32> -> vector<2x1024xf32>
    %871 = vector.broadcast %1 : vector<1x1024xf32> to vector<2x1024xf32>
    %872 = arith.addf %870, %871 : vector<2x1024xf32>
    %873 = vector.broadcast %20 : vector<2x1xf32> to vector<2x128xf32>
    %874 = vector.broadcast %0 : vector<1x128xf32> to vector<2x128xf32>
    %875 = arith.mulf %873, %874 : vector<2x128xf32>
    %876 = vector.extract_strided_slice %872 {offsets = [0, 0], sizes = [2, 128], strides = [1, 1]} : vector<2x1024xf32> to vector<2x128xf32>
    %877 = arith.addf %875, %876 : vector<2x128xf32>
    %878 = arith.negf %877 : vector<2x128xf32>
    %879 = math.exp %878 : vector<2x128xf32>
    %cst_229 = arith.constant 1.000000e+00 : f32
    %880 = vector.broadcast %cst_229 : f32 to vector<2x128xf32>
    %881 = arith.addf %880, %879 : vector<2x128xf32>
    %882 = arith.divf %880, %881 : vector<2x128xf32>
    %883 = math.tanh %877 : vector<2x128xf32>
    %884 = vector.extract_strided_slice %882 {offsets = [0, 0], sizes = [2, 32], strides = [1, 1]} : vector<2x128xf32> to vector<2x32xf32>
    %885 = vector.extract_strided_slice %882 {offsets = [0, 32], sizes = [2, 32], strides = [1, 1]} : vector<2x128xf32> to vector<2x32xf32>
    %886 = vector.extract_strided_slice %883 {offsets = [0, 64], sizes = [2, 32], strides = [1, 1]} : vector<2x128xf32> to vector<2x32xf32>
    %887 = vector.extract_strided_slice %882 {offsets = [0, 96], sizes = [2, 32], strides = [1, 1]} : vector<2x128xf32> to vector<2x32xf32>
    %888 = arith.mulf %885, %725 : vector<2x32xf32>
    %889 = arith.mulf %884, %886 : vector<2x32xf32>
    %890 = arith.addf %888, %889 : vector<2x32xf32>
    %891 = math.tanh %890 : vector<2x32xf32>
    %892 = arith.mulf %887, %891 : vector<2x32xf32>
    %c0_230 = arith.constant 0 : index
    %c0_231 = arith.constant 0 : index
    %c0_232 = arith.constant 0 : index
    %893 = vector.load %arg2[%c0_230, %c0_231, %c0_232] : memref<7x32x128xf32, #tpu.memory_space<vmem>>, vector<1x32x128xf32>
    %894 = vector.shape_cast %893 : vector<1x32x128xf32> to vector<32x128xf32>
    %cst_233 = arith.constant dense<0.000000e+00> : vector<2x128xf32>
    %895 = tpu.matmul %892, %894, %cst_233 {dimension_numbers = #tpu.dot_dimension_numbers<[1], [0], [0], [1], [0, 0, 1, 1], [], []>} : vector<2x32xf32>, vector<32x128xf32>, vector<2x128xf32> -> vector<2x128xf32>
    %896 = vector.extract_strided_slice %872 {offsets = [0, 128], sizes = [2, 128], strides = [1, 1]} : vector<2x1024xf32> to vector<2x128xf32>
    %897 = arith.addf %895, %896 : vector<2x128xf32>
    %898 = arith.negf %897 : vector<2x128xf32>
    %899 = math.exp %898 : vector<2x128xf32>
    %cst_234 = arith.constant 1.000000e+00 : f32
    %900 = vector.broadcast %cst_234 : f32 to vector<2x128xf32>
    %901 = arith.addf %900, %899 : vector<2x128xf32>
    %902 = arith.divf %900, %901 : vector<2x128xf32>
    %903 = math.tanh %897 : vector<2x128xf32>
    %904 = vector.extract_strided_slice %902 {offsets = [0, 0], sizes = [2, 32], strides = [1, 1]} : vector<2x128xf32> to vector<2x32xf32>
    %905 = vector.extract_strided_slice %902 {offsets = [0, 32], sizes = [2, 32], strides = [1, 1]} : vector<2x128xf32> to vector<2x32xf32>
    %906 = vector.extract_strided_slice %903 {offsets = [0, 64], sizes = [2, 32], strides = [1, 1]} : vector<2x128xf32> to vector<2x32xf32>
    %907 = vector.extract_strided_slice %902 {offsets = [0, 96], sizes = [2, 32], strides = [1, 1]} : vector<2x128xf32> to vector<2x32xf32>
    %908 = arith.mulf %905, %745 : vector<2x32xf32>
    %909 = arith.mulf %904, %906 : vector<2x32xf32>
    %910 = arith.addf %908, %909 : vector<2x32xf32>
    %911 = math.tanh %910 : vector<2x32xf32>
    %912 = arith.mulf %907, %911 : vector<2x32xf32>
    %c1_235 = arith.constant 1 : index
    %c0_236 = arith.constant 0 : index
    %c0_237 = arith.constant 0 : index
    %913 = vector.load %arg2[%c1_235, %c0_236, %c0_237] : memref<7x32x128xf32, #tpu.memory_space<vmem>>, vector<1x32x128xf32>
    %914 = vector.shape_cast %913 : vector<1x32x128xf32> to vector<32x128xf32>
    %cst_238 = arith.constant dense<0.000000e+00> : vector<2x128xf32>
    %915 = tpu.matmul %912, %914, %cst_238 {dimension_numbers = #tpu.dot_dimension_numbers<[1], [0], [0], [1], [0, 0, 1, 1], [], []>} : vector<2x32xf32>, vector<32x128xf32>, vector<2x128xf32> -> vector<2x128xf32>
    %916 = vector.extract_strided_slice %872 {offsets = [0, 256], sizes = [2, 128], strides = [1, 1]} : vector<2x1024xf32> to vector<2x128xf32>
    %917 = arith.addf %915, %916 : vector<2x128xf32>
    %918 = arith.negf %917 : vector<2x128xf32>
    %919 = math.exp %918 : vector<2x128xf32>
    %cst_239 = arith.constant 1.000000e+00 : f32
    %920 = vector.broadcast %cst_239 : f32 to vector<2x128xf32>
    %921 = arith.addf %920, %919 : vector<2x128xf32>
    %922 = arith.divf %920, %921 : vector<2x128xf32>
    %923 = math.tanh %917 : vector<2x128xf32>
    %924 = vector.extract_strided_slice %922 {offsets = [0, 0], sizes = [2, 32], strides = [1, 1]} : vector<2x128xf32> to vector<2x32xf32>
    %925 = vector.extract_strided_slice %922 {offsets = [0, 32], sizes = [2, 32], strides = [1, 1]} : vector<2x128xf32> to vector<2x32xf32>
    %926 = vector.extract_strided_slice %923 {offsets = [0, 64], sizes = [2, 32], strides = [1, 1]} : vector<2x128xf32> to vector<2x32xf32>
    %927 = vector.extract_strided_slice %922 {offsets = [0, 96], sizes = [2, 32], strides = [1, 1]} : vector<2x128xf32> to vector<2x32xf32>
    %928 = arith.mulf %925, %765 : vector<2x32xf32>
    %929 = arith.mulf %924, %926 : vector<2x32xf32>
    %930 = arith.addf %928, %929 : vector<2x32xf32>
    %931 = math.tanh %930 : vector<2x32xf32>
    %932 = arith.mulf %927, %931 : vector<2x32xf32>
    %c2_240 = arith.constant 2 : index
    %c0_241 = arith.constant 0 : index
    %c0_242 = arith.constant 0 : index
    %933 = vector.load %arg2[%c2_240, %c0_241, %c0_242] : memref<7x32x128xf32, #tpu.memory_space<vmem>>, vector<1x32x128xf32>
    %934 = vector.shape_cast %933 : vector<1x32x128xf32> to vector<32x128xf32>
    %cst_243 = arith.constant dense<0.000000e+00> : vector<2x128xf32>
    %935 = tpu.matmul %932, %934, %cst_243 {dimension_numbers = #tpu.dot_dimension_numbers<[1], [0], [0], [1], [0, 0, 1, 1], [], []>} : vector<2x32xf32>, vector<32x128xf32>, vector<2x128xf32> -> vector<2x128xf32>
    %936 = vector.extract_strided_slice %872 {offsets = [0, 384], sizes = [2, 128], strides = [1, 1]} : vector<2x1024xf32> to vector<2x128xf32>
    %937 = arith.addf %935, %936 : vector<2x128xf32>
    %938 = arith.negf %937 : vector<2x128xf32>
    %939 = math.exp %938 : vector<2x128xf32>
    %cst_244 = arith.constant 1.000000e+00 : f32
    %940 = vector.broadcast %cst_244 : f32 to vector<2x128xf32>
    %941 = arith.addf %940, %939 : vector<2x128xf32>
    %942 = arith.divf %940, %941 : vector<2x128xf32>
    %943 = math.tanh %937 : vector<2x128xf32>
    %944 = vector.extract_strided_slice %942 {offsets = [0, 0], sizes = [2, 32], strides = [1, 1]} : vector<2x128xf32> to vector<2x32xf32>
    %945 = vector.extract_strided_slice %942 {offsets = [0, 32], sizes = [2, 32], strides = [1, 1]} : vector<2x128xf32> to vector<2x32xf32>
    %946 = vector.extract_strided_slice %943 {offsets = [0, 64], sizes = [2, 32], strides = [1, 1]} : vector<2x128xf32> to vector<2x32xf32>
    %947 = vector.extract_strided_slice %942 {offsets = [0, 96], sizes = [2, 32], strides = [1, 1]} : vector<2x128xf32> to vector<2x32xf32>
    %948 = arith.mulf %945, %785 : vector<2x32xf32>
    %949 = arith.mulf %944, %946 : vector<2x32xf32>
    %950 = arith.addf %948, %949 : vector<2x32xf32>
    %951 = math.tanh %950 : vector<2x32xf32>
    %952 = arith.mulf %947, %951 : vector<2x32xf32>
    %c3_245 = arith.constant 3 : index
    %c0_246 = arith.constant 0 : index
    %c0_247 = arith.constant 0 : index
    %953 = vector.load %arg2[%c3_245, %c0_246, %c0_247] : memref<7x32x128xf32, #tpu.memory_space<vmem>>, vector<1x32x128xf32>
    %954 = vector.shape_cast %953 : vector<1x32x128xf32> to vector<32x128xf32>
    %cst_248 = arith.constant dense<0.000000e+00> : vector<2x128xf32>
    %955 = tpu.matmul %952, %954, %cst_248 {dimension_numbers = #tpu.dot_dimension_numbers<[1], [0], [0], [1], [0, 0, 1, 1], [], []>} : vector<2x32xf32>, vector<32x128xf32>, vector<2x128xf32> -> vector<2x128xf32>
    %956 = vector.extract_strided_slice %872 {offsets = [0, 512], sizes = [2, 128], strides = [1, 1]} : vector<2x1024xf32> to vector<2x128xf32>
    %957 = arith.addf %955, %956 : vector<2x128xf32>
    %958 = arith.negf %957 : vector<2x128xf32>
    %959 = math.exp %958 : vector<2x128xf32>
    %cst_249 = arith.constant 1.000000e+00 : f32
    %960 = vector.broadcast %cst_249 : f32 to vector<2x128xf32>
    %961 = arith.addf %960, %959 : vector<2x128xf32>
    %962 = arith.divf %960, %961 : vector<2x128xf32>
    %963 = math.tanh %957 : vector<2x128xf32>
    %964 = vector.extract_strided_slice %962 {offsets = [0, 0], sizes = [2, 32], strides = [1, 1]} : vector<2x128xf32> to vector<2x32xf32>
    %965 = vector.extract_strided_slice %962 {offsets = [0, 32], sizes = [2, 32], strides = [1, 1]} : vector<2x128xf32> to vector<2x32xf32>
    %966 = vector.extract_strided_slice %963 {offsets = [0, 64], sizes = [2, 32], strides = [1, 1]} : vector<2x128xf32> to vector<2x32xf32>
    %967 = vector.extract_strided_slice %962 {offsets = [0, 96], sizes = [2, 32], strides = [1, 1]} : vector<2x128xf32> to vector<2x32xf32>
    %968 = arith.mulf %965, %805 : vector<2x32xf32>
    %969 = arith.mulf %964, %966 : vector<2x32xf32>
    %970 = arith.addf %968, %969 : vector<2x32xf32>
    %971 = math.tanh %970 : vector<2x32xf32>
    %972 = arith.mulf %967, %971 : vector<2x32xf32>
    %c4_250 = arith.constant 4 : index
    %c0_251 = arith.constant 0 : index
    %c0_252 = arith.constant 0 : index
    %973 = vector.load %arg2[%c4_250, %c0_251, %c0_252] : memref<7x32x128xf32, #tpu.memory_space<vmem>>, vector<1x32x128xf32>
    %974 = vector.shape_cast %973 : vector<1x32x128xf32> to vector<32x128xf32>
    %cst_253 = arith.constant dense<0.000000e+00> : vector<2x128xf32>
    %975 = tpu.matmul %972, %974, %cst_253 {dimension_numbers = #tpu.dot_dimension_numbers<[1], [0], [0], [1], [0, 0, 1, 1], [], []>} : vector<2x32xf32>, vector<32x128xf32>, vector<2x128xf32> -> vector<2x128xf32>
    %976 = vector.extract_strided_slice %872 {offsets = [0, 640], sizes = [2, 128], strides = [1, 1]} : vector<2x1024xf32> to vector<2x128xf32>
    %977 = arith.addf %975, %976 : vector<2x128xf32>
    %978 = arith.negf %977 : vector<2x128xf32>
    %979 = math.exp %978 : vector<2x128xf32>
    %cst_254 = arith.constant 1.000000e+00 : f32
    %980 = vector.broadcast %cst_254 : f32 to vector<2x128xf32>
    %981 = arith.addf %980, %979 : vector<2x128xf32>
    %982 = arith.divf %980, %981 : vector<2x128xf32>
    %983 = math.tanh %977 : vector<2x128xf32>
    %984 = vector.extract_strided_slice %982 {offsets = [0, 0], sizes = [2, 32], strides = [1, 1]} : vector<2x128xf32> to vector<2x32xf32>
    %985 = vector.extract_strided_slice %982 {offsets = [0, 32], sizes = [2, 32], strides = [1, 1]} : vector<2x128xf32> to vector<2x32xf32>
    %986 = vector.extract_strided_slice %983 {offsets = [0, 64], sizes = [2, 32], strides = [1, 1]} : vector<2x128xf32> to vector<2x32xf32>
    %987 = vector.extract_strided_slice %982 {offsets = [0, 96], sizes = [2, 32], strides = [1, 1]} : vector<2x128xf32> to vector<2x32xf32>
    %988 = arith.mulf %985, %825 : vector<2x32xf32>
    %989 = arith.mulf %984, %986 : vector<2x32xf32>
    %990 = arith.addf %988, %989 : vector<2x32xf32>
    %991 = math.tanh %990 : vector<2x32xf32>
    %992 = arith.mulf %987, %991 : vector<2x32xf32>
    %c5_255 = arith.constant 5 : index
    %c0_256 = arith.constant 0 : index
    %c0_257 = arith.constant 0 : index
    %993 = vector.load %arg2[%c5_255, %c0_256, %c0_257] : memref<7x32x128xf32, #tpu.memory_space<vmem>>, vector<1x32x128xf32>
    %994 = vector.shape_cast %993 : vector<1x32x128xf32> to vector<32x128xf32>
    %cst_258 = arith.constant dense<0.000000e+00> : vector<2x128xf32>
    %995 = tpu.matmul %992, %994, %cst_258 {dimension_numbers = #tpu.dot_dimension_numbers<[1], [0], [0], [1], [0, 0, 1, 1], [], []>} : vector<2x32xf32>, vector<32x128xf32>, vector<2x128xf32> -> vector<2x128xf32>
    %996 = vector.extract_strided_slice %872 {offsets = [0, 768], sizes = [2, 128], strides = [1, 1]} : vector<2x1024xf32> to vector<2x128xf32>
    %997 = arith.addf %995, %996 : vector<2x128xf32>
    %998 = arith.negf %997 : vector<2x128xf32>
    %999 = math.exp %998 : vector<2x128xf32>
    %cst_259 = arith.constant 1.000000e+00 : f32
    %1000 = vector.broadcast %cst_259 : f32 to vector<2x128xf32>
    %1001 = arith.addf %1000, %999 : vector<2x128xf32>
    %1002 = arith.divf %1000, %1001 : vector<2x128xf32>
    %1003 = math.tanh %997 : vector<2x128xf32>
    %1004 = vector.extract_strided_slice %1002 {offsets = [0, 0], sizes = [2, 32], strides = [1, 1]} : vector<2x128xf32> to vector<2x32xf32>
    %1005 = vector.extract_strided_slice %1002 {offsets = [0, 32], sizes = [2, 32], strides = [1, 1]} : vector<2x128xf32> to vector<2x32xf32>
    %1006 = vector.extract_strided_slice %1003 {offsets = [0, 64], sizes = [2, 32], strides = [1, 1]} : vector<2x128xf32> to vector<2x32xf32>
    %1007 = vector.extract_strided_slice %1002 {offsets = [0, 96], sizes = [2, 32], strides = [1, 1]} : vector<2x128xf32> to vector<2x32xf32>
    %1008 = arith.mulf %1005, %845 : vector<2x32xf32>
    %1009 = arith.mulf %1004, %1006 : vector<2x32xf32>
    %1010 = arith.addf %1008, %1009 : vector<2x32xf32>
    %1011 = math.tanh %1010 : vector<2x32xf32>
    %1012 = arith.mulf %1007, %1011 : vector<2x32xf32>
    %c6_260 = arith.constant 6 : index
    %c0_261 = arith.constant 0 : index
    %c0_262 = arith.constant 0 : index
    %1013 = vector.load %arg2[%c6_260, %c0_261, %c0_262] : memref<7x32x128xf32, #tpu.memory_space<vmem>>, vector<1x32x128xf32>
    %1014 = vector.shape_cast %1013 : vector<1x32x128xf32> to vector<32x128xf32>
    %cst_263 = arith.constant dense<0.000000e+00> : vector<2x128xf32>
    %1015 = tpu.matmul %1012, %1014, %cst_263 {dimension_numbers = #tpu.dot_dimension_numbers<[1], [0], [0], [1], [0, 0, 1, 1], [], []>} : vector<2x32xf32>, vector<32x128xf32>, vector<2x128xf32> -> vector<2x128xf32>
    %1016 = vector.extract_strided_slice %872 {offsets = [0, 896], sizes = [2, 128], strides = [1, 1]} : vector<2x1024xf32> to vector<2x128xf32>
    %1017 = arith.addf %1015, %1016 : vector<2x128xf32>
    %1018 = arith.negf %1017 : vector<2x128xf32>
    %1019 = math.exp %1018 : vector<2x128xf32>
    %cst_264 = arith.constant 1.000000e+00 : f32
    %1020 = vector.broadcast %cst_264 : f32 to vector<2x128xf32>
    %1021 = arith.addf %1020, %1019 : vector<2x128xf32>
    %1022 = arith.divf %1020, %1021 : vector<2x128xf32>
    %1023 = math.tanh %1017 : vector<2x128xf32>
    %1024 = vector.extract_strided_slice %1022 {offsets = [0, 0], sizes = [2, 32], strides = [1, 1]} : vector<2x128xf32> to vector<2x32xf32>
    %1025 = vector.extract_strided_slice %1022 {offsets = [0, 32], sizes = [2, 32], strides = [1, 1]} : vector<2x128xf32> to vector<2x32xf32>
    %1026 = vector.extract_strided_slice %1023 {offsets = [0, 64], sizes = [2, 32], strides = [1, 1]} : vector<2x128xf32> to vector<2x32xf32>
    %1027 = vector.extract_strided_slice %1022 {offsets = [0, 96], sizes = [2, 32], strides = [1, 1]} : vector<2x128xf32> to vector<2x32xf32>
    %1028 = arith.mulf %1025, %865 : vector<2x32xf32>
    %1029 = arith.mulf %1024, %1026 : vector<2x32xf32>
    %1030 = arith.addf %1028, %1029 : vector<2x32xf32>
    %1031 = math.tanh %1030 : vector<2x32xf32>
    %1032 = arith.mulf %1027, %1031 : vector<2x32xf32>
    %1033 = tpu.concatenate %892, %912, %932, %952, %972, %992, %1012, %1032 in 1 : vector<2x32xf32>, vector<2x32xf32>, vector<2x32xf32>, vector<2x32xf32>, vector<2x32xf32>, vector<2x32xf32>, vector<2x32xf32>, vector<2x32xf32> -> vector<2x256xf32>
    %c0_265 = arith.constant 0 : index
    %c0_266 = arith.constant 0 : index
    %1034 = vector.load %arg3[%c0_265, %c0_266] : memref<256x1024xf32, #tpu.memory_space<vmem>>, vector<256x1024xf32>
    %cst_267 = arith.constant dense<0.000000e+00> : vector<2x1024xf32>
    %1035 = tpu.matmul %1033, %1034, %cst_267 {dimension_numbers = #tpu.dot_dimension_numbers<[1], [0], [0], [1], [0, 0, 1, 1], [], []>} : vector<2x256xf32>, vector<256x1024xf32>, vector<2x1024xf32> -> vector<2x1024xf32>
    %1036 = vector.broadcast %1 : vector<1x1024xf32> to vector<2x1024xf32>
    %1037 = arith.addf %1035, %1036 : vector<2x1024xf32>
    %1038 = vector.broadcast %23 : vector<2x1xf32> to vector<2x128xf32>
    %1039 = vector.broadcast %0 : vector<1x128xf32> to vector<2x128xf32>
    %1040 = arith.mulf %1038, %1039 : vector<2x128xf32>
    %1041 = vector.extract_strided_slice %1037 {offsets = [0, 0], sizes = [2, 128], strides = [1, 1]} : vector<2x1024xf32> to vector<2x128xf32>
    %1042 = arith.addf %1040, %1041 : vector<2x128xf32>
    %1043 = arith.negf %1042 : vector<2x128xf32>
    %1044 = math.exp %1043 : vector<2x128xf32>
    %cst_268 = arith.constant 1.000000e+00 : f32
    %1045 = vector.broadcast %cst_268 : f32 to vector<2x128xf32>
    %1046 = arith.addf %1045, %1044 : vector<2x128xf32>
    %1047 = arith.divf %1045, %1046 : vector<2x128xf32>
    %1048 = math.tanh %1042 : vector<2x128xf32>
    %1049 = vector.extract_strided_slice %1047 {offsets = [0, 0], sizes = [2, 32], strides = [1, 1]} : vector<2x128xf32> to vector<2x32xf32>
    %1050 = vector.extract_strided_slice %1047 {offsets = [0, 32], sizes = [2, 32], strides = [1, 1]} : vector<2x128xf32> to vector<2x32xf32>
    %1051 = vector.extract_strided_slice %1048 {offsets = [0, 64], sizes = [2, 32], strides = [1, 1]} : vector<2x128xf32> to vector<2x32xf32>
    %1052 = vector.extract_strided_slice %1047 {offsets = [0, 96], sizes = [2, 32], strides = [1, 1]} : vector<2x128xf32> to vector<2x32xf32>
    %1053 = arith.mulf %1050, %890 : vector<2x32xf32>
    %1054 = arith.mulf %1049, %1051 : vector<2x32xf32>
    %1055 = arith.addf %1053, %1054 : vector<2x32xf32>
    %1056 = math.tanh %1055 : vector<2x32xf32>
    %1057 = arith.mulf %1052, %1056 : vector<2x32xf32>
    %c0_269 = arith.constant 0 : index
    %c0_270 = arith.constant 0 : index
    %c0_271 = arith.constant 0 : index
    %1058 = vector.load %arg2[%c0_269, %c0_270, %c0_271] : memref<7x32x128xf32, #tpu.memory_space<vmem>>, vector<1x32x128xf32>
    %1059 = vector.shape_cast %1058 : vector<1x32x128xf32> to vector<32x128xf32>
    %cst_272 = arith.constant dense<0.000000e+00> : vector<2x128xf32>
    %1060 = tpu.matmul %1057, %1059, %cst_272 {dimension_numbers = #tpu.dot_dimension_numbers<[1], [0], [0], [1], [0, 0, 1, 1], [], []>} : vector<2x32xf32>, vector<32x128xf32>, vector<2x128xf32> -> vector<2x128xf32>
    %1061 = vector.extract_strided_slice %1037 {offsets = [0, 128], sizes = [2, 128], strides = [1, 1]} : vector<2x1024xf32> to vector<2x128xf32>
    %1062 = arith.addf %1060, %1061 : vector<2x128xf32>
    %1063 = arith.negf %1062 : vector<2x128xf32>
    %1064 = math.exp %1063 : vector<2x128xf32>
    %cst_273 = arith.constant 1.000000e+00 : f32
    %1065 = vector.broadcast %cst_273 : f32 to vector<2x128xf32>
    %1066 = arith.addf %1065, %1064 : vector<2x128xf32>
    %1067 = arith.divf %1065, %1066 : vector<2x128xf32>
    %1068 = math.tanh %1062 : vector<2x128xf32>
    %1069 = vector.extract_strided_slice %1067 {offsets = [0, 0], sizes = [2, 32], strides = [1, 1]} : vector<2x128xf32> to vector<2x32xf32>
    %1070 = vector.extract_strided_slice %1067 {offsets = [0, 32], sizes = [2, 32], strides = [1, 1]} : vector<2x128xf32> to vector<2x32xf32>
    %1071 = vector.extract_strided_slice %1068 {offsets = [0, 64], sizes = [2, 32], strides = [1, 1]} : vector<2x128xf32> to vector<2x32xf32>
    %1072 = vector.extract_strided_slice %1067 {offsets = [0, 96], sizes = [2, 32], strides = [1, 1]} : vector<2x128xf32> to vector<2x32xf32>
    %1073 = arith.mulf %1070, %910 : vector<2x32xf32>
    %1074 = arith.mulf %1069, %1071 : vector<2x32xf32>
    %1075 = arith.addf %1073, %1074 : vector<2x32xf32>
    %1076 = math.tanh %1075 : vector<2x32xf32>
    %1077 = arith.mulf %1072, %1076 : vector<2x32xf32>
    %c1_274 = arith.constant 1 : index
    %c0_275 = arith.constant 0 : index
    %c0_276 = arith.constant 0 : index
    %1078 = vector.load %arg2[%c1_274, %c0_275, %c0_276] : memref<7x32x128xf32, #tpu.memory_space<vmem>>, vector<1x32x128xf32>
    %1079 = vector.shape_cast %1078 : vector<1x32x128xf32> to vector<32x128xf32>
    %cst_277 = arith.constant dense<0.000000e+00> : vector<2x128xf32>
    %1080 = tpu.matmul %1077, %1079, %cst_277 {dimension_numbers = #tpu.dot_dimension_numbers<[1], [0], [0], [1], [0, 0, 1, 1], [], []>} : vector<2x32xf32>, vector<32x128xf32>, vector<2x128xf32> -> vector<2x128xf32>
    %1081 = vector.extract_strided_slice %1037 {offsets = [0, 256], sizes = [2, 128], strides = [1, 1]} : vector<2x1024xf32> to vector<2x128xf32>
    %1082 = arith.addf %1080, %1081 : vector<2x128xf32>
    %1083 = arith.negf %1082 : vector<2x128xf32>
    %1084 = math.exp %1083 : vector<2x128xf32>
    %cst_278 = arith.constant 1.000000e+00 : f32
    %1085 = vector.broadcast %cst_278 : f32 to vector<2x128xf32>
    %1086 = arith.addf %1085, %1084 : vector<2x128xf32>
    %1087 = arith.divf %1085, %1086 : vector<2x128xf32>
    %1088 = math.tanh %1082 : vector<2x128xf32>
    %1089 = vector.extract_strided_slice %1087 {offsets = [0, 0], sizes = [2, 32], strides = [1, 1]} : vector<2x128xf32> to vector<2x32xf32>
    %1090 = vector.extract_strided_slice %1087 {offsets = [0, 32], sizes = [2, 32], strides = [1, 1]} : vector<2x128xf32> to vector<2x32xf32>
    %1091 = vector.extract_strided_slice %1088 {offsets = [0, 64], sizes = [2, 32], strides = [1, 1]} : vector<2x128xf32> to vector<2x32xf32>
    %1092 = vector.extract_strided_slice %1087 {offsets = [0, 96], sizes = [2, 32], strides = [1, 1]} : vector<2x128xf32> to vector<2x32xf32>
    %1093 = arith.mulf %1090, %930 : vector<2x32xf32>
    %1094 = arith.mulf %1089, %1091 : vector<2x32xf32>
    %1095 = arith.addf %1093, %1094 : vector<2x32xf32>
    %1096 = math.tanh %1095 : vector<2x32xf32>
    %1097 = arith.mulf %1092, %1096 : vector<2x32xf32>
    %c2_279 = arith.constant 2 : index
    %c0_280 = arith.constant 0 : index
    %c0_281 = arith.constant 0 : index
    %1098 = vector.load %arg2[%c2_279, %c0_280, %c0_281] : memref<7x32x128xf32, #tpu.memory_space<vmem>>, vector<1x32x128xf32>
    %1099 = vector.shape_cast %1098 : vector<1x32x128xf32> to vector<32x128xf32>
    %cst_282 = arith.constant dense<0.000000e+00> : vector<2x128xf32>
    %1100 = tpu.matmul %1097, %1099, %cst_282 {dimension_numbers = #tpu.dot_dimension_numbers<[1], [0], [0], [1], [0, 0, 1, 1], [], []>} : vector<2x32xf32>, vector<32x128xf32>, vector<2x128xf32> -> vector<2x128xf32>
    %1101 = vector.extract_strided_slice %1037 {offsets = [0, 384], sizes = [2, 128], strides = [1, 1]} : vector<2x1024xf32> to vector<2x128xf32>
    %1102 = arith.addf %1100, %1101 : vector<2x128xf32>
    %1103 = arith.negf %1102 : vector<2x128xf32>
    %1104 = math.exp %1103 : vector<2x128xf32>
    %cst_283 = arith.constant 1.000000e+00 : f32
    %1105 = vector.broadcast %cst_283 : f32 to vector<2x128xf32>
    %1106 = arith.addf %1105, %1104 : vector<2x128xf32>
    %1107 = arith.divf %1105, %1106 : vector<2x128xf32>
    %1108 = math.tanh %1102 : vector<2x128xf32>
    %1109 = vector.extract_strided_slice %1107 {offsets = [0, 0], sizes = [2, 32], strides = [1, 1]} : vector<2x128xf32> to vector<2x32xf32>
    %1110 = vector.extract_strided_slice %1107 {offsets = [0, 32], sizes = [2, 32], strides = [1, 1]} : vector<2x128xf32> to vector<2x32xf32>
    %1111 = vector.extract_strided_slice %1108 {offsets = [0, 64], sizes = [2, 32], strides = [1, 1]} : vector<2x128xf32> to vector<2x32xf32>
    %1112 = vector.extract_strided_slice %1107 {offsets = [0, 96], sizes = [2, 32], strides = [1, 1]} : vector<2x128xf32> to vector<2x32xf32>
    %1113 = arith.mulf %1110, %950 : vector<2x32xf32>
    %1114 = arith.mulf %1109, %1111 : vector<2x32xf32>
    %1115 = arith.addf %1113, %1114 : vector<2x32xf32>
    %1116 = math.tanh %1115 : vector<2x32xf32>
    %1117 = arith.mulf %1112, %1116 : vector<2x32xf32>
    %c3_284 = arith.constant 3 : index
    %c0_285 = arith.constant 0 : index
    %c0_286 = arith.constant 0 : index
    %1118 = vector.load %arg2[%c3_284, %c0_285, %c0_286] : memref<7x32x128xf32, #tpu.memory_space<vmem>>, vector<1x32x128xf32>
    %1119 = vector.shape_cast %1118 : vector<1x32x128xf32> to vector<32x128xf32>
    %cst_287 = arith.constant dense<0.000000e+00> : vector<2x128xf32>
    %1120 = tpu.matmul %1117, %1119, %cst_287 {dimension_numbers = #tpu.dot_dimension_numbers<[1], [0], [0], [1], [0, 0, 1, 1], [], []>} : vector<2x32xf32>, vector<32x128xf32>, vector<2x128xf32> -> vector<2x128xf32>
    %1121 = vector.extract_strided_slice %1037 {offsets = [0, 512], sizes = [2, 128], strides = [1, 1]} : vector<2x1024xf32> to vector<2x128xf32>
    %1122 = arith.addf %1120, %1121 : vector<2x128xf32>
    %1123 = arith.negf %1122 : vector<2x128xf32>
    %1124 = math.exp %1123 : vector<2x128xf32>
    %cst_288 = arith.constant 1.000000e+00 : f32
    %1125 = vector.broadcast %cst_288 : f32 to vector<2x128xf32>
    %1126 = arith.addf %1125, %1124 : vector<2x128xf32>
    %1127 = arith.divf %1125, %1126 : vector<2x128xf32>
    %1128 = math.tanh %1122 : vector<2x128xf32>
    %1129 = vector.extract_strided_slice %1127 {offsets = [0, 0], sizes = [2, 32], strides = [1, 1]} : vector<2x128xf32> to vector<2x32xf32>
    %1130 = vector.extract_strided_slice %1127 {offsets = [0, 32], sizes = [2, 32], strides = [1, 1]} : vector<2x128xf32> to vector<2x32xf32>
    %1131 = vector.extract_strided_slice %1128 {offsets = [0, 64], sizes = [2, 32], strides = [1, 1]} : vector<2x128xf32> to vector<2x32xf32>
    %1132 = vector.extract_strided_slice %1127 {offsets = [0, 96], sizes = [2, 32], strides = [1, 1]} : vector<2x128xf32> to vector<2x32xf32>
    %1133 = arith.mulf %1130, %970 : vector<2x32xf32>
    %1134 = arith.mulf %1129, %1131 : vector<2x32xf32>
    %1135 = arith.addf %1133, %1134 : vector<2x32xf32>
    %1136 = math.tanh %1135 : vector<2x32xf32>
    %1137 = arith.mulf %1132, %1136 : vector<2x32xf32>
    %c4_289 = arith.constant 4 : index
    %c0_290 = arith.constant 0 : index
    %c0_291 = arith.constant 0 : index
    %1138 = vector.load %arg2[%c4_289, %c0_290, %c0_291] : memref<7x32x128xf32, #tpu.memory_space<vmem>>, vector<1x32x128xf32>
    %1139 = vector.shape_cast %1138 : vector<1x32x128xf32> to vector<32x128xf32>
    %cst_292 = arith.constant dense<0.000000e+00> : vector<2x128xf32>
    %1140 = tpu.matmul %1137, %1139, %cst_292 {dimension_numbers = #tpu.dot_dimension_numbers<[1], [0], [0], [1], [0, 0, 1, 1], [], []>} : vector<2x32xf32>, vector<32x128xf32>, vector<2x128xf32> -> vector<2x128xf32>
    %1141 = vector.extract_strided_slice %1037 {offsets = [0, 640], sizes = [2, 128], strides = [1, 1]} : vector<2x1024xf32> to vector<2x128xf32>
    %1142 = arith.addf %1140, %1141 : vector<2x128xf32>
    %1143 = arith.negf %1142 : vector<2x128xf32>
    %1144 = math.exp %1143 : vector<2x128xf32>
    %cst_293 = arith.constant 1.000000e+00 : f32
    %1145 = vector.broadcast %cst_293 : f32 to vector<2x128xf32>
    %1146 = arith.addf %1145, %1144 : vector<2x128xf32>
    %1147 = arith.divf %1145, %1146 : vector<2x128xf32>
    %1148 = math.tanh %1142 : vector<2x128xf32>
    %1149 = vector.extract_strided_slice %1147 {offsets = [0, 0], sizes = [2, 32], strides = [1, 1]} : vector<2x128xf32> to vector<2x32xf32>
    %1150 = vector.extract_strided_slice %1147 {offsets = [0, 32], sizes = [2, 32], strides = [1, 1]} : vector<2x128xf32> to vector<2x32xf32>
    %1151 = vector.extract_strided_slice %1148 {offsets = [0, 64], sizes = [2, 32], strides = [1, 1]} : vector<2x128xf32> to vector<2x32xf32>
    %1152 = vector.extract_strided_slice %1147 {offsets = [0, 96], sizes = [2, 32], strides = [1, 1]} : vector<2x128xf32> to vector<2x32xf32>
    %1153 = arith.mulf %1150, %990 : vector<2x32xf32>
    %1154 = arith.mulf %1149, %1151 : vector<2x32xf32>
    %1155 = arith.addf %1153, %1154 : vector<2x32xf32>
    %1156 = math.tanh %1155 : vector<2x32xf32>
    %1157 = arith.mulf %1152, %1156 : vector<2x32xf32>
    %c5_294 = arith.constant 5 : index
    %c0_295 = arith.constant 0 : index
    %c0_296 = arith.constant 0 : index
    %1158 = vector.load %arg2[%c5_294, %c0_295, %c0_296] : memref<7x32x128xf32, #tpu.memory_space<vmem>>, vector<1x32x128xf32>
    %1159 = vector.shape_cast %1158 : vector<1x32x128xf32> to vector<32x128xf32>
    %cst_297 = arith.constant dense<0.000000e+00> : vector<2x128xf32>
    %1160 = tpu.matmul %1157, %1159, %cst_297 {dimension_numbers = #tpu.dot_dimension_numbers<[1], [0], [0], [1], [0, 0, 1, 1], [], []>} : vector<2x32xf32>, vector<32x128xf32>, vector<2x128xf32> -> vector<2x128xf32>
    %1161 = vector.extract_strided_slice %1037 {offsets = [0, 768], sizes = [2, 128], strides = [1, 1]} : vector<2x1024xf32> to vector<2x128xf32>
    %1162 = arith.addf %1160, %1161 : vector<2x128xf32>
    %1163 = arith.negf %1162 : vector<2x128xf32>
    %1164 = math.exp %1163 : vector<2x128xf32>
    %cst_298 = arith.constant 1.000000e+00 : f32
    %1165 = vector.broadcast %cst_298 : f32 to vector<2x128xf32>
    %1166 = arith.addf %1165, %1164 : vector<2x128xf32>
    %1167 = arith.divf %1165, %1166 : vector<2x128xf32>
    %1168 = math.tanh %1162 : vector<2x128xf32>
    %1169 = vector.extract_strided_slice %1167 {offsets = [0, 0], sizes = [2, 32], strides = [1, 1]} : vector<2x128xf32> to vector<2x32xf32>
    %1170 = vector.extract_strided_slice %1167 {offsets = [0, 32], sizes = [2, 32], strides = [1, 1]} : vector<2x128xf32> to vector<2x32xf32>
    %1171 = vector.extract_strided_slice %1168 {offsets = [0, 64], sizes = [2, 32], strides = [1, 1]} : vector<2x128xf32> to vector<2x32xf32>
    %1172 = vector.extract_strided_slice %1167 {offsets = [0, 96], sizes = [2, 32], strides = [1, 1]} : vector<2x128xf32> to vector<2x32xf32>
    %1173 = arith.mulf %1170, %1010 : vector<2x32xf32>
    %1174 = arith.mulf %1169, %1171 : vector<2x32xf32>
    %1175 = arith.addf %1173, %1174 : vector<2x32xf32>
    %1176 = math.tanh %1175 : vector<2x32xf32>
    %1177 = arith.mulf %1172, %1176 : vector<2x32xf32>
    %c6_299 = arith.constant 6 : index
    %c0_300 = arith.constant 0 : index
    %c0_301 = arith.constant 0 : index
    %1178 = vector.load %arg2[%c6_299, %c0_300, %c0_301] : memref<7x32x128xf32, #tpu.memory_space<vmem>>, vector<1x32x128xf32>
    %1179 = vector.shape_cast %1178 : vector<1x32x128xf32> to vector<32x128xf32>
    %cst_302 = arith.constant dense<0.000000e+00> : vector<2x128xf32>
    %1180 = tpu.matmul %1177, %1179, %cst_302 {dimension_numbers = #tpu.dot_dimension_numbers<[1], [0], [0], [1], [0, 0, 1, 1], [], []>} : vector<2x32xf32>, vector<32x128xf32>, vector<2x128xf32> -> vector<2x128xf32>
    %1181 = vector.extract_strided_slice %1037 {offsets = [0, 896], sizes = [2, 128], strides = [1, 1]} : vector<2x1024xf32> to vector<2x128xf32>
    %1182 = arith.addf %1180, %1181 : vector<2x128xf32>
    %1183 = arith.negf %1182 : vector<2x128xf32>
    %1184 = math.exp %1183 : vector<2x128xf32>
    %cst_303 = arith.constant 1.000000e+00 : f32
    %1185 = vector.broadcast %cst_303 : f32 to vector<2x128xf32>
    %1186 = arith.addf %1185, %1184 : vector<2x128xf32>
    %1187 = arith.divf %1185, %1186 : vector<2x128xf32>
    %1188 = math.tanh %1182 : vector<2x128xf32>
    %1189 = vector.extract_strided_slice %1187 {offsets = [0, 0], sizes = [2, 32], strides = [1, 1]} : vector<2x128xf32> to vector<2x32xf32>
    %1190 = vector.extract_strided_slice %1187 {offsets = [0, 32], sizes = [2, 32], strides = [1, 1]} : vector<2x128xf32> to vector<2x32xf32>
    %1191 = vector.extract_strided_slice %1188 {offsets = [0, 64], sizes = [2, 32], strides = [1, 1]} : vector<2x128xf32> to vector<2x32xf32>
    %1192 = vector.extract_strided_slice %1187 {offsets = [0, 96], sizes = [2, 32], strides = [1, 1]} : vector<2x128xf32> to vector<2x32xf32>
    %1193 = arith.mulf %1190, %1030 : vector<2x32xf32>
    %1194 = arith.mulf %1189, %1191 : vector<2x32xf32>
    %1195 = arith.addf %1193, %1194 : vector<2x32xf32>
    %1196 = math.tanh %1195 : vector<2x32xf32>
    %1197 = arith.mulf %1192, %1196 : vector<2x32xf32>
    %1198 = tpu.concatenate %1057, %1077, %1097, %1117, %1137, %1157, %1177, %1197 in 1 : vector<2x32xf32>, vector<2x32xf32>, vector<2x32xf32>, vector<2x32xf32>, vector<2x32xf32>, vector<2x32xf32>, vector<2x32xf32>, vector<2x32xf32> -> vector<2x256xf32>
    %c0_304 = arith.constant 0 : index
    %c0_305 = arith.constant 0 : index
    %1199 = vector.load %arg3[%c0_304, %c0_305] : memref<256x1024xf32, #tpu.memory_space<vmem>>, vector<256x1024xf32>
    %cst_306 = arith.constant dense<0.000000e+00> : vector<2x1024xf32>
    %1200 = tpu.matmul %1198, %1199, %cst_306 {dimension_numbers = #tpu.dot_dimension_numbers<[1], [0], [0], [1], [0, 0, 1, 1], [], []>} : vector<2x256xf32>, vector<256x1024xf32>, vector<2x1024xf32> -> vector<2x1024xf32>
    %1201 = vector.broadcast %1 : vector<1x1024xf32> to vector<2x1024xf32>
    %1202 = arith.addf %1200, %1201 : vector<2x1024xf32>
    %1203 = vector.broadcast %26 : vector<2x1xf32> to vector<2x128xf32>
    %1204 = vector.broadcast %0 : vector<1x128xf32> to vector<2x128xf32>
    %1205 = arith.mulf %1203, %1204 : vector<2x128xf32>
    %1206 = vector.extract_strided_slice %1202 {offsets = [0, 0], sizes = [2, 128], strides = [1, 1]} : vector<2x1024xf32> to vector<2x128xf32>
    %1207 = arith.addf %1205, %1206 : vector<2x128xf32>
    %1208 = arith.negf %1207 : vector<2x128xf32>
    %1209 = math.exp %1208 : vector<2x128xf32>
    %cst_307 = arith.constant 1.000000e+00 : f32
    %1210 = vector.broadcast %cst_307 : f32 to vector<2x128xf32>
    %1211 = arith.addf %1210, %1209 : vector<2x128xf32>
    %1212 = arith.divf %1210, %1211 : vector<2x128xf32>
    %1213 = math.tanh %1207 : vector<2x128xf32>
    %1214 = vector.extract_strided_slice %1212 {offsets = [0, 0], sizes = [2, 32], strides = [1, 1]} : vector<2x128xf32> to vector<2x32xf32>
    %1215 = vector.extract_strided_slice %1212 {offsets = [0, 32], sizes = [2, 32], strides = [1, 1]} : vector<2x128xf32> to vector<2x32xf32>
    %1216 = vector.extract_strided_slice %1213 {offsets = [0, 64], sizes = [2, 32], strides = [1, 1]} : vector<2x128xf32> to vector<2x32xf32>
    %1217 = vector.extract_strided_slice %1212 {offsets = [0, 96], sizes = [2, 32], strides = [1, 1]} : vector<2x128xf32> to vector<2x32xf32>
    %1218 = arith.mulf %1215, %1055 : vector<2x32xf32>
    %1219 = arith.mulf %1214, %1216 : vector<2x32xf32>
    %1220 = arith.addf %1218, %1219 : vector<2x32xf32>
    %1221 = math.tanh %1220 : vector<2x32xf32>
    %1222 = arith.mulf %1217, %1221 : vector<2x32xf32>
    %c0_308 = arith.constant 0 : index
    %c0_309 = arith.constant 0 : index
    %c0_310 = arith.constant 0 : index
    %1223 = vector.load %arg2[%c0_308, %c0_309, %c0_310] : memref<7x32x128xf32, #tpu.memory_space<vmem>>, vector<1x32x128xf32>
    %1224 = vector.shape_cast %1223 : vector<1x32x128xf32> to vector<32x128xf32>
    %cst_311 = arith.constant dense<0.000000e+00> : vector<2x128xf32>
    %1225 = tpu.matmul %1222, %1224, %cst_311 {dimension_numbers = #tpu.dot_dimension_numbers<[1], [0], [0], [1], [0, 0, 1, 1], [], []>} : vector<2x32xf32>, vector<32x128xf32>, vector<2x128xf32> -> vector<2x128xf32>
    %1226 = vector.extract_strided_slice %1202 {offsets = [0, 128], sizes = [2, 128], strides = [1, 1]} : vector<2x1024xf32> to vector<2x128xf32>
    %1227 = arith.addf %1225, %1226 : vector<2x128xf32>
    %1228 = arith.negf %1227 : vector<2x128xf32>
    %1229 = math.exp %1228 : vector<2x128xf32>
    %cst_312 = arith.constant 1.000000e+00 : f32
    %1230 = vector.broadcast %cst_312 : f32 to vector<2x128xf32>
    %1231 = arith.addf %1230, %1229 : vector<2x128xf32>
    %1232 = arith.divf %1230, %1231 : vector<2x128xf32>
    %1233 = math.tanh %1227 : vector<2x128xf32>
    %1234 = vector.extract_strided_slice %1232 {offsets = [0, 0], sizes = [2, 32], strides = [1, 1]} : vector<2x128xf32> to vector<2x32xf32>
    %1235 = vector.extract_strided_slice %1232 {offsets = [0, 32], sizes = [2, 32], strides = [1, 1]} : vector<2x128xf32> to vector<2x32xf32>
    %1236 = vector.extract_strided_slice %1233 {offsets = [0, 64], sizes = [2, 32], strides = [1, 1]} : vector<2x128xf32> to vector<2x32xf32>
    %1237 = vector.extract_strided_slice %1232 {offsets = [0, 96], sizes = [2, 32], strides = [1, 1]} : vector<2x128xf32> to vector<2x32xf32>
    %1238 = arith.mulf %1235, %1075 : vector<2x32xf32>
    %1239 = arith.mulf %1234, %1236 : vector<2x32xf32>
    %1240 = arith.addf %1238, %1239 : vector<2x32xf32>
    %1241 = math.tanh %1240 : vector<2x32xf32>
    %1242 = arith.mulf %1237, %1241 : vector<2x32xf32>
    %c1_313 = arith.constant 1 : index
    %c0_314 = arith.constant 0 : index
    %c0_315 = arith.constant 0 : index
    %1243 = vector.load %arg2[%c1_313, %c0_314, %c0_315] : memref<7x32x128xf32, #tpu.memory_space<vmem>>, vector<1x32x128xf32>
    %1244 = vector.shape_cast %1243 : vector<1x32x128xf32> to vector<32x128xf32>
    %cst_316 = arith.constant dense<0.000000e+00> : vector<2x128xf32>
    %1245 = tpu.matmul %1242, %1244, %cst_316 {dimension_numbers = #tpu.dot_dimension_numbers<[1], [0], [0], [1], [0, 0, 1, 1], [], []>} : vector<2x32xf32>, vector<32x128xf32>, vector<2x128xf32> -> vector<2x128xf32>
    %1246 = vector.extract_strided_slice %1202 {offsets = [0, 256], sizes = [2, 128], strides = [1, 1]} : vector<2x1024xf32> to vector<2x128xf32>
    %1247 = arith.addf %1245, %1246 : vector<2x128xf32>
    %1248 = arith.negf %1247 : vector<2x128xf32>
    %1249 = math.exp %1248 : vector<2x128xf32>
    %cst_317 = arith.constant 1.000000e+00 : f32
    %1250 = vector.broadcast %cst_317 : f32 to vector<2x128xf32>
    %1251 = arith.addf %1250, %1249 : vector<2x128xf32>
    %1252 = arith.divf %1250, %1251 : vector<2x128xf32>
    %1253 = math.tanh %1247 : vector<2x128xf32>
    %1254 = vector.extract_strided_slice %1252 {offsets = [0, 0], sizes = [2, 32], strides = [1, 1]} : vector<2x128xf32> to vector<2x32xf32>
    %1255 = vector.extract_strided_slice %1252 {offsets = [0, 32], sizes = [2, 32], strides = [1, 1]} : vector<2x128xf32> to vector<2x32xf32>
    %1256 = vector.extract_strided_slice %1253 {offsets = [0, 64], sizes = [2, 32], strides = [1, 1]} : vector<2x128xf32> to vector<2x32xf32>
    %1257 = vector.extract_strided_slice %1252 {offsets = [0, 96], sizes = [2, 32], strides = [1, 1]} : vector<2x128xf32> to vector<2x32xf32>
    %1258 = arith.mulf %1255, %1095 : vector<2x32xf32>
    %1259 = arith.mulf %1254, %1256 : vector<2x32xf32>
    %1260 = arith.addf %1258, %1259 : vector<2x32xf32>
    %1261 = math.tanh %1260 : vector<2x32xf32>
    %1262 = arith.mulf %1257, %1261 : vector<2x32xf32>
    %c2_318 = arith.constant 2 : index
    %c0_319 = arith.constant 0 : index
    %c0_320 = arith.constant 0 : index
    %1263 = vector.load %arg2[%c2_318, %c0_319, %c0_320] : memref<7x32x128xf32, #tpu.memory_space<vmem>>, vector<1x32x128xf32>
    %1264 = vector.shape_cast %1263 : vector<1x32x128xf32> to vector<32x128xf32>
    %cst_321 = arith.constant dense<0.000000e+00> : vector<2x128xf32>
    %1265 = tpu.matmul %1262, %1264, %cst_321 {dimension_numbers = #tpu.dot_dimension_numbers<[1], [0], [0], [1], [0, 0, 1, 1], [], []>} : vector<2x32xf32>, vector<32x128xf32>, vector<2x128xf32> -> vector<2x128xf32>
    %1266 = vector.extract_strided_slice %1202 {offsets = [0, 384], sizes = [2, 128], strides = [1, 1]} : vector<2x1024xf32> to vector<2x128xf32>
    %1267 = arith.addf %1265, %1266 : vector<2x128xf32>
    %1268 = arith.negf %1267 : vector<2x128xf32>
    %1269 = math.exp %1268 : vector<2x128xf32>
    %cst_322 = arith.constant 1.000000e+00 : f32
    %1270 = vector.broadcast %cst_322 : f32 to vector<2x128xf32>
    %1271 = arith.addf %1270, %1269 : vector<2x128xf32>
    %1272 = arith.divf %1270, %1271 : vector<2x128xf32>
    %1273 = math.tanh %1267 : vector<2x128xf32>
    %1274 = vector.extract_strided_slice %1272 {offsets = [0, 0], sizes = [2, 32], strides = [1, 1]} : vector<2x128xf32> to vector<2x32xf32>
    %1275 = vector.extract_strided_slice %1272 {offsets = [0, 32], sizes = [2, 32], strides = [1, 1]} : vector<2x128xf32> to vector<2x32xf32>
    %1276 = vector.extract_strided_slice %1273 {offsets = [0, 64], sizes = [2, 32], strides = [1, 1]} : vector<2x128xf32> to vector<2x32xf32>
    %1277 = vector.extract_strided_slice %1272 {offsets = [0, 96], sizes = [2, 32], strides = [1, 1]} : vector<2x128xf32> to vector<2x32xf32>
    %1278 = arith.mulf %1275, %1115 : vector<2x32xf32>
    %1279 = arith.mulf %1274, %1276 : vector<2x32xf32>
    %1280 = arith.addf %1278, %1279 : vector<2x32xf32>
    %1281 = math.tanh %1280 : vector<2x32xf32>
    %1282 = arith.mulf %1277, %1281 : vector<2x32xf32>
    %c3_323 = arith.constant 3 : index
    %c0_324 = arith.constant 0 : index
    %c0_325 = arith.constant 0 : index
    %1283 = vector.load %arg2[%c3_323, %c0_324, %c0_325] : memref<7x32x128xf32, #tpu.memory_space<vmem>>, vector<1x32x128xf32>
    %1284 = vector.shape_cast %1283 : vector<1x32x128xf32> to vector<32x128xf32>
    %cst_326 = arith.constant dense<0.000000e+00> : vector<2x128xf32>
    %1285 = tpu.matmul %1282, %1284, %cst_326 {dimension_numbers = #tpu.dot_dimension_numbers<[1], [0], [0], [1], [0, 0, 1, 1], [], []>} : vector<2x32xf32>, vector<32x128xf32>, vector<2x128xf32> -> vector<2x128xf32>
    %1286 = vector.extract_strided_slice %1202 {offsets = [0, 512], sizes = [2, 128], strides = [1, 1]} : vector<2x1024xf32> to vector<2x128xf32>
    %1287 = arith.addf %1285, %1286 : vector<2x128xf32>
    %1288 = arith.negf %1287 : vector<2x128xf32>
    %1289 = math.exp %1288 : vector<2x128xf32>
    %cst_327 = arith.constant 1.000000e+00 : f32
    %1290 = vector.broadcast %cst_327 : f32 to vector<2x128xf32>
    %1291 = arith.addf %1290, %1289 : vector<2x128xf32>
    %1292 = arith.divf %1290, %1291 : vector<2x128xf32>
    %1293 = math.tanh %1287 : vector<2x128xf32>
    %1294 = vector.extract_strided_slice %1292 {offsets = [0, 0], sizes = [2, 32], strides = [1, 1]} : vector<2x128xf32> to vector<2x32xf32>
    %1295 = vector.extract_strided_slice %1292 {offsets = [0, 32], sizes = [2, 32], strides = [1, 1]} : vector<2x128xf32> to vector<2x32xf32>
    %1296 = vector.extract_strided_slice %1293 {offsets = [0, 64], sizes = [2, 32], strides = [1, 1]} : vector<2x128xf32> to vector<2x32xf32>
    %1297 = vector.extract_strided_slice %1292 {offsets = [0, 96], sizes = [2, 32], strides = [1, 1]} : vector<2x128xf32> to vector<2x32xf32>
    %1298 = arith.mulf %1295, %1135 : vector<2x32xf32>
    %1299 = arith.mulf %1294, %1296 : vector<2x32xf32>
    %1300 = arith.addf %1298, %1299 : vector<2x32xf32>
    %1301 = math.tanh %1300 : vector<2x32xf32>
    %1302 = arith.mulf %1297, %1301 : vector<2x32xf32>
    %c4_328 = arith.constant 4 : index
    %c0_329 = arith.constant 0 : index
    %c0_330 = arith.constant 0 : index
    %1303 = vector.load %arg2[%c4_328, %c0_329, %c0_330] : memref<7x32x128xf32, #tpu.memory_space<vmem>>, vector<1x32x128xf32>
    %1304 = vector.shape_cast %1303 : vector<1x32x128xf32> to vector<32x128xf32>
    %cst_331 = arith.constant dense<0.000000e+00> : vector<2x128xf32>
    %1305 = tpu.matmul %1302, %1304, %cst_331 {dimension_numbers = #tpu.dot_dimension_numbers<[1], [0], [0], [1], [0, 0, 1, 1], [], []>} : vector<2x32xf32>, vector<32x128xf32>, vector<2x128xf32> -> vector<2x128xf32>
    %1306 = vector.extract_strided_slice %1202 {offsets = [0, 640], sizes = [2, 128], strides = [1, 1]} : vector<2x1024xf32> to vector<2x128xf32>
    %1307 = arith.addf %1305, %1306 : vector<2x128xf32>
    %1308 = arith.negf %1307 : vector<2x128xf32>
    %1309 = math.exp %1308 : vector<2x128xf32>
    %cst_332 = arith.constant 1.000000e+00 : f32
    %1310 = vector.broadcast %cst_332 : f32 to vector<2x128xf32>
    %1311 = arith.addf %1310, %1309 : vector<2x128xf32>
    %1312 = arith.divf %1310, %1311 : vector<2x128xf32>
    %1313 = math.tanh %1307 : vector<2x128xf32>
    %1314 = vector.extract_strided_slice %1312 {offsets = [0, 0], sizes = [2, 32], strides = [1, 1]} : vector<2x128xf32> to vector<2x32xf32>
    %1315 = vector.extract_strided_slice %1312 {offsets = [0, 32], sizes = [2, 32], strides = [1, 1]} : vector<2x128xf32> to vector<2x32xf32>
    %1316 = vector.extract_strided_slice %1313 {offsets = [0, 64], sizes = [2, 32], strides = [1, 1]} : vector<2x128xf32> to vector<2x32xf32>
    %1317 = vector.extract_strided_slice %1312 {offsets = [0, 96], sizes = [2, 32], strides = [1, 1]} : vector<2x128xf32> to vector<2x32xf32>
    %1318 = arith.mulf %1315, %1155 : vector<2x32xf32>
    %1319 = arith.mulf %1314, %1316 : vector<2x32xf32>
    %1320 = arith.addf %1318, %1319 : vector<2x32xf32>
    %1321 = math.tanh %1320 : vector<2x32xf32>
    %1322 = arith.mulf %1317, %1321 : vector<2x32xf32>
    %c5_333 = arith.constant 5 : index
    %c0_334 = arith.constant 0 : index
    %c0_335 = arith.constant 0 : index
    %1323 = vector.load %arg2[%c5_333, %c0_334, %c0_335] : memref<7x32x128xf32, #tpu.memory_space<vmem>>, vector<1x32x128xf32>
    %1324 = vector.shape_cast %1323 : vector<1x32x128xf32> to vector<32x128xf32>
    %cst_336 = arith.constant dense<0.000000e+00> : vector<2x128xf32>
    %1325 = tpu.matmul %1322, %1324, %cst_336 {dimension_numbers = #tpu.dot_dimension_numbers<[1], [0], [0], [1], [0, 0, 1, 1], [], []>} : vector<2x32xf32>, vector<32x128xf32>, vector<2x128xf32> -> vector<2x128xf32>
    %1326 = vector.extract_strided_slice %1202 {offsets = [0, 768], sizes = [2, 128], strides = [1, 1]} : vector<2x1024xf32> to vector<2x128xf32>
    %1327 = arith.addf %1325, %1326 : vector<2x128xf32>
    %1328 = arith.negf %1327 : vector<2x128xf32>
    %1329 = math.exp %1328 : vector<2x128xf32>
    %cst_337 = arith.constant 1.000000e+00 : f32
    %1330 = vector.broadcast %cst_337 : f32 to vector<2x128xf32>
    %1331 = arith.addf %1330, %1329 : vector<2x128xf32>
    %1332 = arith.divf %1330, %1331 : vector<2x128xf32>
    %1333 = math.tanh %1327 : vector<2x128xf32>
    %1334 = vector.extract_strided_slice %1332 {offsets = [0, 0], sizes = [2, 32], strides = [1, 1]} : vector<2x128xf32> to vector<2x32xf32>
    %1335 = vector.extract_strided_slice %1332 {offsets = [0, 32], sizes = [2, 32], strides = [1, 1]} : vector<2x128xf32> to vector<2x32xf32>
    %1336 = vector.extract_strided_slice %1333 {offsets = [0, 64], sizes = [2, 32], strides = [1, 1]} : vector<2x128xf32> to vector<2x32xf32>
    %1337 = vector.extract_strided_slice %1332 {offsets = [0, 96], sizes = [2, 32], strides = [1, 1]} : vector<2x128xf32> to vector<2x32xf32>
    %1338 = arith.mulf %1335, %1175 : vector<2x32xf32>
    %1339 = arith.mulf %1334, %1336 : vector<2x32xf32>
    %1340 = arith.addf %1338, %1339 : vector<2x32xf32>
    %1341 = math.tanh %1340 : vector<2x32xf32>
    %1342 = arith.mulf %1337, %1341 : vector<2x32xf32>
    %c6_338 = arith.constant 6 : index
    %c0_339 = arith.constant 0 : index
    %c0_340 = arith.constant 0 : index
    %1343 = vector.load %arg2[%c6_338, %c0_339, %c0_340] : memref<7x32x128xf32, #tpu.memory_space<vmem>>, vector<1x32x128xf32>
    %1344 = vector.shape_cast %1343 : vector<1x32x128xf32> to vector<32x128xf32>
    %cst_341 = arith.constant dense<0.000000e+00> : vector<2x128xf32>
    %1345 = tpu.matmul %1342, %1344, %cst_341 {dimension_numbers = #tpu.dot_dimension_numbers<[1], [0], [0], [1], [0, 0, 1, 1], [], []>} : vector<2x32xf32>, vector<32x128xf32>, vector<2x128xf32> -> vector<2x128xf32>
    %1346 = vector.extract_strided_slice %1202 {offsets = [0, 896], sizes = [2, 128], strides = [1, 1]} : vector<2x1024xf32> to vector<2x128xf32>
    %1347 = arith.addf %1345, %1346 : vector<2x128xf32>
    %1348 = arith.negf %1347 : vector<2x128xf32>
    %1349 = math.exp %1348 : vector<2x128xf32>
    %cst_342 = arith.constant 1.000000e+00 : f32
    %1350 = vector.broadcast %cst_342 : f32 to vector<2x128xf32>
    %1351 = arith.addf %1350, %1349 : vector<2x128xf32>
    %1352 = arith.divf %1350, %1351 : vector<2x128xf32>
    %1353 = math.tanh %1347 : vector<2x128xf32>
    %1354 = vector.extract_strided_slice %1352 {offsets = [0, 0], sizes = [2, 32], strides = [1, 1]} : vector<2x128xf32> to vector<2x32xf32>
    %1355 = vector.extract_strided_slice %1352 {offsets = [0, 32], sizes = [2, 32], strides = [1, 1]} : vector<2x128xf32> to vector<2x32xf32>
    %1356 = vector.extract_strided_slice %1353 {offsets = [0, 64], sizes = [2, 32], strides = [1, 1]} : vector<2x128xf32> to vector<2x32xf32>
    %1357 = vector.extract_strided_slice %1352 {offsets = [0, 96], sizes = [2, 32], strides = [1, 1]} : vector<2x128xf32> to vector<2x32xf32>
    %1358 = arith.mulf %1355, %1195 : vector<2x32xf32>
    %1359 = arith.mulf %1354, %1356 : vector<2x32xf32>
    %1360 = arith.addf %1358, %1359 : vector<2x32xf32>
    %1361 = math.tanh %1360 : vector<2x32xf32>
    %1362 = arith.mulf %1357, %1361 : vector<2x32xf32>
    %1363 = tpu.concatenate %207, %372, %537, %702, %867, %1032, %1197, %1362 in 1 : vector<2x32xf32>, vector<2x32xf32>, vector<2x32xf32>, vector<2x32xf32>, vector<2x32xf32>, vector<2x32xf32>, vector<2x32xf32>, vector<2x32xf32> -> vector<2x256xf32>
    %c0_343 = arith.constant 0 : index
    %c0_344 = arith.constant 0 : index
    %1364 = vector.load %arg7[%c0_343, %c0_344] : memref<256x512xf32, #tpu.memory_space<vmem>>, vector<256x512xf32>
    %cst_345 = arith.constant dense<0.000000e+00> : vector<2x512xf32>
    %1365 = tpu.matmul %1363, %1364, %cst_345 {dimension_numbers = #tpu.dot_dimension_numbers<[1], [0], [0], [1], [0, 0, 1, 1], [], []>} : vector<2x256xf32>, vector<256x512xf32>, vector<2x512xf32> -> vector<2x512xf32>
    %c0_346 = arith.constant 0 : index
    %c0_347 = arith.constant 0 : index
    %1366 = vector.load %arg8[%c0_346, %c0_347] : memref<1x512xf32, #tpu.memory_space<vmem>>, vector<1x512xf32>
    %1367 = vector.broadcast %1366 : vector<1x512xf32> to vector<2x512xf32>
    %1368 = arith.addf %1365, %1367 : vector<2x512xf32>
    %c0_348 = arith.constant 0 : index
    %c0_349 = arith.constant 0 : index
    %1369 = vector.load %arg9[%c0_348, %c0_349] : memref<2x512xf32, #tpu.memory_space<vmem>>, vector<2x512xf32>
    tpu.vector_store %arg9[%c0_348, %c0_349], %1368 {strides = array<i32>} : memref<2x512xf32, #tpu.memory_space<vmem>>, vector<2x512xf32>,
    return
  }
}

</mosaic_0001>

<llo_original>
// kernel: tpu_custom_call.1
$region0: #{tpu_custom_call.1}
  #allocation0 [shape = 'u32[]', space=smem, size = 0x4, offset = 0x4, fixed_abs, tag = 'smem constant byte address 0x4 - core index']
  #allocation1 [shape = 'u32[144,128]{1,0:T(1,128)}', space=vmem, size = 0x12000, scoped, tag = 'internal scratch']
  %s0 = inlined_call_operand.hbm [shape: f32[2,64], index: 0, kind: input, shape index: {}]
  %s1 = inlined_call_operand.vmem [shape: f32[1,128], index: 1, kind: input, shape index: {}]
  %s2 = inlined_call_operand.hbm [shape: f32[7,32,128], index: 2, kind: input, shape index: {}]
  %s3 = inlined_call_operand.hbm [shape: f32[256,1024], index: 3, kind: input, shape index: {}]
  %s4 = inlined_call_operand.hbm [shape: f32[1,1024], index: 4, kind: input, shape index: {}]
  %s5 = inlined_call_operand.vmem [shape: f32[2,256], index: 5, kind: input, shape index: {}]
  %s6 = inlined_call_operand.vmem [shape: f32[8,2,32], index: 6, kind: input, shape index: {}]
  %s7 = inlined_call_operand.hbm [shape: f32[256,512], index: 7, kind: input, shape index: {}]
  %s8 = inlined_call_operand.vmem [shape: f32[1,512], index: 8, kind: input, shape index: {}]
  %s9 = inlined_call_operand.hbm [shape: f32[2,512], index: 9, kind: output, shape index: {}]
  %s10 = sld [smem:[#allocation0]]
  $region66: #{tpu_custom_call.1} parent=0
    _
  %s12 = ssub.s32 1, %s10
  %s13 = scalar_select 0, %s12, %s10
  $region1: #{tpu_custom_call.1} parent=0
    #allocation2 [shape = 'u8[1024]{0}', space=vmem, size = 0x400, scoped, tag = 'input window, operand 0, single buffered']
    #allocation3 [shape = 's32[1]{0}', space=sflag, size = 0x4, scoped, tag = 'scoped memory for tpu_custom_call.1']
    #allocation4 [shape = 's32[1]{0}', space=sflag, size = 0x4, scoped, tag = 'scoped memory for tpu_custom_call.1']
    #allocation5 [shape = 'u8[114688]{0}', space=vmem, size = 0x1c000, scoped, tag = 'input window, operand 2, single buffered']
    #allocation6 [shape = 's32[1]{0}', space=sflag, size = 0x4, scoped, tag = 'scoped memory for tpu_custom_call.1']
    #allocation7 [shape = 'u8[1048576]{0}', space=vmem, size = 0x100000, scoped, tag = 'input window, operand 3, single buffered']
    #allocation8 [shape = 'u8[4096]{0}', space=vmem, size = 0x1000, scoped, tag = 'input window, operand 4, single buffered']
    #allocation9 [shape = 's32[1]{0}', space=sflag, size = 0x4, scoped, tag = 'scoped memory for tpu_custom_call.1']
    #allocation10 [shape = 'u8[524288]{0}', space=vmem, size = 0x80000, scoped, tag = 'input window, operand 7, single buffered']
    #allocation11 [shape = 'u8[4096]{0}', space=vmem, size = 0x1000, scoped, tag = 'output window, operand 0, single buffered']
    %14 = vsyncpa [#allocation3], 0
    %15 = vsyncpa [#allocation6], 0
    %16 = vsyncpa [#allocation9], 0
    %17 = vsyncpa [#allocation4], 0
    // Predicated region
    $region2: #{tpu_custom_call.1} parent=1 // pred_check
      _
    $region3: #{tpu_custom_call.1} parent=1 // pred_check_branch
      %19 = sbr.rel (0) target = $region5
    $region4: #{tpu_custom_call.1} parent=1 // pred_region
      %s21 = ssub.s32 32, 32
      %22 = vsyncadd [#allocation3], %s21
      %s24 = sshll.u32 [#allocation2], 4
      %s25 = int_to_ptr.vmem [resolvable:$true] %s24
      %27 = dma.hbm_to_vmem [thread:$0]  %s0, 32, %s25, [#allocation3]
    $region5: #{tpu_custom_call.1} parent=1 // pred_fallthru
      _
    // Predicated region
    $region6: #{tpu_custom_call.1} parent=1 // pred_check
      _
    $region7: #{tpu_custom_call.1} parent=1 // pred_check_branch
      %29 = sbr.rel (0) target = $region9
    $region8: #{tpu_custom_call.1} parent=1 // pred_region
      _
    $region9: #{tpu_custom_call.1} parent=1 // pred_fallthru
      _
    // Predicated region
    $region10: #{tpu_custom_call.1} parent=1 // pred_check
      _
    $region11: #{tpu_custom_call.1} parent=1 // pred_check_branch
      %31 = sbr.rel (0) target = $region13
    $region12: #{tpu_custom_call.1} parent=1 // pred_region
      %s33 = ssub.s32 3584, 3584
      %34 = vsyncadd [#allocation6], %s33
      %s35 = sshll.u32 [#allocation5], 4
      %s36 = int_to_ptr.vmem [resolvable:$true] %s35
      %41 = dma.hbm_to_vmem [thread:$0]  %s2, 3584, %s36, [#allocation6], 128, 128, 8
    $region13: #{tpu_custom_call.1} parent=1 // pred_fallthru
      _
    // Predicated region
    $region14: #{tpu_custom_call.1} parent=1 // pred_check
      _
    $region15: #{tpu_custom_call.1} parent=1 // pred_check_branch
      %43 = sbr.rel (0) target = $region17
    $region16: #{tpu_custom_call.1} parent=1 // pred_region
      %s45 = ssub.s32 32768, 32768
      %46 = vsyncadd [#allocation6], %s45
      %s47 = sshll.u32 [#allocation7], 4
      %s48 = int_to_ptr.vmem [resolvable:$true] %s47
      %53 = dma.hbm_to_vmem [thread:$0]  %s3, 32768, %s48, [#allocation6], 1024, 1024, 64
    $region17: #{tpu_custom_call.1} parent=1 // pred_fallthru
      _
    // Predicated region
    $region18: #{tpu_custom_call.1} parent=1 // pred_check
      _
    $region19: #{tpu_custom_call.1} parent=1 // pred_check_branch
      %55 = sbr.rel (0) target = $region21
    $region20: #{tpu_custom_call.1} parent=1 // pred_region
      %s57 = ssub.s32 128, 128
      %58 = vsyncadd [#allocation9], %s57
      %s60 = sshll.u32 [#allocation8], 4
      %s61 = int_to_ptr.vmem [resolvable:$true] %s60
      %63 = dma.hbm_to_vmem [thread:$0]  %s4, 128, %s61, [#allocation9]
    $region21: #{tpu_custom_call.1} parent=1 // pred_fallthru
      _
    // Predicated region
    $region22: #{tpu_custom_call.1} parent=1 // pred_check
      _
    $region23: #{tpu_custom_call.1} parent=1 // pred_check_branch
      %65 = sbr.rel (0) target = $region25
    $region24: #{tpu_custom_call.1} parent=1 // pred_region
      _
    $region25: #{tpu_custom_call.1} parent=1 // pred_fallthru
      _
    // Predicated region
    $region26: #{tpu_custom_call.1} parent=1 // pred_check
      _
    $region27: #{tpu_custom_call.1} parent=1 // pred_check_branch
      %67 = sbr.rel (0) target = $region29
    $region28: #{tpu_custom_call.1} parent=1 // pred_region
      _
    $region29: #{tpu_custom_call.1} parent=1 // pred_fallthru
      _
    // Predicated region
    $region30: #{tpu_custom_call.1} parent=1 // pred_check
      _
    $region31: #{tpu_custom_call.1} parent=1 // pred_check_branch
      %69 = sbr.rel (0) target = $region33
    $region32: #{tpu_custom_call.1} parent=1 // pred_region
      %s71 = ssub.s32 16384, 16384
      %72 = vsyncadd [#allocation9], %s71
      %s73 = sshll.u32 [#allocation10], 4
      %s74 = int_to_ptr.vmem [resolvable:$true] %s73
      %79 = dma.hbm_to_vmem [thread:$0]  %s7, 16384, %s74, [#allocation9], 512, 512, 32
    $region33: #{tpu_custom_call.1} parent=1 // pred_fallthru
      _
    // Predicated region
    $region34: #{tpu_custom_call.1} parent=1 // pred_check
      _
    $region35: #{tpu_custom_call.1} parent=1 // pred_check_branch
      %81 = sbr.rel (0) target = $region37
    $region36: #{tpu_custom_call.1} parent=1 // pred_region
      _
    $region37: #{tpu_custom_call.1} parent=1 // pred_fallthru
      _
    // Predicated region
    $region38: #{tpu_custom_call.1} parent=1 // pred_check
      _
    $region39: #{tpu_custom_call.1} parent=1 // pred_check_branch
      %83 = sbr.rel (0) target = $region41
    $region40: #{tpu_custom_call.1} parent=1 // pred_region
      %84 = dma.done [#allocation3], 32
    $region41: #{tpu_custom_call.1} parent=1 // pred_fallthru
      _
    // Predicated region
    $region42: #{tpu_custom_call.1} parent=1 // pred_check
      _
    $region43: #{tpu_custom_call.1} parent=1 // pred_check_branch
      %86 = sbr.rel (0) target = $region45
    $region44: #{tpu_custom_call.1} parent=1 // pred_region
      %87 = dma.done [#allocation6], 3584
    $region45: #{tpu_custom_call.1} parent=1 // pred_fallthru
      _
    // Predicated region
    $region46: #{tpu_custom_call.1} parent=1 // pred_check
      _
    $region47: #{tpu_custom_call.1} parent=1 // pred_check_branch
      %89 = sbr.rel (0) target = $region49
    $region48: #{tpu_custom_call.1} parent=1 // pred_region
      %90 = dma.done [#allocation6], 32768
    $region49: #{tpu_custom_call.1} parent=1 // pred_fallthru
      _
    // Predicated region
    $region50: #{tpu_custom_call.1} parent=1 // pred_check
      _
    $region51: #{tpu_custom_call.1} parent=1 // pred_check_branch
      %92 = sbr.rel (0) target = $region53
    $region52: #{tpu_custom_call.1} parent=1 // pred_region
      %93 = dma.done [#allocation9], 128
    $region53: #{tpu_custom_call.1} parent=1 // pred_fallthru
      _
    // Predicated region
    $region54: #{tpu_custom_call.1} parent=1 // pred_check
      _
    $region55: #{tpu_custom_call.1} parent=1 // pred_check_branch
      %95 = sbr.rel (0) target = $region57
    $region56: #{tpu_custom_call.1} parent=1 // pred_region
      %96 = dma.done [#allocation9], 16384
    $region57: #{tpu_custom_call.1} parent=1 // pred_fallthru
      _
    %v97 = vld [vmem:[%s1] sm:$0x1]
    %v98 = vld [vmem:[#allocation8] sm:$0xff]
    %v99 = vld [vmem:[#allocation2] sm:$0x3]
    %vm100 = vcmask 58368
    %v101 = vsel %vm100, %v99, -inf
    %102 = vmax.xlane.f32.xlu0 %v101
    %v103 = vpop.xlane.xlu0 %102
    %vm104 = vcmask 123968
    %v105 = vsel %vm104, %v99, -inf
    %106 = vmax.xlane.f32.xlu0 %v105
    %v107 = vpop.xlane.xlu0 %106
    %vm108 = vcmask 189568
    %v109 = vsel %vm108, %v99, -inf
    %110 = vmax.xlane.f32.xlu0 %v109
    %v111 = vpop.xlane.xlu0 %110
    %vm112 = vcmask 255168
    %v113 = vsel %vm112, %v99, -inf
    %114 = vmax.xlane.f32.xlu0 %v113
    %v115 = vpop.xlane.xlu0 %114
    %vm116 = vcmask 320768
    %v117 = vsel %vm116, %v99, -inf
    %118 = vmax.xlane.f32.xlu0 %v117
    %v119 = vpop.xlane.xlu0 %118
    %vm120 = vcmask 386368
    %v121 = vsel %vm120, %v99, -inf
    %122 = vmax.xlane.f32.xlu0 %v121
    %v123 = vpop.xlane.xlu0 %122
    %vm124 = vcmask 451968
    %v125 = vsel %vm124, %v99, -inf
    %126 = vmax.xlane.f32.xlu0 %v125
    %v127 = vpop.xlane.xlu0 %126
    %vm128 = vcmask 517568
    %v129 = vsel %vm128, %v99, -inf
    %130 = vmax.xlane.f32.xlu0 %v129
    %v131 = vpop.xlane.xlu0 %130
    %v132 = vld [vmem:[%s5] sm:$0xf]
    %v133 = vld [vmem:[%s6] sm:$0x3]
    %s134 = scalar_lea.vmem %s6, 2
    %v135 = vld [vmem:[%s134] sm:$0x3]
    %s136 = scalar_lea.vmem %s6, 4
    %v137 = vld [vmem:[%s136] sm:$0x3]
    %s138 = scalar_lea.vmem %s6, 6
    %v139 = vld [vmem:[%s138] sm:$0x3]
    %s140 = scalar_lea.vmem %s6, 8
    %v141 = vld [vmem:[%s140] sm:$0x3]
    %s142 = scalar_lea.vmem %s6, 10
    %v143 = vld [vmem:[%s142] sm:$0x3]
    %s144 = scalar_lea.vmem %s6, 12
    %v145 = vld [vmem:[%s144] sm:$0x3]
    %s146 = scalar_lea.vmem %s6, 14
    %v147 = vld [vmem:[%s146] sm:$0x3]
    %v148 = vld [vmem:[#allocation7] sm:$0xff]
    %v149 = vld [vmem:[#allocation7 + $0x8] sm:$0xff]
    %v150 = vld [vmem:[#allocation7 + $0x10] sm:$0xff]
    %v151 = vld [vmem:[#allocation7 + $0x18] sm:$0xff]
    %v152 = vld [vmem:[#allocation7 + $0x20] sm:$0xff]
    %v153 = vld [vmem:[#allocation7 + $0x28] sm:$0xff]
    %v154 = vld [vmem:[#allocation7 + $0x30] sm:$0xff]
    %v155 = vld [vmem:[#allocation7 + $0x38] sm:$0xff]
    %v156 = vld [vmem:[#allocation7 + $0x40] sm:$0xff]
    %v157 = vld [vmem:[#allocation7 + $0x48] sm:$0xff]
    %v158 = vld [vmem:[#allocation7 + $0x50] sm:$0xff]
    %v159 = vld [vmem:[#allocation7 + $0x58] sm:$0xff]
    %v160 = vld [vmem:[#allocation7 + $0x60] sm:$0xff]
    %v161 = vld [vmem:[#allocation7 + $0x68] sm:$0xff]
    %v162 = vld [vmem:[#allocation7 + $0x70] sm:$0xff]
    %v163 = vld [vmem:[#allocation7 + $0x78] sm:$0xff]
    %v164 = vld [vmem:[#allocation7 + $0x80] sm:$0xff]
    %v165 = vld [vmem:[#allocation7 + $0x88] sm:$0xff]
    %v166 = vld [vmem:[#allocation7 + $0x90] sm:$0xff]
    %v167 = vld [vmem:[#allocation7 + $0x98] sm:$0xff]
    %v168 = vld [vmem:[#allocation7 + $0xa0] sm:$0xff]
    %v169 = vld [vmem:[#allocation7 + $0xa8] sm:$0xff]
    %v170 = vld [vmem:[#allocation7 + $0xb0] sm:$0xff]
    %v171 = vld [vmem:[#allocation7 + $0xb8] sm:$0xff]
    %v172 = vld [vmem:[#allocation7 + $0xc0] sm:$0xff]
    %v173 = vld [vmem:[#allocation7 + $0xc8] sm:$0xff]
    %v174 = vld [vmem:[#allocation7 + $0xd0] sm:$0xff]
    %v175 = vld [vmem:[#allocation7 + $0xd8] sm:$0xff]
    %v176 = vld [vmem:[#allocation7 + $0xe0] sm:$0xff]
    %v177 = vld [vmem:[#allocation7 + $0xe8] sm:$0xff]
    %v178 = vld [vmem:[#allocation7 + $0xf0] sm:$0xff]
    %v179 = vld [vmem:[#allocation7 + $0xf8] sm:$0xff]
    %v180 = vld [vmem:[#allocation7 + $0x100] sm:$0xff]
    %v181 = vld [vmem:[#allocation7 + $0x108] sm:$0xff]
    %v182 = vld [vmem:[#allocation7 + $0x110] sm:$0xff]
    %v183 = vld [vmem:[#allocation7 + $0x118] sm:$0xff]
    %v184 = vld [vmem:[#allocation7 + $0x120] sm:$0xff]
    %v185 = vld [vmem:[#allocation7 + $0x128] sm:$0xff]
    %v186 = vld [vmem:[#allocation7 + $0x130] sm:$0xff]
    %v187 = vld [vmem:[#allocation7 + $0x138] sm:$0xff]
    %v188 = vld [vmem:[#allocation7 + $0x140] sm:$0xff]
    %v189 = vld [vmem:[#allocation7 + $0x148] sm:$0xff]
    %v190 = vld [vmem:[#allocation7 + $0x150] sm:$0xff]
    %v191 = vld [vmem:[#allocation7 + $0x158] sm:$0xff]
    %v192 = vld [vmem:[#allocation7 + $0x160] sm:$0xff]
    %v193 = vld [vmem:[#allocation7 + $0x168] sm:$0xff]
    %v194 = vld [vmem:[#allocation7 + $0x170] sm:$0xff]
    %v195 = vld [vmem:[#allocation7 + $0x178] sm:$0xff]
    %v196 = vld [vmem:[#allocation7 + $0x180] sm:$0xff]
    %v197 = vld [vmem:[#allocation7 + $0x188] sm:$0xff]
    %v198 = vld [vmem:[#allocation7 + $0x190] sm:$0xff]
    %v199 = vld [vmem:[#allocation7 + $0x198] sm:$0xff]
    %v200 = vld [vmem:[#allocation7 + $0x1a0] sm:$0xff]
    %v201 = vld [vmem:[#allocation7 + $0x1a8] sm:$0xff]
    %v202 = vld [vmem:[#allocation7 + $0x1b0] sm:$0xff]
    %v203 = vld [vmem:[#allocation7 + $0x1b8] sm:$0xff]
    %v204 = vld [vmem:[#allocation7 + $0x1c0] sm:$0xff]
    %v205 = vld [vmem:[#allocation7 + $0x1c8] sm:$0xff]
    %v206 = vld [vmem:[#allocation7 + $0x1d0] sm:$0xff]
    %v207 = vld [vmem:[#allocation7 + $0x1d8] sm:$0xff]
    %v208 = vld [vmem:[#allocation7 + $0x1e0] sm:$0xff]
    %v209 = vld [vmem:[#allocation7 + $0x1e8] sm:$0xff]
    %v210 = vld [vmem:[#allocation7 + $0x1f0] sm:$0xff]
    %v211 = vld [vmem:[#allocation7 + $0x1f8] sm:$0xff]
    %v212 = vld [vmem:[#allocation7 + $0x200] sm:$0xff]
    %v213 = vld [vmem:[#allocation7 + $0x208] sm:$0xff]
    %v214 = vld [vmem:[#allocation7 + $0x210] sm:$0xff]
    %v215 = vld [vmem:[#allocation7 + $0x218] sm:$0xff]
    %v216 = vld [vmem:[#allocation7 + $0x220] sm:$0xff]
    %v217 = vld [vmem:[#allocation7 + $0x228] sm:$0xff]
    %v218 = vld [vmem:[#allocation7 + $0x230] sm:$0xff]
    %v219 = vld [vmem:[#allocation7 + $0x238] sm:$0xff]
    %v220 = vld [vmem:[#allocation7 + $0x240] sm:$0xff]
    %v221 = vld [vmem:[#allocation7 + $0x248] sm:$0xff]
    %v222 = vld [vmem:[#allocation7 + $0x250] sm:$0xff]
    %v223 = vld [vmem:[#allocation7 + $0x258] sm:$0xff]
    %v224 = vld [vmem:[#allocation7 + $0x260] sm:$0xff]
    %v225 = vld [vmem:[#allocation7 + $0x268] sm:$0xff]
    %v226 = vld [vmem:[#allocation7 + $0x270] sm:$0xff]
    %v227 = vld [vmem:[#allocation7 + $0x278] sm:$0xff]
    %v228 = vld [vmem:[#allocation7 + $0x280] sm:$0xff]
    %v229 = vld [vmem:[#allocation7 + $0x288] sm:$0xff]
    %v230 = vld [vmem:[#allocation7 + $0x290] sm:$0xff]
    %v231 = vld [vmem:[#allocation7 + $0x298] sm:$0xff]
    %v232 = vld [vmem:[#allocation7 + $0x2a0] sm:$0xff]
    %v233 = vld [vmem:[#allocation7 + $0x2a8] sm:$0xff]
    %v234 = vld [vmem:[#allocation7 + $0x2b0] sm:$0xff]
    %v235 = vld [vmem:[#allocation7 + $0x2b8] sm:$0xff]
    %v236 = vld [vmem:[#allocation7 + $0x2c0] sm:$0xff]
    %v237 = vld [vmem:[#allocation7 + $0x2c8] sm:$0xff]
    %v238 = vld [vmem:[#allocation7 + $0x2d0] sm:$0xff]
    %v239 = vld [vmem:[#allocation7 + $0x2d8] sm:$0xff]
    %v240 = vld [vmem:[#allocation7 + $0x2e0] sm:$0xff]
    %v241 = vld [vmem:[#allocation7 + $0x2e8] sm:$0xff]
    %v242 = vld [vmem:[#allocation7 + $0x2f0] sm:$0xff]
    %v243 = vld [vmem:[#allocation7 + $0x2f8] sm:$0xff]
    %v244 = vld [vmem:[#allocation7 + $0x300] sm:$0xff]
    %v245 = vld [vmem:[#allocation7 + $0x308] sm:$0xff]
    %v246 = vld [vmem:[#allocation7 + $0x310] sm:$0xff]
    %v247 = vld [vmem:[#allocation7 + $0x318] sm:$0xff]
    %v248 = vld [vmem:[#allocation7 + $0x320] sm:$0xff]
    %v249 = vld [vmem:[#allocation7 + $0x328] sm:$0xff]
    %v250 = vld [vmem:[#allocation7 + $0x330] sm:$0xff]
    %v251 = vld [vmem:[#allocation7 + $0x338] sm:$0xff]
    %v252 = vld [vmem:[#allocation7 + $0x340] sm:$0xff]
    %v253 = vld [vmem:[#allocation7 + $0x348] sm:$0xff]
    %v254 = vld [vmem:[#allocation7 + $0x350] sm:$0xff]
    %v255 = vld [vmem:[#allocation7 + $0x358] sm:$0xff]
    %v256 = vld [vmem:[#allocation7 + $0x360] sm:$0xff]
    %v257 = vld [vmem:[#allocation7 + $0x368] sm:$0xff]
    %v258 = vld [vmem:[#allocation7 + $0x370] sm:$0xff]
    %v259 = vld [vmem:[#allocation7 + $0x378] sm:$0xff]
    %v260 = vld [vmem:[#allocation7 + $0x380] sm:$0xff]
    %v261 = vld [vmem:[#allocation7 + $0x388] sm:$0xff]
    %v262 = vld [vmem:[#allocation7 + $0x390] sm:$0xff]
    %v263 = vld [vmem:[#allocation7 + $0x398] sm:$0xff]
    %v264 = vld [vmem:[#allocation7 + $0x3a0] sm:$0xff]
    %v265 = vld [vmem:[#allocation7 + $0x3a8] sm:$0xff]
    %v266 = vld [vmem:[#allocation7 + $0x3b0] sm:$0xff]
    %v267 = vld [vmem:[#allocation7 + $0x3b8] sm:$0xff]
    %v268 = vld [vmem:[#allocation7 + $0x3c0] sm:$0xff]
    %v269 = vld [vmem:[#allocation7 + $0x3c8] sm:$0xff]
    %v270 = vld [vmem:[#allocation7 + $0x3d0] sm:$0xff]
    %v271 = vld [vmem:[#allocation7 + $0x3d8] sm:$0xff]
    %v272 = vld [vmem:[#allocation7 + $0x3e0] sm:$0xff]
    %v273 = vld [vmem:[#allocation7 + $0x3e8] sm:$0xff]
    %v274 = vld [vmem:[#allocation7 + $0x3f0] sm:$0xff]
    %v275 = vld [vmem:[#allocation7 + $0x3f8] sm:$0xff]
    %v276 = vld [vmem:[#allocation7 + $0x400] sm:$0xff]
    %v277 = vld [vmem:[#allocation7 + $0x408] sm:$0xff]
    %v278 = vld [vmem:[#allocation7 + $0x410] sm:$0xff]
    %v279 = vld [vmem:[#allocation7 + $0x418] sm:$0xff]
    %v280 = vld [vmem:[#allocation7 + $0x420] sm:$0xff]
    %v281 = vld [vmem:[#allocation7 + $0x428] sm:$0xff]
    %v282 = vld [vmem:[#allocation7 + $0x430] sm:$0xff]
    %v283 = vld [vmem:[#allocation7 + $0x438] sm:$0xff]
    %v284 = vld [vmem:[#allocation7 + $0x440] sm:$0xff]
    %v285 = vld [vmem:[#allocation7 + $0x448] sm:$0xff]
    %v286 = vld [vmem:[#allocation7 + $0x450] sm:$0xff]
    %v287 = vld [vmem:[#allocation7 + $0x458] sm:$0xff]
    %v288 = vld [vmem:[#allocation7 + $0x460] sm:$0xff]
    %v289 = vld [vmem:[#allocation7 + $0x468] sm:$0xff]
    %v290 = vld [vmem:[#allocation7 + $0x470] sm:$0xff]
    %v291 = vld [vmem:[#allocation7 + $0x478] sm:$0xff]
    %v292 = vld [vmem:[#allocation7 + $0x480] sm:$0xff]
    %v293 = vld [vmem:[#allocation7 + $0x488] sm:$0xff]
    %v294 = vld [vmem:[#allocation7 + $0x490] sm:$0xff]
    %v295 = vld [vmem:[#allocation7 + $0x498] sm:$0xff]
    %v296 = vld [vmem:[#allocation7 + $0x4a0] sm:$0xff]
    %v297 = vld [vmem:[#allocation7 + $0x4a8] sm:$0xff]
    %v298 = vld [vmem:[#allocation7 + $0x4b0] sm:$0xff]
    %v299 = vld [vmem:[#allocation7 + $0x4b8] sm:$0xff]
    %v300 = vld [vmem:[#allocation7 + $0x4c0] sm:$0xff]
    %v301 = vld [vmem:[#allocation7 + $0x4c8] sm:$0xff]
    %v302 = vld [vmem:[#allocation7 + $0x4d0] sm:$0xff]
    %v303 = vld [vmem:[#allocation7 + $0x4d8] sm:$0xff]
    %v304 = vld [vmem:[#allocation7 + $0x4e0] sm:$0xff]
    %v305 = vld [vmem:[#allocation7 + $0x4e8] sm:$0xff]
    %v306 = vld [vmem:[#allocation7 + $0x4f0] sm:$0xff]
    %v307 = vld [vmem:[#allocation7 + $0x4f8] sm:$0xff]
    %v308 = vld [vmem:[#allocation7 + $0x500] sm:$0xff]
    %v309 = vld [vmem:[#allocation7 + $0x508] sm:$0xff]
    %v310 = vld [vmem:[#allocation7 + $0x510] sm:$0xff]
    %v311 = vld [vmem:[#allocation7 + $0x518] sm:$0xff]
    %v312 = vld [vmem:[#allocation7 + $0x520] sm:$0xff]
    %v313 = vld [vmem:[#allocation7 + $0x528] sm:$0xff]
    %v314 = vld [vmem:[#allocation7 + $0x530] sm:$0xff]
    %v315 = vld [vmem:[#allocation7 + $0x538] sm:$0xff]
    %v316 = vld [vmem:[#allocation7 + $0x540] sm:$0xff]
    %v317 = vld [vmem:[#allocation7 + $0x548] sm:$0xff]
    %v318 = vld [vmem:[#allocation7 + $0x550] sm:$0xff]
    %v319 = vld [vmem:[#allocation7 + $0x558] sm:$0xff]
    %v320 = vld [vmem:[#allocation7 + $0x560] sm:$0xff]
    %v321 = vld [vmem:[#allocation7 + $0x568] sm:$0xff]
    %v322 = vld [vmem:[#allocation7 + $0x570] sm:$0xff]
    %v323 = vld [vmem:[#allocation7 + $0x578] sm:$0xff]
    %v324 = vld [vmem:[#allocation7 + $0x580] sm:$0xff]
    %v325 = vld [vmem:[#allocation7 + $0x588] sm:$0xff]
    %v326 = vld [vmem:[#allocation7 + $0x590] sm:$0xff]
    %v327 = vld [vmem:[#allocation7 + $0x598] sm:$0xff]
    %v328 = vld [vmem:[#allocation7 + $0x5a0] sm:$0xff]
    %v329 = vld [vmem:[#allocation7 + $0x5a8] sm:$0xff]
    %v330 = vld [vmem:[#allocation7 + $0x5b0] sm:$0xff]
    %v331 = vld [vmem:[#allocation7 + $0x5b8] sm:$0xff]
    %v332 = vld [vmem:[#allocation7 + $0x5c0] sm:$0xff]
    %v333 = vld [vmem:[#allocation7 + $0x5c8] sm:$0xff]
    %v334 = vld [vmem:[#allocation7 + $0x5d0] sm:$0xff]
    %v335 = vld [vmem:[#allocation7 + $0x5d8] sm:$0xff]
    %v336 = vld [vmem:[#allocation7 + $0x5e0] sm:$0xff]
    %v337 = vld [vmem:[#allocation7 + $0x5e8] sm:$0xff]
    %v338 = vld [vmem:[#allocation7 + $0x5f0] sm:$0xff]
    %v339 = vld [vmem:[#allocation7 + $0x5f8] sm:$0xff]
    %v340 = vld [vmem:[#allocation7 + $0x600] sm:$0xff]
    %v341 = vld [vmem:[#allocation7 + $0x608] sm:$0xff]
    %v342 = vld [vmem:[#allocation7 + $0x610] sm:$0xff]
    %v343 = vld [vmem:[#allocation7 + $0x618] sm:$0xff]
    %v344 = vld [vmem:[#allocation7 + $0x620] sm:$0xff]
    %v345 = vld [vmem:[#allocation7 + $0x628] sm:$0xff]
    %v346 = vld [vmem:[#allocation7 + $0x630] sm:$0xff]
    %v347 = vld [vmem:[#allocation7 + $0x638] sm:$0xff]
    %v348 = vld [vmem:[#allocation7 + $0x640] sm:$0xff]
    %v349 = vld [vmem:[#allocation7 + $0x648] sm:$0xff]
    %v350 = vld [vmem:[#allocation7 + $0x650] sm:$0xff]
    %v351 = vld [vmem:[#allocation7 + $0x658] sm:$0xff]
    %v352 = vld [vmem:[#allocation7 + $0x660] sm:$0xff]
    %v353 = vld [vmem:[#allocation7 + $0x668] sm:$0xff]
    %v354 = vld [vmem:[#allocation7 + $0x670] sm:$0xff]
    %v355 = vld [vmem:[#allocation7 + $0x678] sm:$0xff]
    %v356 = vld [vmem:[#allocation7 + $0x680] sm:$0xff]
    %v357 = vld [vmem:[#allocation7 + $0x688] sm:$0xff]
    %v358 = vld [vmem:[#allocation7 + $0x690] sm:$0xff]
    %v359 = vld [vmem:[#allocation7 + $0x698] sm:$0xff]
    %v360 = vld [vmem:[#allocation7 + $0x6a0] sm:$0xff]
    %v361 = vld [vmem:[#allocation7 + $0x6a8] sm:$0xff]
    %v362 = vld [vmem:[#allocation7 + $0x6b0] sm:$0xff]
    %v363 = vld [vmem:[#allocation7 + $0x6b8] sm:$0xff]
    %v364 = vld [vmem:[#allocation7 + $0x6c0] sm:$0xff]
    %v365 = vld [vmem:[#allocation7 + $0x6c8] sm:$0xff]
    %v366 = vld [vmem:[#allocation7 + $0x6d0] sm:$0xff]
    %v367 = vld [vmem:[#allocation7 + $0x6d8] sm:$0xff]
    %v368 = vld [vmem:[#allocation7 + $0x6e0] sm:$0xff]
    %v369 = vld [vmem:[#allocation7 + $0x6e8] sm:$0xff]
    %v370 = vld [vmem:[#allocation7 + $0x6f0] sm:$0xff]
    %v371 = vld [vmem:[#allocation7 + $0x6f8] sm:$0xff]
    %v372 = vld [vmem:[#allocation7 + $0x700] sm:$0xff]
    %v373 = vld [vmem:[#allocation7 + $0x708] sm:$0xff]
    %v374 = vld [vmem:[#allocation7 + $0x710] sm:$0xff]
    %v375 = vld [vmem:[#allocation7 + $0x718] sm:$0xff]
    %v376 = vld [vmem:[#allocation7 + $0x720] sm:$0xff]
    %v377 = vld [vmem:[#allocation7 + $0x728] sm:$0xff]
    %v378 = vld [vmem:[#allocation7 + $0x730] sm:$0xff]
    %v379 = vld [vmem:[#allocation7 + $0x738] sm:$0xff]
    %v380 = vld [vmem:[#allocation7 + $0x740] sm:$0xff]
    %v381 = vld [vmem:[#allocation7 + $0x748] sm:$0xff]
    %v382 = vld [vmem:[#allocation7 + $0x750] sm:$0xff]
    %v383 = vld [vmem:[#allocation7 + $0x758] sm:$0xff]
    %v384 = vld [vmem:[#allocation7 + $0x760] sm:$0xff]
    %v385 = vld [vmem:[#allocation7 + $0x768] sm:$0xff]
    %v386 = vld [vmem:[#allocation7 + $0x770] sm:$0xff]
    %v387 = vld [vmem:[#allocation7 + $0x778] sm:$0xff]
    %v388 = vld [vmem:[#allocation7 + $0x780] sm:$0xff]
    %v389 = vld [vmem:[#allocation7 + $0x788] sm:$0xff]
    %v390 = vld [vmem:[#allocation7 + $0x790] sm:$0xff]
    %v391 = vld [vmem:[#allocation7 + $0x798] sm:$0xff]
    %v392 = vld [vmem:[#allocation7 + $0x7a0] sm:$0xff]
    %v393 = vld [vmem:[#allocation7 + $0x7a8] sm:$0xff]
    %v394 = vld [vmem:[#allocation7 + $0x7b0] sm:$0xff]
    %v395 = vld [vmem:[#allocation7 + $0x7b8] sm:$0xff]
    %v396 = vld [vmem:[#allocation7 + $0x7c0] sm:$0xff]
    %v397 = vld [vmem:[#allocation7 + $0x7c8] sm:$0xff]
    %v398 = vld [vmem:[#allocation7 + $0x7d0] sm:$0xff]
    %v399 = vld [vmem:[#allocation7 + $0x7d8] sm:$0xff]
    %v400 = vld [vmem:[#allocation7 + $0x7e0] sm:$0xff]
    %v401 = vld [vmem:[#allocation7 + $0x7e8] sm:$0xff]
    %v402 = vld [vmem:[#allocation7 + $0x7f0] sm:$0xff]
    %v403 = vld [vmem:[#allocation7 + $0x7f8] sm:$0xff]
    %v405 = vlaneseq
    %v406 = vshrl.u32 %v405, 7
    %v407 = vsub.s32 0, %v406
    %v408 = vrot.slane %v98, %v407
    %v409 = vlaneseq
    %v410 = vshrl.u32 %v409, 7
    %v411 = vsub.s32 1, %v410
    %v412 = vrot.slane %v98, %v411
    %v413 = vlaneseq
    %v414 = vshrl.u32 %v413, 7
    %v415 = vsub.s32 2, %v414
    %v416 = vrot.slane %v98, %v415
    %v417 = vlaneseq
    %v418 = vshrl.u32 %v417, 7
    %v419 = vsub.s32 3, %v418
    %v420 = vrot.slane %v98, %v419
    %v421 = vlaneseq
    %v422 = vshrl.u32 %v421, 7
    %v423 = vsub.s32 4, %v422
    %v424 = vrot.slane %v98, %v423
    %v425 = vlaneseq
    %v426 = vshrl.u32 %v425, 7
    %v427 = vsub.s32 5, %v426
    %v428 = vrot.slane %v98, %v427
    %v429 = vlaneseq
    %v430 = vshrl.u32 %v429, 7
    %v431 = vsub.s32 6, %v430
    %v432 = vrot.slane %v98, %v431
    %v433 = vlaneseq
    %v434 = vshrl.u32 %v433, 7
    %v435 = vsub.s32 7, %v434
    %v436 = vrot.slane %v98, %v435
    %v447 = vunpack.c.l.s4 1983009808
    %v448 = vunpack.c.0.s8 %v447
    %v449 = vlaneseq
    %v450 = vshrl.u32 %v449, 7
    %v451 = vsub.s32 %v448, %v450
    %v452 = vrot.slane %v132, %v451
    %v453 = vcombine.high %v452, %v452
    %456 = vmatprep.subr.mxu0 %v149
    %457 = vmatpush1.msra.mxu0 %v148
    %458 = vmatprep.subr.mxu0 %v157
    %459 = vmatpush1.msra.mxu0 %v156
    %460 = vmatprep.subr.mxu0 %v165
    %461 = vmatpush1.msra.mxu0 %v164
    %462 = vmatprep.subr.mxu0 %v173
    %463 = vmatpush1.msra.mxu0 %v172
    %464 = vmatprep.subr.mxu0 %v181
    %465 = vmatpush1.msra.mxu0 %v180
    %466 = vmatprep.subr.mxu0 %v189
    %467 = vmatpush1.msra.mxu0 %v188
    %468 = vmatprep.subr.mxu0 %v197
    %469 = vmatpush1.msra.mxu0 %v196
    %470 = vmatprep.subr.mxu0 %v205
    %471 = vmatpush1.msra.mxu0 %v204
    %472 = vmatprep.subr.mxu0 %v213
    %473 = vmatpush1.msra.mxu0 %v212
    %474 = vmatprep.subr.mxu0 %v221
    %475 = vmatpush1.msra.mxu0 %v220
    %476 = vmatprep.subr.mxu0 %v229
    %477 = vmatpush1.msra.mxu0 %v228
    %478 = vmatprep.subr.mxu0 %v237
    %479 = vmatpush1.msra.mxu0 %v236
    %480 = vmatprep.subr.mxu0 %v245
    %481 = vmatpush1.msra.mxu0 %v244
    %482 = vmatprep.subr.mxu0 %v253
    %483 = vmatpush1.msra.mxu0 %v252
    %484 = vmatprep.subr.mxu0 %v261
    %485 = vmatpush1.msra.mxu0 %v260
    %486 = vmatprep.subr.mxu0 %v269
    %487 = vmatpush1.msra.mxu0 %v268
    %488 = vmatprep.subr.mxu0 %v277
    %489 = vmatpush1.msra.mxu0 %v276
    %490 = vmatprep.subr.mxu0 %v285
    %491 = vmatpush1.msra.mxu0 %v284
    %492 = vmatprep.subr.mxu0 %v293
    %493 = vmatpush1.msra.mxu0 %v292
    %494 = vmatprep.subr.mxu0 %v301
    %495 = vmatpush1.msra.mxu0 %v300
    %496 = vmatprep.subr.mxu0 %v309
    %497 = vmatpush1.msra.mxu0 %v308
    %498 = vmatprep.subr.mxu0 %v317
    %499 = vmatpush1.msra.mxu0 %v316
    %500 = vmatprep.subr.mxu0 %v325
    %501 = vmatpush1.msra.mxu0 %v324
    %502 = vmatprep.subr.mxu0 %v333
    %503 = vmatpush1.msra.mxu0 %v332
    %504 = vmatprep.subr.mxu0 %v341
    %505 = vmatpush1.msra.mxu0 %v340
    %506 = vmatprep.subr.mxu0 %v349
    %507 = vmatpush1.msra.mxu0 %v348
    %508 = vmatprep.subr.mxu0 %v357
    %509 = vmatpush1.msra.mxu0 %v356
    %510 = vmatprep.subr.mxu0 %v365
    %511 = vmatpush1.msra.mxu0 %v364
    %512 = vmatprep.subr.mxu0 %v373
    %513 = vmatpush1.msra.mxu0 %v372
    %514 = vmatprep.subr.mxu0 %v381
    %515 = vmatpush1.msra.mxu0 %v380
    %516 = vmatprep.subr.mxu0 %v389
    %517 = vmatpush1.msra.mxu0 %v388
    %518 = vmatprep.subr.mxu0 %v397
    %519 = vmatpush1.msra.mxu0 %v396
    %520 = vmatprep.mubr.f32.mxu0 %v453
    %521 = vmatmul.mubr.f32.gmra.mrb[0].mxu0 %v452
    %v522 = vpop.f32.mrb[0].mxu0
    %v523 = vadd.f32 %v408, %v522
    %v524 = vpop.f32.mrb[0].mxu0
    %v525 = vadd.f32 %v412, %v524
    %526 = vdwg.mxu0
    %527 = vmatprep.subr.mxu0 %v151
    %528 = vmatpush1.msra.mxu0 %v150
    %529 = vmatprep.subr.mxu0 %v159
    %530 = vmatpush1.msra.mxu0 %v158
    %531 = vmatprep.subr.mxu0 %v167
    %532 = vmatpush1.msra.mxu0 %v166
    %533 = vmatprep.subr.mxu0 %v175
    %534 = vmatpush1.msra.mxu0 %v174
    %535 = vmatprep.subr.mxu0 %v183
    %536 = vmatpush1.msra.mxu0 %v182
    %537 = vmatprep.subr.mxu0 %v191
    %538 = vmatpush1.msra.mxu0 %v190
    %539 = vmatprep.subr.mxu0 %v199
    %540 = vmatpush1.msra.mxu0 %v198
    %541 = vmatprep.subr.mxu0 %v207
    %542 = vmatpush1.msra.mxu0 %v206
    %543 = vmatprep.subr.mxu0 %v215
    %544 = vmatpush1.msra.mxu0 %v214
    %545 = vmatprep.subr.mxu0 %v223
    %546 = vmatpush1.msra.mxu0 %v222
    %547 = vmatprep.subr.mxu0 %v231
    %548 = vmatpush1.msra.mxu0 %v230
    %549 = vmatprep.subr.mxu0 %v239
    %550 = vmatpush1.msra.mxu0 %v238
    %551 = vmatprep.subr.mxu0 %v247
    %552 = vmatpush1.msra.mxu0 %v246
    %553 = vmatprep.subr.mxu0 %v255
    %554 = vmatpush1.msra.mxu0 %v254
    %555 = vmatprep.subr.mxu0 %v263
    %556 = vmatpush1.msra.mxu0 %v262
    %557 = vmatprep.subr.mxu0 %v271
    %558 = vmatpush1.msra.mxu0 %v270
    %559 = vmatprep.subr.mxu0 %v279
    %560 = vmatpush1.msra.mxu0 %v278
    %561 = vmatprep.subr.mxu0 %v287
    %562 = vmatpush1.msra.mxu0 %v286
    %563 = vmatprep.subr.mxu0 %v295
    %564 = vmatpush1.msra.mxu0 %v294
    %565 = vmatprep.subr.mxu0 %v303
    %566 = vmatpush1.msra.mxu0 %v302
    %567 = vmatprep.subr.mxu0 %v311
    %568 = vmatpush1.msra.mxu0 %v310
    %569 = vmatprep.subr.mxu0 %v319
    %570 = vmatpush1.msra.mxu0 %v318
    %571 = vmatprep.subr.mxu0 %v327
    %572 = vmatpush1.msra.mxu0 %v326
    %573 = vmatprep.subr.mxu0 %v335
    %574 = vmatpush1.msra.mxu0 %v334
    %575 = vmatprep.subr.mxu0 %v343
    %576 = vmatpush1.msra.mxu0 %v342
    %577 = vmatprep.subr.mxu0 %v351
    %578 = vmatpush1.msra.mxu0 %v350
    %579 = vmatprep.subr.mxu0 %v359
    %580 = vmatpush1.msra.mxu0 %v358
    %581 = vmatprep.subr.mxu0 %v367
    %582 = vmatpush1.msra.mxu0 %v366
    %583 = vmatprep.subr.mxu0 %v375
    %584 = vmatpush1.msra.mxu0 %v374
    %585 = vmatprep.subr.mxu0 %v383
    %586 = vmatpush1.msra.mxu0 %v382
    %587 = vmatprep.subr.mxu0 %v391
    %588 = vmatpush1.msra.mxu0 %v390
    %589 = vmatprep.subr.mxu0 %v399
    %590 = vmatpush1.msra.mxu0 %v398
    %591 = vmatprep.mubr.f32.mxu0 %v453
    %592 = vmatmul.mubr.f32.gmra.mrb[0].mxu0 %v452
    %v593 = vpop.f32.mrb[0].mxu0
    %v594 = vadd.f32 %v416, %v593
    %v595 = vpop.f32.mrb[0].mxu0
    %v596 = vadd.f32 %v420, %v595
    %597 = vdwg.mxu0
    %598 = vmatprep.subr.mxu0 %v153
    %599 = vmatpush1.msra.mxu0 %v152
    %600 = vmatprep.subr.mxu0 %v161
    %601 = vmatpush1.msra.mxu0 %v160
    %602 = vmatprep.subr.mxu0 %v169
    %603 = vmatpush1.msra.mxu0 %v168
    %604 = vmatprep.subr.mxu0 %v177
    %605 = vmatpush1.msra.mxu0 %v176
    %606 = vmatprep.subr.mxu0 %v185
    %607 = vmatpush1.msra.mxu0 %v184
    %608 = vmatprep.subr.mxu0 %v193
    %609 = vmatpush1.msra.mxu0 %v192
    %610 = vmatprep.subr.mxu0 %v201
    %611 = vmatpush1.msra.mxu0 %v200
    %612 = vmatprep.subr.mxu0 %v209
    %613 = vmatpush1.msra.mxu0 %v208
    %614 = vmatprep.subr.mxu0 %v217
    %615 = vmatpush1.msra.mxu0 %v216
    %616 = vmatprep.subr.mxu0 %v225
    %617 = vmatpush1.msra.mxu0 %v224
    %618 = vmatprep.subr.mxu0 %v233
    %619 = vmatpush1.msra.mxu0 %v232
    %620 = vmatprep.subr.mxu0 %v241
    %621 = vmatpush1.msra.mxu0 %v240
    %622 = vmatprep.subr.mxu0 %v249
    %623 = vmatpush1.msra.mxu0 %v248
    %624 = vmatprep.subr.mxu0 %v257
    %625 = vmatpush1.msra.mxu0 %v256
    %626 = vmatprep.subr.mxu0 %v265
    %627 = vmatpush1.msra.mxu0 %v264
    %628 = vmatprep.subr.mxu0 %v273
    %629 = vmatpush1.msra.mxu0 %v272
    %630 = vmatprep.subr.mxu0 %v281
    %631 = vmatpush1.msra.mxu0 %v280
    %632 = vmatprep.subr.mxu0 %v289
    %633 = vmatpush1.msra.mxu0 %v288
    %634 = vmatprep.subr.mxu0 %v297
    %635 = vmatpush1.msra.mxu0 %v296
    %636 = vmatprep.subr.mxu0 %v305
    %637 = vmatpush1.msra.mxu0 %v304
    %638 = vmatprep.subr.mxu0 %v313
    %639 = vmatpush1.msra.mxu0 %v312
    %640 = vmatprep.subr.mxu0 %v321
    %641 = vmatpush1.msra.mxu0 %v320
    %642 = vmatprep.subr.mxu0 %v329
    %643 = vmatpush1.msra.mxu0 %v328
    %644 = vmatprep.subr.mxu0 %v337
    %645 = vmatpush1.msra.mxu0 %v336
    %646 = vmatprep.subr.mxu0 %v345
    %647 = vmatpush1.msra.mxu0 %v344
    %648 = vmatprep.subr.mxu0 %v353
    %649 = vmatpush1.msra.mxu0 %v352
    %650 = vmatprep.subr.mxu0 %v361
    %651 = vmatpush1.msra.mxu0 %v360
    %652 = vmatprep.subr.mxu0 %v369
    %653 = vmatpush1.msra.mxu0 %v368
    %654 = vmatprep.subr.mxu0 %v377
    %655 = vmatpush1.msra.mxu0 %v376
    %656 = vmatprep.subr.mxu0 %v385
    %657 = vmatpush1.msra.mxu0 %v384
    %658 = vmatprep.subr.mxu0 %v393
    %659 = vmatpush1.msra.mxu0 %v392
    %660 = vmatprep.subr.mxu0 %v401
    %661 = vmatpush1.msra.mxu0 %v400
    %662 = vmatprep.mubr.f32.mxu0 %v453
    %663 = vmatmul.mubr.f32.gmra.mrb[0].mxu0 %v452
    %v664 = vpop.f32.mrb[0].mxu0
    %v665 = vadd.f32 %v424, %v664
    %v666 = vpop.f32.mrb[0].mxu0
    %v667 = vadd.f32 %v428, %v666
    %668 = vdwg.mxu0
    %669 = vmatprep.subr.mxu0 %v155
    %670 = vmatpush1.msra.mxu0 %v154
    %671 = vmatprep.subr.mxu0 %v163
    %672 = vmatpush1.msra.mxu0 %v162
    %673 = vmatprep.subr.mxu0 %v171
    %674 = vmatpush1.msra.mxu0 %v170
    %675 = vmatprep.subr.mxu0 %v179
    %676 = vmatpush1.msra.mxu0 %v178
    %677 = vmatprep.subr.mxu0 %v187
    %678 = vmatpush1.msra.mxu0 %v186
    %679 = vmatprep.subr.mxu0 %v195
    %680 = vmatpush1.msra.mxu0 %v194
    %681 = vmatprep.subr.mxu0 %v203
    %682 = vmatpush1.msra.mxu0 %v202
    %683 = vmatprep.subr.mxu0 %v211
    %684 = vmatpush1.msra.mxu0 %v210
    %685 = vmatprep.subr.mxu0 %v219
    %686 = vmatpush1.msra.mxu0 %v218
    %687 = vmatprep.subr.mxu0 %v227
    %688 = vmatpush1.msra.mxu0 %v226
    %689 = vmatprep.subr.mxu0 %v235
    %690 = vmatpush1.msra.mxu0 %v234
    %691 = vmatprep.subr.mxu0 %v243
    %692 = vmatpush1.msra.mxu0 %v242
    %693 = vmatprep.subr.mxu0 %v251
    %694 = vmatpush1.msra.mxu0 %v250
    %695 = vmatprep.subr.mxu0 %v259
    %696 = vmatpush1.msra.mxu0 %v258
    %697 = vmatprep.subr.mxu0 %v267
    %698 = vmatpush1.msra.mxu0 %v266
    %699 = vmatprep.subr.mxu0 %v275
    %700 = vmatpush1.msra.mxu0 %v274
    %701 = vmatprep.subr.mxu0 %v283
    %702 = vmatpush1.msra.mxu0 %v282
    %703 = vmatprep.subr.mxu0 %v291
    %704 = vmatpush1.msra.mxu0 %v290
    %705 = vmatprep.subr.mxu0 %v299
    %706 = vmatpush1.msra.mxu0 %v298
    %707 = vmatprep.subr.mxu0 %v307
    %708 = vmatpush1.msra.mxu0 %v306
    %709 = vmatprep.subr.mxu0 %v315
    %710 = vmatpush1.msra.mxu0 %v314
    %711 = vmatprep.subr.mxu0 %v323
    %712 = vmatpush1.msra.mxu0 %v322
    %713 = vmatprep.subr.mxu0 %v331
    %714 = vmatpush1.msra.mxu0 %v330
    %715 = vmatprep.subr.mxu0 %v339
    %716 = vmatpush1.msra.mxu0 %v338
    %717 = vmatprep.subr.mxu0 %v347
    %718 = vmatpush1.msra.mxu0 %v346
    %719 = vmatprep.subr.mxu0 %v355
    %720 = vmatpush1.msra.mxu0 %v354
    %721 = vmatprep.subr.mxu0 %v363
    %722 = vmatpush1.msra.mxu0 %v362
    %723 = vmatprep.subr.mxu0 %v371
    %724 = vmatpush1.msra.mxu0 %v370
    %725 = vmatprep.subr.mxu0 %v379
    %726 = vmatpush1.msra.mxu0 %v378
    %727 = vmatprep.subr.mxu0 %v387
    %728 = vmatpush1.msra.mxu0 %v386
    %729 = vmatprep.subr.mxu0 %v395
    %730 = vmatpush1.msra.mxu0 %v394
    %731 = vmatprep.subr.mxu0 %v403
    %732 = vmatpush1.msra.mxu0 %v402
    %733 = vmatprep.mubr.f32.mxu0 %v453
    %734 = vmatmul.mubr.f32.gmra.mrb[0].mxu0 %v452
    %v735 = vpop.f32.mrb[0].mxu0
    %v736 = vadd.f32 %v432, %v735
    %v737 = vpop.f32.mrb[0].mxu0
    %v738 = vadd.f32 %v436, %v737
    %739 = vdwg.mxu0
    %v741 = vlaneseq
    %v742 = vshrl.u32 %v741, 7
    %v743 = vsub.s32 0, %v742
    %v744 = vrot.slane %v97, %v743
    %v746 = vmul.f32 %v103, %v744
    %v747 = vadd.f32 %v746, %v523
    %v748 = vxor.u32 %v747, 2147483648
    %v749 = vmul.f32 %v748, 1.442695
    %v750 = vpow.pop %v749
    %v751 = vadd.f32 %v750, 1.0
    %v752 = vrcp.pop %v751
    %v753 = vmul.f32 1.0, %v752
    %v754 = vtanh.pop %v747
    %756 = vrot.lane.b32.xlu0 %v133, 32
    %v757 = vpop.permute.xlu0 %756
    %v759 = vmul.f32 %v753, %v757
    %761 = vrot.lane.b32.xlu0 %v754, 64
    %v762 = vpop.permute.xlu0 %761
    %v764 = vmul.f32 %v753, %v762
    %766 = vrot.lane.b32.xlu0 %v764, 32
    %v767 = vpop.permute.xlu0 %766
    %v769 = vadd.f32 %v759, %v767
    %v770 = vtanh.pop %v769
    %772 = vrot.lane.b32.xlu0 %v770, 64
    %v773 = vpop.permute.xlu0 %772
    %v775 = vmul.f32 %v753, %v773
    %v776 = vld [vmem:[#allocation5] sm:$0xff]
    %v777 = vld [vmem:[#allocation5 + $0x8] sm:$0xff]
    %v778 = vld [vmem:[#allocation5 + $0x10] sm:$0xff]
    %v779 = vld [vmem:[#allocation5 + $0x18] sm:$0xff]
    %781 = vrot.lane.b32.xlu0 %v775, 32
    %v782 = vpop.permute.xlu0 %781
    %vm783 = vcmask 261120
    %v784 = vsel %vm783, %v782, 0
    %786 = vmatprep.subr.mxu0 0.0
    %787 = vmatpush1.msra.mxu0 %v776
    %788 = vmatprep.subr.mxu0 0.0
    %789 = vmatpush1.msra.mxu0 %v777
    %790 = vmatprep.subr.mxu0 0.0
    %791 = vmatpush1.msra.mxu0 %v778
    %792 = vmatprep.subr.mxu0 0.0
    %793 = vmatpush1.msra.mxu0 %v779
    %794 = vmatprep.subr.mxu0 0.0
    %795 = vmatpush1.msra.mxu0 0.0
    %796 = vmatprep.subr.mxu0 0.0
    %797 = vmatpush1.msra.mxu0 0.0
    %798 = vmatprep.subr.mxu0 0.0
    %799 = vmatpush1.msra.mxu0 0.0
    %800 = vmatprep.subr.mxu0 0.0
    %801 = vmatpush1.msra.mxu0 0.0
    %802 = vmatprep.subr.mxu0 0.0
    %803 = vmatpush1.msra.mxu0 0.0
    %804 = vmatprep.subr.mxu0 0.0
    %805 = vmatpush1.msra.mxu0 0.0
    %806 = vmatprep.subr.mxu0 0.0
    %807 = vmatpush1.msra.mxu0 0.0
    %808 = vmatprep.subr.mxu0 0.0
    %809 = vmatpush1.msra.mxu0 0.0
    %810 = vmatprep.subr.mxu0 0.0
    %811 = vmatpush1.msra.mxu0 0.0
    %812 = vmatprep.subr.mxu0 0.0
    %813 = vmatpush1.msra.mxu0 0.0
    %814 = vmatprep.subr.mxu0 0.0
    %815 = vmatpush1.msra.mxu0 0.0
    %816 = vmatprep.subr.mxu0 0.0
    %817 = vmatpush1.msra.mxu0 0.0
    %818 = vmatprep.subr.mxu0 0.0
    %819 = vmatpush1.msra.mxu0 0.0
    %820 = vmatprep.subr.mxu0 0.0
    %821 = vmatpush1.msra.mxu0 0.0
    %822 = vmatprep.subr.mxu0 0.0
    %823 = vmatpush1.msra.mxu0 0.0
    %824 = vmatprep.subr.mxu0 0.0
    %825 = vmatpush1.msra.mxu0 0.0
    %826 = vmatprep.subr.mxu0 0.0
    %827 = vmatpush1.msra.mxu0 0.0
    %828 = vmatprep.subr.mxu0 0.0
    %829 = vmatpush1.msra.mxu0 0.0
    %830 = vmatprep.subr.mxu0 0.0
    %831 = vmatpush1.msra.mxu0 0.0
    %832 = vmatprep.subr.mxu0 0.0
    %833 = vmatpush1.msra.mxu0 0.0
    %834 = vmatprep.subr.mxu0 0.0
    %835 = vmatpush1.msra.mxu0 0.0
    %836 = vmatprep.subr.mxu0 0.0
    %837 = vmatpush1.msra.mxu0 0.0
    %838 = vmatprep.subr.mxu0 0.0
    %839 = vmatpush1.msra.mxu0 0.0
    %840 = vmatprep.subr.mxu0 0.0
    %841 = vmatpush1.msra.mxu0 0.0
    %842 = vmatprep.subr.mxu0 0.0
    %843 = vmatpush1.msra.mxu0 0.0
    %844 = vmatprep.subr.mxu0 0.0
    %845 = vmatpush1.msra.mxu0 0.0
    %846 = vmatprep.subr.mxu0 0.0
    %847 = vmatpush1.msra.mxu0 0.0
    %848 = vmatprep.subr.mxu0 0.0
    %849 = vmatpush1.msra.mxu0 0.0
    %850 = vmatprep.mubr.f32.mxu0 0.0
    %851 = vmatmul.mubr.f32.gmra.mrb[0].mxu0 %v784
    %v852 = vpop.f32.mrb[0].mxu0
    %v853 = vadd.f32 %v525, %v852
    %v854 = vpop.f32.mrb[0].mxu0
    %855 = vdwg.mxu0
    %v856 = vxor.u32 %v853, 2147483648
    %v857 = vmul.f32 %v856, 1.442695
    %v858 = vpow.pop %v857
    %v859 = vadd.f32 %v858, 1.0
    %v860 = vrcp.pop %v859
    %v861 = vmul.f32 1.0, %v860
    %v862 = vtanh.pop %v853
    %864 = vrot.lane.b32.xlu0 %v135, 32
    %v865 = vpop.permute.xlu0 %864
    %v867 = vmul.f32 %v861, %v865
    %869 = vrot.lane.b32.xlu0 %v862, 64
    %v870 = vpop.permute.xlu0 %869
    %v872 = vmul.f32 %v861, %v870
    %874 = vrot.lane.b32.xlu0 %v872, 32
    %v875 = vpop.permute.xlu0 %874
    %v877 = vadd.f32 %v867, %v875
    %v878 = vtanh.pop %v877
    %880 = vrot.lane.b32.xlu0 %v878, 64
    %v881 = vpop.permute.xlu0 %880
    %v883 = vmul.f32 %v861, %v881
    %s884 = scalar_lea.vmem [#allocation5], 32
    %v885 = vld [vmem:[%s884] sm:$0xff]
    %v886 = vld [vmem:[%s884 + $0x8] sm:$0xff]
    %v887 = vld [vmem:[%s884 + $0x10] sm:$0xff]
    %v888 = vld [vmem:[%s884 + $0x18] sm:$0xff]
    %890 = vrot.lane.b32.xlu0 %v883, 32
    %v891 = vpop.permute.xlu0 %890
    %v892 = vsel %vm783, %v891, 0
    %894 = vmatprep.subr.mxu0 0.0
    %895 = vmatpush1.msra.mxu0 %v885
    %896 = vmatprep.subr.mxu0 0.0
    %897 = vmatpush1.msra.mxu0 %v886
    %898 = vmatprep.subr.mxu0 0.0
    %899 = vmatpush1.msra.mxu0 %v887
    %900 = vmatprep.subr.mxu0 0.0
    %901 = vmatpush1.msra.mxu0 %v888
    %902 = vmatprep.subr.mxu0 0.0
    %903 = vmatpush1.msra.mxu0 0.0
    %904 = vmatprep.subr.mxu0 0.0
    %905 = vmatpush1.msra.mxu0 0.0
    %906 = vmatprep.subr.mxu0 0.0
    %907 = vmatpush1.msra.mxu0 0.0
    %908 = vmatprep.subr.mxu0 0.0
    %909 = vmatpush1.msra.mxu0 0.0
    %910 = vmatprep.subr.mxu0 0.0
    %911 = vmatpush1.msra.mxu0 0.0
    %912 = vmatprep.subr.mxu0 0.0
    %913 = vmatpush1.msra.mxu0 0.0
    %914 = vmatprep.subr.mxu0 0.0
    %915 = vmatpush1.msra.mxu0 0.0
    %916 = vmatprep.subr.mxu0 0.0
    %917 = vmatpush1.msra.mxu0 0.0
    %918 = vmatprep.subr.mxu0 0.0
    %919 = vmatpush1.msra.mxu0 0.0
    %920 = vmatprep.subr.mxu0 0.0
    %921 = vmatpush1.msra.mxu0 0.0
    %922 = vmatprep.subr.mxu0 0.0
    %923 = vmatpush1.msra.mxu0 0.0
    %924 = vmatprep.subr.mxu0 0.0
    %925 = vmatpush1.msra.mxu0 0.0
    %926 = vmatprep.subr.mxu0 0.0
    %927 = vmatpush1.msra.mxu0 0.0
    %928 = vmatprep.subr.mxu0 0.0
    %929 = vmatpush1.msra.mxu0 0.0
    %930 = vmatprep.subr.mxu0 0.0
    %931 = vmatpush1.msra.mxu0 0.0
    %932 = vmatprep.subr.mxu0 0.0
    %933 = vmatpush1.msra.mxu0 0.0
    %934 = vmatprep.subr.mxu0 0.0
    %935 = vmatpush1.msra.mxu0 0.0
    %936 = vmatprep.subr.mxu0 0.0
    %937 = vmatpush1.msra.mxu0 0.0
    %938 = vmatprep.subr.mxu0 0.0
    %939 = vmatpush1.msra.mxu0 0.0
    %940 = vmatprep.subr.mxu0 0.0
    %941 = vmatpush1.msra.mxu0 0.0
    %942 = vmatprep.subr.mxu0 0.0
    %943 = vmatpush1.msra.mxu0 0.0
    %944 = vmatprep.subr.mxu0 0.0
    %945 = vmatpush1.msra.mxu0 0.0
    %946 = vmatprep.subr.mxu0 0.0
    %947 = vmatpush1.msra.mxu0 0.0
    %948 = vmatprep.subr.mxu0 0.0
    %949 = vmatpush1.msra.mxu0 0.0
    %950 = vmatprep.subr.mxu0 0.0
    %951 = vmatpush1.msra.mxu0 0.0
    %952 = vmatprep.subr.mxu0 0.0
    %953 = vmatpush1.msra.mxu0 0.0
    %954 = vmatprep.subr.mxu0 0.0
    %955 = vmatpush1.msra.mxu0 0.0
    %956 = vmatprep.subr.mxu0 0.0
    %957 = vmatpush1.msra.mxu0 0.0
    %958 = vmatprep.mubr.f32.mxu0 0.0
    %959 = vmatmul.mubr.f32.gmra.mrb[0].mxu0 %v892
    %v960 = vpop.f32.mrb[0].mxu0
    %v961 = vadd.f32 %v594, %v960
    %v962 = vpop.f32.mrb[0].mxu0
    %963 = vdwg.mxu0
    %v964 = vxor.u32 %v961, 2147483648
    %v965 = vmul.f32 %v964, 1.442695
    %v966 = vpow.pop %v965
    %v967 = vadd.f32 %v966, 1.0
    %v968 = vrcp.pop %v967
    %v969 = vmul.f32 1.0, %v968
    %v970 = vtanh.pop %v961
    %972 = vrot.lane.b32.xlu0 %v137, 32
    %v973 = vpop.permute.xlu0 %972
    %v975 = vmul.f32 %v969, %v973
    %977 = vrot.lane.b32.xlu0 %v970, 64
    %v978 = vpop.permute.xlu0 %977
    %v980 = vmul.f32 %v969, %v978
    %982 = vrot.lane.b32.xlu0 %v980, 32
    %v983 = vpop.permute.xlu0 %982
    %v985 = vadd.f32 %v975, %v983
    %v986 = vtanh.pop %v985
    %988 = vrot.lane.b32.xlu0 %v986, 64
    %v989 = vpop.permute.xlu0 %988
    %v991 = vmul.f32 %v969, %v989
    %s992 = scalar_lea.vmem [#allocation5], 64
    %v993 = vld [vmem:[%s992] sm:$0xff]
    %v994 = vld [vmem:[%s992 + $0x8] sm:$0xff]
    %v995 = vld [vmem:[%s992 + $0x10] sm:$0xff]
    %v996 = vld [vmem:[%s992 + $0x18] sm:$0xff]
    %998 = vrot.lane.b32.xlu0 %v991, 32
    %v999 = vpop.permute.xlu0 %998
    %v1000 = vsel %vm783, %v999, 0
    %1002 = vmatprep.subr.mxu0 0.0
    %1003 = vmatpush1.msra.mxu0 %v993
    %1004 = vmatprep.subr.mxu0 0.0
    %1005 = vmatpush1.msra.mxu0 %v994
    %1006 = vmatprep.subr.mxu0 0.0
    %1007 = vmatpush1.msra.mxu0 %v995
    %1008 = vmatprep.subr.mxu0 0.0
    %1009 = vmatpush1.msra.mxu0 %v996
    %1010 = vmatprep.subr.mxu0 0.0
    %1011 = vmatpush1.msra.mxu0 0.0
    %1012 = vmatprep.subr.mxu0 0.0
    %1013 = vmatpush1.msra.mxu0 0.0
    %1014 = vmatprep.subr.mxu0 0.0
    %1015 = vmatpush1.msra.mxu0 0.0
    %1016 = vmatprep.subr.mxu0 0.0
    %1017 = vmatpush1.msra.mxu0 0.0
    %1018 = vmatprep.subr.mxu0 0.0
    %1019 = vmatpush1.msra.mxu0 0.0
    %1020 = vmatprep.subr.mxu0 0.0
    %1021 = vmatpush1.msra.mxu0 0.0
    %1022 = vmatprep.subr.mxu0 0.0
    %1023 = vmatpush1.msra.mxu0 0.0
    %1024 = vmatprep.subr.mxu0 0.0
    %1025 = vmatpush1.msra.mxu0 0.0
    %1026 = vmatprep.subr.mxu0 0.0
    %1027 = vmatpush1.msra.mxu0 0.0
    %1028 = vmatprep.subr.mxu0 0.0
    %1029 = vmatpush1.msra.mxu0 0.0
    %1030 = vmatprep.subr.mxu0 0.0
    %1031 = vmatpush1.msra.mxu0 0.0
    %1032 = vmatprep.subr.mxu0 0.0
    %1033 = vmatpush1.msra.mxu0 0.0
    %1034 = vmatprep.subr.mxu0 0.0
    %1035 = vmatpush1.msra.mxu0 0.0
    %1036 = vmatprep.subr.mxu0 0.0
    %1037 = vmatpush1.msra.mxu0 0.0
    %1038 = vmatprep.subr.mxu0 0.0
    %1039 = vmatpush1.msra.mxu0 0.0
    %1040 = vmatprep.subr.mxu0 0.0
    %1041 = vmatpush1.msra.mxu0 0.0
    %1042 = vmatprep.subr.mxu0 0.0
    %1043 = vmatpush1.msra.mxu0 0.0
    %1044 = vmatprep.subr.mxu0 0.0
    %1045 = vmatpush1.msra.mxu0 0.0
    %1046 = vmatprep.subr.mxu0 0.0
    %1047 = vmatpush1.msra.mxu0 0.0
    %1048 = vmatprep.subr.mxu0 0.0
    %1049 = vmatpush1.msra.mxu0 0.0
    %1050 = vmatprep.subr.mxu0 0.0
    %1051 = vmatpush1.msra.mxu0 0.0
    %1052 = vmatprep.subr.mxu0 0.0
    %1053 = vmatpush1.msra.mxu0 0.0
    %1054 = vmatprep.subr.mxu0 0.0
    %1055 = vmatpush1.msra.mxu0 0.0
    %1056 = vmatprep.subr.mxu0 0.0
    %1057 = vmatpush1.msra.mxu0 0.0
    %1058 = vmatprep.subr.mxu0 0.0
    %1059 = vmatpush1.msra.mxu0 0.0
    %1060 = vmatprep.subr.mxu0 0.0
    %1061 = vmatpush1.msra.mxu0 0.0
    %1062 = vmatprep.subr.mxu0 0.0
    %1063 = vmatpush1.msra.mxu0 0.0
    %1064 = vmatprep.subr.mxu0 0.0
    %1065 = vmatpush1.msra.mxu0 0.0
    %1066 = vmatprep.mubr.f32.mxu0 0.0
    %1067 = vmatmul.mubr.f32.gmra.mrb[0].mxu0 %v1000
    %v1068 = vpop.f32.mrb[0].mxu0
    %v1069 = vadd.f32 %v596, %v1068
    %v1070 = vpop.f32.mrb[0].mxu0
    %1071 = vdwg.mxu0
    %v1072 = vxor.u32 %v1069, 2147483648
    %v1073 = vmul.f32 %v1072, 1.442695
    %v1074 = vpow.pop %v1073
    %v1075 = vadd.f32 %v1074, 1.0
    %v1076 = vrcp.pop %v1075
    %v1077 = vmul.f32 1.0, %v1076
    %v1078 = vtanh.pop %v1069
    %1080 = vrot.lane.b32.xlu0 %v139, 32
    %v1081 = vpop.permute.xlu0 %1080
    %v1083 = vmul.f32 %v1077, %v1081
    %1085 = vrot.lane.b32.xlu0 %v1078, 64
    %v1086 = vpop.permute.xlu0 %1085
    %v1088 = vmul.f32 %v1077, %v1086
    %1090 = vrot.lane.b32.xlu0 %v1088, 32
    %v1091 = vpop.permute.xlu0 %1090
    %v1093 = vadd.f32 %v1083, %v1091
    %v1094 = vtanh.pop %v1093
    %1096 = vrot.lane.b32.xlu0 %v1094, 64
    %v1097 = vpop.permute.xlu0 %1096
    %v1099 = vmul.f32 %v1077, %v1097
    %s1100 = scalar_lea.vmem [#allocation5], 96
    %v1101 = vld [vmem:[%s1100] sm:$0xff]
    %v1102 = vld [vmem:[%s1100 + $0x8] sm:$0xff]
    %v1103 = vld [vmem:[%s1100 + $0x10] sm:$0xff]
    %v1104 = vld [vmem:[%s1100 + $0x18] sm:$0xff]
    %1106 = vrot.lane.b32.xlu0 %v1099, 32
    %v1107 = vpop.permute.xlu0 %1106
    %v1108 = vsel %vm783, %v1107, 0
    %1110 = vmatprep.subr.mxu0 0.0
    %1111 = vmatpush1.msra.mxu0 %v1101
    %1112 = vmatprep.subr.mxu0 0.0
    %1113 = vmatpush1.msra.mxu0 %v1102
    %1114 = vmatprep.subr.mxu0 0.0
    %1115 = vmatpush1.msra.mxu0 %v1103
    %1116 = vmatprep.subr.mxu0 0.0
    %1117 = vmatpush1.msra.mxu0 %v1104
    %1118 = vmatprep.subr.mxu0 0.0
    %1119 = vmatpush1.msra.mxu0 0.0
    %1120 = vmatprep.subr.mxu0 0.0
    %1121 = vmatpush1.msra.mxu0 0.0
    %1122 = vmatprep.subr.mxu0 0.0
    %1123 = vmatpush1.msra.mxu0 0.0
    %1124 = vmatprep.subr.mxu0 0.0
    %1125 = vmatpush1.msra.mxu0 0.0
    %1126 = vmatprep.subr.mxu0 0.0
    %1127 = vmatpush1.msra.mxu0 0.0
    %1128 = vmatprep.subr.mxu0 0.0
    %1129 = vmatpush1.msra.mxu0 0.0
    %1130 = vmatprep.subr.mxu0 0.0
    %1131 = vmatpush1.msra.mxu0 0.0
    %1132 = vmatprep.subr.mxu0 0.0
    %1133 = vmatpush1.msra.mxu0 0.0
    %1134 = vmatprep.subr.mxu0 0.0
    %1135 = vmatpush1.msra.mxu0 0.0
    %1136 = vmatprep.subr.mxu0 0.0
    %1137 = vmatpush1.msra.mxu0 0.0
    %1138 = vmatprep.subr.mxu0 0.0
    %1139 = vmatpush1.msra.mxu0 0.0
    %1140 = vmatprep.subr.mxu0 0.0
    %1141 = vmatpush1.msra.mxu0 0.0
    %1142 = vmatprep.subr.mxu0 0.0
    %1143 = vmatpush1.msra.mxu0 0.0
    %1144 = vmatprep.subr.mxu0 0.0
    %1145 = vmatpush1.msra.mxu0 0.0
    %1146 = vmatprep.subr.mxu0 0.0
    %1147 = vmatpush1.msra.mxu0 0.0
    %1148 = vmatprep.subr.mxu0 0.0
    %1149 = vmatpush1.msra.mxu0 0.0
    %1150 = vmatprep.subr.mxu0 0.0
    %1151 = vmatpush1.msra.mxu0 0.0
    %1152 = vmatprep.subr.mxu0 0.0
    %1153 = vmatpush1.msra.mxu0 0.0
    %1154 = vmatprep.subr.mxu0 0.0
    %1155 = vmatpush1.msra.mxu0 0.0
    %1156 = vmatprep.subr.mxu0 0.0
    %1157 = vmatpush1.msra.mxu0 0.0
    %1158 = vmatprep.subr.mxu0 0.0
    %1159 = vmatpush1.msra.mxu0 0.0
    %1160 = vmatprep.subr.mxu0 0.0
    %1161 = vmatpush1.msra.mxu0 0.0
    %1162 = vmatprep.subr.mxu0 0.0
    %1163 = vmatpush1.msra.mxu0 0.0
    %1164 = vmatprep.subr.mxu0 0.0
    %1165 = vmatpush1.msra.mxu0 0.0
    %1166 = vmatprep.subr.mxu0 0.0
    %1167 = vmatpush1.msra.mxu0 0.0
    %1168 = vmatprep.subr.mxu0 0.0
    %1169 = vmatpush1.msra.mxu0 0.0
    %1170 = vmatprep.subr.mxu0 0.0
    %1171 = vmatpush1.msra.mxu0 0.0
    %1172 = vmatprep.subr.mxu0 0.0
    %1173 = vmatpush1.msra.mxu0 0.0
    %1174 = vmatprep.mubr.f32.mxu0 0.0
    %1175 = vmatmul.mubr.f32.gmra.mrb[0].mxu0 %v1108
    %v1176 = vpop.f32.mrb[0].mxu0
    %v1177 = vadd.f32 %v665, %v1176
    %v1178 = vpop.f32.mrb[0].mxu0
    %1179 = vdwg.mxu0
    %v1180 = vxor.u32 %v1177, 2147483648
    %v1181 = vmul.f32 %v1180, 1.442695
    %v1182 = vpow.pop %v1181
    %v1183 = vadd.f32 %v1182, 1.0
    %v1184 = vrcp.pop %v1183
    %v1185 = vmul.f32 1.0, %v1184
    %v1186 = vtanh.pop %v1177
    %1188 = vrot.lane.b32.xlu0 %v141, 32
    %v1189 = vpop.permute.xlu0 %1188
    %v1191 = vmul.f32 %v1185, %v1189
    %1193 = vrot.lane.b32.xlu0 %v1186, 64
    %v1194 = vpop.permute.xlu0 %1193
    %v1196 = vmul.f32 %v1185, %v1194
    %1198 = vrot.lane.b32.xlu0 %v1196, 32
    %v1199 = vpop.permute.xlu0 %1198
    %v1201 = vadd.f32 %v1191, %v1199
    %v1202 = vtanh.pop %v1201
    %1204 = vrot.lane.b32.xlu0 %v1202, 64
    %v1205 = vpop.permute.xlu0 %1204
    %v1207 = vmul.f32 %v1185, %v1205
    %s1208 = scalar_lea.vmem [#allocation5], 128
    %v1209 = vld [vmem:[%s1208] sm:$0xff]
    %v1210 = vld [vmem:[%s1208 + $0x8] sm:$0xff]
    %v1211 = vld [vmem:[%s1208 + $0x10] sm:$0xff]
    %v1212 = vld [vmem:[%s1208 + $0x18] sm:$0xff]
    %1214 = vrot.lane.b32.xlu0 %v1207, 32
    %v1215 = vpop.permute.xlu0 %1214
    %v1216 = vsel %vm783, %v1215, 0
    %1218 = vmatprep.subr.mxu0 0.0
    %1219 = vmatpush1.msra.mxu0 %v1209
    %1220 = vmatprep.subr.mxu0 0.0
    %1221 = vmatpush1.msra.mxu0 %v1210
    %1222 = vmatprep.subr.mxu0 0.0
    %1223 = vmatpush1.msra.mxu0 %v1211
    %1224 = vmatprep.subr.mxu0 0.0
    %1225 = vmatpush1.msra.mxu0 %v1212
    %1226 = vmatprep.subr.mxu0 0.0
    %1227 = vmatpush1.msra.mxu0 0.0
    %1228 = vmatprep.subr.mxu0 0.0
    %1229 = vmatpush1.msra.mxu0 0.0
    %1230 = vmatprep.subr.mxu0 0.0
    %1231 = vmatpush1.msra.mxu0 0.0
    %1232 = vmatprep.subr.mxu0 0.0
    %1233 = vmatpush1.msra.mxu0 0.0
    %1234 = vmatprep.subr.mxu0 0.0
    %1235 = vmatpush1.msra.mxu0 0.0
    %1236 = vmatprep.subr.mxu0 0.0
    %1237 = vmatpush1.msra.mxu0 0.0
    %1238 = vmatprep.subr.mxu0 0.0
    %1239 = vmatpush1.msra.mxu0 0.0
    %1240 = vmatprep.subr.mxu0 0.0
    %1241 = vmatpush1.msra.mxu0 0.0
    %1242 = vmatprep.subr.mxu0 0.0
    %1243 = vmatpush1.msra.mxu0 0.0
    %1244 = vmatprep.subr.mxu0 0.0
    %1245 = vmatpush1.msra.mxu0 0.0
    %1246 = vmatprep.subr.mxu0 0.0
    %1247 = vmatpush1.msra.mxu0 0.0
    %1248 = vmatprep.subr.mxu0 0.0
    %1249 = vmatpush1.msra.mxu0 0.0
    %1250 = vmatprep.subr.mxu0 0.0
    %1251 = vmatpush1.msra.mxu0 0.0
    %1252 = vmatprep.subr.mxu0 0.0
    %1253 = vmatpush1.msra.mxu0 0.0
    %1254 = vmatprep.subr.mxu0 0.0
    %1255 = vmatpush1.msra.mxu0 0.0
    %1256 = vmatprep.subr.mxu0 0.0
    %1257 = vmatpush1.msra.mxu0 0.0
    %1258 = vmatprep.subr.mxu0 0.0
    %1259 = vmatpush1.msra.mxu0 0.0
    %1260 = vmatprep.subr.mxu0 0.0
    %1261 = vmatpush1.msra.mxu0 0.0
    %1262 = vmatprep.subr.mxu0 0.0
    %1263 = vmatpush1.msra.mxu0 0.0
    %1264 = vmatprep.subr.mxu0 0.0
    %1265 = vmatpush1.msra.mxu0 0.0
    %1266 = vmatprep.subr.mxu0 0.0
    %1267 = vmatpush1.msra.mxu0 0.0
    %1268 = vmatprep.subr.mxu0 0.0
    %1269 = vmatpush1.msra.mxu0 0.0
    %1270 = vmatprep.subr.mxu0 0.0
    %1271 = vmatpush1.msra.mxu0 0.0
    %1272 = vmatprep.subr.mxu0 0.0
    %1273 = vmatpush1.msra.mxu0 0.0
    %1274 = vmatprep.subr.mxu0 0.0
    %1275 = vmatpush1.msra.mxu0 0.0
    %1276 = vmatprep.subr.mxu0 0.0
    %1277 = vmatpush1.msra.mxu0 0.0
    %1278 = vmatprep.subr.mxu0 0.0
    %1279 = vmatpush1.msra.mxu0 0.0
    %1280 = vmatprep.subr.mxu0 0.0
    %1281 = vmatpush1.msra.mxu0 0.0
    %1282 = vmatprep.mubr.f32.mxu0 0.0
    %1283 = vmatmul.mubr.f32.gmra.mrb[0].mxu0 %v1216
    %v1284 = vpop.f32.mrb[0].mxu0
    %v1285 = vadd.f32 %v667, %v1284
    %v1286 = vpop.f32.mrb[0].mxu0
    %1287 = vdwg.mxu0
    %v1288 = vxor.u32 %v1285, 2147483648
    %v1289 = vmul.f32 %v1288, 1.442695
    %v1290 = vpow.pop %v1289
    %v1291 = vadd.f32 %v1290, 1.0
    %v1292 = vrcp.pop %v1291
    %v1293 = vmul.f32 1.0, %v1292
    %v1294 = vtanh.pop %v1285
    %1296 = vrot.lane.b32.xlu0 %v143, 32
    %v1297 = vpop.permute.xlu0 %1296
    %v1299 = vmul.f32 %v1293, %v1297
    %1301 = vrot.lane.b32.xlu0 %v1294, 64
    %v1302 = vpop.permute.xlu0 %1301
    %v1304 = vmul.f32 %v1293, %v1302
    %1306 = vrot.lane.b32.xlu0 %v1304, 32
    %v1307 = vpop.permute.xlu0 %1306
    %v1309 = vadd.f32 %v1299, %v1307
    %v1310 = vtanh.pop %v1309
    %1312 = vrot.lane.b32.xlu0 %v1310, 64
    %v1313 = vpop.permute.xlu0 %1312
    %v1315 = vmul.f32 %v1293, %v1313
    %s1316 = scalar_lea.vmem [#allocation5], 160
    %v1317 = vld [vmem:[%s1316] sm:$0xff]
    %v1318 = vld [vmem:[%s1316 + $0x8] sm:$0xff]
    %v1319 = vld [vmem:[%s1316 + $0x10] sm:$0xff]
    %v1320 = vld [vmem:[%s1316 + $0x18] sm:$0xff]
    %1322 = vrot.lane.b32.xlu0 %v1315, 32
    %v1323 = vpop.permute.xlu0 %1322
    %v1324 = vsel %vm783, %v1323, 0
    %1326 = vmatprep.subr.mxu0 0.0
    %1327 = vmatpush1.msra.mxu0 %v1317
    %1328 = vmatprep.subr.mxu0 0.0
    %1329 = vmatpush1.msra.mxu0 %v1318
    %1330 = vmatprep.subr.mxu0 0.0
    %1331 = vmatpush1.msra.mxu0 %v1319
    %1332 = vmatprep.subr.mxu0 0.0
    %1333 = vmatpush1.msra.mxu0 %v1320
    %1334 = vmatprep.subr.mxu0 0.0
    %1335 = vmatpush1.msra.mxu0 0.0
    %1336 = vmatprep.subr.mxu0 0.0
    %1337 = vmatpush1.msra.mxu0 0.0
    %1338 = vmatprep.subr.mxu0 0.0
    %1339 = vmatpush1.msra.mxu0 0.0
    %1340 = vmatprep.subr.mxu0 0.0
    %1341 = vmatpush1.msra.mxu0 0.0
    %1342 = vmatprep.subr.mxu0 0.0
    %1343 = vmatpush1.msra.mxu0 0.0
    %1344 = vmatprep.subr.mxu0 0.0
    %1345 = vmatpush1.msra.mxu0 0.0
    %1346 = vmatprep.subr.mxu0 0.0
    %1347 = vmatpush1.msra.mxu0 0.0
    %1348 = vmatprep.subr.mxu0 0.0
    %1349 = vmatpush1.msra.mxu0 0.0
    %1350 = vmatprep.subr.mxu0 0.0
    %1351 = vmatpush1.msra.mxu0 0.0
    %1352 = vmatprep.subr.mxu0 0.0
    %1353 = vmatpush1.msra.mxu0 0.0
    %1354 = vmatprep.subr.mxu0 0.0
    %1355 = vmatpush1.msra.mxu0 0.0
    %1356 = vmatprep.subr.mxu0 0.0
    %1357 = vmatpush1.msra.mxu0 0.0
    %1358 = vmatprep.subr.mxu0 0.0
    %1359 = vmatpush1.msra.mxu0 0.0
    %1360 = vmatprep.subr.mxu0 0.0
    %1361 = vmatpush1.msra.mxu0 0.0
    %1362 = vmatprep.subr.mxu0 0.0
    %1363 = vmatpush1.msra.mxu0 0.0
    %1364 = vmatprep.subr.mxu0 0.0
    %1365 = vmatpush1.msra.mxu0 0.0
    %1366 = vmatprep.subr.mxu0 0.0
    %1367 = vmatpush1.msra.mxu0 0.0
    %1368 = vmatprep.subr.mxu0 0.0
    %1369 = vmatpush1.msra.mxu0 0.0
    %1370 = vmatprep.subr.mxu0 0.0
    %1371 = vmatpush1.msra.mxu0 0.0
    %1372 = vmatprep.subr.mxu0 0.0
    %1373 = vmatpush1.msra.mxu0 0.0
    %1374 = vmatprep.subr.mxu0 0.0
    %1375 = vmatpush1.msra.mxu0 0.0
    %1376 = vmatprep.subr.mxu0 0.0
    %1377 = vmatpush1.msra.mxu0 0.0
    %1378 = vmatprep.subr.mxu0 0.0
    %1379 = vmatpush1.msra.mxu0 0.0
    %1380 = vmatprep.subr.mxu0 0.0
    %1381 = vmatpush1.msra.mxu0 0.0
    %1382 = vmatprep.subr.mxu0 0.0
    %1383 = vmatpush1.msra.mxu0 0.0
    %1384 = vmatprep.subr.mxu0 0.0
    %1385 = vmatpush1.msra.mxu0 0.0
    %1386 = vmatprep.subr.mxu0 0.0
    %1387 = vmatpush1.msra.mxu0 0.0
    %1388 = vmatprep.subr.mxu0 0.0
    %1389 = vmatpush1.msra.mxu0 0.0
    %1390 = vmatprep.mubr.f32.mxu0 0.0
    %1391 = vmatmul.mubr.f32.gmra.mrb[0].mxu0 %v1324
    %v1392 = vpop.f32.mrb[0].mxu0
    %v1393 = vadd.f32 %v736, %v1392
    %v1394 = vpop.f32.mrb[0].mxu0
    %1395 = vdwg.mxu0
    %v1396 = vxor.u32 %v1393, 2147483648
    %v1397 = vmul.f32 %v1396, 1.442695
    %v1398 = vpow.pop %v1397
    %v1399 = vadd.f32 %v1398, 1.0
    %v1400 = vrcp.pop %v1399
    %v1401 = vmul.f32 1.0, %v1400
    %v1402 = vtanh.pop %v1393
    %1404 = vrot.lane.b32.xlu0 %v145, 32
    %v1405 = vpop.permute.xlu0 %1404
    %v1407 = vmul.f32 %v1401, %v1405
    %1409 = vrot.lane.b32.xlu0 %v1402, 64
    %v1410 = vpop.permute.xlu0 %1409
    %v1412 = vmul.f32 %v1401, %v1410
    %1414 = vrot.lane.b32.xlu0 %v1412, 32
    %v1415 = vpop.permute.xlu0 %1414
    %v1417 = vadd.f32 %v1407, %v1415
    %v1418 = vtanh.pop %v1417
    %1420 = vrot.lane.b32.xlu0 %v1418, 64
    %v1421 = vpop.permute.xlu0 %1420
    %v1423 = vmul.f32 %v1401, %v1421
    %s1424 = scalar_lea.vmem [#allocation5], 192
    %v1425 = vld [vmem:[%s1424] sm:$0xff]
    %v1426 = vld [vmem:[%s1424 + $0x8] sm:$0xff]
    %v1427 = vld [vmem:[%s1424 + $0x10] sm:$0xff]
    %v1428 = vld [vmem:[%s1424 + $0x18] sm:$0xff]
    %1430 = vrot.lane.b32.xlu0 %v1423, 32
    %v1431 = vpop.permute.xlu0 %1430
    %v1432 = vsel %vm783, %v1431, 0
    %1434 = vmatprep.subr.mxu0 0.0
    %1435 = vmatpush1.msra.mxu0 %v1425
    %1436 = vmatprep.subr.mxu0 0.0
    %1437 = vmatpush1.msra.mxu0 %v1426
    %1438 = vmatprep.subr.mxu0 0.0
    %1439 = vmatpush1.msra.mxu0 %v1427
    %1440 = vmatprep.subr.mxu0 0.0
    %1441 = vmatpush1.msra.mxu0 %v1428
    %1442 = vmatprep.subr.mxu0 0.0
    %1443 = vmatpush1.msra.mxu0 0.0
    %1444 = vmatprep.subr.mxu0 0.0
    %1445 = vmatpush1.msra.mxu0 0.0
    %1446 = vmatprep.subr.mxu0 0.0
    %1447 = vmatpush1.msra.mxu0 0.0
    %1448 = vmatprep.subr.mxu0 0.0
    %1449 = vmatpush1.msra.mxu0 0.0
    %1450 = vmatprep.subr.mxu0 0.0
    %1451 = vmatpush1.msra.mxu0 0.0
    %1452 = vmatprep.subr.mxu0 0.0
    %1453 = vmatpush1.msra.mxu0 0.0
    %1454 = vmatprep.subr.mxu0 0.0
    %1455 = vmatpush1.msra.mxu0 0.0
    %1456 = vmatprep.subr.mxu0 0.0
    %1457 = vmatpush1.msra.mxu0 0.0
    %1458 = vmatprep.subr.mxu0 0.0
    %1459 = vmatpush1.msra.mxu0 0.0
    %1460 = vmatprep.subr.mxu0 0.0
    %1461 = vmatpush1.msra.mxu0 0.0
    %1462 = vmatprep.subr.mxu0 0.0
    %1463 = vmatpush1.msra.mxu0 0.0
    %1464 = vmatprep.subr.mxu0 0.0
    %1465 = vmatpush1.msra.mxu0 0.0
    %1466 = vmatprep.subr.mxu0 0.0
    %1467 = vmatpush1.msra.mxu0 0.0
    %1468 = vmatprep.subr.mxu0 0.0
    %1469 = vmatpush1.msra.mxu0 0.0
    %1470 = vmatprep.subr.mxu0 0.0
    %1471 = vmatpush1.msra.mxu0 0.0
    %1472 = vmatprep.subr.mxu0 0.0
    %1473 = vmatpush1.msra.mxu0 0.0
    %1474 = vmatprep.subr.mxu0 0.0
    %1475 = vmatpush1.msra.mxu0 0.0
    %1476 = vmatprep.subr.mxu0 0.0
    %1477 = vmatpush1.msra.mxu0 0.0
    %1478 = vmatprep.subr.mxu0 0.0
    %1479 = vmatpush1.msra.mxu0 0.0
    %1480 = vmatprep.subr.mxu0 0.0
    %1481 = vmatpush1.msra.mxu0 0.0
    %1482 = vmatprep.subr.mxu0 0.0
    %1483 = vmatpush1.msra.mxu0 0.0
    %1484 = vmatprep.subr.mxu0 0.0
    %1485 = vmatpush1.msra.mxu0 0.0
    %1486 = vmatprep.subr.mxu0 0.0
    %1487 = vmatpush1.msra.mxu0 0.0
    %1488 = vmatprep.subr.mxu0 0.0
    %1489 = vmatpush1.msra.mxu0 0.0
    %1490 = vmatprep.subr.mxu0 0.0
    %1491 = vmatpush1.msra.mxu0 0.0
    %1492 = vmatprep.subr.mxu0 0.0
    %1493 = vmatpush1.msra.mxu0 0.0
    %1494 = vmatprep.subr.mxu0 0.0
    %1495 = vmatpush1.msra.mxu0 0.0
    %1496 = vmatprep.subr.mxu0 0.0
    %1497 = vmatpush1.msra.mxu0 0.0
    %1498 = vmatprep.mubr.f32.mxu0 0.0
    %1499 = vmatmul.mubr.f32.gmra.mrb[0].mxu0 %v1432
    %v1500 = vpop.f32.mrb[0].mxu0
    %v1501 = vadd.f32 %v738, %v1500
    %v1502 = vpop.f32.mrb[0].mxu0
    %1503 = vdwg.mxu0
    %v1504 = vxor.u32 %v1501, 2147483648
    %v1505 = vmul.f32 %v1504, 1.442695
    %v1506 = vpow.pop %v1505
    %v1507 = vadd.f32 %v1506, 1.0
    %v1508 = vrcp.pop %v1507
    %v1509 = vmul.f32 1.0, %v1508
    %v1510 = vtanh.pop %v1501
    %1512 = vrot.lane.b32.xlu0 %v147, 32
    %v1513 = vpop.permute.xlu0 %1512
    %v1515 = vmul.f32 %v1509, %v1513
    %1517 = vrot.lane.b32.xlu0 %v1510, 64
    %v1518 = vpop.permute.xlu0 %1517
    %v1520 = vmul.f32 %v1509, %v1518
    %1522 = vrot.lane.b32.xlu0 %v1520, 32
    %v1523 = vpop.permute.xlu0 %1522
    %v1525 = vadd.f32 %v1515, %v1523
    %v1526 = vtanh.pop %v1525
    %1528 = vrot.lane.b32.xlu0 %v1526, 64
    %v1529 = vpop.permute.xlu0 %1528
    %v1531 = vmul.f32 %v1509, %v1529
    %1533 = vrot.lane.b32.xlu0 %v883, 64
    %v1534 = vpop.permute.xlu0 %1533
    %1536 = vrot.lane.b32.xlu0 %v991, 96
    %v1537 = vpop.permute.xlu0 %1536
    %1540 = vrot.lane.b32.xlu0 %v1315, 64
    %v1541 = vpop.permute.xlu0 %1540
    %1543 = vrot.lane.b32.xlu0 %v1423, 96
    %v1544 = vpop.permute.xlu0 %1543
    %v1546 = vsel %vm783, %v782, %v1534
    %vm1547 = vcmask 523264
    %v1548 = vsel %vm1547, %v1546, %v1537
    %vm1549 = vcmask 785408
    %v1550 = vsel %vm1549, %v1548, %v1099
    %v1551 = vsel %vm783, %v1215, %v1541
    %v1552 = vsel %vm1547, %v1551, %v1544
    %v1553 = vsel %vm1549, %v1552, %v1531
    %1554 = vmatprep.subr.mxu0 %v149
    %1555 = vmatpush1.msra.mxu0 %v148
    %1556 = vmatprep.subr.mxu0 %v157
    %1557 = vmatpush1.msra.mxu0 %v156
    %1558 = vmatprep.subr.mxu0 %v165
    %1559 = vmatpush1.msra.mxu0 %v164
    %1560 = vmatprep.subr.mxu0 %v173
    %1561 = vmatpush1.msra.mxu0 %v172
    %1562 = vmatprep.subr.mxu0 %v181
    %1563 = vmatpush1.msra.mxu0 %v180
    %1564 = vmatprep.subr.mxu0 %v189
    %1565 = vmatpush1.msra.mxu0 %v188
    %1566 = vmatprep.subr.mxu0 %v197
    %1567 = vmatpush1.msra.mxu0 %v196
    %1568 = vmatprep.subr.mxu0 %v205
    %1569 = vmatpush1.msra.mxu0 %v204
    %1570 = vmatprep.subr.mxu0 %v213
    %1571 = vmatpush1.msra.mxu0 %v212
    %1572 = vmatprep.subr.mxu0 %v221
    %1573 = vmatpush1.msra.mxu0 %v220
    %1574 = vmatprep.subr.mxu0 %v229
    %1575 = vmatpush1.msra.mxu0 %v228
    %1576 = vmatprep.subr.mxu0 %v237
    %1577 = vmatpush1.msra.mxu0 %v236
    %1578 = vmatprep.subr.mxu0 %v245
    %1579 = vmatpush1.msra.mxu0 %v244
    %1580 = vmatprep.subr.mxu0 %v253
    %1581 = vmatpush1.msra.mxu0 %v252
    %1582 = vmatprep.subr.mxu0 %v261
    %1583 = vmatpush1.msra.mxu0 %v260
    %1584 = vmatprep.subr.mxu0 %v269
    %1585 = vmatpush1.msra.mxu0 %v268
    %1586 = vmatprep.subr.mxu0 %v277
    %1587 = vmatpush1.msra.mxu0 %v276
    %1588 = vmatprep.subr.mxu0 %v285
    %1589 = vmatpush1.msra.mxu0 %v284
    %1590 = vmatprep.subr.mxu0 %v293
    %1591 = vmatpush1.msra.mxu0 %v292
    %1592 = vmatprep.subr.mxu0 %v301
    %1593 = vmatpush1.msra.mxu0 %v300
    %1594 = vmatprep.subr.mxu0 %v309
    %1595 = vmatpush1.msra.mxu0 %v308
    %1596 = vmatprep.subr.mxu0 %v317
    %1597 = vmatpush1.msra.mxu0 %v316
    %1598 = vmatprep.subr.mxu0 %v325
    %1599 = vmatpush1.msra.mxu0 %v324
    %1600 = vmatprep.subr.mxu0 %v333
    %1601 = vmatpush1.msra.mxu0 %v332
    %1602 = vmatprep.subr.mxu0 %v341
    %1603 = vmatpush1.msra.mxu0 %v340
    %1604 = vmatprep.subr.mxu0 %v349
    %1605 = vmatpush1.msra.mxu0 %v348
    %1606 = vmatprep.subr.mxu0 %v357
    %1607 = vmatpush1.msra.mxu0 %v356
    %1608 = vmatprep.subr.mxu0 %v365
    %1609 = vmatpush1.msra.mxu0 %v364
    %1610 = vmatprep.subr.mxu0 %v373
    %1611 = vmatpush1.msra.mxu0 %v372
    %1612 = vmatprep.subr.mxu0 %v381
    %1613 = vmatpush1.msra.mxu0 %v380
    %1614 = vmatprep.subr.mxu0 %v389
    %1615 = vmatpush1.msra.mxu0 %v388
    %1616 = vmatprep.subr.mxu0 %v397
    %1617 = vmatpush1.msra.mxu0 %v396
    %1618 = vmatprep.mubr.f32.mxu0 %v1553
    %1619 = vmatmul.mubr.f32.gmra.mrb[0].mxu0 %v1550
    %v1620 = vpop.f32.mrb[0].mxu0
    %v1621 = vadd.f32 %v408, %v1620
    %v1622 = vpop.f32.mrb[0].mxu0
    %v1623 = vadd.f32 %v412, %v1622
    %1624 = vdwg.mxu0
    %1625 = vmatprep.subr.mxu0 %v151
    %1626 = vmatpush1.msra.mxu0 %v150
    %1627 = vmatprep.subr.mxu0 %v159
    %1628 = vmatpush1.msra.mxu0 %v158
    %1629 = vmatprep.subr.mxu0 %v167
    %1630 = vmatpush1.msra.mxu0 %v166
    %1631 = vmatprep.subr.mxu0 %v175
    %1632 = vmatpush1.msra.mxu0 %v174
    %1633 = vmatprep.subr.mxu0 %v183
    %1634 = vmatpush1.msra.mxu0 %v182
    %1635 = vmatprep.subr.mxu0 %v191
    %1636 = vmatpush1.msra.mxu0 %v190
    %1637 = vmatprep.subr.mxu0 %v199
    %1638 = vmatpush1.msra.mxu0 %v198
    %1639 = vmatprep.subr.mxu0 %v207
    %1640 = vmatpush1.msra.mxu0 %v206
    %1641 = vmatprep.subr.mxu0 %v215
    %1642 = vmatpush1.msra.mxu0 %v214
    %1643 = vmatprep.subr.mxu0 %v223
    %1644 = vmatpush1.msra.mxu0 %v222
    %1645 = vmatprep.subr.mxu0 %v231
    %1646 = vmatpush1.msra.mxu0 %v230
    %1647 = vmatprep.subr.mxu0 %v239
    %1648 = vmatpush1.msra.mxu0 %v238
    %1649 = vmatprep.subr.mxu0 %v247
    %1650 = vmatpush1.msra.mxu0 %v246
    %1651 = vmatprep.subr.mxu0 %v255
    %1652 = vmatpush1.msra.mxu0 %v254
    %1653 = vmatprep.subr.mxu0 %v263
    %1654 = vmatpush1.msra.mxu0 %v262
    %1655 = vmatprep.subr.mxu0 %v271
    %1656 = vmatpush1.msra.mxu0 %v270
    %1657 = vmatprep.subr.mxu0 %v279
    %1658 = vmatpush1.msra.mxu0 %v278
    %1659 = vmatprep.subr.mxu0 %v287
    %1660 = vmatpush1.msra.mxu0 %v286
    %1661 = vmatprep.subr.mxu0 %v295
    %1662 = vmatpush1.msra.mxu0 %v294
    %1663 = vmatprep.subr.mxu0 %v303
    %1664 = vmatpush1.msra.mxu0 %v302
    %1665 = vmatprep.subr.mxu0 %v311
    %1666 = vmatpush1.msra.mxu0 %v310
    %1667 = vmatprep.subr.mxu0 %v319
    %1668 = vmatpush1.msra.mxu0 %v318
    %1669 = vmatprep.subr.mxu0 %v327
    %1670 = vmatpush1.msra.mxu0 %v326
    %1671 = vmatprep.subr.mxu0 %v335
    %1672 = vmatpush1.msra.mxu0 %v334
    %1673 = vmatprep.subr.mxu0 %v343
    %1674 = vmatpush1.msra.mxu0 %v342
    %1675 = vmatprep.subr.mxu0 %v351
    %1676 = vmatpush1.msra.mxu0 %v350
    %1677 = vmatprep.subr.mxu0 %v359
    %1678 = vmatpush1.msra.mxu0 %v358
    %1679 = vmatprep.subr.mxu0 %v367
    %1680 = vmatpush1.msra.mxu0 %v366
    %1681 = vmatprep.subr.mxu0 %v375
    %1682 = vmatpush1.msra.mxu0 %v374
    %1683 = vmatprep.subr.mxu0 %v383
    %1684 = vmatpush1.msra.mxu0 %v382
    %1685 = vmatprep.subr.mxu0 %v391
    %1686 = vmatpush1.msra.mxu0 %v390
    %1687 = vmatprep.subr.mxu0 %v399
    %1688 = vmatpush1.msra.mxu0 %v398
    %1689 = vmatprep.mubr.f32.mxu0 %v1553
    %1690 = vmatmul.mubr.f32.gmra.mrb[0].mxu0 %v1550
    %v1691 = vpop.f32.mrb[0].mxu0
    %v1692 = vadd.f32 %v416, %v1691
    %v1693 = vpop.f32.mrb[0].mxu0
    %v1694 = vadd.f32 %v420, %v1693
    %1695 = vdwg.mxu0
    %1696 = vmatprep.subr.mxu0 %v153
    %1697 = vmatpush1.msra.mxu0 %v152
    %1698 = vmatprep.subr.mxu0 %v161
    %1699 = vmatpush1.msra.mxu0 %v160
    %1700 = vmatprep.subr.mxu0 %v169
    %1701 = vmatpush1.msra.mxu0 %v168
    %1702 = vmatprep.subr.mxu0 %v177
    %1703 = vmatpush1.msra.mxu0 %v176
    %1704 = vmatprep.subr.mxu0 %v185
    %1705 = vmatpush1.msra.mxu0 %v184
    %1706 = vmatprep.subr.mxu0 %v193
    %1707 = vmatpush1.msra.mxu0 %v192
    %1708 = vmatprep.subr.mxu0 %v201
    %1709 = vmatpush1.msra.mxu0 %v200
    %1710 = vmatprep.subr.mxu0 %v209
    %1711 = vmatpush1.msra.mxu0 %v208
    %1712 = vmatprep.subr.mxu0 %v217
    %1713 = vmatpush1.msra.mxu0 %v216
    %1714 = vmatprep.subr.mxu0 %v225
    %1715 = vmatpush1.msra.mxu0 %v224
    %1716 = vmatprep.subr.mxu0 %v233
    %1717 = vmatpush1.msra.mxu0 %v232
    %1718 = vmatprep.subr.mxu0 %v241
    %1719 = vmatpush1.msra.mxu0 %v240
    %1720 = vmatprep.subr.mxu0 %v249
    %1721 = vmatpush1.msra.mxu0 %v248
    %1722 = vmatprep.subr.mxu0 %v257
    %1723 = vmatpush1.msra.mxu0 %v256
    %1724 = vmatprep.subr.mxu0 %v265
    %1725 = vmatpush1.msra.mxu0 %v264
    %1726 = vmatprep.subr.mxu0 %v273
    %1727 = vmatpush1.msra.mxu0 %v272
    %1728 = vmatprep.subr.mxu0 %v281
    %1729 = vmatpush1.msra.mxu0 %v280
    %1730 = vmatprep.subr.mxu0 %v289
    %1731 = vmatpush1.msra.mxu0 %v288
    %1732 = vmatprep.subr.mxu0 %v297
    %1733 = vmatpush1.msra.mxu0 %v296
    %1734 = vmatprep.subr.mxu0 %v305
    %1735 = vmatpush1.msra.mxu0 %v304
    %1736 = vmatprep.subr.mxu0 %v313
    %1737 = vmatpush1.msra.mxu0 %v312
    %1738 = vmatprep.subr.mxu0 %v321
    %1739 = vmatpush1.msra.mxu0 %v320
    %1740 = vmatprep.subr.mxu0 %v329
    %1741 = vmatpush1.msra.mxu0 %v328
    %1742 = vmatprep.subr.mxu0 %v337
    %1743 = vmatpush1.msra.mxu0 %v336
    %1744 = vmatprep.subr.mxu0 %v345
    %1745 = vmatpush1.msra.mxu0 %v344
    %1746 = vmatprep.subr.mxu0 %v353
    %1747 = vmatpush1.msra.mxu0 %v352
    %1748 = vmatprep.subr.mxu0 %v361
    %1749 = vmatpush1.msra.mxu0 %v360
    %1750 = vmatprep.subr.mxu0 %v369
    %1751 = vmatpush1.msra.mxu0 %v368
    %1752 = vmatprep.subr.mxu0 %v377
    %1753 = vmatpush1.msra.mxu0 %v376
    %1754 = vmatprep.subr.mxu0 %v385
    %1755 = vmatpush1.msra.mxu0 %v384
    %1756 = vmatprep.subr.mxu0 %v393
    %1757 = vmatpush1.msra.mxu0 %v392
    %1758 = vmatprep.subr.mxu0 %v401
    %1759 = vmatpush1.msra.mxu0 %v400
    %1760 = vmatprep.mubr.f32.mxu0 %v1553
    %1761 = vmatmul.mubr.f32.gmra.mrb[0].mxu0 %v1550
    %v1762 = vpop.f32.mrb[0].mxu0
    %v1763 = vadd.f32 %v424, %v1762
    %v1764 = vpop.f32.mrb[0].mxu0
    %v1765 = vadd.f32 %v428, %v1764
    %1766 = vdwg.mxu0
    %1767 = vmatprep.subr.mxu0 %v155
    %1768 = vmatpush1.msra.mxu0 %v154
    %1769 = vmatprep.subr.mxu0 %v163
    %1770 = vmatpush1.msra.mxu0 %v162
    %1771 = vmatprep.subr.mxu0 %v171
    %1772 = vmatpush1.msra.mxu0 %v170
    %1773 = vmatprep.subr.mxu0 %v179
    %1774 = vmatpush1.msra.mxu0 %v178
    %1775 = vmatprep.subr.mxu0 %v187
    %1776 = vmatpush1.msra.mxu0 %v186
    %1777 = vmatprep.subr.mxu0 %v195
    %1778 = vmatpush1.msra.mxu0 %v194
    %1779 = vmatprep.subr.mxu0 %v203
    %1780 = vmatpush1.msra.mxu0 %v202
    %1781 = vmatprep.subr.mxu0 %v211
    %1782 = vmatpush1.msra.mxu0 %v210
    %1783 = vmatprep.subr.mxu0 %v219
    %1784 = vmatpush1.msra.mxu0 %v218
    %1785 = vmatprep.subr.mxu0 %v227
    %1786 = vmatpush1.msra.mxu0 %v226
    %1787 = vmatprep.subr.mxu0 %v235
    %1788 = vmatpush1.msra.mxu0 %v234
    %1789 = vmatprep.subr.mxu0 %v243
    %1790 = vmatpush1.msra.mxu0 %v242
    %1791 = vmatprep.subr.mxu0 %v251
    %1792 = vmatpush1.msra.mxu0 %v250
    %1793 = vmatprep.subr.mxu0 %v259
    %1794 = vmatpush1.msra.mxu0 %v258
    %1795 = vmatprep.subr.mxu0 %v267
    %1796 = vmatpush1.msra.mxu0 %v266
    %1797 = vmatprep.subr.mxu0 %v275
    %1798 = vmatpush1.msra.mxu0 %v274
    %1799 = vmatprep.subr.mxu0 %v283
    %1800 = vmatpush1.msra.mxu0 %v282
    %1801 = vmatprep.subr.mxu0 %v291
    %1802 = vmatpush1.msra.mxu0 %v290
    %1803 = vmatprep.subr.mxu0 %v299
    %1804 = vmatpush1.msra.mxu0 %v298
    %1805 = vmatprep.subr.mxu0 %v307
    %1806 = vmatpush1.msra.mxu0 %v306
    %1807 = vmatprep.subr.mxu0 %v315
    %1808 = vmatpush1.msra.mxu0 %v314
    %1809 = vmatprep.subr.mxu0 %v323
    %1810 = vmatpush1.msra.mxu0 %v322
    %1811 = vmatprep.subr.mxu0 %v331
    %1812 = vmatpush1.msra.mxu0 %v330
    %1813 = vmatprep.subr.mxu0 %v339
    %1814 = vmatpush1.msra.mxu0 %v338
    %1815 = vmatprep.subr.mxu0 %v347
    %1816 = vmatpush1.msra.mxu0 %v346
    %1817 = vmatprep.subr.mxu0 %v355
    %1818 = vmatpush1.msra.mxu0 %v354
    %1819 = vmatprep.subr.mxu0 %v363
    %1820 = vmatpush1.msra.mxu0 %v362
    %1821 = vmatprep.subr.mxu0 %v371
    %1822 = vmatpush1.msra.mxu0 %v370
    %1823 = vmatprep.subr.mxu0 %v379
    %1824 = vmatpush1.msra.mxu0 %v378
    %1825 = vmatprep.subr.mxu0 %v387
    %1826 = vmatpush1.msra.mxu0 %v386
    %1827 = vmatprep.subr.mxu0 %v395
    %1828 = vmatpush1.msra.mxu0 %v394
    %1829 = vmatprep.subr.mxu0 %v403
    %1830 = vmatpush1.msra.mxu0 %v402
    %1831 = vmatprep.mubr.f32.mxu0 %v1553
    %1832 = vmatmul.mubr.f32.gmra.mrb[0].mxu0 %v1550
    %v1833 = vpop.f32.mrb[0].mxu0
    %v1834 = vadd.f32 %v432, %v1833
    %v1835 = vpop.f32.mrb[0].mxu0
    %v1836 = vadd.f32 %v436, %v1835
    %1837 = vdwg.mxu0
    %v1838 = vmul.f32 %v107, %v744
    %v1839 = vadd.f32 %v1838, %v1621
    %v1840 = vxor.u32 %v1839, 2147483648
    %v1841 = vmul.f32 %v1840, 1.442695
    %v1842 = vpow.pop %v1841
    %v1843 = vadd.f32 %v1842, 1.0
    %v1844 = vrcp.pop %v1843
    %v1845 = vmul.f32 1.0, %v1844
    %v1846 = vtanh.pop %v1839
    %v1847 = vmul.f32 %v1845, %v769
    %1849 = vrot.lane.b32.xlu0 %v1846, 64
    %v1850 = vpop.permute.xlu0 %1849
    %v1852 = vmul.f32 %v1845, %v1850
    %1854 = vrot.lane.b32.xlu0 %v1852, 32
    %v1855 = vpop.permute.xlu0 %1854
    %v1857 = vadd.f32 %v1847, %v1855
    %v1858 = vtanh.pop %v1857
    %1860 = vrot.lane.b32.xlu0 %v1858, 64
    %v1861 = vpop.permute.xlu0 %1860
    %v1863 = vmul.f32 %v1845, %v1861
    %1865 = vrot.lane.b32.xlu0 %v1863, 32
    %v1866 = vpop.permute.xlu0 %1865
    %v1867 = vsel %vm783, %v1866, 0
    %1869 = vmatprep.subr.mxu0 0.0
    %1870 = vmatpush1.msra.mxu0 %v776
    %1871 = vmatprep.subr.mxu0 0.0
    %1872 = vmatpush1.msra.mxu0 %v777
    %1873 = vmatprep.subr.mxu0 0.0
    %1874 = vmatpush1.msra.mxu0 %v778
    %1875 = vmatprep.subr.mxu0 0.0
    %1876 = vmatpush1.msra.mxu0 %v779
    %1877 = vmatprep.subr.mxu0 0.0
    %1878 = vmatpush1.msra.mxu0 0.0
    %1879 = vmatprep.subr.mxu0 0.0
    %1880 = vmatpush1.msra.mxu0 0.0
    %1881 = vmatprep.subr.mxu0 0.0
    %1882 = vmatpush1.msra.mxu0 0.0
    %1883 = vmatprep.subr.mxu0 0.0
    %1884 = vmatpush1.msra.mxu0 0.0
    %1885 = vmatprep.subr.mxu0 0.0
    %1886 = vmatpush1.msra.mxu0 0.0
    %1887 = vmatprep.subr.mxu0 0.0
    %1888 = vmatpush1.msra.mxu0 0.0
    %1889 = vmatprep.subr.mxu0 0.0
    %1890 = vmatpush1.msra.mxu0 0.0
    %1891 = vmatprep.subr.mxu0 0.0
    %1892 = vmatpush1.msra.mxu0 0.0
    %1893 = vmatprep.subr.mxu0 0.0
    %1894 = vmatpush1.msra.mxu0 0.0
    %1895 = vmatprep.subr.mxu0 0.0
    %1896 = vmatpush1.msra.mxu0 0.0
    %1897 = vmatprep.subr.mxu0 0.0
    %1898 = vmatpush1.msra.mxu0 0.0
    %1899 = vmatprep.subr.mxu0 0.0
    %1900 = vmatpush1.msra.mxu0 0.0
    %1901 = vmatprep.subr.mxu0 0.0
    %1902 = vmatpush1.msra.mxu0 0.0
    %1903 = vmatprep.subr.mxu0 0.0
    %1904 = vmatpush1.msra.mxu0 0.0
    %1905 = vmatprep.subr.mxu0 0.0
    %1906 = vmatpush1.msra.mxu0 0.0
    %1907 = vmatprep.subr.mxu0 0.0
    %1908 = vmatpush1.msra.mxu0 0.0
    %1909 = vmatprep.subr.mxu0 0.0
    %1910 = vmatpush1.msra.mxu0 0.0
    %1911 = vmatprep.subr.mxu0 0.0
    %1912 = vmatpush1.msra.mxu0 0.0
    %1913 = vmatprep.subr.mxu0 0.0
    %1914 = vmatpush1.msra.mxu0 0.0
    %1915 = vmatprep.subr.mxu0 0.0
    %1916 = vmatpush1.msra.mxu0 0.0
    %1917 = vmatprep.subr.mxu0 0.0
    %1918 = vmatpush1.msra.mxu0 0.0
    %1919 = vmatprep.subr.mxu0 0.0
    %1920 = vmatpush1.msra.mxu0 0.0
    %1921 = vmatprep.subr.mxu0 0.0
    %1922 = vmatpush1.msra.mxu0 0.0
    %1923 = vmatprep.subr.mxu0 0.0
    %1924 = vmatpush1.msra.mxu0 0.0
    %1925 = vmatprep.subr.mxu0 0.0
    %1926 = vmatpush1.msra.mxu0 0.0
    %1927 = vmatprep.subr.mxu0 0.0
    %1928 = vmatpush1.msra.mxu0 0.0
    %1929 = vmatprep.subr.mxu0 0.0
    %1930 = vmatpush1.msra.mxu0 0.0
    %1931 = vmatprep.subr.mxu0 0.0
    %1932 = vmatpush1.msra.mxu0 0.0
    %1933 = vmatprep.mubr.f32.mxu0 0.0
    %1934 = vmatmul.mubr.f32.gmra.mrb[0].mxu0 %v1867
    %v1935 = vpop.f32.mrb[0].mxu0
    %v1936 = vadd.f32 %v1623, %v1935
    %v1937 = vpop.f32.mrb[0].mxu0
    %1938 = vdwg.mxu0
    %v1939 = vxor.u32 %v1936, 2147483648
    %v1940 = vmul.f32 %v1939, 1.442695
    %v1941 = vpow.pop %v1940
    %v1942 = vadd.f32 %v1941, 1.0
    %v1943 = vrcp.pop %v1942
    %v1944 = vmul.f32 1.0, %v1943
    %v1945 = vtanh.pop %v1936
    %v1946 = vmul.f32 %v1944, %v877
    %1948 = vrot.lane.b32.xlu0 %v1945, 64
    %v1949 = vpop.permute.xlu0 %1948
    %v1951 = vmul.f32 %v1944, %v1949
    %1953 = vrot.lane.b32.xlu0 %v1951, 32
    %v1954 = vpop.permute.xlu0 %1953
    %v1956 = vadd.f32 %v1946, %v1954
    %v1957 = vtanh.pop %v1956
    %1959 = vrot.lane.b32.xlu0 %v1957, 64
    %v1960 = vpop.permute.xlu0 %1959
    %v1962 = vmul.f32 %v1944, %v1960
    %1964 = vrot.lane.b32.xlu0 %v1962, 32
    %v1965 = vpop.permute.xlu0 %1964
    %v1966 = vsel %vm783, %v1965, 0
    %1968 = vmatprep.subr.mxu0 0.0
    %1969 = vmatpush1.msra.mxu0 %v885
    %1970 = vmatprep.subr.mxu0 0.0
    %1971 = vmatpush1.msra.mxu0 %v886
    %1972 = vmatprep.subr.mxu0 0.0
    %1973 = vmatpush1.msra.mxu0 %v887
    %1974 = vmatprep.subr.mxu0 0.0
    %1975 = vmatpush1.msra.mxu0 %v888
    %1976 = vmatprep.subr.mxu0 0.0
    %1977 = vmatpush1.msra.mxu0 0.0
    %1978 = vmatprep.subr.mxu0 0.0
    %1979 = vmatpush1.msra.mxu0 0.0
    %1980 = vmatprep.subr.mxu0 0.0
    %1981 = vmatpush1.msra.mxu0 0.0
    %1982 = vmatprep.subr.mxu0 0.0
    %1983 = vmatpush1.msra.mxu0 0.0
    %1984 = vmatprep.subr.mxu0 0.0
    %1985 = vmatpush1.msra.mxu0 0.0
    %1986 = vmatprep.subr.mxu0 0.0
    %1987 = vmatpush1.msra.mxu0 0.0
    %1988 = vmatprep.subr.mxu0 0.0
    %1989 = vmatpush1.msra.mxu0 0.0
    %1990 = vmatprep.subr.mxu0 0.0
    %1991 = vmatpush1.msra.mxu0 0.0
    %1992 = vmatprep.subr.mxu0 0.0
    %1993 = vmatpush1.msra.mxu0 0.0
    %1994 = vmatprep.subr.mxu0 0.0
    %1995 = vmatpush1.msra.mxu0 0.0
    %1996 = vmatprep.subr.mxu0 0.0
    %1997 = vmatpush1.msra.mxu0 0.0
    %1998 = vmatprep.subr.mxu0 0.0
    %1999 = vmatpush1.msra.mxu0 0.0
    %2000 = vmatprep.subr.mxu0 0.0
    %2001 = vmatpush1.msra.mxu0 0.0
    %2002 = vmatprep.subr.mxu0 0.0
    %2003 = vmatpush1.msra.mxu0 0.0
    %2004 = vmatprep.subr.mxu0 0.0
    %2005 = vmatpush1.msra.mxu0 0.0
    %2006 = vmatprep.subr.mxu0 0.0
    %2007 = vmatpush1.msra.mxu0 0.0
    %2008 = vmatprep.subr.mxu0 0.0
    %2009 = vmatpush1.msra.mxu0 0.0
    %2010 = vmatprep.subr.mxu0 0.0
    %2011 = vmatpush1.msra.mxu0 0.0
    %2012 = vmatprep.subr.mxu0 0.0
    %2013 = vmatpush1.msra.mxu0 0.0
    %2014 = vmatprep.subr.mxu0 0.0
    %2015 = vmatpush1.msra.mxu0 0.0
    %2016 = vmatprep.subr.mxu0 0.0
    %2017 = vmatpush1.msra.mxu0 0.0
    %2018 = vmatprep.subr.mxu0 0.0
    %2019 = vmatpush1.msra.mxu0 0.0
    %2020 = vmatprep.subr.mxu0 0.0
    %2021 = vmatpush1.msra.mxu0 0.0
    %2022 = vmatprep.subr.mxu0 0.0
    %2023 = vmatpush1.msra.mxu0 0.0
    %2024 = vmatprep.subr.mxu0 0.0
    %2025 = vmatpush1.msra.mxu0 0.0
    %2026 = vmatprep.subr.mxu0 0.0
    %2027 = vmatpush1.msra.mxu0 0.0
    %2028 = vmatprep.subr.mxu0 0.0
    %2029 = vmatpush1.msra.mxu0 0.0
    %2030 = vmatprep.subr.mxu0 0.0
    %2031 = vmatpush1.msra.mxu0 0.0
    %2032 = vmatprep.mubr.f32.mxu0 0.0
    %2033 = vmatmul.mubr.f32.gmra.mrb[0].mxu0 %v1966
    %v2034 = vpop.f32.mrb[0].mxu0
    %v2035 = vadd.f32 %v1692, %v2034
    %v2036 = vpop.f32.mrb[0].mxu0
    %2037 = vdwg.mxu0
    %v2038 = vxor.u32 %v2035, 2147483648
    %v2039 = vmul.f32 %v2038, 1.442695
    %v2040 = vpow.pop %v2039
    %v2041 = vadd.f32 %v2040, 1.0
    %v2042 = vrcp.pop %v2041
    %v2043 = vmul.f32 1.0, %v2042
    %v2044 = vtanh.pop %v2035
    %v2045 = vmul.f32 %v2043, %v985
    %2047 = vrot.lane.b32.xlu0 %v2044, 64
    %v2048 = vpop.permute.xlu0 %2047
    %v2050 = vmul.f32 %v2043, %v2048
    %2052 = vrot.lane.b32.xlu0 %v2050, 32
    %v2053 = vpop.permute.xlu0 %2052
    %v2055 = vadd.f32 %v2045, %v2053
    %v2056 = vtanh.pop %v2055
    %2058 = vrot.lane.b32.xlu0 %v2056, 64
    %v2059 = vpop.permute.xlu0 %2058
    %v2061 = vmul.f32 %v2043, %v2059
    %2063 = vrot.lane.b32.xlu0 %v2061, 32
    %v2064 = vpop.permute.xlu0 %2063
    %v2065 = vsel %vm783, %v2064, 0
    %2067 = vmatprep.subr.mxu0 0.0
    %2068 = vmatpush1.msra.mxu0 %v993
    %2069 = vmatprep.subr.mxu0 0.0
    %2070 = vmatpush1.msra.mxu0 %v994
    %2071 = vmatprep.subr.mxu0 0.0
    %2072 = vmatpush1.msra.mxu0 %v995
    %2073 = vmatprep.subr.mxu0 0.0
    %2074 = vmatpush1.msra.mxu0 %v996
    %2075 = vmatprep.subr.mxu0 0.0
    %2076 = vmatpush1.msra.mxu0 0.0
    %2077 = vmatprep.subr.mxu0 0.0
    %2078 = vmatpush1.msra.mxu0 0.0
    %2079 = vmatprep.subr.mxu0 0.0
    %2080 = vmatpush1.msra.mxu0 0.0
    %2081 = vmatprep.subr.mxu0 0.0
    %2082 = vmatpush1.msra.mxu0 0.0
    %2083 = vmatprep.subr.mxu0 0.0
    %2084 = vmatpush1.msra.mxu0 0.0
    %2085 = vmatprep.subr.mxu0 0.0
    %2086 = vmatpush1.msra.mxu0 0.0
    %2087 = vmatprep.subr.mxu0 0.0
    %2088 = vmatpush1.msra.mxu0 0.0
    %2089 = vmatprep.subr.mxu0 0.0
    %2090 = vmatpush1.msra.mxu0 0.0
    %2091 = vmatprep.subr.mxu0 0.0
    %2092 = vmatpush1.msra.mxu0 0.0
    %2093 = vmatprep.subr.mxu0 0.0
    %2094 = vmatpush1.msra.mxu0 0.0
    %2095 = vmatprep.subr.mxu0 0.0
    %2096 = vmatpush1.msra.mxu0 0.0
    %2097 = vmatprep.subr.mxu0 0.0
    %2098 = vmatpush1.msra.mxu0 0.0
    %2099 = vmatprep.subr.mxu0 0.0
    %2100 = vmatpush1.msra.mxu0 0.0
    %2101 = vmatprep.subr.mxu0 0.0
    %2102 = vmatpush1.msra.mxu0 0.0
    %2103 = vmatprep.subr.mxu0 0.0
    %2104 = vmatpush1.msra.mxu0 0.0
    %2105 = vmatprep.subr.mxu0 0.0
    %2106 = vmatpush1.msra.mxu0 0.0
    %2107 = vmatprep.subr.mxu0 0.0
    %2108 = vmatpush1.msra.mxu0 0.0
    %2109 = vmatprep.subr.mxu0 0.0
    %2110 = vmatpush1.msra.mxu0 0.0
    %2111 = vmatprep.subr.mxu0 0.0
    %2112 = vmatpush1.msra.mxu0 0.0
    %2113 = vmatprep.subr.mxu0 0.0
    %2114 = vmatpush1.msra.mxu0 0.0
    %2115 = vmatprep.subr.mxu0 0.0
    %2116 = vmatpush1.msra.mxu0 0.0
    %2117 = vmatprep.subr.mxu0 0.0
    %2118 = vmatpush1.msra.mxu0 0.0
    %2119 = vmatprep.subr.mxu0 0.0
    %2120 = vmatpush1.msra.mxu0 0.0
    %2121 = vmatprep.subr.mxu0 0.0
    %2122 = vmatpush1.msra.mxu0 0.0
    %2123 = vmatprep.subr.mxu0 0.0
    %2124 = vmatpush1.msra.mxu0 0.0
    %2125 = vmatprep.subr.mxu0 0.0
    %2126 = vmatpush1.msra.mxu0 0.0
    %2127 = vmatprep.subr.mxu0 0.0
    %2128 = vmatpush1.msra.mxu0 0.0
    %2129 = vmatprep.subr.mxu0 0.0
    %2130 = vmatpush1.msra.mxu0 0.0
    %2131 = vmatprep.mubr.f32.mxu0 0.0
    %2132 = vmatmul.mubr.f32.gmra.mrb[0].mxu0 %v2065
    %v2133 = vpop.f32.mrb[0].mxu0
    %v2134 = vadd.f32 %v1694, %v2133
    %v2135 = vpop.f32.mrb[0].mxu0
    %2136 = vdwg.mxu0
    %v2137 = vxor.u32 %v2134, 2147483648
    %v2138 = vmul.f32 %v2137, 1.442695
    %v2139 = vpow.pop %v2138
    %v2140 = vadd.f32 %v2139, 1.0
    %v2141 = vrcp.pop %v2140
    %v2142 = vmul.f32 1.0, %v2141
    %v2143 = vtanh.pop %v2134
    %v2144 = vmul.f32 %v2142, %v1093
    %2146 = vrot.lane.b32.xlu0 %v2143, 64
    %v2147 = vpop.permute.xlu0 %2146
    %v2149 = vmul.f32 %v2142, %v2147
    %2151 = vrot.lane.b32.xlu0 %v2149, 32
    %v2152 = vpop.permute.xlu0 %2151
    %v2154 = vadd.f32 %v2144, %v2152
    %v2155 = vtanh.pop %v2154
    %2157 = vrot.lane.b32.xlu0 %v2155, 64
    %v2158 = vpop.permute.xlu0 %2157
    %v2160 = vmul.f32 %v2142, %v2158
    %2162 = vrot.lane.b32.xlu0 %v2160, 32
    %v2163 = vpop.permute.xlu0 %2162
    %v2164 = vsel %vm783, %v2163, 0
    %2166 = vmatprep.subr.mxu0 0.0
    %2167 = vmatpush1.msra.mxu0 %v1101
    %2168 = vmatprep.subr.mxu0 0.0
    %2169 = vmatpush1.msra.mxu0 %v1102
    %2170 = vmatprep.subr.mxu0 0.0
    %2171 = vmatpush1.msra.mxu0 %v1103
    %2172 = vmatprep.subr.mxu0 0.0
    %2173 = vmatpush1.msra.mxu0 %v1104
    %2174 = vmatprep.subr.mxu0 0.0
    %2175 = vmatpush1.msra.mxu0 0.0
    %2176 = vmatprep.subr.mxu0 0.0
    %2177 = vmatpush1.msra.mxu0 0.0
    %2178 = vmatprep.subr.mxu0 0.0
    %2179 = vmatpush1.msra.mxu0 0.0
    %2180 = vmatprep.subr.mxu0 0.0
    %2181 = vmatpush1.msra.mxu0 0.0
    %2182 = vmatprep.subr.mxu0 0.0
    %2183 = vmatpush1.msra.mxu0 0.0
    %2184 = vmatprep.subr.mxu0 0.0
    %2185 = vmatpush1.msra.mxu0 0.0
    %2186 = vmatprep.subr.mxu0 0.0
    %2187 = vmatpush1.msra.mxu0 0.0
    %2188 = vmatprep.subr.mxu0 0.0
    %2189 = vmatpush1.msra.mxu0 0.0
    %2190 = vmatprep.subr.mxu0 0.0
    %2191 = vmatpush1.msra.mxu0 0.0
    %2192 = vmatprep.subr.mxu0 0.0
    %2193 = vmatpush1.msra.mxu0 0.0
    %2194 = vmatprep.subr.mxu0 0.0
    %2195 = vmatpush1.msra.mxu0 0.0
    %2196 = vmatprep.subr.mxu0 0.0
    %2197 = vmatpush1.msra.mxu0 0.0
    %2198 = vmatprep.subr.mxu0 0.0
    %2199 = vmatpush1.msra.mxu0 0.0
    %2200 = vmatprep.subr.mxu0 0.0
    %2201 = vmatpush1.msra.mxu0 0.0
    %2202 = vmatprep.subr.mxu0 0.0
    %2203 = vmatpush1.msra.mxu0 0.0
    %2204 = vmatprep.subr.mxu0 0.0
    %2205 = vmatpush1.msra.mxu0 0.0
    %2206 = vmatprep.subr.mxu0 0.0
    %2207 = vmatpush1.msra.mxu0 0.0
    %2208 = vmatprep.subr.mxu0 0.0
    %2209 = vmatpush1.msra.mxu0 0.0
    %2210 = vmatprep.subr.mxu0 0.0
    %2211 = vmatpush1.msra.mxu0 0.0
    %2212 = vmatprep.subr.mxu0 0.0
    %2213 = vmatpush1.msra.mxu0 0.0
    %2214 = vmatprep.subr.mxu0 0.0
    %2215 = vmatpush1.msra.mxu0 0.0
    %2216 = vmatprep.subr.mxu0 0.0
    %2217 = vmatpush1.msra.mxu0 0.0
    %2218 = vmatprep.subr.mxu0 0.0
    %2219 = vmatpush1.msra.mxu0 0.0
    %2220 = vmatprep.subr.mxu0 0.0
    %2221 = vmatpush1.msra.mxu0 0.0
    %2222 = vmatprep.subr.mxu0 0.0
    %2223 = vmatpush1.msra.mxu0 0.0
    %2224 = vmatprep.subr.mxu0 0.0
    %2225 = vmatpush1.msra.mxu0 0.0
    %2226 = vmatprep.subr.mxu0 0.0
    %2227 = vmatpush1.msra.mxu0 0.0
    %2228 = vmatprep.subr.mxu0 0.0
    %2229 = vmatpush1.msra.mxu0 0.0
    %2230 = vmatprep.mubr.f32.mxu0 0.0
    %2231 = vmatmul.mubr.f32.gmra.mrb[0].mxu0 %v2164
    %v2232 = vpop.f32.mrb[0].mxu0
    %v2233 = vadd.f32 %v1763, %v2232
    %v2234 = vpop.f32.mrb[0].mxu0
    %2235 = vdwg.mxu0
    %v2236 = vxor.u32 %v2233, 2147483648
    %v2237 = vmul.f32 %v2236, 1.442695
    %v2238 = vpow.pop %v2237
    %v2239 = vadd.f32 %v2238, 1.0
    %v2240 = vrcp.pop %v2239
    %v2241 = vmul.f32 1.0, %v2240
    %v2242 = vtanh.pop %v2233
    %v2243 = vmul.f32 %v2241, %v1201
    %2245 = vrot.lane.b32.xlu0 %v2242, 64
    %v2246 = vpop.permute.xlu0 %2245
    %v2248 = vmul.f32 %v2241, %v2246
    %2250 = vrot.lane.b32.xlu0 %v2248, 32
    %v2251 = vpop.permute.xlu0 %2250
    %v2253 = vadd.f32 %v2243, %v2251
    %v2254 = vtanh.pop %v2253
    %2256 = vrot.lane.b32.xlu0 %v2254, 64
    %v2257 = vpop.permute.xlu0 %2256
    %v2259 = vmul.f32 %v2241, %v2257
    %2261 = vrot.lane.b32.xlu0 %v2259, 32
    %v2262 = vpop.permute.xlu0 %2261
    %v2263 = vsel %vm783, %v2262, 0
    %2265 = vmatprep.subr.mxu0 0.0
    %2266 = vmatpush1.msra.mxu0 %v1209
    %2267 = vmatprep.subr.mxu0 0.0
    %2268 = vmatpush1.msra.mxu0 %v1210
    %2269 = vmatprep.subr.mxu0 0.0
    %2270 = vmatpush1.msra.mxu0 %v1211
    %2271 = vmatprep.subr.mxu0 0.0
    %2272 = vmatpush1.msra.mxu0 %v1212
    %2273 = vmatprep.subr.mxu0 0.0
    %2274 = vmatpush1.msra.mxu0 0.0
    %2275 = vmatprep.subr.mxu0 0.0
    %2276 = vmatpush1.msra.mxu0 0.0
    %2277 = vmatprep.subr.mxu0 0.0
    %2278 = vmatpush1.msra.mxu0 0.0
    %2279 = vmatprep.subr.mxu0 0.0
    %2280 = vmatpush1.msra.mxu0 0.0
    %2281 = vmatprep.subr.mxu0 0.0
    %2282 = vmatpush1.msra.mxu0 0.0
    %2283 = vmatprep.subr.mxu0 0.0
    %2284 = vmatpush1.msra.mxu0 0.0
    %2285 = vmatprep.subr.mxu0 0.0
    %2286 = vmatpush1.msra.mxu0 0.0
    %2287 = vmatprep.subr.mxu0 0.0
    %2288 = vmatpush1.msra.mxu0 0.0
    %2289 = vmatprep.subr.mxu0 0.0
    %2290 = vmatpush1.msra.mxu0 0.0
    %2291 = vmatprep.subr.mxu0 0.0
    %2292 = vmatpush1.msra.mxu0 0.0
    %2293 = vmatprep.subr.mxu0 0.0
    %2294 = vmatpush1.msra.mxu0 0.0
    %2295 = vmatprep.subr.mxu0 0.0
    %2296 = vmatpush1.msra.mxu0 0.0
    %2297 = vmatprep.subr.mxu0 0.0
    %2298 = vmatpush1.msra.mxu0 0.0
    %2299 = vmatprep.subr.mxu0 0.0
    %2300 = vmatpush1.msra.mxu0 0.0
    %2301 = vmatprep.subr.mxu0 0.0
    %2302 = vmatpush1.msra.mxu0 0.0
    %2303 = vmatprep.subr.mxu0 0.0
    %2304 = vmatpush1.msra.mxu0 0.0
    %2305 = vmatprep.subr.mxu0 0.0
    %2306 = vmatpush1.msra.mxu0 0.0
    %2307 = vmatprep.subr.mxu0 0.0
    %2308 = vmatpush1.msra.mxu0 0.0
    %2309 = vmatprep.subr.mxu0 0.0
    %2310 = vmatpush1.msra.mxu0 0.0
    %2311 = vmatprep.subr.mxu0 0.0
    %2312 = vmatpush1.msra.mxu0 0.0
    %2313 = vmatprep.subr.mxu0 0.0
    %2314 = vmatpush1.msra.mxu0 0.0
    %2315 = vmatprep.subr.mxu0 0.0
    %2316 = vmatpush1.msra.mxu0 0.0
    %2317 = vmatprep.subr.mxu0 0.0
    %2318 = vmatpush1.msra.mxu0 0.0
    %2319 = vmatprep.subr.mxu0 0.0
    %2320 = vmatpush1.msra.mxu0 0.0
    %2321 = vmatprep.subr.mxu0 0.0
    %2322 = vmatpush1.msra.mxu0 0.0
    %2323 = vmatprep.subr.mxu0 0.0
    %2324 = vmatpush1.msra.mxu0 0.0
    %2325 = vmatprep.subr.mxu0 0.0
    %2326 = vmatpush1.msra.mxu0 0.0
    %2327 = vmatprep.subr.mxu0 0.0
    %2328 = vmatpush1.msra.mxu0 0.0
    %2329 = vmatprep.mubr.f32.mxu0 0.0
    %2330 = vmatmul.mubr.f32.gmra.mrb[0].mxu0 %v2263
    %v2331 = vpop.f32.mrb[0].mxu0
    %v2332 = vadd.f32 %v1765, %v2331
    %v2333 = vpop.f32.mrb[0].mxu0
    %2334 = vdwg.mxu0
    %v2335 = vxor.u32 %v2332, 2147483648
    %v2336 = vmul.f32 %v2335, 1.442695
    %v2337 = vpow.pop %v2336
    %v2338 = vadd.f32 %v2337, 1.0
    %v2339 = vrcp.pop %v2338
    %v2340 = vmul.f32 1.0, %v2339
    %v2341 = vtanh.pop %v2332
    %v2342 = vmul.f32 %v2340, %v1309
    %2344 = vrot.lane.b32.xlu0 %v2341, 64
    %v2345 = vpop.permute.xlu0 %2344
    %v2347 = vmul.f32 %v2340, %v2345
    %2349 = vrot.lane.b32.xlu0 %v2347, 32
    %v2350 = vpop.permute.xlu0 %2349
    %v2352 = vadd.f32 %v2342, %v2350
    %v2353 = vtanh.pop %v2352
    %2355 = vrot.lane.b32.xlu0 %v2353, 64
    %v2356 = vpop.permute.xlu0 %2355
    %v2358 = vmul.f32 %v2340, %v2356
    %2360 = vrot.lane.b32.xlu0 %v2358, 32
    %v2361 = vpop.permute.xlu0 %2360
    %v2362 = vsel %vm783, %v2361, 0
    %2364 = vmatprep.subr.mxu0 0.0
    %2365 = vmatpush1.msra.mxu0 %v1317
    %2366 = vmatprep.subr.mxu0 0.0
    %2367 = vmatpush1.msra.mxu0 %v1318
    %2368 = vmatprep.subr.mxu0 0.0
    %2369 = vmatpush1.msra.mxu0 %v1319
    %2370 = vmatprep.subr.mxu0 0.0
    %2371 = vmatpush1.msra.mxu0 %v1320
    %2372 = vmatprep.subr.mxu0 0.0
    %2373 = vmatpush1.msra.mxu0 0.0
    %2374 = vmatprep.subr.mxu0 0.0
    %2375 = vmatpush1.msra.mxu0 0.0
    %2376 = vmatprep.subr.mxu0 0.0
    %2377 = vmatpush1.msra.mxu0 0.0
    %2378 = vmatprep.subr.mxu0 0.0
    %2379 = vmatpush1.msra.mxu0 0.0
    %2380 = vmatprep.subr.mxu0 0.0
    %2381 = vmatpush1.msra.mxu0 0.0
    %2382 = vmatprep.subr.mxu0 0.0
    %2383 = vmatpush1.msra.mxu0 0.0
    %2384 = vmatprep.subr.mxu0 0.0
    %2385 = vmatpush1.msra.mxu0 0.0
    %2386 = vmatprep.subr.mxu0 0.0
    %2387 = vmatpush1.msra.mxu0 0.0
    %2388 = vmatprep.subr.mxu0 0.0
    %2389 = vmatpush1.msra.mxu0 0.0
    %2390 = vmatprep.subr.mxu0 0.0
    %2391 = vmatpush1.msra.mxu0 0.0
    %2392 = vmatprep.subr.mxu0 0.0
    %2393 = vmatpush1.msra.mxu0 0.0
    %2394 = vmatprep.subr.mxu0 0.0
    %2395 = vmatpush1.msra.mxu0 0.0
    %2396 = vmatprep.subr.mxu0 0.0
    %2397 = vmatpush1.msra.mxu0 0.0
    %2398 = vmatprep.subr.mxu0 0.0
    %2399 = vmatpush1.msra.mxu0 0.0
    %2400 = vmatprep.subr.mxu0 0.0
    %2401 = vmatpush1.msra.mxu0 0.0
    %2402 = vmatprep.subr.mxu0 0.0
    %2403 = vmatpush1.msra.mxu0 0.0
    %2404 = vmatprep.subr.mxu0 0.0
    %2405 = vmatpush1.msra.mxu0 0.0
    %2406 = vmatprep.subr.mxu0 0.0
    %2407 = vmatpush1.msra.mxu0 0.0
    %2408 = vmatprep.subr.mxu0 0.0
    %2409 = vmatpush1.msra.mxu0 0.0
    %2410 = vmatprep.subr.mxu0 0.0
    %2411 = vmatpush1.msra.mxu0 0.0
    %2412 = vmatprep.subr.mxu0 0.0
    %2413 = vmatpush1.msra.mxu0 0.0
    %2414 = vmatprep.subr.mxu0 0.0
    %2415 = vmatpush1.msra.mxu0 0.0
    %2416 = vmatprep.subr.mxu0 0.0
    %2417 = vmatpush1.msra.mxu0 0.0
    %2418 = vmatprep.subr.mxu0 0.0
    %2419 = vmatpush1.msra.mxu0 0.0
    %2420 = vmatprep.subr.mxu0 0.0
    %2421 = vmatpush1.msra.mxu0 0.0
    %2422 = vmatprep.subr.mxu0 0.0
    %2423 = vmatpush1.msra.mxu0 0.0
    %2424 = vmatprep.subr.mxu0 0.0
    %2425 = vmatpush1.msra.mxu0 0.0
    %2426 = vmatprep.subr.mxu0 0.0
    %2427 = vmatpush1.msra.mxu0 0.0
    %2428 = vmatprep.mubr.f32.mxu0 0.0
    %2429 = vmatmul.mubr.f32.gmra.mrb[0].mxu0 %v2362
    %v2430 = vpop.f32.mrb[0].mxu0
    %v2431 = vadd.f32 %v1834, %v2430
    %v2432 = vpop.f32.mrb[0].mxu0
    %2433 = vdwg.mxu0
    %v2434 = vxor.u32 %v2431, 2147483648
    %v2435 = vmul.f32 %v2434, 1.442695
    %v2436 = vpow.pop %v2435
    %v2437 = vadd.f32 %v2436, 1.0
    %v2438 = vrcp.pop %v2437
    %v2439 = vmul.f32 1.0, %v2438
    %v2440 = vtanh.pop %v2431
    %v2441 = vmul.f32 %v2439, %v1417
    %2443 = vrot.lane.b32.xlu0 %v2440, 64
    %v2444 = vpop.permute.xlu0 %2443
    %v2446 = vmul.f32 %v2439, %v2444
    %2448 = vrot.lane.b32.xlu0 %v2446, 32
    %v2449 = vpop.permute.xlu0 %2448
    %v2451 = vadd.f32 %v2441, %v2449
    %v2452 = vtanh.pop %v2451
    %2454 = vrot.lane.b32.xlu0 %v2452, 64
    %v2455 = vpop.permute.xlu0 %2454
    %v2457 = vmul.f32 %v2439, %v2455
    %2459 = vrot.lane.b32.xlu0 %v2457, 32
    %v2460 = vpop.permute.xlu0 %2459
    %v2461 = vsel %vm783, %v2460, 0
    %2463 = vmatprep.subr.mxu0 0.0
    %2464 = vmatpush1.msra.mxu0 %v1425
    %2465 = vmatprep.subr.mxu0 0.0
    %2466 = vmatpush1.msra.mxu0 %v1426
    %2467 = vmatprep.subr.mxu0 0.0
    %2468 = vmatpush1.msra.mxu0 %v1427
    %2469 = vmatprep.subr.mxu0 0.0
    %2470 = vmatpush1.msra.mxu0 %v1428
    %2471 = vmatprep.subr.mxu0 0.0
    %2472 = vmatpush1.msra.mxu0 0.0
    %2473 = vmatprep.subr.mxu0 0.0
    %2474 = vmatpush1.msra.mxu0 0.0
    %2475 = vmatprep.subr.mxu0 0.0
    %2476 = vmatpush1.msra.mxu0 0.0
    %2477 = vmatprep.subr.mxu0 0.0
    %2478 = vmatpush1.msra.mxu0 0.0
    %2479 = vmatprep.subr.mxu0 0.0
    %2480 = vmatpush1.msra.mxu0 0.0
    %2481 = vmatprep.subr.mxu0 0.0
    %2482 = vmatpush1.msra.mxu0 0.0
    %2483 = vmatprep.subr.mxu0 0.0
    %2484 = vmatpush1.msra.mxu0 0.0
    %2485 = vmatprep.subr.mxu0 0.0
    %2486 = vmatpush1.msra.mxu0 0.0
    %2487 = vmatprep.subr.mxu0 0.0
    %2488 = vmatpush1.msra.mxu0 0.0
    %2489 = vmatprep.subr.mxu0 0.0
    %2490 = vmatpush1.msra.mxu0 0.0
    %2491 = vmatprep.subr.mxu0 0.0
    %2492 = vmatpush1.msra.mxu0 0.0
    %2493 = vmatprep.subr.mxu0 0.0
    %2494 = vmatpush1.msra.mxu0 0.0
    %2495 = vmatprep.subr.mxu0 0.0
    %2496 = vmatpush1.msra.mxu0 0.0
    %2497 = vmatprep.subr.mxu0 0.0
    %2498 = vmatpush1.msra.mxu0 0.0
    %2499 = vmatprep.subr.mxu0 0.0
    %2500 = vmatpush1.msra.mxu0 0.0
    %2501 = vmatprep.subr.mxu0 0.0
    %2502 = vmatpush1.msra.mxu0 0.0
    %2503 = vmatprep.subr.mxu0 0.0
    %2504 = vmatpush1.msra.mxu0 0.0
    %2505 = vmatprep.subr.mxu0 0.0
    %2506 = vmatpush1.msra.mxu0 0.0
    %2507 = vmatprep.subr.mxu0 0.0
    %2508 = vmatpush1.msra.mxu0 0.0
    %2509 = vmatprep.subr.mxu0 0.0
    %2510 = vmatpush1.msra.mxu0 0.0
    %2511 = vmatprep.subr.mxu0 0.0
    %2512 = vmatpush1.msra.mxu0 0.0
    %2513 = vmatprep.subr.mxu0 0.0
    %2514 = vmatpush1.msra.mxu0 0.0
    %2515 = vmatprep.subr.mxu0 0.0
    %2516 = vmatpush1.msra.mxu0 0.0
    %2517 = vmatprep.subr.mxu0 0.0
    %2518 = vmatpush1.msra.mxu0 0.0
    %2519 = vmatprep.subr.mxu0 0.0
    %2520 = vmatpush1.msra.mxu0 0.0
    %2521 = vmatprep.subr.mxu0 0.0
    %2522 = vmatpush1.msra.mxu0 0.0
    %2523 = vmatprep.subr.mxu0 0.0
    %2524 = vmatpush1.msra.mxu0 0.0
    %2525 = vmatprep.subr.mxu0 0.0
    %2526 = vmatpush1.msra.mxu0 0.0
    %2527 = vmatprep.mubr.f32.mxu0 0.0
    %2528 = vmatmul.mubr.f32.gmra.mrb[0].mxu0 %v2461
    %v2529 = vpop.f32.mrb[0].mxu0
    %v2530 = vadd.f32 %v1836, %v2529
    %v2531 = vpop.f32.mrb[0].mxu0
    %2532 = vdwg.mxu0
    %v2533 = vxor.u32 %v2530, 2147483648
    %v2534 = vmul.f32 %v2533, 1.442695
    %v2535 = vpow.pop %v2534
    %v2536 = vadd.f32 %v2535, 1.0
    %v2537 = vrcp.pop %v2536
    %v2538 = vmul.f32 1.0, %v2537
    %v2539 = vtanh.pop %v2530
    %v2540 = vmul.f32 %v2538, %v1525
    %2542 = vrot.lane.b32.xlu0 %v2539, 64
    %v2543 = vpop.permute.xlu0 %2542
    %v2545 = vmul.f32 %v2538, %v2543
    %2547 = vrot.lane.b32.xlu0 %v2545, 32
    %v2548 = vpop.permute.xlu0 %2547
    %v2550 = vadd.f32 %v2540, %v2548
    %v2551 = vtanh.pop %v2550
    %2553 = vrot.lane.b32.xlu0 %v2551, 64
    %v2554 = vpop.permute.xlu0 %2553
    %v2556 = vmul.f32 %v2538, %v2554
    %2558 = vrot.lane.b32.xlu0 %v1962, 64
    %v2559 = vpop.permute.xlu0 %2558
    %2561 = vrot.lane.b32.xlu0 %v2061, 96
    %v2562 = vpop.permute.xlu0 %2561
    %2565 = vrot.lane.b32.xlu0 %v2358, 64
    %v2566 = vpop.permute.xlu0 %2565
    %2568 = vrot.lane.b32.xlu0 %v2457, 96
    %v2569 = vpop.permute.xlu0 %2568
    %v2571 = vsel %vm783, %v1866, %v2559
    %v2572 = vsel %vm1547, %v2571, %v2562
    %v2573 = vsel %vm1549, %v2572, %v2160
    %v2574 = vsel %vm783, %v2262, %v2566
    %v2575 = vsel %vm1547, %v2574, %v2569
    %v2576 = vsel %vm1549, %v2575, %v2556
    %2577 = vmatprep.subr.mxu0 %v149
    %2578 = vmatpush1.msra.mxu0 %v148
    %2579 = vmatprep.subr.mxu0 %v157
    %2580 = vmatpush1.msra.mxu0 %v156
    %2581 = vmatprep.subr.mxu0 %v165
    %2582 = vmatpush1.msra.mxu0 %v164
    %2583 = vmatprep.subr.mxu0 %v173
    %2584 = vmatpush1.msra.mxu0 %v172
    %2585 = vmatprep.subr.mxu0 %v181
    %2586 = vmatpush1.msra.mxu0 %v180
    %2587 = vmatprep.subr.mxu0 %v189
    %2588 = vmatpush1.msra.mxu0 %v188
    %2589 = vmatprep.subr.mxu0 %v197
    %2590 = vmatpush1.msra.mxu0 %v196
    %2591 = vmatprep.subr.mxu0 %v205
    %2592 = vmatpush1.msra.mxu0 %v204
    %2593 = vmatprep.subr.mxu0 %v213
    %2594 = vmatpush1.msra.mxu0 %v212
    %2595 = vmatprep.subr.mxu0 %v221
    %2596 = vmatpush1.msra.mxu0 %v220
    %2597 = vmatprep.subr.mxu0 %v229
    %2598 = vmatpush1.msra.mxu0 %v228
    %2599 = vmatprep.subr.mxu0 %v237
    %2600 = vmatpush1.msra.mxu0 %v236
    %2601 = vmatprep.subr.mxu0 %v245
    %2602 = vmatpush1.msra.mxu0 %v244
    %2603 = vmatprep.subr.mxu0 %v253
    %2604 = vmatpush1.msra.mxu0 %v252
    %2605 = vmatprep.subr.mxu0 %v261
    %2606 = vmatpush1.msra.mxu0 %v260
    %2607 = vmatprep.subr.mxu0 %v269
    %2608 = vmatpush1.msra.mxu0 %v268
    %2609 = vmatprep.subr.mxu0 %v277
    %2610 = vmatpush1.msra.mxu0 %v276
    %2611 = vmatprep.subr.mxu0 %v285
    %2612 = vmatpush1.msra.mxu0 %v284
    %2613 = vmatprep.subr.mxu0 %v293
    %2614 = vmatpush1.msra.mxu0 %v292
    %2615 = vmatprep.subr.mxu0 %v301
    %2616 = vmatpush1.msra.mxu0 %v300
    %2617 = vmatprep.subr.mxu0 %v309
    %2618 = vmatpush1.msra.mxu0 %v308
    %2619 = vmatprep.subr.mxu0 %v317
    %2620 = vmatpush1.msra.mxu0 %v316
    %2621 = vmatprep.subr.mxu0 %v325
    %2622 = vmatpush1.msra.mxu0 %v324
    %2623 = vmatprep.subr.mxu0 %v333
    %2624 = vmatpush1.msra.mxu0 %v332
    %2625 = vmatprep.subr.mxu0 %v341
    %2626 = vmatpush1.msra.mxu0 %v340
    %2627 = vmatprep.subr.mxu0 %v349
    %2628 = vmatpush1.msra.mxu0 %v348
    %2629 = vmatprep.subr.mxu0 %v357
    %2630 = vmatpush1.msra.mxu0 %v356
    %2631 = vmatprep.subr.mxu0 %v365
    %2632 = vmatpush1.msra.mxu0 %v364
    %2633 = vmatprep.subr.mxu0 %v373
    %2634 = vmatpush1.msra.mxu0 %v372
    %2635 = vmatprep.subr.mxu0 %v381
    %2636 = vmatpush1.msra.mxu0 %v380
    %2637 = vmatprep.subr.mxu0 %v389
    %2638 = vmatpush1.msra.mxu0 %v388
    %2639 = vmatprep.subr.mxu0 %v397
    %2640 = vmatpush1.msra.mxu0 %v396
    %2641 = vmatprep.mubr.f32.mxu0 %v2576
    %2642 = vmatmul.mubr.f32.gmra.mrb[0].mxu0 %v2573
    %v2643 = vpop.f32.mrb[0].mxu0
    %v2644 = vadd.f32 %v408, %v2643
    %v2645 = vpop.f32.mrb[0].mxu0
    %v2646 = vadd.f32 %v412, %v2645
    %2647 = vdwg.mxu0
    %2648 = vmatprep.subr.mxu0 %v151
    %2649 = vmatpush1.msra.mxu0 %v150
    %2650 = vmatprep.subr.mxu0 %v159
    %2651 = vmatpush1.msra.mxu0 %v158
    %2652 = vmatprep.subr.mxu0 %v167
    %2653 = vmatpush1.msra.mxu0 %v166
    %2654 = vmatprep.subr.mxu0 %v175
    %2655 = vmatpush1.msra.mxu0 %v174
    %2656 = vmatprep.subr.mxu0 %v183
    %2657 = vmatpush1.msra.mxu0 %v182
    %2658 = vmatprep.subr.mxu0 %v191
    %2659 = vmatpush1.msra.mxu0 %v190
    %2660 = vmatprep.subr.mxu0 %v199
    %2661 = vmatpush1.msra.mxu0 %v198
    %2662 = vmatprep.subr.mxu0 %v207
    %2663 = vmatpush1.msra.mxu0 %v206
    %2664 = vmatprep.subr.mxu0 %v215
    %2665 = vmatpush1.msra.mxu0 %v214
    %2666 = vmatprep.subr.mxu0 %v223
    %2667 = vmatpush1.msra.mxu0 %v222
    %2668 = vmatprep.subr.mxu0 %v231
    %2669 = vmatpush1.msra.mxu0 %v230
    %2670 = vmatprep.subr.mxu0 %v239
    %2671 = vmatpush1.msra.mxu0 %v238
    %2672 = vmatprep.subr.mxu0 %v247
    %2673 = vmatpush1.msra.mxu0 %v246
    %2674 = vmatprep.subr.mxu0 %v255
    %2675 = vmatpush1.msra.mxu0 %v254
    %2676 = vmatprep.subr.mxu0 %v263
    %2677 = vmatpush1.msra.mxu0 %v262
    %2678 = vmatprep.subr.mxu0 %v271
    %2679 = vmatpush1.msra.mxu0 %v270
    %2680 = vmatprep.subr.mxu0 %v279
    %2681 = vmatpush1.msra.mxu0 %v278
    %2682 = vmatprep.subr.mxu0 %v287
    %2683 = vmatpush1.msra.mxu0 %v286
    %2684 = vmatprep.subr.mxu0 %v295
    %2685 = vmatpush1.msra.mxu0 %v294
    %2686 = vmatprep.subr.mxu0 %v303
    %2687 = vmatpush1.msra.mxu0 %v302
    %2688 = vmatprep.subr.mxu0 %v311
    %2689 = vmatpush1.msra.mxu0 %v310
    %2690 = vmatprep.subr.mxu0 %v319
    %2691 = vmatpush1.msra.mxu0 %v318
    %2692 = vmatprep.subr.mxu0 %v327
    %2693 = vmatpush1.msra.mxu0 %v326
    %2694 = vmatprep.subr.mxu0 %v335
    %2695 = vmatpush1.msra.mxu0 %v334
    %2696 = vmatprep.subr.mxu0 %v343
    %2697 = vmatpush1.msra.mxu0 %v342
    %2698 = vmatprep.subr.mxu0 %v351
    %2699 = vmatpush1.msra.mxu0 %v350
    %2700 = vmatprep.subr.mxu0 %v359
    %2701 = vmatpush1.msra.mxu0 %v358
    %2702 = vmatprep.subr.mxu0 %v367
    %2703 = vmatpush1.msra.mxu0 %v366
    %2704 = vmatprep.subr.mxu0 %v375
    %2705 = vmatpush1.msra.mxu0 %v374
    %2706 = vmatprep.subr.mxu0 %v383
    %2707 = vmatpush1.msra.mxu0 %v382
    %2708 = vmatprep.subr.mxu0 %v391
    %2709 = vmatpush1.msra.mxu0 %v390
    %2710 = vmatprep.subr.mxu0 %v399
    %2711 = vmatpush1.msra.mxu0 %v398
    %2712 = vmatprep.mubr.f32.mxu0 %v2576
    %2713 = vmatmul.mubr.f32.gmra.mrb[0].mxu0 %v2573
    %v2714 = vpop.f32.mrb[0].mxu0
    %v2715 = vadd.f32 %v416, %v2714
    %v2716 = vpop.f32.mrb[0].mxu0
    %v2717 = vadd.f32 %v420, %v2716
    %2718 = vdwg.mxu0
    %2719 = vmatprep.subr.mxu0 %v153
    %2720 = vmatpush1.msra.mxu0 %v152
    %2721 = vmatprep.subr.mxu0 %v161
    %2722 = vmatpush1.msra.mxu0 %v160
    %2723 = vmatprep.subr.mxu0 %v169
    %2724 = vmatpush1.msra.mxu0 %v168
    %2725 = vmatprep.subr.mxu0 %v177
    %2726 = vmatpush1.msra.mxu0 %v176
    %2727 = vmatprep.subr.mxu0 %v185
    %2728 = vmatpush1.msra.mxu0 %v184
    %2729 = vmatprep.subr.mxu0 %v193
    %2730 = vmatpush1.msra.mxu0 %v192
    %2731 = vmatprep.subr.mxu0 %v201
    %2732 = vmatpush1.msra.mxu0 %v200
    %2733 = vmatprep.subr.mxu0 %v209
    %2734 = vmatpush1.msra.mxu0 %v208
    %2735 = vmatprep.subr.mxu0 %v217
    %2736 = vmatpush1.msra.mxu0 %v216
    %2737 = vmatprep.subr.mxu0 %v225
    %2738 = vmatpush1.msra.mxu0 %v224
    %2739 = vmatprep.subr.mxu0 %v233
    %2740 = vmatpush1.msra.mxu0 %v232
    %2741 = vmatprep.subr.mxu0 %v241
    %2742 = vmatpush1.msra.mxu0 %v240
    %2743 = vmatprep.subr.mxu0 %v249
    %2744 = vmatpush1.msra.mxu0 %v248
    %2745 = vmatprep.subr.mxu0 %v257
    %2746 = vmatpush1.msra.mxu0 %v256
    %2747 = vmatprep.subr.mxu0 %v265
    %2748 = vmatpush1.msra.mxu0 %v264
    %2749 = vmatprep.subr.mxu0 %v273
    %2750 = vmatpush1.msra.mxu0 %v272
    %2751 = vmatprep.subr.mxu0 %v281
    %2752 = vmatpush1.msra.mxu0 %v280
    %2753 = vmatprep.subr.mxu0 %v289
    %2754 = vmatpush1.msra.mxu0 %v288
    %2755 = vmatprep.subr.mxu0 %v297
    %2756 = vmatpush1.msra.mxu0 %v296
    %2757 = vmatprep.subr.mxu0 %v305
    %2758 = vmatpush1.msra.mxu0 %v304
    %2759 = vmatprep.subr.mxu0 %v313
    %2760 = vmatpush1.msra.mxu0 %v312
    %2761 = vmatprep.subr.mxu0 %v321
    %2762 = vmatpush1.msra.mxu0 %v320
    %2763 = vmatprep.subr.mxu0 %v329
    %2764 = vmatpush1.msra.mxu0 %v328
    %2765 = vmatprep.subr.mxu0 %v337
    %2766 = vmatpush1.msra.mxu0 %v336
    %2767 = vmatprep.subr.mxu0 %v345
    %2768 = vmatpush1.msra.mxu0 %v344
    %2769 = vmatprep.subr.mxu0 %v353
    %2770 = vmatpush1.msra.mxu0 %v352
    %2771 = vmatprep.subr.mxu0 %v361
    %2772 = vmatpush1.msra.mxu0 %v360
    %2773 = vmatprep.subr.mxu0 %v369
    %2774 = vmatpush1.msra.mxu0 %v368
    %2775 = vmatprep.subr.mxu0 %v377
    %2776 = vmatpush1.msra.mxu0 %v376
    %2777 = vmatprep.subr.mxu0 %v385
    %2778 = vmatpush1.msra.mxu0 %v384
    %2779 = vmatprep.subr.mxu0 %v393
    %2780 = vmatpush1.msra.mxu0 %v392
    %2781 = vmatprep.subr.mxu0 %v401
    %2782 = vmatpush1.msra.mxu0 %v400
    %2783 = vmatprep.mubr.f32.mxu0 %v2576
    %2784 = vmatmul.mubr.f32.gmra.mrb[0].mxu0 %v2573
    %v2785 = vpop.f32.mrb[0].mxu0
    %v2786 = vadd.f32 %v424, %v2785
    %v2787 = vpop.f32.mrb[0].mxu0
    %v2788 = vadd.f32 %v428, %v2787
    %2789 = vdwg.mxu0
    %2790 = vmatprep.subr.mxu0 %v155
    %2791 = vmatpush1.msra.mxu0 %v154
    %2792 = vmatprep.subr.mxu0 %v163
    %2793 = vmatpush1.msra.mxu0 %v162
    %2794 = vmatprep.subr.mxu0 %v171
    %2795 = vmatpush1.msra.mxu0 %v170
    %2796 = vmatprep.subr.mxu0 %v179
    %2797 = vmatpush1.msra.mxu0 %v178
    %2798 = vmatprep.subr.mxu0 %v187
    %2799 = vmatpush1.msra.mxu0 %v186
    %2800 = vmatprep.subr.mxu0 %v195
    %2801 = vmatpush1.msra.mxu0 %v194
    %2802 = vmatprep.subr.mxu0 %v203
    %2803 = vmatpush1.msra.mxu0 %v202
    %2804 = vmatprep.subr.mxu0 %v211
    %2805 = vmatpush1.msra.mxu0 %v210
    %2806 = vmatprep.subr.mxu0 %v219
    %2807 = vmatpush1.msra.mxu0 %v218
    %2808 = vmatprep.subr.mxu0 %v227
    %2809 = vmatpush1.msra.mxu0 %v226
    %2810 = vmatprep.subr.mxu0 %v235
    %2811 = vmatpush1.msra.mxu0 %v234
    %2812 = vmatprep.subr.mxu0 %v243
    %2813 = vmatpush1.msra.mxu0 %v242
    %2814 = vmatprep.subr.mxu0 %v251
    %2815 = vmatpush1.msra.mxu0 %v250
    %2816 = vmatprep.subr.mxu0 %v259
    %2817 = vmatpush1.msra.mxu0 %v258
    %2818 = vmatprep.subr.mxu0 %v267
    %2819 = vmatpush1.msra.mxu0 %v266
    %2820 = vmatprep.subr.mxu0 %v275
    %2821 = vmatpush1.msra.mxu0 %v274
    %2822 = vmatprep.subr.mxu0 %v283
    %2823 = vmatpush1.msra.mxu0 %v282
    %2824 = vmatprep.subr.mxu0 %v291
    %2825 = vmatpush1.msra.mxu0 %v290
    %2826 = vmatprep.subr.mxu0 %v299
    %2827 = vmatpush1.msra.mxu0 %v298
    %2828 = vmatprep.subr.mxu0 %v307
    %2829 = vmatpush1.msra.mxu0 %v306
    %2830 = vmatprep.subr.mxu0 %v315
    %2831 = vmatpush1.msra.mxu0 %v314
    %2832 = vmatprep.subr.mxu0 %v323
    %2833 = vmatpush1.msra.mxu0 %v322
    %2834 = vmatprep.subr.mxu0 %v331
    %2835 = vmatpush1.msra.mxu0 %v330
    %2836 = vmatprep.subr.mxu0 %v339
    %2837 = vmatpush1.msra.mxu0 %v338
    %2838 = vmatprep.subr.mxu0 %v347
    %2839 = vmatpush1.msra.mxu0 %v346
    %2840 = vmatprep.subr.mxu0 %v355
    %2841 = vmatpush1.msra.mxu0 %v354
    %2842 = vmatprep.subr.mxu0 %v363
    %2843 = vmatpush1.msra.mxu0 %v362
    %2844 = vmatprep.subr.mxu0 %v371
    %2845 = vmatpush1.msra.mxu0 %v370
    %2846 = vmatprep.subr.mxu0 %v379
    %2847 = vmatpush1.msra.mxu0 %v378
    %2848 = vmatprep.subr.mxu0 %v387
    %2849 = vmatpush1.msra.mxu0 %v386
    %2850 = vmatprep.subr.mxu0 %v395
    %2851 = vmatpush1.msra.mxu0 %v394
    %2852 = vmatprep.subr.mxu0 %v403
    %2853 = vmatpush1.msra.mxu0 %v402
    %2854 = vmatprep.mubr.f32.mxu0 %v2576
    %2855 = vmatmul.mubr.f32.gmra.mrb[0].mxu0 %v2573
    %v2856 = vpop.f32.mrb[0].mxu0
    %v2857 = vadd.f32 %v432, %v2856
    %v2858 = vpop.f32.mrb[0].mxu0
    %v2859 = vadd.f32 %v436, %v2858
    %2860 = vdwg.mxu0
    %v2861 = vmul.f32 %v111, %v744
    %v2862 = vadd.f32 %v2861, %v2644
    %v2863 = vxor.u32 %v2862, 2147483648
    %v2864 = vmul.f32 %v2863, 1.442695
    %v2865 = vpow.pop %v2864
    %v2866 = vadd.f32 %v2865, 1.0
    %v2867 = vrcp.pop %v2866
    %v2868 = vmul.f32 1.0, %v2867
    %v2869 = vtanh.pop %v2862
    %v2870 = vmul.f32 %v2868, %v1857
    %2872 = vrot.lane.b32.xlu0 %v2869, 64
    %v2873 = vpop.permute.xlu0 %2872
    %v2875 = vmul.f32 %v2868, %v2873
    %2877 = vrot.lane.b32.xlu0 %v2875, 32
    %v2878 = vpop.permute.xlu0 %2877
    %v2880 = vadd.f32 %v2870, %v2878
    %v2881 = vtanh.pop %v2880
    %2883 = vrot.lane.b32.xlu0 %v2881, 64
    %v2884 = vpop.permute.xlu0 %2883
    %v2886 = vmul.f32 %v2868, %v2884
    %2888 = vrot.lane.b32.xlu0 %v2886, 32
    %v2889 = vpop.permute.xlu0 %2888
    %v2890 = vsel %vm783, %v2889, 0
    %2892 = vmatprep.subr.mxu0 0.0
    %2893 = vmatpush1.msra.mxu0 %v776
    %2894 = vmatprep.subr.mxu0 0.0
    %2895 = vmatpush1.msra.mxu0 %v777
    %2896 = vmatprep.subr.mxu0 0.0
    %2897 = vmatpush1.msra.mxu0 %v778
    %2898 = vmatprep.subr.mxu0 0.0
    %2899 = vmatpush1.msra.mxu0 %v779
    %2900 = vmatprep.subr.mxu0 0.0
    %2901 = vmatpush1.msra.mxu0 0.0
    %2902 = vmatprep.subr.mxu0 0.0
    %2903 = vmatpush1.msra.mxu0 0.0
    %2904 = vmatprep.subr.mxu0 0.0
    %2905 = vmatpush1.msra.mxu0 0.0
    %2906 = vmatprep.subr.mxu0 0.0
    %2907 = vmatpush1.msra.mxu0 0.0
    %2908 = vmatprep.subr.mxu0 0.0
    %2909 = vmatpush1.msra.mxu0 0.0
    %2910 = vmatprep.subr.mxu0 0.0
    %2911 = vmatpush1.msra.mxu0 0.0
    %2912 = vmatprep.subr.mxu0 0.0
    %2913 = vmatpush1.msra.mxu0 0.0
    %2914 = vmatprep.subr.mxu0 0.0
    %2915 = vmatpush1.msra.mxu0 0.0
    %2916 = vmatprep.subr.mxu0 0.0
    %2917 = vmatpush1.msra.mxu0 0.0
    %2918 = vmatprep.subr.mxu0 0.0
    %2919 = vmatpush1.msra.mxu0 0.0
    %2920 = vmatprep.subr.mxu0 0.0
    %2921 = vmatpush1.msra.mxu0 0.0
    %2922 = vmatprep.subr.mxu0 0.0
    %2923 = vmatpush1.msra.mxu0 0.0
    %2924 = vmatprep.subr.mxu0 0.0
    %2925 = vmatpush1.msra.mxu0 0.0
    %2926 = vmatprep.subr.mxu0 0.0
    %2927 = vmatpush1.msra.mxu0 0.0
    %2928 = vmatprep.subr.mxu0 0.0
    %2929 = vmatpush1.msra.mxu0 0.0
    %2930 = vmatprep.subr.mxu0 0.0
    %2931 = vmatpush1.msra.mxu0 0.0
    %2932 = vmatprep.subr.mxu0 0.0
    %2933 = vmatpush1.msra.mxu0 0.0
    %2934 = vmatprep.subr.mxu0 0.0
    %2935 = vmatpush1.msra.mxu0 0.0
    %2936 = vmatprep.subr.mxu0 0.0
    %2937 = vmatpush1.msra.mxu0 0.0
    %2938 = vmatprep.subr.mxu0 0.0
    %2939 = vmatpush1.msra.mxu0 0.0
    %2940 = vmatprep.subr.mxu0 0.0
    %2941 = vmatpush1.msra.mxu0 0.0
    %2942 = vmatprep.subr.mxu0 0.0
    %2943 = vmatpush1.msra.mxu0 0.0
    %2944 = vmatprep.subr.mxu0 0.0
    %2945 = vmatpush1.msra.mxu0 0.0
    %2946 = vmatprep.subr.mxu0 0.0
    %2947 = vmatpush1.msra.mxu0 0.0
    %2948 = vmatprep.subr.mxu0 0.0
    %2949 = vmatpush1.msra.mxu0 0.0
    %2950 = vmatprep.subr.mxu0 0.0
    %2951 = vmatpush1.msra.mxu0 0.0
    %2952 = vmatprep.subr.mxu0 0.0
    %2953 = vmatpush1.msra.mxu0 0.0
    %2954 = vmatprep.subr.mxu0 0.0
    %2955 = vmatpush1.msra.mxu0 0.0
    %2956 = vmatprep.mubr.f32.mxu0 0.0
    %2957 = vmatmul.mubr.f32.gmra.mrb[0].mxu0 %v2890
    %v2958 = vpop.f32.mrb[0].mxu0
    %v2959 = vadd.f32 %v2646, %v2958
    %v2960 = vpop.f32.mrb[0].mxu0
    %2961 = vdwg.mxu0
    %v2962 = vxor.u32 %v2959, 2147483648
    %v2963 = vmul.f32 %v2962, 1.442695
    %v2964 = vpow.pop %v2963
    %v2965 = vadd.f32 %v2964, 1.0
    %v2966 = vrcp.pop %v2965
    %v2967 = vmul.f32 1.0, %v2966
    %v2968 = vtanh.pop %v2959
    %v2969 = vmul.f32 %v2967, %v1956
    %2971 = vrot.lane.b32.xlu0 %v2968, 64
    %v2972 = vpop.permute.xlu0 %2971
    %v2974 = vmul.f32 %v2967, %v2972
    %2976 = vrot.lane.b32.xlu0 %v2974, 32
    %v2977 = vpop.permute.xlu0 %2976
    %v2979 = vadd.f32 %v2969, %v2977
    %v2980 = vtanh.pop %v2979
    %2982 = vrot.lane.b32.xlu0 %v2980, 64
    %v2983 = vpop.permute.xlu0 %2982
    %v2985 = vmul.f32 %v2967, %v2983
    %2987 = vrot.lane.b32.xlu0 %v2985, 32
    %v2988 = vpop.permute.xlu0 %2987
    %v2989 = vsel %vm783, %v2988, 0
    %2991 = vmatprep.subr.mxu0 0.0
    %2992 = vmatpush1.msra.mxu0 %v885
    %2993 = vmatprep.subr.mxu0 0.0
    %2994 = vmatpush1.msra.mxu0 %v886
    %2995 = vmatprep.subr.mxu0 0.0
    %2996 = vmatpush1.msra.mxu0 %v887
    %2997 = vmatprep.subr.mxu0 0.0
    %2998 = vmatpush1.msra.mxu0 %v888
    %2999 = vmatprep.subr.mxu0 0.0
    %3000 = vmatpush1.msra.mxu0 0.0
    %3001 = vmatprep.subr.mxu0 0.0
    %3002 = vmatpush1.msra.mxu0 0.0
    %3003 = vmatprep.subr.mxu0 0.0
    %3004 = vmatpush1.msra.mxu0 0.0
    %3005 = vmatprep.subr.mxu0 0.0
    %3006 = vmatpush1.msra.mxu0 0.0
    %3007 = vmatprep.subr.mxu0 0.0
    %3008 = vmatpush1.msra.mxu0 0.0
    %3009 = vmatprep.subr.mxu0 0.0
    %3010 = vmatpush1.msra.mxu0 0.0
    %3011 = vmatprep.subr.mxu0 0.0
    %3012 = vmatpush1.msra.mxu0 0.0
    %3013 = vmatprep.subr.mxu0 0.0
    %3014 = vmatpush1.msra.mxu0 0.0
    %3015 = vmatprep.subr.mxu0 0.0
    %3016 = vmatpush1.msra.mxu0 0.0
    %3017 = vmatprep.subr.mxu0 0.0
    %3018 = vmatpush1.msra.mxu0 0.0
    %3019 = vmatprep.subr.mxu0 0.0
    %3020 = vmatpush1.msra.mxu0 0.0
    %3021 = vmatprep.subr.mxu0 0.0
    %3022 = vmatpush1.msra.mxu0 0.0
    %3023 = vmatprep.subr.mxu0 0.0
    %3024 = vmatpush1.msra.mxu0 0.0
    %3025 = vmatprep.subr.mxu0 0.0
    %3026 = vmatpush1.msra.mxu0 0.0
    %3027 = vmatprep.subr.mxu0 0.0
    %3028 = vmatpush1.msra.mxu0 0.0
    %3029 = vmatprep.subr.mxu0 0.0
    %3030 = vmatpush1.msra.mxu0 0.0
    %3031 = vmatprep.subr.mxu0 0.0
    %3032 = vmatpush1.msra.mxu0 0.0
    %3033 = vmatprep.subr.mxu0 0.0
    %3034 = vmatpush1.msra.mxu0 0.0
    %3035 = vmatprep.subr.mxu0 0.0
    %3036 = vmatpush1.msra.mxu0 0.0
    %3037 = vmatprep.subr.mxu0 0.0
    %3038 = vmatpush1.msra.mxu0 0.0
    %3039 = vmatprep.subr.mxu0 0.0
    %3040 = vmatpush1.msra.mxu0 0.0
    %3041 = vmatprep.subr.mxu0 0.0
    %3042 = vmatpush1.msra.mxu0 0.0
    %3043 = vmatprep.subr.mxu0 0.0
    %3044 = vmatpush1.msra.mxu0 0.0
    %3045 = vmatprep.subr.mxu0 0.0
    %3046 = vmatpush1.msra.mxu0 0.0
    %3047 = vmatprep.subr.mxu0 0.0
    %3048 = vmatpush1.msra.mxu0 0.0
    %3049 = vmatprep.subr.mxu0 0.0
    %3050 = vmatpush1.msra.mxu0 0.0
    %3051 = vmatprep.subr.mxu0 0.0
    %3052 = vmatpush1.msra.mxu0 0.0
    %3053 = vmatprep.subr.mxu0 0.0
    %3054 = vmatpush1.msra.mxu0 0.0
    %3055 = vmatprep.mubr.f32.mxu0 0.0
    %3056 = vmatmul.mubr.f32.gmra.mrb[0].mxu0 %v2989
    %v3057 = vpop.f32.mrb[0].mxu0
    %v3058 = vadd.f32 %v2715, %v3057
    %v3059 = vpop.f32.mrb[0].mxu0
    %3060 = vdwg.mxu0
    %v3061 = vxor.u32 %v3058, 2147483648
    %v3062 = vmul.f32 %v3061, 1.442695
    %v3063 = vpow.pop %v3062
    %v3064 = vadd.f32 %v3063, 1.0
    %v3065 = vrcp.pop %v3064
    %v3066 = vmul.f32 1.0, %v3065
    %v3067 = vtanh.pop %v3058
    %v3068 = vmul.f32 %v3066, %v2055
    %3070 = vrot.lane.b32.xlu0 %v3067, 64
    %v3071 = vpop.permute.xlu0 %3070
    %v3073 = vmul.f32 %v3066, %v3071
    %3075 = vrot.lane.b32.xlu0 %v3073, 32
    %v3076 = vpop.permute.xlu0 %3075
    %v3078 = vadd.f32 %v3068, %v3076
    %v3079 = vtanh.pop %v3078
    %3081 = vrot.lane.b32.xlu0 %v3079, 64
    %v3082 = vpop.permute.xlu0 %3081
    %v3084 = vmul.f32 %v3066, %v3082
    %3086 = vrot.lane.b32.xlu0 %v3084, 32
    %v3087 = vpop.permute.xlu0 %3086
    %v3088 = vsel %vm783, %v3087, 0
    %3090 = vmatprep.subr.mxu0 0.0
    %3091 = vmatpush1.msra.mxu0 %v993
    %3092 = vmatprep.subr.mxu0 0.0
    %3093 = vmatpush1.msra.mxu0 %v994
    %3094 = vmatprep.subr.mxu0 0.0
    %3095 = vmatpush1.msra.mxu0 %v995
    %3096 = vmatprep.subr.mxu0 0.0
    %3097 = vmatpush1.msra.mxu0 %v996
    %3098 = vmatprep.subr.mxu0 0.0
    %3099 = vmatpush1.msra.mxu0 0.0
    %3100 = vmatprep.subr.mxu0 0.0
    %3101 = vmatpush1.msra.mxu0 0.0
    %3102 = vmatprep.subr.mxu0 0.0
    %3103 = vmatpush1.msra.mxu0 0.0
    %3104 = vmatprep.subr.mxu0 0.0
    %3105 = vmatpush1.msra.mxu0 0.0
    %3106 = vmatprep.subr.mxu0 0.0
    %3107 = vmatpush1.msra.mxu0 0.0
    %3108 = vmatprep.subr.mxu0 0.0
    %3109 = vmatpush1.msra.mxu0 0.0
    %3110 = vmatprep.subr.mxu0 0.0
    %3111 = vmatpush1.msra.mxu0 0.0
    %3112 = vmatprep.subr.mxu0 0.0
    %3113 = vmatpush1.msra.mxu0 0.0
    %3114 = vmatprep.subr.mxu0 0.0
    %3115 = vmatpush1.msra.mxu0 0.0
    %3116 = vmatprep.subr.mxu0 0.0
    %3117 = vmatpush1.msra.mxu0 0.0
    %3118 = vmatprep.subr.mxu0 0.0
    %3119 = vmatpush1.msra.mxu0 0.0
    %3120 = vmatprep.subr.mxu0 0.0
    %3121 = vmatpush1.msra.mxu0 0.0
    %3122 = vmatprep.subr.mxu0 0.0
    %3123 = vmatpush1.msra.mxu0 0.0
    %3124 = vmatprep.subr.mxu0 0.0
    %3125 = vmatpush1.msra.mxu0 0.0
    %3126 = vmatprep.subr.mxu0 0.0
    %3127 = vmatpush1.msra.mxu0 0.0
    %3128 = vmatprep.subr.mxu0 0.0
    %3129 = vmatpush1.msra.mxu0 0.0
    %3130 = vmatprep.subr.mxu0 0.0
    %3131 = vmatpush1.msra.mxu0 0.0
    %3132 = vmatprep.subr.mxu0 0.0
    %3133 = vmatpush1.msra.mxu0 0.0
    %3134 = vmatprep.subr.mxu0 0.0
    %3135 = vmatpush1.msra.mxu0 0.0
    %3136 = vmatprep.subr.mxu0 0.0
    %3137 = vmatpush1.msra.mxu0 0.0
    %3138 = vmatprep.subr.mxu0 0.0
    %3139 = vmatpush1.msra.mxu0 0.0
    %3140 = vmatprep.subr.mxu0 0.0
    %3141 = vmatpush1.msra.mxu0 0.0
    %3142 = vmatprep.subr.mxu0 0.0
    %3143 = vmatpush1.msra.mxu0 0.0
    %3144 = vmatprep.subr.mxu0 0.0
    %3145 = vmatpush1.msra.mxu0 0.0
    %3146 = vmatprep.subr.mxu0 0.0
    %3147 = vmatpush1.msra.mxu0 0.0
    %3148 = vmatprep.subr.mxu0 0.0
    %3149 = vmatpush1.msra.mxu0 0.0
    %3150 = vmatprep.subr.mxu0 0.0
    %3151 = vmatpush1.msra.mxu0 0.0
    %3152 = vmatprep.subr.mxu0 0.0
    %3153 = vmatpush1.msra.mxu0 0.0
    %3154 = vmatprep.mubr.f32.mxu0 0.0
    %3155 = vmatmul.mubr.f32.gmra.mrb[0].mxu0 %v3088
    %v3156 = vpop.f32.mrb[0].mxu0
    %v3157 = vadd.f32 %v2717, %v3156
    %v3158 = vpop.f32.mrb[0].mxu0
    %3159 = vdwg.mxu0
    %v3160 = vxor.u32 %v3157, 2147483648
    %v3161 = vmul.f32 %v3160, 1.442695
    %v3162 = vpow.pop %v3161
    %v3163 = vadd.f32 %v3162, 1.0
    %v3164 = vrcp.pop %v3163
    %v3165 = vmul.f32 1.0, %v3164
    %v3166 = vtanh.pop %v3157
    %v3167 = vmul.f32 %v3165, %v2154
    %3169 = vrot.lane.b32.xlu0 %v3166, 64
    %v3170 = vpop.permute.xlu0 %3169
    %v3172 = vmul.f32 %v3165, %v3170
    %3174 = vrot.lane.b32.xlu0 %v3172, 32
    %v3175 = vpop.permute.xlu0 %3174
    %v3177 = vadd.f32 %v3167, %v3175
    %v3178 = vtanh.pop %v3177
    %3180 = vrot.lane.b32.xlu0 %v3178, 64
    %v3181 = vpop.permute.xlu0 %3180
    %v3183 = vmul.f32 %v3165, %v3181
    %3185 = vrot.lane.b32.xlu0 %v3183, 32
    %v3186 = vpop.permute.xlu0 %3185
    %v3187 = vsel %vm783, %v3186, 0
    %3189 = vmatprep.subr.mxu0 0.0
    %3190 = vmatpush1.msra.mxu0 %v1101
    %3191 = vmatprep.subr.mxu0 0.0
    %3192 = vmatpush1.msra.mxu0 %v1102
    %3193 = vmatprep.subr.mxu0 0.0
    %3194 = vmatpush1.msra.mxu0 %v1103
    %3195 = vmatprep.subr.mxu0 0.0
    %3196 = vmatpush1.msra.mxu0 %v1104
    %3197 = vmatprep.subr.mxu0 0.0
    %3198 = vmatpush1.msra.mxu0 0.0
    %3199 = vmatprep.subr.mxu0 0.0
    %3200 = vmatpush1.msra.mxu0 0.0
    %3201 = vmatprep.subr.mxu0 0.0
    %3202 = vmatpush1.msra.mxu0 0.0
    %3203 = vmatprep.subr.mxu0 0.0
    %3204 = vmatpush1.msra.mxu0 0.0
    %3205 = vmatprep.subr.mxu0 0.0
    %3206 = vmatpush1.msra.mxu0 0.0
    %3207 = vmatprep.subr.mxu0 0.0
    %3208 = vmatpush1.msra.mxu0 0.0
    %3209 = vmatprep.subr.mxu0 0.0
    %3210 = vmatpush1.msra.mxu0 0.0
    %3211 = vmatprep.subr.mxu0 0.0
    %3212 = vmatpush1.msra.mxu0 0.0
    %3213 = vmatprep.subr.mxu0 0.0
    %3214 = vmatpush1.msra.mxu0 0.0
    %3215 = vmatprep.subr.mxu0 0.0
    %3216 = vmatpush1.msra.mxu0 0.0
    %3217 = vmatprep.subr.mxu0 0.0
    %3218 = vmatpush1.msra.mxu0 0.0
    %3219 = vmatprep.subr.mxu0 0.0
    %3220 = vmatpush1.msra.mxu0 0.0
    %3221 = vmatprep.subr.mxu0 0.0
    %3222 = vmatpush1.msra.mxu0 0.0
    %3223 = vmatprep.subr.mxu0 0.0
    %3224 = vmatpush1.msra.mxu0 0.0
    %3225 = vmatprep.subr.mxu0 0.0
    %3226 = vmatpush1.msra.mxu0 0.0
    %3227 = vmatprep.subr.mxu0 0.0
    %3228 = vmatpush1.msra.mxu0 0.0
    %3229 = vmatprep.subr.mxu0 0.0
    %3230 = vmatpush1.msra.mxu0 0.0
    %3231 = vmatprep.subr.mxu0 0.0
    %3232 = vmatpush1.msra.mxu0 0.0
    %3233 = vmatprep.subr.mxu0 0.0
    %3234 = vmatpush1.msra.mxu0 0.0
    %3235 = vmatprep.subr.mxu0 0.0
    %3236 = vmatpush1.msra.mxu0 0.0
    %3237 = vmatprep.subr.mxu0 0.0
    %3238 = vmatpush1.msra.mxu0 0.0
    %3239 = vmatprep.subr.mxu0 0.0
    %3240 = vmatpush1.msra.mxu0 0.0
    %3241 = vmatprep.subr.mxu0 0.0
    %3242 = vmatpush1.msra.mxu0 0.0
    %3243 = vmatprep.subr.mxu0 0.0
    %3244 = vmatpush1.msra.mxu0 0.0
    %3245 = vmatprep.subr.mxu0 0.0
    %3246 = vmatpush1.msra.mxu0 0.0
    %3247 = vmatprep.subr.mxu0 0.0
    %3248 = vmatpush1.msra.mxu0 0.0
    %3249 = vmatprep.subr.mxu0 0.0
    %3250 = vmatpush1.msra.mxu0 0.0
    %3251 = vmatprep.subr.mxu0 0.0
    %3252 = vmatpush1.msra.mxu0 0.0
    %3253 = vmatprep.mubr.f32.mxu0 0.0
    %3254 = vmatmul.mubr.f32.gmra.mrb[0].mxu0 %v3187
    %v3255 = vpop.f32.mrb[0].mxu0
    %v3256 = vadd.f32 %v2786, %v3255
    %v3257 = vpop.f32.mrb[0].mxu0
    %3258 = vdwg.mxu0
    %v3259 = vxor.u32 %v3256, 2147483648
    %v3260 = vmul.f32 %v3259, 1.442695
    %v3261 = vpow.pop %v3260
    %v3262 = vadd.f32 %v3261, 1.0
    %v3263 = vrcp.pop %v3262
    %v3264 = vmul.f32 1.0, %v3263
    %v3265 = vtanh.pop %v3256
    %v3266 = vmul.f32 %v3264, %v2253
    %3268 = vrot.lane.b32.xlu0 %v3265, 64
    %v3269 = vpop.permute.xlu0 %3268
    %v3271 = vmul.f32 %v3264, %v3269
    %3273 = vrot.lane.b32.xlu0 %v3271, 32
    %v3274 = vpop.permute.xlu0 %3273
    %v3276 = vadd.f32 %v3266, %v3274
    %v3277 = vtanh.pop %v3276
    %3279 = vrot.lane.b32.xlu0 %v3277, 64
    %v3280 = vpop.permute.xlu0 %3279
    %v3282 = vmul.f32 %v3264, %v3280
    %3284 = vrot.lane.b32.xlu0 %v3282, 32
    %v3285 = vpop.permute.xlu0 %3284
    %v3286 = vsel %vm783, %v3285, 0
    %3288 = vmatprep.subr.mxu0 0.0
    %3289 = vmatpush1.msra.mxu0 %v1209
    %3290 = vmatprep.subr.mxu0 0.0
    %3291 = vmatpush1.msra.mxu0 %v1210
    %3292 = vmatprep.subr.mxu0 0.0
    %3293 = vmatpush1.msra.mxu0 %v1211
    %3294 = vmatprep.subr.mxu0 0.0
    %3295 = vmatpush1.msra.mxu0 %v1212
    %3296 = vmatprep.subr.mxu0 0.0
    %3297 = vmatpush1.msra.mxu0 0.0
    %3298 = vmatprep.subr.mxu0 0.0
    %3299 = vmatpush1.msra.mxu0 0.0
    %3300 = vmatprep.subr.mxu0 0.0
    %3301 = vmatpush1.msra.mxu0 0.0
    %3302 = vmatprep.subr.mxu0 0.0
    %3303 = vmatpush1.msra.mxu0 0.0
    %3304 = vmatprep.subr.mxu0 0.0
    %3305 = vmatpush1.msra.mxu0 0.0
    %3306 = vmatprep.subr.mxu0 0.0
    %3307 = vmatpush1.msra.mxu0 0.0
    %3308 = vmatprep.subr.mxu0 0.0
    %3309 = vmatpush1.msra.mxu0 0.0
    %3310 = vmatprep.subr.mxu0 0.0
    %3311 = vmatpush1.msra.mxu0 0.0
    %3312 = vmatprep.subr.mxu0 0.0
    %3313 = vmatpush1.msra.mxu0 0.0
    %3314 = vmatprep.subr.mxu0 0.0
    %3315 = vmatpush1.msra.mxu0 0.0
    %3316 = vmatprep.subr.mxu0 0.0
    %3317 = vmatpush1.msra.mxu0 0.0
    %3318 = vmatprep.subr.mxu0 0.0
    %3319 = vmatpush1.msra.mxu0 0.0
    %3320 = vmatprep.subr.mxu0 0.0
    %3321 = vmatpush1.msra.mxu0 0.0
    %3322 = vmatprep.subr.mxu0 0.0
    %3323 = vmatpush1.msra.mxu0 0.0
    %3324 = vmatprep.subr.mxu0 0.0
    %3325 = vmatpush1.msra.mxu0 0.0
    %3326 = vmatprep.subr.mxu0 0.0
    %3327 = vmatpush1.msra.mxu0 0.0
    %3328 = vmatprep.subr.mxu0 0.0
    %3329 = vmatpush1.msra.mxu0 0.0
    %3330 = vmatprep.subr.mxu0 0.0
    %3331 = vmatpush1.msra.mxu0 0.0
    %3332 = vmatprep.subr.mxu0 0.0
    %3333 = vmatpush1.msra.mxu0 0.0
    %3334 = vmatprep.subr.mxu0 0.0
    %3335 = vmatpush1.msra.mxu0 0.0
    %3336 = vmatprep.subr.mxu0 0.0
    %3337 = vmatpush1.msra.mxu0 0.0
    %3338 = vmatprep.subr.mxu0 0.0
    %3339 = vmatpush1.msra.mxu0 0.0
    %3340 = vmatprep.subr.mxu0 0.0
    %3341 = vmatpush1.msra.mxu0 0.0
    %3342 = vmatprep.subr.mxu0 0.0
    %3343 = vmatpush1.msra.mxu0 0.0
    %3344 = vmatprep.subr.mxu0 0.0
    %3345 = vmatpush1.msra.mxu0 0.0
    %3346 = vmatprep.subr.mxu0 0.0
    %3347 = vmatpush1.msra.mxu0 0.0
    %3348 = vmatprep.subr.mxu0 0.0
    %3349 = vmatpush1.msra.mxu0 0.0
    %3350 = vmatprep.subr.mxu0 0.0
    %3351 = vmatpush1.msra.mxu0 0.0
    %3352 = vmatprep.mubr.f32.mxu0 0.0
    %3353 = vmatmul.mubr.f32.gmra.mrb[0].mxu0 %v3286
    %v3354 = vpop.f32.mrb[0].mxu0
    %v3355 = vadd.f32 %v2788, %v3354
    %v3356 = vpop.f32.mrb[0].mxu0
    %3357 = vdwg.mxu0
    %v3358 = vxor.u32 %v3355, 2147483648
    %v3359 = vmul.f32 %v3358, 1.442695
    %v3360 = vpow.pop %v3359
    %v3361 = vadd.f32 %v3360, 1.0
    %v3362 = vrcp.pop %v3361
    %v3363 = vmul.f32 1.0, %v3362
    %v3364 = vtanh.pop %v3355
    %v3365 = vmul.f32 %v3363, %v2352
    %3367 = vrot.lane.b32.xlu0 %v3364, 64
    %v3368 = vpop.permute.xlu0 %3367
    %v3370 = vmul.f32 %v3363, %v3368
    %3372 = vrot.lane.b32.xlu0 %v3370, 32
    %v3373 = vpop.permute.xlu0 %3372
    %v3375 = vadd.f32 %v3365, %v3373
    %v3376 = vtanh.pop %v3375
    %3378 = vrot.lane.b32.xlu0 %v3376, 64
    %v3379 = vpop.permute.xlu0 %3378
    %v3381 = vmul.f32 %v3363, %v3379
    %3383 = vrot.lane.b32.xlu0 %v3381, 32
    %v3384 = vpop.permute.xlu0 %3383
    %v3385 = vsel %vm783, %v3384, 0
    %3387 = vmatprep.subr.mxu0 0.0
    %3388 = vmatpush1.msra.mxu0 %v1317
    %3389 = vmatprep.subr.mxu0 0.0
    %3390 = vmatpush1.msra.mxu0 %v1318
    %3391 = vmatprep.subr.mxu0 0.0
    %3392 = vmatpush1.msra.mxu0 %v1319
    %3393 = vmatprep.subr.mxu0 0.0
    %3394 = vmatpush1.msra.mxu0 %v1320
    %3395 = vmatprep.subr.mxu0 0.0
    %3396 = vmatpush1.msra.mxu0 0.0
    %3397 = vmatprep.subr.mxu0 0.0
    %3398 = vmatpush1.msra.mxu0 0.0
    %3399 = vmatprep.subr.mxu0 0.0
    %3400 = vmatpush1.msra.mxu0 0.0
    %3401 = vmatprep.subr.mxu0 0.0
    %3402 = vmatpush1.msra.mxu0 0.0
    %3403 = vmatprep.subr.mxu0 0.0
    %3404 = vmatpush1.msra.mxu0 0.0
    %3405 = vmatprep.subr.mxu0 0.0
    %3406 = vmatpush1.msra.mxu0 0.0
    %3407 = vmatprep.subr.mxu0 0.0
    %3408 = vmatpush1.msra.mxu0 0.0
    %3409 = vmatprep.subr.mxu0 0.0
    %3410 = vmatpush1.msra.mxu0 0.0
    %3411 = vmatprep.subr.mxu0 0.0
    %3412 = vmatpush1.msra.mxu0 0.0
    %3413 = vmatprep.subr.mxu0 0.0
    %3414 = vmatpush1.msra.mxu0 0.0
    %3415 = vmatprep.subr.mxu0 0.0
    %3416 = vmatpush1.msra.mxu0 0.0
    %3417 = vmatprep.subr.mxu0 0.0
    %3418 = vmatpush1.msra.mxu0 0.0
    %3419 = vmatprep.subr.mxu0 0.0
    %3420 = vmatpush1.msra.mxu0 0.0
    %3421 = vmatprep.subr.mxu0 0.0
    %3422 = vmatpush1.msra.mxu0 0.0
    %3423 = vmatprep.subr.mxu0 0.0
    %3424 = vmatpush1.msra.mxu0 0.0
    %3425 = vmatprep.subr.mxu0 0.0
    %3426 = vmatpush1.msra.mxu0 0.0
    %3427 = vmatprep.subr.mxu0 0.0
    %3428 = vmatpush1.msra.mxu0 0.0
    %3429 = vmatprep.subr.mxu0 0.0
    %3430 = vmatpush1.msra.mxu0 0.0
    %3431 = vmatprep.subr.mxu0 0.0
    %3432 = vmatpush1.msra.mxu0 0.0
    %3433 = vmatprep.subr.mxu0 0.0
    %3434 = vmatpush1.msra.mxu0 0.0
    %3435 = vmatprep.subr.mxu0 0.0
    %3436 = vmatpush1.msra.mxu0 0.0
    %3437 = vmatprep.subr.mxu0 0.0
    %3438 = vmatpush1.msra.mxu0 0.0
    %3439 = vmatprep.subr.mxu0 0.0
    %3440 = vmatpush1.msra.mxu0 0.0
    %3441 = vmatprep.subr.mxu0 0.0
    %3442 = vmatpush1.msra.mxu0 0.0
    %3443 = vmatprep.subr.mxu0 0.0
    %3444 = vmatpush1.msra.mxu0 0.0
    %3445 = vmatprep.subr.mxu0 0.0
    %3446 = vmatpush1.msra.mxu0 0.0
    %3447 = vmatprep.subr.mxu0 0.0
    %3448 = vmatpush1.msra.mxu0 0.0
    %3449 = vmatprep.subr.mxu0 0.0
    %3450 = vmatpush1.msra.mxu0 0.0
    %3451 = vmatprep.mubr.f32.mxu0 0.0
    %3452 = vmatmul.mubr.f32.gmra.mrb[0].mxu0 %v3385
    %v3453 = vpop.f32.mrb[0].mxu0
    %v3454 = vadd.f32 %v2857, %v3453
    %v3455 = vpop.f32.mrb[0].mxu0
    %3456 = vdwg.mxu0
    %v3457 = vxor.u32 %v3454, 2147483648
    %v3458 = vmul.f32 %v3457, 1.442695
    %v3459 = vpow.pop %v3458
    %v3460 = vadd.f32 %v3459, 1.0
    %v3461 = vrcp.pop %v3460
    %v3462 = vmul.f32 1.0, %v3461
    %v3463 = vtanh.pop %v3454
    %v3464 = vmul.f32 %v3462, %v2451
    %3466 = vrot.lane.b32.xlu0 %v3463, 64
    %v3467 = vpop.permute.xlu0 %3466
    %v3469 = vmul.f32 %v3462, %v3467
    %3471 = vrot.lane.b32.xlu0 %v3469, 32
    %v3472 = vpop.permute.xlu0 %3471
    %v3474 = vadd.f32 %v3464, %v3472
    %v3475 = vtanh.pop %v3474
    %3477 = vrot.lane.b32.xlu0 %v3475, 64
    %v3478 = vpop.permute.xlu0 %3477
    %v3480 = vmul.f32 %v3462, %v3478
    %3482 = vrot.lane.b32.xlu0 %v3480, 32
    %v3483 = vpop.permute.xlu0 %3482
    %v3484 = vsel %vm783, %v3483, 0
    %3486 = vmatprep.subr.mxu0 0.0
    %3487 = vmatpush1.msra.mxu0 %v1425
    %3488 = vmatprep.subr.mxu0 0.0
    %3489 = vmatpush1.msra.mxu0 %v1426
    %3490 = vmatprep.subr.mxu0 0.0
    %3491 = vmatpush1.msra.mxu0 %v1427
    %3492 = vmatprep.subr.mxu0 0.0
    %3493 = vmatpush1.msra.mxu0 %v1428
    %3494 = vmatprep.subr.mxu0 0.0
    %3495 = vmatpush1.msra.mxu0 0.0
    %3496 = vmatprep.subr.mxu0 0.0
    %3497 = vmatpush1.msra.mxu0 0.0
    %3498 = vmatprep.subr.mxu0 0.0
    %3499 = vmatpush1.msra.mxu0 0.0
    %3500 = vmatprep.subr.mxu0 0.0
    %3501 = vmatpush1.msra.mxu0 0.0
    %3502 = vmatprep.subr.mxu0 0.0
    %3503 = vmatpush1.msra.mxu0 0.0
    %3504 = vmatprep.subr.mxu0 0.0
    %3505 = vmatpush1.msra.mxu0 0.0
    %3506 = vmatprep.subr.mxu0 0.0
    %3507 = vmatpush1.msra.mxu0 0.0
    %3508 = vmatprep.subr.mxu0 0.0
    %3509 = vmatpush1.msra.mxu0 0.0
    %3510 = vmatprep.subr.mxu0 0.0
    %3511 = vmatpush1.msra.mxu0 0.0
    %3512 = vmatprep.subr.mxu0 0.0
    %3513 = vmatpush1.msra.mxu0 0.0
    %3514 = vmatprep.subr.mxu0 0.0
    %3515 = vmatpush1.msra.mxu0 0.0
    %3516 = vmatprep.subr.mxu0 0.0
    %3517 = vmatpush1.msra.mxu0 0.0
    %3518 = vmatprep.subr.mxu0 0.0
    %3519 = vmatpush1.msra.mxu0 0.0
    %3520 = vmatprep.subr.mxu0 0.0
    %3521 = vmatpush1.msra.mxu0 0.0
    %3522 = vmatprep.subr.mxu0 0.0
    %3523 = vmatpush1.msra.mxu0 0.0
    %3524 = vmatprep.subr.mxu0 0.0
    %3525 = vmatpush1.msra.mxu0 0.0
    %3526 = vmatprep.subr.mxu0 0.0
    %3527 = vmatpush1.msra.mxu0 0.0
    %3528 = vmatprep.subr.mxu0 0.0
    %3529 = vmatpush1.msra.mxu0 0.0
    %3530 = vmatprep.subr.mxu0 0.0
    %3531 = vmatpush1.msra.mxu0 0.0
    %3532 = vmatprep.subr.mxu0 0.0
    %3533 = vmatpush1.msra.mxu0 0.0
    %3534 = vmatprep.subr.mxu0 0.0
    %3535 = vmatpush1.msra.mxu0 0.0
    %3536 = vmatprep.subr.mxu0 0.0
    %3537 = vmatpush1.msra.mxu0 0.0
    %3538 = vmatprep.subr.mxu0 0.0
    %3539 = vmatpush1.msra.mxu0 0.0
    %3540 = vmatprep.subr.mxu0 0.0
    %3541 = vmatpush1.msra.mxu0 0.0
    %3542 = vmatprep.subr.mxu0 0.0
    %3543 = vmatpush1.msra.mxu0 0.0
    %3544 = vmatprep.subr.mxu0 0.0
    %3545 = vmatpush1.msra.mxu0 0.0
    %3546 = vmatprep.subr.mxu0 0.0
    %3547 = vmatpush1.msra.mxu0 0.0
    %3548 = vmatprep.subr.mxu0 0.0
    %3549 = vmatpush1.msra.mxu0 0.0
    %3550 = vmatprep.mubr.f32.mxu0 0.0
    %3551 = vmatmul.mubr.f32.gmra.mrb[0].mxu0 %v3484
    %v3552 = vpop.f32.mrb[0].mxu0
    %v3553 = vadd.f32 %v2859, %v3552
    %v3554 = vpop.f32.mrb[0].mxu0
    %3555 = vdwg.mxu0
    %v3556 = vxor.u32 %v3553, 2147483648
    %v3557 = vmul.f32 %v3556, 1.442695
    %v3558 = vpow.pop %v3557
    %v3559 = vadd.f32 %v3558, 1.0
    %v3560 = vrcp.pop %v3559
    %v3561 = vmul.f32 1.0, %v3560
    %v3562 = vtanh.pop %v3553
    %v3563 = vmul.f32 %v3561, %v2550
    %3565 = vrot.lane.b32.xlu0 %v3562, 64
    %v3566 = vpop.permute.xlu0 %3565
    %v3568 = vmul.f32 %v3561, %v3566
    %3570 = vrot.lane.b32.xlu0 %v3568, 32
    %v3571 = vpop.permute.xlu0 %3570
    %v3573 = vadd.f32 %v3563, %v3571
    %v3574 = vtanh.pop %v3573
    %3576 = vrot.lane.b32.xlu0 %v3574, 64
    %v3577 = vpop.permute.xlu0 %3576
    %v3579 = vmul.f32 %v3561, %v3577
    %3581 = vrot.lane.b32.xlu0 %v2985, 64
    %v3582 = vpop.permute.xlu0 %3581
    %3584 = vrot.lane.b32.xlu0 %v3084, 96
    %v3585 = vpop.permute.xlu0 %3584
    %3588 = vrot.lane.b32.xlu0 %v3381, 64
    %v3589 = vpop.permute.xlu0 %3588
    %3591 = vrot.lane.b32.xlu0 %v3480, 96
    %v3592 = vpop.permute.xlu0 %3591
    %v3594 = vsel %vm783, %v2889, %v3582
    %v3595 = vsel %vm1547, %v3594, %v3585
    %v3596 = vsel %vm1549, %v3595, %v3183
    %v3597 = vsel %vm783, %v3285, %v3589
    %v3598 = vsel %vm1547, %v3597, %v3592
    %v3599 = vsel %vm1549, %v3598, %v3579
    %3600 = vmatprep.subr.mxu0 %v149
    %3601 = vmatpush1.msra.mxu0 %v148
    %3602 = vmatprep.subr.mxu0 %v157
    %3603 = vmatpush1.msra.mxu0 %v156
    %3604 = vmatprep.subr.mxu0 %v165
    %3605 = vmatpush1.msra.mxu0 %v164
    %3606 = vmatprep.subr.mxu0 %v173
    %3607 = vmatpush1.msra.mxu0 %v172
    %3608 = vmatprep.subr.mxu0 %v181
    %3609 = vmatpush1.msra.mxu0 %v180
    %3610 = vmatprep.subr.mxu0 %v189
    %3611 = vmatpush1.msra.mxu0 %v188
    %3612 = vmatprep.subr.mxu0 %v197
    %3613 = vmatpush1.msra.mxu0 %v196
    %3614 = vmatprep.subr.mxu0 %v205
    %3615 = vmatpush1.msra.mxu0 %v204
    %3616 = vmatprep.subr.mxu0 %v213
    %3617 = vmatpush1.msra.mxu0 %v212
    %3618 = vmatprep.subr.mxu0 %v221
    %3619 = vmatpush1.msra.mxu0 %v220
    %3620 = vmatprep.subr.mxu0 %v229
    %3621 = vmatpush1.msra.mxu0 %v228
    %3622 = vmatprep.subr.mxu0 %v237
    %3623 = vmatpush1.msra.mxu0 %v236
    %3624 = vmatprep.subr.mxu0 %v245
    %3625 = vmatpush1.msra.mxu0 %v244
    %3626 = vmatprep.subr.mxu0 %v253
    %3627 = vmatpush1.msra.mxu0 %v252
    %3628 = vmatprep.subr.mxu0 %v261
    %3629 = vmatpush1.msra.mxu0 %v260
    %3630 = vmatprep.subr.mxu0 %v269
    %3631 = vmatpush1.msra.mxu0 %v268
    %3632 = vmatprep.subr.mxu0 %v277
    %3633 = vmatpush1.msra.mxu0 %v276
    %3634 = vmatprep.subr.mxu0 %v285
    %3635 = vmatpush1.msra.mxu0 %v284
    %3636 = vmatprep.subr.mxu0 %v293
    %3637 = vmatpush1.msra.mxu0 %v292
    %3638 = vmatprep.subr.mxu0 %v301
    %3639 = vmatpush1.msra.mxu0 %v300
    %3640 = vmatprep.subr.mxu0 %v309
    %3641 = vmatpush1.msra.mxu0 %v308
    %3642 = vmatprep.subr.mxu0 %v317
    %3643 = vmatpush1.msra.mxu0 %v316
    %3644 = vmatprep.subr.mxu0 %v325
    %3645 = vmatpush1.msra.mxu0 %v324
    %3646 = vmatprep.subr.mxu0 %v333
    %3647 = vmatpush1.msra.mxu0 %v332
    %3648 = vmatprep.subr.mxu0 %v341
    %3649 = vmatpush1.msra.mxu0 %v340
    %3650 = vmatprep.subr.mxu0 %v349
    %3651 = vmatpush1.msra.mxu0 %v348
    %3652 = vmatprep.subr.mxu0 %v357
    %3653 = vmatpush1.msra.mxu0 %v356
    %3654 = vmatprep.subr.mxu0 %v365
    %3655 = vmatpush1.msra.mxu0 %v364
    %3656 = vmatprep.subr.mxu0 %v373
    %3657 = vmatpush1.msra.mxu0 %v372
    %3658 = vmatprep.subr.mxu0 %v381
    %3659 = vmatpush1.msra.mxu0 %v380
    %3660 = vmatprep.subr.mxu0 %v389
    %3661 = vmatpush1.msra.mxu0 %v388
    %3662 = vmatprep.subr.mxu0 %v397
    %3663 = vmatpush1.msra.mxu0 %v396
    %3664 = vmatprep.mubr.f32.mxu0 %v3599
    %3665 = vmatmul.mubr.f32.gmra.mrb[0].mxu0 %v3596
    %v3666 = vpop.f32.mrb[0].mxu0
    %v3667 = vadd.f32 %v408, %v3666
    %v3668 = vpop.f32.mrb[0].mxu0
    %v3669 = vadd.f32 %v412, %v3668
    %3670 = vdwg.mxu0
    %3671 = vmatprep.subr.mxu0 %v151
    %3672 = vmatpush1.msra.mxu0 %v150
    %3673 = vmatprep.subr.mxu0 %v159
    %3674 = vmatpush1.msra.mxu0 %v158
    %3675 = vmatprep.subr.mxu0 %v167
    %3676 = vmatpush1.msra.mxu0 %v166
    %3677 = vmatprep.subr.mxu0 %v175
    %3678 = vmatpush1.msra.mxu0 %v174
    %3679 = vmatprep.subr.mxu0 %v183
    %3680 = vmatpush1.msra.mxu0 %v182
    %3681 = vmatprep.subr.mxu0 %v191
    %3682 = vmatpush1.msra.mxu0 %v190
    %3683 = vmatprep.subr.mxu0 %v199
    %3684 = vmatpush1.msra.mxu0 %v198
    %3685 = vmatprep.subr.mxu0 %v207
    %3686 = vmatpush1.msra.mxu0 %v206
    %3687 = vmatprep.subr.mxu0 %v215
    %3688 = vmatpush1.msra.mxu0 %v214
    %3689 = vmatprep.subr.mxu0 %v223
    %3690 = vmatpush1.msra.mxu0 %v222
    %3691 = vmatprep.subr.mxu0 %v231
    %3692 = vmatpush1.msra.mxu0 %v230
    %3693 = vmatprep.subr.mxu0 %v239
    %3694 = vmatpush1.msra.mxu0 %v238
    %3695 = vmatprep.subr.mxu0 %v247
    %3696 = vmatpush1.msra.mxu0 %v246
    %3697 = vmatprep.subr.mxu0 %v255
    %3698 = vmatpush1.msra.mxu0 %v254
    %3699 = vmatprep.subr.mxu0 %v263
    %3700 = vmatpush1.msra.mxu0 %v262
    %3701 = vmatprep.subr.mxu0 %v271
    %3702 = vmatpush1.msra.mxu0 %v270
    %3703 = vmatprep.subr.mxu0 %v279
    %3704 = vmatpush1.msra.mxu0 %v278
    %3705 = vmatprep.subr.mxu0 %v287
    %3706 = vmatpush1.msra.mxu0 %v286
    %3707 = vmatprep.subr.mxu0 %v295
    %3708 = vmatpush1.msra.mxu0 %v294
    %3709 = vmatprep.subr.mxu0 %v303
    %3710 = vmatpush1.msra.mxu0 %v302
    %3711 = vmatprep.subr.mxu0 %v311
    %3712 = vmatpush1.msra.mxu0 %v310
    %3713 = vmatprep.subr.mxu0 %v319
    %3714 = vmatpush1.msra.mxu0 %v318
    %3715 = vmatprep.subr.mxu0 %v327
    %3716 = vmatpush1.msra.mxu0 %v326
    %3717 = vmatprep.subr.mxu0 %v335
    %3718 = vmatpush1.msra.mxu0 %v334
    %3719 = vmatprep.subr.mxu0 %v343
    %3720 = vmatpush1.msra.mxu0 %v342
    %3721 = vmatprep.subr.mxu0 %v351
    %3722 = vmatpush1.msra.mxu0 %v350
    %3723 = vmatprep.subr.mxu0 %v359
    %3724 = vmatpush1.msra.mxu0 %v358
    %3725 = vmatprep.subr.mxu0 %v367
    %3726 = vmatpush1.msra.mxu0 %v366
    %3727 = vmatprep.subr.mxu0 %v375
    %3728 = vmatpush1.msra.mxu0 %v374
    %3729 = vmatprep.subr.mxu0 %v383
    %3730 = vmatpush1.msra.mxu0 %v382
    %3731 = vmatprep.subr.mxu0 %v391
    %3732 = vmatpush1.msra.mxu0 %v390
    %3733 = vmatprep.subr.mxu0 %v399
    %3734 = vmatpush1.msra.mxu0 %v398
    %3735 = vmatprep.mubr.f32.mxu0 %v3599
    %3736 = vmatmul.mubr.f32.gmra.mrb[0].mxu0 %v3596
    %v3737 = vpop.f32.mrb[0].mxu0
    %v3738 = vadd.f32 %v416, %v3737
    %v3739 = vpop.f32.mrb[0].mxu0
    %v3740 = vadd.f32 %v420, %v3739
    %3741 = vdwg.mxu0
    %3742 = vmatprep.subr.mxu0 %v153
    %3743 = vmatpush1.msra.mxu0 %v152
    %3744 = vmatprep.subr.mxu0 %v161
    %3745 = vmatpush1.msra.mxu0 %v160
    %3746 = vmatprep.subr.mxu0 %v169
    %3747 = vmatpush1.msra.mxu0 %v168
    %3748 = vmatprep.subr.mxu0 %v177
    %3749 = vmatpush1.msra.mxu0 %v176
    %3750 = vmatprep.subr.mxu0 %v185
    %3751 = vmatpush1.msra.mxu0 %v184
    %3752 = vmatprep.subr.mxu0 %v193
    %3753 = vmatpush1.msra.mxu0 %v192
    %3754 = vmatprep.subr.mxu0 %v201
    %3755 = vmatpush1.msra.mxu0 %v200
    %3756 = vmatprep.subr.mxu0 %v209
    %3757 = vmatpush1.msra.mxu0 %v208
    %3758 = vmatprep.subr.mxu0 %v217
    %3759 = vmatpush1.msra.mxu0 %v216
    %3760 = vmatprep.subr.mxu0 %v225
    %3761 = vmatpush1.msra.mxu0 %v224
    %3762 = vmatprep.subr.mxu0 %v233
    %3763 = vmatpush1.msra.mxu0 %v232
    %3764 = vmatprep.subr.mxu0 %v241
    %3765 = vmatpush1.msra.mxu0 %v240
    %3766 = vmatprep.subr.mxu0 %v249
    %3767 = vmatpush1.msra.mxu0 %v248
    %3768 = vmatprep.subr.mxu0 %v257
    %3769 = vmatpush1.msra.mxu0 %v256
    %3770 = vmatprep.subr.mxu0 %v265
    %3771 = vmatpush1.msra.mxu0 %v264
    %3772 = vmatprep.subr.mxu0 %v273
    %3773 = vmatpush1.msra.mxu0 %v272
    %3774 = vmatprep.subr.mxu0 %v281
    %3775 = vmatpush1.msra.mxu0 %v280
    %3776 = vmatprep.subr.mxu0 %v289
    %3777 = vmatpush1.msra.mxu0 %v288
    %3778 = vmatprep.subr.mxu0 %v297
    %3779 = vmatpush1.msra.mxu0 %v296
    %3780 = vmatprep.subr.mxu0 %v305
    %3781 = vmatpush1.msra.mxu0 %v304
    %3782 = vmatprep.subr.mxu0 %v313
    %3783 = vmatpush1.msra.mxu0 %v312
    %3784 = vmatprep.subr.mxu0 %v321
    %3785 = vmatpush1.msra.mxu0 %v320
    %3786 = vmatprep.subr.mxu0 %v329
    %3787 = vmatpush1.msra.mxu0 %v328
    %3788 = vmatprep.subr.mxu0 %v337
    %3789 = vmatpush1.msra.mxu0 %v336
    %3790 = vmatprep.subr.mxu0 %v345
    %3791 = vmatpush1.msra.mxu0 %v344
    %3792 = vmatprep.subr.mxu0 %v353
    %3793 = vmatpush1.msra.mxu0 %v352
    %3794 = vmatprep.subr.mxu0 %v361
    %3795 = vmatpush1.msra.mxu0 %v360
    %3796 = vmatprep.subr.mxu0 %v369
    %3797 = vmatpush1.msra.mxu0 %v368
    %3798 = vmatprep.subr.mxu0 %v377
    %3799 = vmatpush1.msra.mxu0 %v376
    %3800 = vmatprep.subr.mxu0 %v385
    %3801 = vmatpush1.msra.mxu0 %v384
    %3802 = vmatprep.subr.mxu0 %v393
    %3803 = vmatpush1.msra.mxu0 %v392
    %3804 = vmatprep.subr.mxu0 %v401
    %3805 = vmatpush1.msra.mxu0 %v400
    %3806 = vmatprep.mubr.f32.mxu0 %v3599
    %3807 = vmatmul.mubr.f32.gmra.mrb[0].mxu0 %v3596
    %v3808 = vpop.f32.mrb[0].mxu0
    %v3809 = vadd.f32 %v424, %v3808
    %v3810 = vpop.f32.mrb[0].mxu0
    %v3811 = vadd.f32 %v428, %v3810
    %3812 = vdwg.mxu0
    %3813 = vmatprep.subr.mxu0 %v155
    %3814 = vmatpush1.msra.mxu0 %v154
    %3815 = vmatprep.subr.mxu0 %v163
    %3816 = vmatpush1.msra.mxu0 %v162
    %3817 = vmatprep.subr.mxu0 %v171
    %3818 = vmatpush1.msra.mxu0 %v170
    %3819 = vmatprep.subr.mxu0 %v179
    %3820 = vmatpush1.msra.mxu0 %v178
    %3821 = vmatprep.subr.mxu0 %v187
    %3822 = vmatpush1.msra.mxu0 %v186
    %3823 = vmatprep.subr.mxu0 %v195
    %3824 = vmatpush1.msra.mxu0 %v194
    %3825 = vmatprep.subr.mxu0 %v203
    %3826 = vmatpush1.msra.mxu0 %v202
    %3827 = vmatprep.subr.mxu0 %v211
    %3828 = vmatpush1.msra.mxu0 %v210
    %3829 = vmatprep.subr.mxu0 %v219
    %3830 = vmatpush1.msra.mxu0 %v218
    %3831 = vmatprep.subr.mxu0 %v227
    %3832 = vmatpush1.msra.mxu0 %v226
    %3833 = vmatprep.subr.mxu0 %v235
    %3834 = vmatpush1.msra.mxu0 %v234
    %3835 = vmatprep.subr.mxu0 %v243
    %3836 = vmatpush1.msra.mxu0 %v242
    %3837 = vmatprep.subr.mxu0 %v251
    %3838 = vmatpush1.msra.mxu0 %v250
    %3839 = vmatprep.subr.mxu0 %v259
    %3840 = vmatpush1.msra.mxu0 %v258
    %3841 = vmatprep.subr.mxu0 %v267
    %3842 = vmatpush1.msra.mxu0 %v266
    %3843 = vmatprep.subr.mxu0 %v275
    %3844 = vmatpush1.msra.mxu0 %v274
    %3845 = vmatprep.subr.mxu0 %v283
    %3846 = vmatpush1.msra.mxu0 %v282
    %3847 = vmatprep.subr.mxu0 %v291
    %3848 = vmatpush1.msra.mxu0 %v290
    %3849 = vmatprep.subr.mxu0 %v299
    %3850 = vmatpush1.msra.mxu0 %v298
    %3851 = vmatprep.subr.mxu0 %v307
    %3852 = vmatpush1.msra.mxu0 %v306
    %3853 = vmatprep.subr.mxu0 %v315
    %3854 = vmatpush1.msra.mxu0 %v314
    %3855 = vmatprep.subr.mxu0 %v323
    %3856 = vmatpush1.msra.mxu0 %v322
    %3857 = vmatprep.subr.mxu0 %v331
    %3858 = vmatpush1.msra.mxu0 %v330
    %3859 = vmatprep.subr.mxu0 %v339
    %3860 = vmatpush1.msra.mxu0 %v338
    %3861 = vmatprep.subr.mxu0 %v347
    %3862 = vmatpush1.msra.mxu0 %v346
    %3863 = vmatprep.subr.mxu0 %v355
    %3864 = vmatpush1.msra.mxu0 %v354
    %3865 = vmatprep.subr.mxu0 %v363
    %3866 = vmatpush1.msra.mxu0 %v362
    %3867 = vmatprep.subr.mxu0 %v371
    %3868 = vmatpush1.msra.mxu0 %v370
    %3869 = vmatprep.subr.mxu0 %v379
    %3870 = vmatpush1.msra.mxu0 %v378
    %3871 = vmatprep.subr.mxu0 %v387
    %3872 = vmatpush1.msra.mxu0 %v386
    %3873 = vmatprep.subr.mxu0 %v395
    %3874 = vmatpush1.msra.mxu0 %v394
    %3875 = vmatprep.subr.mxu0 %v403
    %3876 = vmatpush1.msra.mxu0 %v402
    %3877 = vmatprep.mubr.f32.mxu0 %v3599
    %3878 = vmatmul.mubr.f32.gmra.mrb[0].mxu0 %v3596
    %v3879 = vpop.f32.mrb[0].mxu0
    %v3880 = vadd.f32 %v432, %v3879
    %v3881 = vpop.f32.mrb[0].mxu0
    %v3882 = vadd.f32 %v436, %v3881
    %3883 = vdwg.mxu0
    %v3884 = vmul.f32 %v115, %v744
    %v3885 = vadd.f32 %v3884, %v3667
    %v3886 = vxor.u32 %v3885, 2147483648
    %v3887 = vmul.f32 %v3886, 1.442695
    %v3888 = vpow.pop %v3887
    %v3889 = vadd.f32 %v3888, 1.0
    %v3890 = vrcp.pop %v3889
    %v3891 = vmul.f32 1.0, %v3890
    %v3892 = vtanh.pop %v3885
    %v3893 = vmul.f32 %v3891, %v2880
    %3895 = vrot.lane.b32.xlu0 %v3892, 64
    %v3896 = vpop.permute.xlu0 %3895
    %v3898 = vmul.f32 %v3891, %v3896
    %3900 = vrot.lane.b32.xlu0 %v3898, 32
    %v3901 = vpop.permute.xlu0 %3900
    %v3903 = vadd.f32 %v3893, %v3901
    %v3904 = vtanh.pop %v3903
    %3906 = vrot.lane.b32.xlu0 %v3904, 64
    %v3907 = vpop.permute.xlu0 %3906
    %v3909 = vmul.f32 %v3891, %v3907
    %3911 = vrot.lane.b32.xlu0 %v3909, 32
    %v3912 = vpop.permute.xlu0 %3911
    %v3913 = vsel %vm783, %v3912, 0
    %3915 = vmatprep.subr.mxu0 0.0
    %3916 = vmatpush1.msra.mxu0 %v776
    %3917 = vmatprep.subr.mxu0 0.0
    %3918 = vmatpush1.msra.mxu0 %v777
    %3919 = vmatprep.subr.mxu0 0.0
    %3920 = vmatpush1.msra.mxu0 %v778
    %3921 = vmatprep.subr.mxu0 0.0
    %3922 = vmatpush1.msra.mxu0 %v779
    %3923 = vmatprep.subr.mxu0 0.0
    %3924 = vmatpush1.msra.mxu0 0.0
    %3925 = vmatprep.subr.mxu0 0.0
    %3926 = vmatpush1.msra.mxu0 0.0
    %3927 = vmatprep.subr.mxu0 0.0
    %3928 = vmatpush1.msra.mxu0 0.0
    %3929 = vmatprep.subr.mxu0 0.0
    %3930 = vmatpush1.msra.mxu0 0.0
    %3931 = vmatprep.subr.mxu0 0.0
    %3932 = vmatpush1.msra.mxu0 0.0
    %3933 = vmatprep.subr.mxu0 0.0
    %3934 = vmatpush1.msra.mxu0 0.0
    %3935 = vmatprep.subr.mxu0 0.0
    %3936 = vmatpush1.msra.mxu0 0.0
    %3937 = vmatprep.subr.mxu0 0.0
    %3938 = vmatpush1.msra.mxu0 0.0
    %3939 = vmatprep.subr.mxu0 0.0
    %3940 = vmatpush1.msra.mxu0 0.0
    %3941 = vmatprep.subr.mxu0 0.0
    %3942 = vmatpush1.msra.mxu0 0.0
    %3943 = vmatprep.subr.mxu0 0.0
    %3944 = vmatpush1.msra.mxu0 0.0
    %3945 = vmatprep.subr.mxu0 0.0
    %3946 = vmatpush1.msra.mxu0 0.0
    %3947 = vmatprep.subr.mxu0 0.0
    %3948 = vmatpush1.msra.mxu0 0.0
    %3949 = vmatprep.subr.mxu0 0.0
    %3950 = vmatpush1.msra.mxu0 0.0
    %3951 = vmatprep.subr.mxu0 0.0
    %3952 = vmatpush1.msra.mxu0 0.0
    %3953 = vmatprep.subr.mxu0 0.0
    %3954 = vmatpush1.msra.mxu0 0.0
    %3955 = vmatprep.subr.mxu0 0.0
    %3956 = vmatpush1.msra.mxu0 0.0
    %3957 = vmatprep.subr.mxu0 0.0
    %3958 = vmatpush1.msra.mxu0 0.0
    %3959 = vmatprep.subr.mxu0 0.0
    %3960 = vmatpush1.msra.mxu0 0.0
    %3961 = vmatprep.subr.mxu0 0.0
    %3962 = vmatpush1.msra.mxu0 0.0
    %3963 = vmatprep.subr.mxu0 0.0
    %3964 = vmatpush1.msra.mxu0 0.0
    %3965 = vmatprep.subr.mxu0 0.0
    %3966 = vmatpush1.msra.mxu0 0.0
    %3967 = vmatprep.subr.mxu0 0.0
    %3968 = vmatpush1.msra.mxu0 0.0
    %3969 = vmatprep.subr.mxu0 0.0
    %3970 = vmatpush1.msra.mxu0 0.0
    %3971 = vmatprep.subr.mxu0 0.0
    %3972 = vmatpush1.msra.mxu0 0.0
    %3973 = vmatprep.subr.mxu0 0.0
    %3974 = vmatpush1.msra.mxu0 0.0
    %3975 = vmatprep.subr.mxu0 0.0
    %3976 = vmatpush1.msra.mxu0 0.0
    %3977 = vmatprep.subr.mxu0 0.0
    %3978 = vmatpush1.msra.mxu0 0.0
    %3979 = vmatprep.mubr.f32.mxu0 0.0
    %3980 = vmatmul.mubr.f32.gmra.mrb[0].mxu0 %v3913
    %v3981 = vpop.f32.mrb[0].mxu0
    %v3982 = vadd.f32 %v3669, %v3981
    %v3983 = vpop.f32.mrb[0].mxu0
    %3984 = vdwg.mxu0
    %v3985 = vxor.u32 %v3982, 2147483648
    %v3986 = vmul.f32 %v3985, 1.442695
    %v3987 = vpow.pop %v3986
    %v3988 = vadd.f32 %v3987, 1.0
    %v3989 = vrcp.pop %v3988
    %v3990 = vmul.f32 1.0, %v3989
    %v3991 = vtanh.pop %v3982
    %v3992 = vmul.f32 %v3990, %v2979
    %3994 = vrot.lane.b32.xlu0 %v3991, 64
    %v3995 = vpop.permute.xlu0 %3994
    %v3997 = vmul.f32 %v3990, %v3995
    %3999 = vrot.lane.b32.xlu0 %v3997, 32
    %v4000 = vpop.permute.xlu0 %3999
    %v4002 = vadd.f32 %v3992, %v4000
    %v4003 = vtanh.pop %v4002
    %4005 = vrot.lane.b32.xlu0 %v4003, 64
    %v4006 = vpop.permute.xlu0 %4005
    %v4008 = vmul.f32 %v3990, %v4006
    %4010 = vrot.lane.b32.xlu0 %v4008, 32
    %v4011 = vpop.permute.xlu0 %4010
    %v4012 = vsel %vm783, %v4011, 0
    %4014 = vmatprep.subr.mxu0 0.0
    %4015 = vmatpush1.msra.mxu0 %v885
    %4016 = vmatprep.subr.mxu0 0.0
    %4017 = vmatpush1.msra.mxu0 %v886
    %4018 = vmatprep.subr.mxu0 0.0
    %4019 = vmatpush1.msra.mxu0 %v887
    %4020 = vmatprep.subr.mxu0 0.0
    %4021 = vmatpush1.msra.mxu0 %v888
    %4022 = vmatprep.subr.mxu0 0.0
    %4023 = vmatpush1.msra.mxu0 0.0
    %4024 = vmatprep.subr.mxu0 0.0
    %4025 = vmatpush1.msra.mxu0 0.0
    %4026 = vmatprep.subr.mxu0 0.0
    %4027 = vmatpush1.msra.mxu0 0.0
    %4028 = vmatprep.subr.mxu0 0.0
    %4029 = vmatpush1.msra.mxu0 0.0
    %4030 = vmatprep.subr.mxu0 0.0
    %4031 = vmatpush1.msra.mxu0 0.0
    %4032 = vmatprep.subr.mxu0 0.0
    %4033 = vmatpush1.msra.mxu0 0.0
    %4034 = vmatprep.subr.mxu0 0.0
    %4035 = vmatpush1.msra.mxu0 0.0
    %4036 = vmatprep.subr.mxu0 0.0
    %4037 = vmatpush1.msra.mxu0 0.0
    %4038 = vmatprep.subr.mxu0 0.0
    %4039 = vmatpush1.msra.mxu0 0.0
    %4040 = vmatprep.subr.mxu0 0.0
    %4041 = vmatpush1.msra.mxu0 0.0
    %4042 = vmatprep.subr.mxu0 0.0
    %4043 = vmatpush1.msra.mxu0 0.0
    %4044 = vmatprep.subr.mxu0 0.0
    %4045 = vmatpush1.msra.mxu0 0.0
    %4046 = vmatprep.subr.mxu0 0.0
    %4047 = vmatpush1.msra.mxu0 0.0
    %4048 = vmatprep.subr.mxu0 0.0
    %4049 = vmatpush1.msra.mxu0 0.0
    %4050 = vmatprep.subr.mxu0 0.0
    %4051 = vmatpush1.msra.mxu0 0.0
    %4052 = vmatprep.subr.mxu0 0.0
    %4053 = vmatpush1.msra.mxu0 0.0
    %4054 = vmatprep.subr.mxu0 0.0
    %4055 = vmatpush1.msra.mxu0 0.0
    %4056 = vmatprep.subr.mxu0 0.0
    %4057 = vmatpush1.msra.mxu0 0.0
    %4058 = vmatprep.subr.mxu0 0.0
    %4059 = vmatpush1.msra.mxu0 0.0
    %4060 = vmatprep.subr.mxu0 0.0
    %4061 = vmatpush1.msra.mxu0 0.0
    %4062 = vmatprep.subr.mxu0 0.0
    %4063 = vmatpush1.msra.mxu0 0.0
    %4064 = vmatprep.subr.mxu0 0.0
    %4065 = vmatpush1.msra.mxu0 0.0
    %4066 = vmatprep.subr.mxu0 0.0
    %4067 = vmatpush1.msra.mxu0 0.0
    %4068 = vmatprep.subr.mxu0 0.0
    %4069 = vmatpush1.msra.mxu0 0.0
    %4070 = vmatprep.subr.mxu0 0.0
    %4071 = vmatpush1.msra.mxu0 0.0
    %4072 = vmatprep.subr.mxu0 0.0
    %4073 = vmatpush1.msra.mxu0 0.0
    %4074 = vmatprep.subr.mxu0 0.0
    %4075 = vmatpush1.msra.mxu0 0.0
    %4076 = vmatprep.subr.mxu0 0.0
    %4077 = vmatpush1.msra.mxu0 0.0
    %4078 = vmatprep.mubr.f32.mxu0 0.0
    %4079 = vmatmul.mubr.f32.gmra.mrb[0].mxu0 %v4012
    %v4080 = vpop.f32.mrb[0].mxu0
    %v4081 = vadd.f32 %v3738, %v4080
    %v4082 = vpop.f32.mrb[0].mxu0
    %4083 = vdwg.mxu0
    %v4084 = vxor.u32 %v4081, 2147483648
    %v4085 = vmul.f32 %v4084, 1.442695
    %v4086 = vpow.pop %v4085
    %v4087 = vadd.f32 %v4086, 1.0
    %v4088 = vrcp.pop %v4087
    %v4089 = vmul.f32 1.0, %v4088
    %v4090 = vtanh.pop %v4081
    %v4091 = vmul.f32 %v4089, %v3078
    %4093 = vrot.lane.b32.xlu0 %v4090, 64
    %v4094 = vpop.permute.xlu0 %4093
    %v4096 = vmul.f32 %v4089, %v4094
    %4098 = vrot.lane.b32.xlu0 %v4096, 32
    %v4099 = vpop.permute.xlu0 %4098
    %v4101 = vadd.f32 %v4091, %v4099
    %v4102 = vtanh.pop %v4101
    %4104 = vrot.lane.b32.xlu0 %v4102, 64
    %v4105 = vpop.permute.xlu0 %4104
    %v4107 = vmul.f32 %v4089, %v4105
    %4109 = vrot.lane.b32.xlu0 %v4107, 32
    %v4110 = vpop.permute.xlu0 %4109
    %v4111 = vsel %vm783, %v4110, 0
    %4113 = vmatprep.subr.mxu0 0.0
    %4114 = vmatpush1.msra.mxu0 %v993
    %4115 = vmatprep.subr.mxu0 0.0
    %4116 = vmatpush1.msra.mxu0 %v994
    %4117 = vmatprep.subr.mxu0 0.0
    %4118 = vmatpush1.msra.mxu0 %v995
    %4119 = vmatprep.subr.mxu0 0.0
    %4120 = vmatpush1.msra.mxu0 %v996
    %4121 = vmatprep.subr.mxu0 0.0
    %4122 = vmatpush1.msra.mxu0 0.0
    %4123 = vmatprep.subr.mxu0 0.0
    %4124 = vmatpush1.msra.mxu0 0.0
    %4125 = vmatprep.subr.mxu0 0.0
    %4126 = vmatpush1.msra.mxu0 0.0
    %4127 = vmatprep.subr.mxu0 0.0
    %4128 = vmatpush1.msra.mxu0 0.0
    %4129 = vmatprep.subr.mxu0 0.0
    %4130 = vmatpush1.msra.mxu0 0.0
    %4131 = vmatprep.subr.mxu0 0.0
    %4132 = vmatpush1.msra.mxu0 0.0
    %4133 = vmatprep.subr.mxu0 0.0
    %4134 = vmatpush1.msra.mxu0 0.0
    %4135 = vmatprep.subr.mxu0 0.0
    %4136 = vmatpush1.msra.mxu0 0.0
    %4137 = vmatprep.subr.mxu0 0.0
    %4138 = vmatpush1.msra.mxu0 0.0
    %4139 = vmatprep.subr.mxu0 0.0
    %4140 = vmatpush1.msra.mxu0 0.0
    %4141 = vmatprep.subr.mxu0 0.0
    %4142 = vmatpush1.msra.mxu0 0.0
    %4143 = vmatprep.subr.mxu0 0.0
    %4144 = vmatpush1.msra.mxu0 0.0
    %4145 = vmatprep.subr.mxu0 0.0
    %4146 = vmatpush1.msra.mxu0 0.0
    %4147 = vmatprep.subr.mxu0 0.0
    %4148 = vmatpush1.msra.mxu0 0.0
    %4149 = vmatprep.subr.mxu0 0.0
    %4150 = vmatpush1.msra.mxu0 0.0
    %4151 = vmatprep.subr.mxu0 0.0
    %4152 = vmatpush1.msra.mxu0 0.0
    %4153 = vmatprep.subr.mxu0 0.0
    %4154 = vmatpush1.msra.mxu0 0.0
    %4155 = vmatprep.subr.mxu0 0.0
    %4156 = vmatpush1.msra.mxu0 0.0
    %4157 = vmatprep.subr.mxu0 0.0
    %4158 = vmatpush1.msra.mxu0 0.0
    %4159 = vmatprep.subr.mxu0 0.0
    %4160 = vmatpush1.msra.mxu0 0.0
    %4161 = vmatprep.subr.mxu0 0.0
    %4162 = vmatpush1.msra.mxu0 0.0
    %4163 = vmatprep.subr.mxu0 0.0
    %4164 = vmatpush1.msra.mxu0 0.0
    %4165 = vmatprep.subr.mxu0 0.0
    %4166 = vmatpush1.msra.mxu0 0.0
    %4167 = vmatprep.subr.mxu0 0.0
    %4168 = vmatpush1.msra.mxu0 0.0
    %4169 = vmatprep.subr.mxu0 0.0
    %4170 = vmatpush1.msra.mxu0 0.0
    %4171 = vmatprep.subr.mxu0 0.0
    %4172 = vmatpush1.msra.mxu0 0.0
    %4173 = vmatprep.subr.mxu0 0.0
    %4174 = vmatpush1.msra.mxu0 0.0
    %4175 = vmatprep.subr.mxu0 0.0
    %4176 = vmatpush1.msra.mxu0 0.0
    %4177 = vmatprep.mubr.f32.mxu0 0.0
    %4178 = vmatmul.mubr.f32.gmra.mrb[0].mxu0 %v4111
    %v4179 = vpop.f32.mrb[0].mxu0
    %v4180 = vadd.f32 %v3740, %v4179
    %v4181 = vpop.f32.mrb[0].mxu0
    %4182 = vdwg.mxu0
    %v4183 = vxor.u32 %v4180, 2147483648
    %v4184 = vmul.f32 %v4183, 1.442695
    %v4185 = vpow.pop %v4184
    %v4186 = vadd.f32 %v4185, 1.0
    %v4187 = vrcp.pop %v4186
    %v4188 = vmul.f32 1.0, %v4187
    %v4189 = vtanh.pop %v4180
    %v4190 = vmul.f32 %v4188, %v3177
    %4192 = vrot.lane.b32.xlu0 %v4189, 64
    %v4193 = vpop.permute.xlu0 %4192
    %v4195 = vmul.f32 %v4188, %v4193
    %4197 = vrot.lane.b32.xlu0 %v4195, 32
    %v4198 = vpop.permute.xlu0 %4197
    %v4200 = vadd.f32 %v4190, %v4198
    %v4201 = vtanh.pop %v4200
    %4203 = vrot.lane.b32.xlu0 %v4201, 64
    %v4204 = vpop.permute.xlu0 %4203
    %v4206 = vmul.f32 %v4188, %v4204
    %4208 = vrot.lane.b32.xlu0 %v4206, 32
    %v4209 = vpop.permute.xlu0 %4208
    %v4210 = vsel %vm783, %v4209, 0
    %4212 = vmatprep.subr.mxu0 0.0
    %4213 = vmatpush1.msra.mxu0 %v1101
    %4214 = vmatprep.subr.mxu0 0.0
    %4215 = vmatpush1.msra.mxu0 %v1102
    %4216 = vmatprep.subr.mxu0 0.0
    %4217 = vmatpush1.msra.mxu0 %v1103
    %4218 = vmatprep.subr.mxu0 0.0
    %4219 = vmatpush1.msra.mxu0 %v1104
    %4220 = vmatprep.subr.mxu0 0.0
    %4221 = vmatpush1.msra.mxu0 0.0
    %4222 = vmatprep.subr.mxu0 0.0
    %4223 = vmatpush1.msra.mxu0 0.0
    %4224 = vmatprep.subr.mxu0 0.0
    %4225 = vmatpush1.msra.mxu0 0.0
    %4226 = vmatprep.subr.mxu0 0.0
    %4227 = vmatpush1.msra.mxu0 0.0
    %4228 = vmatprep.subr.mxu0 0.0
    %4229 = vmatpush1.msra.mxu0 0.0
    %4230 = vmatprep.subr.mxu0 0.0
    %4231 = vmatpush1.msra.mxu0 0.0
    %4232 = vmatprep.subr.mxu0 0.0
    %4233 = vmatpush1.msra.mxu0 0.0
    %4234 = vmatprep.subr.mxu0 0.0
    %4235 = vmatpush1.msra.mxu0 0.0
    %4236 = vmatprep.subr.mxu0 0.0
    %4237 = vmatpush1.msra.mxu0 0.0
    %4238 = vmatprep.subr.mxu0 0.0
    %4239 = vmatpush1.msra.mxu0 0.0
    %4240 = vmatprep.subr.mxu0 0.0
    %4241 = vmatpush1.msra.mxu0 0.0
    %4242 = vmatprep.subr.mxu0 0.0
    %4243 = vmatpush1.msra.mxu0 0.0
    %4244 = vmatprep.subr.mxu0 0.0
    %4245 = vmatpush1.msra.mxu0 0.0
    %4246 = vmatprep.subr.mxu0 0.0
    %4247 = vmatpush1.msra.mxu0 0.0
    %4248 = vmatprep.subr.mxu0 0.0
    %4249 = vmatpush1.msra.mxu0 0.0
    %4250 = vmatprep.subr.mxu0 0.0
    %4251 = vmatpush1.msra.mxu0 0.0
    %4252 = vmatprep.subr.mxu0 0.0
    %4253 = vmatpush1.msra.mxu0 0.0
    %4254 = vmatprep.subr.mxu0 0.0
    %4255 = vmatpush1.msra.mxu0 0.0
    %4256 = vmatprep.subr.mxu0 0.0
    %4257 = vmatpush1.msra.mxu0 0.0
    %4258 = vmatprep.subr.mxu0 0.0
    %4259 = vmatpush1.msra.mxu0 0.0
    %4260 = vmatprep.subr.mxu0 0.0
    %4261 = vmatpush1.msra.mxu0 0.0
    %4262 = vmatprep.subr.mxu0 0.0
    %4263 = vmatpush1.msra.mxu0 0.0
    %4264 = vmatprep.subr.mxu0 0.0
    %4265 = vmatpush1.msra.mxu0 0.0
    %4266 = vmatprep.subr.mxu0 0.0
    %4267 = vmatpush1.msra.mxu0 0.0
    %4268 = vmatprep.subr.mxu0 0.0
    %4269 = vmatpush1.msra.mxu0 0.0
    %4270 = vmatprep.subr.mxu0 0.0
    %4271 = vmatpush1.msra.mxu0 0.0
    %4272 = vmatprep.subr.mxu0 0.0
    %4273 = vmatpush1.msra.mxu0 0.0
    %4274 = vmatprep.subr.mxu0 0.0
    %4275 = vmatpush1.msra.mxu0 0.0
    %4276 = vmatprep.mubr.f32.mxu0 0.0
    %4277 = vmatmul.mubr.f32.gmra.mrb[0].mxu0 %v4210
    %v4278 = vpop.f32.mrb[0].mxu0
    %v4279 = vadd.f32 %v3809, %v4278
    %v4280 = vpop.f32.mrb[0].mxu0
    %4281 = vdwg.mxu0
    %v4282 = vxor.u32 %v4279, 2147483648
    %v4283 = vmul.f32 %v4282, 1.442695
    %v4284 = vpow.pop %v4283
    %v4285 = vadd.f32 %v4284, 1.0
    %v4286 = vrcp.pop %v4285
    %v4287 = vmul.f32 1.0, %v4286
    %v4288 = vtanh.pop %v4279
    %v4289 = vmul.f32 %v4287, %v3276
    %4291 = vrot.lane.b32.xlu0 %v4288, 64
    %v4292 = vpop.permute.xlu0 %4291
    %v4294 = vmul.f32 %v4287, %v4292
    %4296 = vrot.lane.b32.xlu0 %v4294, 32
    %v4297 = vpop.permute.xlu0 %4296
    %v4299 = vadd.f32 %v4289, %v4297
    %v4300 = vtanh.pop %v4299
    %4302 = vrot.lane.b32.xlu0 %v4300, 64
    %v4303 = vpop.permute.xlu0 %4302
    %v4305 = vmul.f32 %v4287, %v4303
    %4307 = vrot.lane.b32.xlu0 %v4305, 32
    %v4308 = vpop.permute.xlu0 %4307
    %v4309 = vsel %vm783, %v4308, 0
    %4311 = vmatprep.subr.mxu0 0.0
    %4312 = vmatpush1.msra.mxu0 %v1209
    %4313 = vmatprep.subr.mxu0 0.0
    %4314 = vmatpush1.msra.mxu0 %v1210
    %4315 = vmatprep.subr.mxu0 0.0
    %4316 = vmatpush1.msra.mxu0 %v1211
    %4317 = vmatprep.subr.mxu0 0.0
    %4318 = vmatpush1.msra.mxu0 %v1212
    %4319 = vmatprep.subr.mxu0 0.0
    %4320 = vmatpush1.msra.mxu0 0.0
    %4321 = vmatprep.subr.mxu0 0.0
    %4322 = vmatpush1.msra.mxu0 0.0
    %4323 = vmatprep.subr.mxu0 0.0
    %4324 = vmatpush1.msra.mxu0 0.0
    %4325 = vmatprep.subr.mxu0 0.0
    %4326 = vmatpush1.msra.mxu0 0.0
    %4327 = vmatprep.subr.mxu0 0.0
    %4328 = vmatpush1.msra.mxu0 0.0
    %4329 = vmatprep.subr.mxu0 0.0
    %4330 = vmatpush1.msra.mxu0 0.0
    %4331 = vmatprep.subr.mxu0 0.0
    %4332 = vmatpush1.msra.mxu0 0.0
    %4333 = vmatprep.subr.mxu0 0.0
    %4334 = vmatpush1.msra.mxu0 0.0
    %4335 = vmatprep.subr.mxu0 0.0
    %4336 = vmatpush1.msra.mxu0 0.0
    %4337 = vmatprep.subr.mxu0 0.0
    %4338 = vmatpush1.msra.mxu0 0.0
    %4339 = vmatprep.subr.mxu0 0.0
    %4340 = vmatpush1.msra.mxu0 0.0
    %4341 = vmatprep.subr.mxu0 0.0
    %4342 = vmatpush1.msra.mxu0 0.0
    %4343 = vmatprep.subr.mxu0 0.0
    %4344 = vmatpush1.msra.mxu0 0.0
    %4345 = vmatprep.subr.mxu0 0.0
    %4346 = vmatpush1.msra.mxu0 0.0
    %4347 = vmatprep.subr.mxu0 0.0
    %4348 = vmatpush1.msra.mxu0 0.0
    %4349 = vmatprep.subr.mxu0 0.0
    %4350 = vmatpush1.msra.mxu0 0.0
    %4351 = vmatprep.subr.mxu0 0.0
    %4352 = vmatpush1.msra.mxu0 0.0
    %4353 = vmatprep.subr.mxu0 0.0
    %4354 = vmatpush1.msra.mxu0 0.0
    %4355 = vmatprep.subr.mxu0 0.0
    %4356 = vmatpush1.msra.mxu0 0.0
    %4357 = vmatprep.subr.mxu0 0.0
    %4358 = vmatpush1.msra.mxu0 0.0
    %4359 = vmatprep.subr.mxu0 0.0
    %4360 = vmatpush1.msra.mxu0 0.0
    %4361 = vmatprep.subr.mxu0 0.0
    %4362 = vmatpush1.msra.mxu0 0.0
    %4363 = vmatprep.subr.mxu0 0.0
    %4364 = vmatpush1.msra.mxu0 0.0
    %4365 = vmatprep.subr.mxu0 0.0
    %4366 = vmatpush1.msra.mxu0 0.0
    %4367 = vmatprep.subr.mxu0 0.0
    %4368 = vmatpush1.msra.mxu0 0.0
    %4369 = vmatprep.subr.mxu0 0.0
    %4370 = vmatpush1.msra.mxu0 0.0
    %4371 = vmatprep.subr.mxu0 0.0
    %4372 = vmatpush1.msra.mxu0 0.0
    %4373 = vmatprep.subr.mxu0 0.0
    %4374 = vmatpush1.msra.mxu0 0.0
    %4375 = vmatprep.mubr.f32.mxu0 0.0
    %4376 = vmatmul.mubr.f32.gmra.mrb[0].mxu0 %v4309
    %v4377 = vpop.f32.mrb[0].mxu0
    %v4378 = vadd.f32 %v3811, %v4377
    %v4379 = vpop.f32.mrb[0].mxu0
    %4380 = vdwg.mxu0
    %v4381 = vxor.u32 %v4378, 2147483648
    %v4382 = vmul.f32 %v4381, 1.442695
    %v4383 = vpow.pop %v4382
    %v4384 = vadd.f32 %v4383, 1.0
    %v4385 = vrcp.pop %v4384
    %v4386 = vmul.f32 1.0, %v4385
    %v4387 = vtanh.pop %v4378
    %v4388 = vmul.f32 %v4386, %v3375
    %4390 = vrot.lane.b32.xlu0 %v4387, 64
    %v4391 = vpop.permute.xlu0 %4390
    %v4393 = vmul.f32 %v4386, %v4391
    %4395 = vrot.lane.b32.xlu0 %v4393, 32
    %v4396 = vpop.permute.xlu0 %4395
    %v4398 = vadd.f32 %v4388, %v4396
    %v4399 = vtanh.pop %v4398
    %4401 = vrot.lane.b32.xlu0 %v4399, 64
    %v4402 = vpop.permute.xlu0 %4401
    %v4404 = vmul.f32 %v4386, %v4402
    %4406 = vrot.lane.b32.xlu0 %v4404, 32
    %v4407 = vpop.permute.xlu0 %4406
    %v4408 = vsel %vm783, %v4407, 0
    %4410 = vmatprep.subr.mxu0 0.0
    %4411 = vmatpush1.msra.mxu0 %v1317
    %4412 = vmatprep.subr.mxu0 0.0
    %4413 = vmatpush1.msra.mxu0 %v1318
    %4414 = vmatprep.subr.mxu0 0.0
    %4415 = vmatpush1.msra.mxu0 %v1319
    %4416 = vmatprep.subr.mxu0 0.0
    %4417 = vmatpush1.msra.mxu0 %v1320
    %4418 = vmatprep.subr.mxu0 0.0
    %4419 = vmatpush1.msra.mxu0 0.0
    %4420 = vmatprep.subr.mxu0 0.0
    %4421 = vmatpush1.msra.mxu0 0.0
    %4422 = vmatprep.subr.mxu0 0.0
    %4423 = vmatpush1.msra.mxu0 0.0
    %4424 = vmatprep.subr.mxu0 0.0
    %4425 = vmatpush1.msra.mxu0 0.0
    %4426 = vmatprep.subr.mxu0 0.0
    %4427 = vmatpush1.msra.mxu0 0.0
    %4428 = vmatprep.subr.mxu0 0.0
    %4429 = vmatpush1.msra.mxu0 0.0
    %4430 = vmatprep.subr.mxu0 0.0
    %4431 = vmatpush1.msra.mxu0 0.0
    %4432 = vmatprep.subr.mxu0 0.0
    %4433 = vmatpush1.msra.mxu0 0.0
    %4434 = vmatprep.subr.mxu0 0.0
    %4435 = vmatpush1.msra.mxu0 0.0
    %4436 = vmatprep.subr.mxu0 0.0
    %4437 = vmatpush1.msra.mxu0 0.0
    %4438 = vmatprep.subr.mxu0 0.0
    %4439 = vmatpush1.msra.mxu0 0.0
    %4440 = vmatprep.subr.mxu0 0.0
    %4441 = vmatpush1.msra.mxu0 0.0
    %4442 = vmatprep.subr.mxu0 0.0
    %4443 = vmatpush1.msra.mxu0 0.0
    %4444 = vmatprep.subr.mxu0 0.0
    %4445 = vmatpush1.msra.mxu0 0.0
    %4446 = vmatprep.subr.mxu0 0.0
    %4447 = vmatpush1.msra.mxu0 0.0
    %4448 = vmatprep.subr.mxu0 0.0
    %4449 = vmatpush1.msra.mxu0 0.0
    %4450 = vmatprep.subr.mxu0 0.0
    %4451 = vmatpush1.msra.mxu0 0.0
    %4452 = vmatprep.subr.mxu0 0.0
    %4453 = vmatpush1.msra.mxu0 0.0
    %4454 = vmatprep.subr.mxu0 0.0
    %4455 = vmatpush1.msra.mxu0 0.0
    %4456 = vmatprep.subr.mxu0 0.0
    %4457 = vmatpush1.msra.mxu0 0.0
    %4458 = vmatprep.subr.mxu0 0.0
    %4459 = vmatpush1.msra.mxu0 0.0
    %4460 = vmatprep.subr.mxu0 0.0
    %4461 = vmatpush1.msra.mxu0 0.0
    %4462 = vmatprep.subr.mxu0 0.0
    %4463 = vmatpush1.msra.mxu0 0.0
    %4464 = vmatprep.subr.mxu0 0.0
    %4465 = vmatpush1.msra.mxu0 0.0
    %4466 = vmatprep.subr.mxu0 0.0
    %4467 = vmatpush1.msra.mxu0 0.0
    %4468 = vmatprep.subr.mxu0 0.0
    %4469 = vmatpush1.msra.mxu0 0.0
    %4470 = vmatprep.subr.mxu0 0.0
    %4471 = vmatpush1.msra.mxu0 0.0
    %4472 = vmatprep.subr.mxu0 0.0
    %4473 = vmatpush1.msra.mxu0 0.0
    %4474 = vmatprep.mubr.f32.mxu0 0.0
    %4475 = vmatmul.mubr.f32.gmra.mrb[0].mxu0 %v4408
    %v4476 = vpop.f32.mrb[0].mxu0
    %v4477 = vadd.f32 %v3880, %v4476
    %v4478 = vpop.f32.mrb[0].mxu0
    %4479 = vdwg.mxu0
    %v4480 = vxor.u32 %v4477, 2147483648
    %v4481 = vmul.f32 %v4480, 1.442695
    %v4482 = vpow.pop %v4481
    %v4483 = vadd.f32 %v4482, 1.0
    %v4484 = vrcp.pop %v4483
    %v4485 = vmul.f32 1.0, %v4484
    %v4486 = vtanh.pop %v4477
    %v4487 = vmul.f32 %v4485, %v3474
    %4489 = vrot.lane.b32.xlu0 %v4486, 64
    %v4490 = vpop.permute.xlu0 %4489
    %v4492 = vmul.f32 %v4485, %v4490
    %4494 = vrot.lane.b32.xlu0 %v4492, 32
    %v4495 = vpop.permute.xlu0 %4494
    %v4497 = vadd.f32 %v4487, %v4495
    %v4498 = vtanh.pop %v4497
    %4500 = vrot.lane.b32.xlu0 %v4498, 64
    %v4501 = vpop.permute.xlu0 %4500
    %v4503 = vmul.f32 %v4485, %v4501
    %4505 = vrot.lane.b32.xlu0 %v4503, 32
    %v4506 = vpop.permute.xlu0 %4505
    %v4507 = vsel %vm783, %v4506, 0
    %4509 = vmatprep.subr.mxu0 0.0
    %4510 = vmatpush1.msra.mxu0 %v1425
    %4511 = vmatprep.subr.mxu0 0.0
    %4512 = vmatpush1.msra.mxu0 %v1426
    %4513 = vmatprep.subr.mxu0 0.0
    %4514 = vmatpush1.msra.mxu0 %v1427
    %4515 = vmatprep.subr.mxu0 0.0
    %4516 = vmatpush1.msra.mxu0 %v1428
    %4517 = vmatprep.subr.mxu0 0.0
    %4518 = vmatpush1.msra.mxu0 0.0
    %4519 = vmatprep.subr.mxu0 0.0
    %4520 = vmatpush1.msra.mxu0 0.0
    %4521 = vmatprep.subr.mxu0 0.0
    %4522 = vmatpush1.msra.mxu0 0.0
    %4523 = vmatprep.subr.mxu0 0.0
    %4524 = vmatpush1.msra.mxu0 0.0
    %4525 = vmatprep.subr.mxu0 0.0
    %4526 = vmatpush1.msra.mxu0 0.0
    %4527 = vmatprep.subr.mxu0 0.0
    %4528 = vmatpush1.msra.mxu0 0.0
    %4529 = vmatprep.subr.mxu0 0.0
    %4530 = vmatpush1.msra.mxu0 0.0
    %4531 = vmatprep.subr.mxu0 0.0
    %4532 = vmatpush1.msra.mxu0 0.0
    %4533 = vmatprep.subr.mxu0 0.0
    %4534 = vmatpush1.msra.mxu0 0.0
    %4535 = vmatprep.subr.mxu0 0.0
    %4536 = vmatpush1.msra.mxu0 0.0
    %4537 = vmatprep.subr.mxu0 0.0
    %4538 = vmatpush1.msra.mxu0 0.0
    %4539 = vmatprep.subr.mxu0 0.0
    %4540 = vmatpush1.msra.mxu0 0.0
    %4541 = vmatprep.subr.mxu0 0.0
    %4542 = vmatpush1.msra.mxu0 0.0
    %4543 = vmatprep.subr.mxu0 0.0
    %4544 = vmatpush1.msra.mxu0 0.0
    %4545 = vmatprep.subr.mxu0 0.0
    %4546 = vmatpush1.msra.mxu0 0.0
    %4547 = vmatprep.subr.mxu0 0.0
    %4548 = vmatpush1.msra.mxu0 0.0
    %4549 = vmatprep.subr.mxu0 0.0
    %4550 = vmatpush1.msra.mxu0 0.0
    %4551 = vmatprep.subr.mxu0 0.0
    %4552 = vmatpush1.msra.mxu0 0.0
    %4553 = vmatprep.subr.mxu0 0.0
    %4554 = vmatpush1.msra.mxu0 0.0
    %4555 = vmatprep.subr.mxu0 0.0
    %4556 = vmatpush1.msra.mxu0 0.0
    %4557 = vmatprep.subr.mxu0 0.0
    %4558 = vmatpush1.msra.mxu0 0.0
    %4559 = vmatprep.subr.mxu0 0.0
    %4560 = vmatpush1.msra.mxu0 0.0
    %4561 = vmatprep.subr.mxu0 0.0
    %4562 = vmatpush1.msra.mxu0 0.0
    %4563 = vmatprep.subr.mxu0 0.0
    %4564 = vmatpush1.msra.mxu0 0.0
    %4565 = vmatprep.subr.mxu0 0.0
    %4566 = vmatpush1.msra.mxu0 0.0
    %4567 = vmatprep.subr.mxu0 0.0
    %4568 = vmatpush1.msra.mxu0 0.0
    %4569 = vmatprep.subr.mxu0 0.0
    %4570 = vmatpush1.msra.mxu0 0.0
    %4571 = vmatprep.subr.mxu0 0.0
    %4572 = vmatpush1.msra.mxu0 0.0
    %4573 = vmatprep.mubr.f32.mxu0 0.0
    %4574 = vmatmul.mubr.f32.gmra.mrb[0].mxu0 %v4507
    %v4575 = vpop.f32.mrb[0].mxu0
    %v4576 = vadd.f32 %v3882, %v4575
    %v4577 = vpop.f32.mrb[0].mxu0
    %4578 = vdwg.mxu0
    %v4579 = vxor.u32 %v4576, 2147483648
    %v4580 = vmul.f32 %v4579, 1.442695
    %v4581 = vpow.pop %v4580
    %v4582 = vadd.f32 %v4581, 1.0
    %v4583 = vrcp.pop %v4582
    %v4584 = vmul.f32 1.0, %v4583
    %v4585 = vtanh.pop %v4576
    %v4586 = vmul.f32 %v4584, %v3573
    %4588 = vrot.lane.b32.xlu0 %v4585, 64
    %v4589 = vpop.permute.xlu0 %4588
    %v4591 = vmul.f32 %v4584, %v4589
    %4593 = vrot.lane.b32.xlu0 %v4591, 32
    %v4594 = vpop.permute.xlu0 %4593
    %v4596 = vadd.f32 %v4586, %v4594
    %v4597 = vtanh.pop %v4596
    %4599 = vrot.lane.b32.xlu0 %v4597, 64
    %v4600 = vpop.permute.xlu0 %4599
    %v4602 = vmul.f32 %v4584, %v4600
    %4604 = vrot.lane.b32.xlu0 %v4008, 64
    %v4605 = vpop.permute.xlu0 %4604
    %4607 = vrot.lane.b32.xlu0 %v4107, 96
    %v4608 = vpop.permute.xlu0 %4607
    %4611 = vrot.lane.b32.xlu0 %v4404, 64
    %v4612 = vpop.permute.xlu0 %4611
    %4614 = vrot.lane.b32.xlu0 %v4503, 96
    %v4615 = vpop.permute.xlu0 %4614
    %v4617 = vsel %vm783, %v3912, %v4605
    %v4618 = vsel %vm1547, %v4617, %v4608
    %v4619 = vsel %vm1549, %v4618, %v4206
    %v4620 = vsel %vm783, %v4308, %v4612
    %v4621 = vsel %vm1547, %v4620, %v4615
    %v4622 = vsel %vm1549, %v4621, %v4602
    %4623 = vmatprep.subr.mxu0 %v149
    %4624 = vmatpush1.msra.mxu0 %v148
    %4625 = vmatprep.subr.mxu0 %v157
    %4626 = vmatpush1.msra.mxu0 %v156
    %4627 = vmatprep.subr.mxu0 %v165
    %4628 = vmatpush1.msra.mxu0 %v164
    %4629 = vmatprep.subr.mxu0 %v173
    %4630 = vmatpush1.msra.mxu0 %v172
    %4631 = vmatprep.subr.mxu0 %v181
    %4632 = vmatpush1.msra.mxu0 %v180
    %4633 = vmatprep.subr.mxu0 %v189
    %4634 = vmatpush1.msra.mxu0 %v188
    %4635 = vmatprep.subr.mxu0 %v197
    %4636 = vmatpush1.msra.mxu0 %v196
    %4637 = vmatprep.subr.mxu0 %v205
    %4638 = vmatpush1.msra.mxu0 %v204
    %4639 = vmatprep.subr.mxu0 %v213
    %4640 = vmatpush1.msra.mxu0 %v212
    %4641 = vmatprep.subr.mxu0 %v221
    %4642 = vmatpush1.msra.mxu0 %v220
    %4643 = vmatprep.subr.mxu0 %v229
    %4644 = vmatpush1.msra.mxu0 %v228
    %4645 = vmatprep.subr.mxu0 %v237
    %4646 = vmatpush1.msra.mxu0 %v236
    %4647 = vmatprep.subr.mxu0 %v245
    %4648 = vmatpush1.msra.mxu0 %v244
    %4649 = vmatprep.subr.mxu0 %v253
    %4650 = vmatpush1.msra.mxu0 %v252
    %4651 = vmatprep.subr.mxu0 %v261
    %4652 = vmatpush1.msra.mxu0 %v260
    %4653 = vmatprep.subr.mxu0 %v269
    %4654 = vmatpush1.msra.mxu0 %v268
    %4655 = vmatprep.subr.mxu0 %v277
    %4656 = vmatpush1.msra.mxu0 %v276
    %4657 = vmatprep.subr.mxu0 %v285
    %4658 = vmatpush1.msra.mxu0 %v284
    %4659 = vmatprep.subr.mxu0 %v293
    %4660 = vmatpush1.msra.mxu0 %v292
    %4661 = vmatprep.subr.mxu0 %v301
    %4662 = vmatpush1.msra.mxu0 %v300
    %4663 = vmatprep.subr.mxu0 %v309
    %4664 = vmatpush1.msra.mxu0 %v308
    %4665 = vmatprep.subr.mxu0 %v317
    %4666 = vmatpush1.msra.mxu0 %v316
    %4667 = vmatprep.subr.mxu0 %v325
    %4668 = vmatpush1.msra.mxu0 %v324
    %4669 = vmatprep.subr.mxu0 %v333
    %4670 = vmatpush1.msra.mxu0 %v332
    %4671 = vmatprep.subr.mxu0 %v341
    %4672 = vmatpush1.msra.mxu0 %v340
    %4673 = vmatprep.subr.mxu0 %v349
    %4674 = vmatpush1.msra.mxu0 %v348
    %4675 = vmatprep.subr.mxu0 %v357
    %4676 = vmatpush1.msra.mxu0 %v356
    %4677 = vmatprep.subr.mxu0 %v365
    %4678 = vmatpush1.msra.mxu0 %v364
    %4679 = vmatprep.subr.mxu0 %v373
    %4680 = vmatpush1.msra.mxu0 %v372
    %4681 = vmatprep.subr.mxu0 %v381
    %4682 = vmatpush1.msra.mxu0 %v380
    %4683 = vmatprep.subr.mxu0 %v389
    %4684 = vmatpush1.msra.mxu0 %v388
    %4685 = vmatprep.subr.mxu0 %v397
    %4686 = vmatpush1.msra.mxu0 %v396
    %4687 = vmatprep.mubr.f32.mxu0 %v4622
    %4688 = vmatmul.mubr.f32.gmra.mrb[0].mxu0 %v4619
    %v4689 = vpop.f32.mrb[0].mxu0
    %v4690 = vadd.f32 %v408, %v4689
    %v4691 = vpop.f32.mrb[0].mxu0
    %v4692 = vadd.f32 %v412, %v4691
    %4693 = vdwg.mxu0
    %4694 = vmatprep.subr.mxu0 %v151
    %4695 = vmatpush1.msra.mxu0 %v150
    %4696 = vmatprep.subr.mxu0 %v159
    %4697 = vmatpush1.msra.mxu0 %v158
    %4698 = vmatprep.subr.mxu0 %v167
    %4699 = vmatpush1.msra.mxu0 %v166
    %4700 = vmatprep.subr.mxu0 %v175
    %4701 = vmatpush1.msra.mxu0 %v174
    %4702 = vmatprep.subr.mxu0 %v183
    %4703 = vmatpush1.msra.mxu0 %v182
    %4704 = vmatprep.subr.mxu0 %v191
    %4705 = vmatpush1.msra.mxu0 %v190
    %4706 = vmatprep.subr.mxu0 %v199
    %4707 = vmatpush1.msra.mxu0 %v198
    %4708 = vmatprep.subr.mxu0 %v207
    %4709 = vmatpush1.msra.mxu0 %v206
    %4710 = vmatprep.subr.mxu0 %v215
    %4711 = vmatpush1.msra.mxu0 %v214
    %4712 = vmatprep.subr.mxu0 %v223
    %4713 = vmatpush1.msra.mxu0 %v222
    %4714 = vmatprep.subr.mxu0 %v231
    %4715 = vmatpush1.msra.mxu0 %v230
    %4716 = vmatprep.subr.mxu0 %v239
    %4717 = vmatpush1.msra.mxu0 %v238
    %4718 = vmatprep.subr.mxu0 %v247
    %4719 = vmatpush1.msra.mxu0 %v246
    %4720 = vmatprep.subr.mxu0 %v255
    %4721 = vmatpush1.msra.mxu0 %v254
    %4722 = vmatprep.subr.mxu0 %v263
    %4723 = vmatpush1.msra.mxu0 %v262
    %4724 = vmatprep.subr.mxu0 %v271
    %4725 = vmatpush1.msra.mxu0 %v270
    %4726 = vmatprep.subr.mxu0 %v279
    %4727 = vmatpush1.msra.mxu0 %v278
    %4728 = vmatprep.subr.mxu0 %v287
    %4729 = vmatpush1.msra.mxu0 %v286
    %4730 = vmatprep.subr.mxu0 %v295
    %4731 = vmatpush1.msra.mxu0 %v294
    %4732 = vmatprep.subr.mxu0 %v303
    %4733 = vmatpush1.msra.mxu0 %v302
    %4734 = vmatprep.subr.mxu0 %v311
    %4735 = vmatpush1.msra.mxu0 %v310
    %4736 = vmatprep.subr.mxu0 %v319
    %4737 = vmatpush1.msra.mxu0 %v318
    %4738 = vmatprep.subr.mxu0 %v327
    %4739 = vmatpush1.msra.mxu0 %v326
    %4740 = vmatprep.subr.mxu0 %v335
    %4741 = vmatpush1.msra.mxu0 %v334
    %4742 = vmatprep.subr.mxu0 %v343
    %4743 = vmatpush1.msra.mxu0 %v342
    %4744 = vmatprep.subr.mxu0 %v351
    %4745 = vmatpush1.msra.mxu0 %v350
    %4746 = vmatprep.subr.mxu0 %v359
    %4747 = vmatpush1.msra.mxu0 %v358
    %4748 = vmatprep.subr.mxu0 %v367
    %4749 = vmatpush1.msra.mxu0 %v366
    %4750 = vmatprep.subr.mxu0 %v375
    %4751 = vmatpush1.msra.mxu0 %v374
    %4752 = vmatprep.subr.mxu0 %v383
    %4753 = vmatpush1.msra.mxu0 %v382
    %4754 = vmatprep.subr.mxu0 %v391
    %4755 = vmatpush1.msra.mxu0 %v390
    %4756 = vmatprep.subr.mxu0 %v399
    %4757 = vmatpush1.msra.mxu0 %v398
    %4758 = vmatprep.mubr.f32.mxu0 %v4622
    %4759 = vmatmul.mubr.f32.gmra.mrb[0].mxu0 %v4619
    %v4760 = vpop.f32.mrb[0].mxu0
    %v4761 = vadd.f32 %v416, %v4760
    %v4762 = vpop.f32.mrb[0].mxu0
    %v4763 = vadd.f32 %v420, %v4762
    %4764 = vdwg.mxu0
    %4765 = vmatprep.subr.mxu0 %v153
    %4766 = vmatpush1.msra.mxu0 %v152
    %4767 = vmatprep.subr.mxu0 %v161
    %4768 = vmatpush1.msra.mxu0 %v160
    %4769 = vmatprep.subr.mxu0 %v169
    %4770 = vmatpush1.msra.mxu0 %v168
    %4771 = vmatprep.subr.mxu0 %v177
    %4772 = vmatpush1.msra.mxu0 %v176
    %4773 = vmatprep.subr.mxu0 %v185
    %4774 = vmatpush1.msra.mxu0 %v184
    %4775 = vmatprep.subr.mxu0 %v193
    %4776 = vmatpush1.msra.mxu0 %v192
    %4777 = vmatprep.subr.mxu0 %v201
    %4778 = vmatpush1.msra.mxu0 %v200
    %4779 = vmatprep.subr.mxu0 %v209
    %4780 = vmatpush1.msra.mxu0 %v208
    %4781 = vmatprep.subr.mxu0 %v217
    %4782 = vmatpush1.msra.mxu0 %v216
    %4783 = vmatprep.subr.mxu0 %v225
    %4784 = vmatpush1.msra.mxu0 %v224
    %4785 = vmatprep.subr.mxu0 %v233
    %4786 = vmatpush1.msra.mxu0 %v232
    %4787 = vmatprep.subr.mxu0 %v241
    %4788 = vmatpush1.msra.mxu0 %v240
    %4789 = vmatprep.subr.mxu0 %v249
    %4790 = vmatpush1.msra.mxu0 %v248
    %4791 = vmatprep.subr.mxu0 %v257
    %4792 = vmatpush1.msra.mxu0 %v256
    %4793 = vmatprep.subr.mxu0 %v265
    %4794 = vmatpush1.msra.mxu0 %v264
    %4795 = vmatprep.subr.mxu0 %v273
    %4796 = vmatpush1.msra.mxu0 %v272
    %4797 = vmatprep.subr.mxu0 %v281
    %4798 = vmatpush1.msra.mxu0 %v280
    %4799 = vmatprep.subr.mxu0 %v289
    %4800 = vmatpush1.msra.mxu0 %v288
    %4801 = vmatprep.subr.mxu0 %v297
    %4802 = vmatpush1.msra.mxu0 %v296
    %4803 = vmatprep.subr.mxu0 %v305
    %4804 = vmatpush1.msra.mxu0 %v304
    %4805 = vmatprep.subr.mxu0 %v313
    %4806 = vmatpush1.msra.mxu0 %v312
    %4807 = vmatprep.subr.mxu0 %v321
    %4808 = vmatpush1.msra.mxu0 %v320
    %4809 = vmatprep.subr.mxu0 %v329
    %4810 = vmatpush1.msra.mxu0 %v328
    %4811 = vmatprep.subr.mxu0 %v337
    %4812 = vmatpush1.msra.mxu0 %v336
    %4813 = vmatprep.subr.mxu0 %v345
    %4814 = vmatpush1.msra.mxu0 %v344
    %4815 = vmatprep.subr.mxu0 %v353
    %4816 = vmatpush1.msra.mxu0 %v352
    %4817 = vmatprep.subr.mxu0 %v361
    %4818 = vmatpush1.msra.mxu0 %v360
    %4819 = vmatprep.subr.mxu0 %v369
    %4820 = vmatpush1.msra.mxu0 %v368
    %4821 = vmatprep.subr.mxu0 %v377
    %4822 = vmatpush1.msra.mxu0 %v376
    %4823 = vmatprep.subr.mxu0 %v385
    %4824 = vmatpush1.msra.mxu0 %v384
    %4825 = vmatprep.subr.mxu0 %v393
    %4826 = vmatpush1.msra.mxu0 %v392
    %4827 = vmatprep.subr.mxu0 %v401
    %4828 = vmatpush1.msra.mxu0 %v400
    %4829 = vmatprep.mubr.f32.mxu0 %v4622
    %4830 = vmatmul.mubr.f32.gmra.mrb[0].mxu0 %v4619
    %v4831 = vpop.f32.mrb[0].mxu0
    %v4832 = vadd.f32 %v424, %v4831
    %v4833 = vpop.f32.mrb[0].mxu0
    %v4834 = vadd.f32 %v428, %v4833
    %4835 = vdwg.mxu0
    %4836 = vmatprep.subr.mxu0 %v155
    %4837 = vmatpush1.msra.mxu0 %v154
    %4838 = vmatprep.subr.mxu0 %v163
    %4839 = vmatpush1.msra.mxu0 %v162
    %4840 = vmatprep.subr.mxu0 %v171
    %4841 = vmatpush1.msra.mxu0 %v170
    %4842 = vmatprep.subr.mxu0 %v179
    %4843 = vmatpush1.msra.mxu0 %v178
    %4844 = vmatprep.subr.mxu0 %v187
    %4845 = vmatpush1.msra.mxu0 %v186
    %4846 = vmatprep.subr.mxu0 %v195
    %4847 = vmatpush1.msra.mxu0 %v194
    %4848 = vmatprep.subr.mxu0 %v203
    %4849 = vmatpush1.msra.mxu0 %v202
    %4850 = vmatprep.subr.mxu0 %v211
    %4851 = vmatpush1.msra.mxu0 %v210
    %4852 = vmatprep.subr.mxu0 %v219
    %4853 = vmatpush1.msra.mxu0 %v218
    %4854 = vmatprep.subr.mxu0 %v227
    %4855 = vmatpush1.msra.mxu0 %v226
    %4856 = vmatprep.subr.mxu0 %v235
    %4857 = vmatpush1.msra.mxu0 %v234
    %4858 = vmatprep.subr.mxu0 %v243
    %4859 = vmatpush1.msra.mxu0 %v242
    %4860 = vmatprep.subr.mxu0 %v251
    %4861 = vmatpush1.msra.mxu0 %v250
    %4862 = vmatprep.subr.mxu0 %v259
    %4863 = vmatpush1.msra.mxu0 %v258
    %4864 = vmatprep.subr.mxu0 %v267
    %4865 = vmatpush1.msra.mxu0 %v266
    %4866 = vmatprep.subr.mxu0 %v275
    %4867 = vmatpush1.msra.mxu0 %v274
    %4868 = vmatprep.subr.mxu0 %v283
    %4869 = vmatpush1.msra.mxu0 %v282
    %4870 = vmatprep.subr.mxu0 %v291
    %4871 = vmatpush1.msra.mxu0 %v290
    %4872 = vmatprep.subr.mxu0 %v299
    %4873 = vmatpush1.msra.mxu0 %v298
    %4874 = vmatprep.subr.mxu0 %v307
    %4875 = vmatpush1.msra.mxu0 %v306
    %4876 = vmatprep.subr.mxu0 %v315
    %4877 = vmatpush1.msra.mxu0 %v314
    %4878 = vmatprep.subr.mxu0 %v323
    %4879 = vmatpush1.msra.mxu0 %v322
    %4880 = vmatprep.subr.mxu0 %v331
    %4881 = vmatpush1.msra.mxu0 %v330
    %4882 = vmatprep.subr.mxu0 %v339
    %4883 = vmatpush1.msra.mxu0 %v338
    %4884 = vmatprep.subr.mxu0 %v347
    %4885 = vmatpush1.msra.mxu0 %v346
    %4886 = vmatprep.subr.mxu0 %v355
    %4887 = vmatpush1.msra.mxu0 %v354
    %4888 = vmatprep.subr.mxu0 %v363
    %4889 = vmatpush1.msra.mxu0 %v362
    %4890 = vmatprep.subr.mxu0 %v371
    %4891 = vmatpush1.msra.mxu0 %v370
    %4892 = vmatprep.subr.mxu0 %v379
    %4893 = vmatpush1.msra.mxu0 %v378
    %4894 = vmatprep.subr.mxu0 %v387
    %4895 = vmatpush1.msra.mxu0 %v386
    %4896 = vmatprep.subr.mxu0 %v395
    %4897 = vmatpush1.msra.mxu0 %v394
    %4898 = vmatprep.subr.mxu0 %v403
    %4899 = vmatpush1.msra.mxu0 %v402
    %4900 = vmatprep.mubr.f32.mxu0 %v4622
    %4901 = vmatmul.mubr.f32.gmra.mrb[0].mxu0 %v4619
    %v4902 = vpop.f32.mrb[0].mxu0
    %v4903 = vadd.f32 %v432, %v4902
    %v4904 = vpop.f32.mrb[0].mxu0
    %v4905 = vadd.f32 %v436, %v4904
    %4906 = vdwg.mxu0
    %v4907 = vmul.f32 %v119, %v744
    %v4908 = vadd.f32 %v4907, %v4690
    %v4909 = vxor.u32 %v4908, 2147483648
    %v4910 = vmul.f32 %v4909, 1.442695
    %v4911 = vpow.pop %v4910
    %v4912 = vadd.f32 %v4911, 1.0
    %v4913 = vrcp.pop %v4912
    %v4914 = vmul.f32 1.0, %v4913
    %v4915 = vtanh.pop %v4908
    %v4916 = vmul.f32 %v4914, %v3903
    %4918 = vrot.lane.b32.xlu0 %v4915, 64
    %v4919 = vpop.permute.xlu0 %4918
    %v4921 = vmul.f32 %v4914, %v4919
    %4923 = vrot.lane.b32.xlu0 %v4921, 32
    %v4924 = vpop.permute.xlu0 %4923
    %v4926 = vadd.f32 %v4916, %v4924
    %v4927 = vtanh.pop %v4926
    %4929 = vrot.lane.b32.xlu0 %v4927, 64
    %v4930 = vpop.permute.xlu0 %4929
    %v4932 = vmul.f32 %v4914, %v4930
    %4934 = vrot.lane.b32.xlu0 %v4932, 32
    %v4935 = vpop.permute.xlu0 %4934
    %v4936 = vsel %vm783, %v4935, 0
    %4938 = vmatprep.subr.mxu0 0.0
    %4939 = vmatpush1.msra.mxu0 %v776
    %4940 = vmatprep.subr.mxu0 0.0
    %4941 = vmatpush1.msra.mxu0 %v777
    %4942 = vmatprep.subr.mxu0 0.0
    %4943 = vmatpush1.msra.mxu0 %v778
    %4944 = vmatprep.subr.mxu0 0.0
    %4945 = vmatpush1.msra.mxu0 %v779
    %4946 = vmatprep.subr.mxu0 0.0
    %4947 = vmatpush1.msra.mxu0 0.0
    %4948 = vmatprep.subr.mxu0 0.0
    %4949 = vmatpush1.msra.mxu0 0.0
    %4950 = vmatprep.subr.mxu0 0.0
    %4951 = vmatpush1.msra.mxu0 0.0
    %4952 = vmatprep.subr.mxu0 0.0
    %4953 = vmatpush1.msra.mxu0 0.0
    %4954 = vmatprep.subr.mxu0 0.0
    %4955 = vmatpush1.msra.mxu0 0.0
    %4956 = vmatprep.subr.mxu0 0.0
    %4957 = vmatpush1.msra.mxu0 0.0
    %4958 = vmatprep.subr.mxu0 0.0
    %4959 = vmatpush1.msra.mxu0 0.0
    %4960 = vmatprep.subr.mxu0 0.0
    %4961 = vmatpush1.msra.mxu0 0.0
    %4962 = vmatprep.subr.mxu0 0.0
    %4963 = vmatpush1.msra.mxu0 0.0
    %4964 = vmatprep.subr.mxu0 0.0
    %4965 = vmatpush1.msra.mxu0 0.0
    %4966 = vmatprep.subr.mxu0 0.0
    %4967 = vmatpush1.msra.mxu0 0.0
    %4968 = vmatprep.subr.mxu0 0.0
    %4969 = vmatpush1.msra.mxu0 0.0
    %4970 = vmatprep.subr.mxu0 0.0
    %4971 = vmatpush1.msra.mxu0 0.0
    %4972 = vmatprep.subr.mxu0 0.0
    %4973 = vmatpush1.msra.mxu0 0.0
    %4974 = vmatprep.subr.mxu0 0.0
    %4975 = vmatpush1.msra.mxu0 0.0
    %4976 = vmatprep.subr.mxu0 0.0
    %4977 = vmatpush1.msra.mxu0 0.0
    %4978 = vmatprep.subr.mxu0 0.0
    %4979 = vmatpush1.msra.mxu0 0.0
    %4980 = vmatprep.subr.mxu0 0.0
    %4981 = vmatpush1.msra.mxu0 0.0
    %4982 = vmatprep.subr.mxu0 0.0
    %4983 = vmatpush1.msra.mxu0 0.0
    %4984 = vmatprep.subr.mxu0 0.0
    %4985 = vmatpush1.msra.mxu0 0.0
    %4986 = vmatprep.subr.mxu0 0.0
    %4987 = vmatpush1.msra.mxu0 0.0
    %4988 = vmatprep.subr.mxu0 0.0
    %4989 = vmatpush1.msra.mxu0 0.0
    %4990 = vmatprep.subr.mxu0 0.0
    %4991 = vmatpush1.msra.mxu0 0.0
    %4992 = vmatprep.subr.mxu0 0.0
    %4993 = vmatpush1.msra.mxu0 0.0
    %4994 = vmatprep.subr.mxu0 0.0
    %4995 = vmatpush1.msra.mxu0 0.0
    %4996 = vmatprep.subr.mxu0 0.0
    %4997 = vmatpush1.msra.mxu0 0.0
    %4998 = vmatprep.subr.mxu0 0.0
    %4999 = vmatpush1.msra.mxu0 0.0
    %5000 = vmatprep.subr.mxu0 0.0
    %5001 = vmatpush1.msra.mxu0 0.0
    %5002 = vmatprep.mubr.f32.mxu0 0.0
    %5003 = vmatmul.mubr.f32.gmra.mrb[0].mxu0 %v4936
    %v5004 = vpop.f32.mrb[0].mxu0
    %v5005 = vadd.f32 %v4692, %v5004
    %v5006 = vpop.f32.mrb[0].mxu0
    %5007 = vdwg.mxu0
    %v5008 = vxor.u32 %v5005, 2147483648
    %v5009 = vmul.f32 %v5008, 1.442695
    %v5010 = vpow.pop %v5009
    %v5011 = vadd.f32 %v5010, 1.0
    %v5012 = vrcp.pop %v5011
    %v5013 = vmul.f32 1.0, %v5012
    %v5014 = vtanh.pop %v5005
    %v5015 = vmul.f32 %v5013, %v4002
    %5017 = vrot.lane.b32.xlu0 %v5014, 64
    %v5018 = vpop.permute.xlu0 %5017
    %v5020 = vmul.f32 %v5013, %v5018
    %5022 = vrot.lane.b32.xlu0 %v5020, 32
    %v5023 = vpop.permute.xlu0 %5022
    %v5025 = vadd.f32 %v5015, %v5023
    %v5026 = vtanh.pop %v5025
    %5028 = vrot.lane.b32.xlu0 %v5026, 64
    %v5029 = vpop.permute.xlu0 %5028
    %v5031 = vmul.f32 %v5013, %v5029
    %5033 = vrot.lane.b32.xlu0 %v5031, 32
    %v5034 = vpop.permute.xlu0 %5033
    %v5035 = vsel %vm783, %v5034, 0
    %5037 = vmatprep.subr.mxu0 0.0
    %5038 = vmatpush1.msra.mxu0 %v885
    %5039 = vmatprep.subr.mxu0 0.0
    %5040 = vmatpush1.msra.mxu0 %v886
    %5041 = vmatprep.subr.mxu0 0.0
    %5042 = vmatpush1.msra.mxu0 %v887
    %5043 = vmatprep.subr.mxu0 0.0
    %5044 = vmatpush1.msra.mxu0 %v888
    %5045 = vmatprep.subr.mxu0 0.0
    %5046 = vmatpush1.msra.mxu0 0.0
    %5047 = vmatprep.subr.mxu0 0.0
    %5048 = vmatpush1.msra.mxu0 0.0
    %5049 = vmatprep.subr.mxu0 0.0
    %5050 = vmatpush1.msra.mxu0 0.0
    %5051 = vmatprep.subr.mxu0 0.0
    %5052 = vmatpush1.msra.mxu0 0.0
    %5053 = vmatprep.subr.mxu0 0.0
    %5054 = vmatpush1.msra.mxu0 0.0
    %5055 = vmatprep.subr.mxu0 0.0
    %5056 = vmatpush1.msra.mxu0 0.0
    %5057 = vmatprep.subr.mxu0 0.0
    %5058 = vmatpush1.msra.mxu0 0.0
    %5059 = vmatprep.subr.mxu0 0.0
    %5060 = vmatpush1.msra.mxu0 0.0
    %5061 = vmatprep.subr.mxu0 0.0
    %5062 = vmatpush1.msra.mxu0 0.0
    %5063 = vmatprep.subr.mxu0 0.0
    %5064 = vmatpush1.msra.mxu0 0.0
    %5065 = vmatprep.subr.mxu0 0.0
    %5066 = vmatpush1.msra.mxu0 0.0
    %5067 = vmatprep.subr.mxu0 0.0
    %5068 = vmatpush1.msra.mxu0 0.0
    %5069 = vmatprep.subr.mxu0 0.0
    %5070 = vmatpush1.msra.mxu0 0.0
    %5071 = vmatprep.subr.mxu0 0.0
    %5072 = vmatpush1.msra.mxu0 0.0
    %5073 = vmatprep.subr.mxu0 0.0
    %5074 = vmatpush1.msra.mxu0 0.0
    %5075 = vmatprep.subr.mxu0 0.0
    %5076 = vmatpush1.msra.mxu0 0.0
    %5077 = vmatprep.subr.mxu0 0.0
    %5078 = vmatpush1.msra.mxu0 0.0
    %5079 = vmatprep.subr.mxu0 0.0
    %5080 = vmatpush1.msra.mxu0 0.0
    %5081 = vmatprep.subr.mxu0 0.0
    %5082 = vmatpush1.msra.mxu0 0.0
    %5083 = vmatprep.subr.mxu0 0.0
    %5084 = vmatpush1.msra.mxu0 0.0
    %5085 = vmatprep.subr.mxu0 0.0
    %5086 = vmatpush1.msra.mxu0 0.0
    %5087 = vmatprep.subr.mxu0 0.0
    %5088 = vmatpush1.msra.mxu0 0.0
    %5089 = vmatprep.subr.mxu0 0.0
    %5090 = vmatpush1.msra.mxu0 0.0
    %5091 = vmatprep.subr.mxu0 0.0
    %5092 = vmatpush1.msra.mxu0 0.0
    %5093 = vmatprep.subr.mxu0 0.0
    %5094 = vmatpush1.msra.mxu0 0.0
    %5095 = vmatprep.subr.mxu0 0.0
    %5096 = vmatpush1.msra.mxu0 0.0
    %5097 = vmatprep.subr.mxu0 0.0
    %5098 = vmatpush1.msra.mxu0 0.0
    %5099 = vmatprep.subr.mxu0 0.0
    %5100 = vmatpush1.msra.mxu0 0.0
    %5101 = vmatprep.mubr.f32.mxu0 0.0
    %5102 = vmatmul.mubr.f32.gmra.mrb[0].mxu0 %v5035
    %v5103 = vpop.f32.mrb[0].mxu0
    %v5104 = vadd.f32 %v4761, %v5103
    %v5105 = vpop.f32.mrb[0].mxu0
    %5106 = vdwg.mxu0
    %v5107 = vxor.u32 %v5104, 2147483648
    %v5108 = vmul.f32 %v5107, 1.442695
    %v5109 = vpow.pop %v5108
    %v5110 = vadd.f32 %v5109, 1.0
    %v5111 = vrcp.pop %v5110
    %v5112 = vmul.f32 1.0, %v5111
    %v5113 = vtanh.pop %v5104
    %v5114 = vmul.f32 %v5112, %v4101
    %5116 = vrot.lane.b32.xlu0 %v5113, 64
    %v5117 = vpop.permute.xlu0 %5116
    %v5119 = vmul.f32 %v5112, %v5117
    %5121 = vrot.lane.b32.xlu0 %v5119, 32
    %v5122 = vpop.permute.xlu0 %5121
    %v5124 = vadd.f32 %v5114, %v5122
    %v5125 = vtanh.pop %v5124
    %5127 = vrot.lane.b32.xlu0 %v5125, 64
    %v5128 = vpop.permute.xlu0 %5127
    %v5130 = vmul.f32 %v5112, %v5128
    %5132 = vrot.lane.b32.xlu0 %v5130, 32
    %v5133 = vpop.permute.xlu0 %5132
    %v5134 = vsel %vm783, %v5133, 0
    %5136 = vmatprep.subr.mxu0 0.0
    %5137 = vmatpush1.msra.mxu0 %v993
    %5138 = vmatprep.subr.mxu0 0.0
    %5139 = vmatpush1.msra.mxu0 %v994
    %5140 = vmatprep.subr.mxu0 0.0
    %5141 = vmatpush1.msra.mxu0 %v995
    %5142 = vmatprep.subr.mxu0 0.0
    %5143 = vmatpush1.msra.mxu0 %v996
    %5144 = vmatprep.subr.mxu0 0.0
    %5145 = vmatpush1.msra.mxu0 0.0
    %5146 = vmatprep.subr.mxu0 0.0
    %5147 = vmatpush1.msra.mxu0 0.0
    %5148 = vmatprep.subr.mxu0 0.0
    %5149 = vmatpush1.msra.mxu0 0.0
    %5150 = vmatprep.subr.mxu0 0.0
    %5151 = vmatpush1.msra.mxu0 0.0
    %5152 = vmatprep.subr.mxu0 0.0
    %5153 = vmatpush1.msra.mxu0 0.0
    %5154 = vmatprep.subr.mxu0 0.0
    %5155 = vmatpush1.msra.mxu0 0.0
    %5156 = vmatprep.subr.mxu0 0.0
    %5157 = vmatpush1.msra.mxu0 0.0
    %5158 = vmatprep.subr.mxu0 0.0
    %5159 = vmatpush1.msra.mxu0 0.0
    %5160 = vmatprep.subr.mxu0 0.0
    %5161 = vmatpush1.msra.mxu0 0.0
    %5162 = vmatprep.subr.mxu0 0.0
    %5163 = vmatpush1.msra.mxu0 0.0
    %5164 = vmatprep.subr.mxu0 0.0
    %5165 = vmatpush1.msra.mxu0 0.0
    %5166 = vmatprep.subr.mxu0 0.0
    %5167 = vmatpush1.msra.mxu0 0.0
    %5168 = vmatprep.subr.mxu0 0.0
    %5169 = vmatpush1.msra.mxu0 0.0
    %5170 = vmatprep.subr.mxu0 0.0
    %5171 = vmatpush1.msra.mxu0 0.0
    %5172 = vmatprep.subr.mxu0 0.0
    %5173 = vmatpush1.msra.mxu0 0.0
    %5174 = vmatprep.subr.mxu0 0.0
    %5175 = vmatpush1.msra.mxu0 0.0
    %5176 = vmatprep.subr.mxu0 0.0
    %5177 = vmatpush1.msra.mxu0 0.0
    %5178 = vmatprep.subr.mxu0 0.0
    %5179 = vmatpush1.msra.mxu0 0.0
    %5180 = vmatprep.subr.mxu0 0.0
    %5181 = vmatpush1.msra.mxu0 0.0
    %5182 = vmatprep.subr.mxu0 0.0
    %5183 = vmatpush1.msra.mxu0 0.0
    %5184 = vmatprep.subr.mxu0 0.0
    %5185 = vmatpush1.msra.mxu0 0.0
    %5186 = vmatprep.subr.mxu0 0.0
    %5187 = vmatpush1.msra.mxu0 0.0
    %5188 = vmatprep.subr.mxu0 0.0
    %5189 = vmatpush1.msra.mxu0 0.0
    %5190 = vmatprep.subr.mxu0 0.0
    %5191 = vmatpush1.msra.mxu0 0.0
    %5192 = vmatprep.subr.mxu0 0.0
    %5193 = vmatpush1.msra.mxu0 0.0
    %5194 = vmatprep.subr.mxu0 0.0
    %5195 = vmatpush1.msra.mxu0 0.0
    %5196 = vmatprep.subr.mxu0 0.0
    %5197 = vmatpush1.msra.mxu0 0.0
    %5198 = vmatprep.subr.mxu0 0.0
    %5199 = vmatpush1.msra.mxu0 0.0
    %5200 = vmatprep.mubr.f32.mxu0 0.0
    %5201 = vmatmul.mubr.f32.gmra.mrb[0].mxu0 %v5134
    %v5202 = vpop.f32.mrb[0].mxu0
    %v5203 = vadd.f32 %v4763, %v5202
    %v5204 = vpop.f32.mrb[0].mxu0
    %5205 = vdwg.mxu0
    %v5206 = vxor.u32 %v5203, 2147483648
    %v5207 = vmul.f32 %v5206, 1.442695
    %v5208 = vpow.pop %v5207
    %v5209 = vadd.f32 %v5208, 1.0
    %v5210 = vrcp.pop %v5209
    %v5211 = vmul.f32 1.0, %v5210
    %v5212 = vtanh.pop %v5203
    %v5213 = vmul.f32 %v5211, %v4200
    %5215 = vrot.lane.b32.xlu0 %v5212, 64
    %v5216 = vpop.permute.xlu0 %5215
    %v5218 = vmul.f32 %v5211, %v5216
    %5220 = vrot.lane.b32.xlu0 %v5218, 32
    %v5221 = vpop.permute.xlu0 %5220
    %v5223 = vadd.f32 %v5213, %v5221
    %v5224 = vtanh.pop %v5223
    %5226 = vrot.lane.b32.xlu0 %v5224, 64
    %v5227 = vpop.permute.xlu0 %5226
    %v5229 = vmul.f32 %v5211, %v5227
    %5231 = vrot.lane.b32.xlu0 %v5229, 32
    %v5232 = vpop.permute.xlu0 %5231
    %v5233 = vsel %vm783, %v5232, 0
    %5235 = vmatprep.subr.mxu0 0.0
    %5236 = vmatpush1.msra.mxu0 %v1101
    %5237 = vmatprep.subr.mxu0 0.0
    %5238 = vmatpush1.msra.mxu0 %v1102
    %5239 = vmatprep.subr.mxu0 0.0
    %5240 = vmatpush1.msra.mxu0 %v1103
    %5241 = vmatprep.subr.mxu0 0.0
    %5242 = vmatpush1.msra.mxu0 %v1104
    %5243 = vmatprep.subr.mxu0 0.0
    %5244 = vmatpush1.msra.mxu0 0.0
    %5245 = vmatprep.subr.mxu0 0.0
    %5246 = vmatpush1.msra.mxu0 0.0
    %5247 = vmatprep.subr.mxu0 0.0
    %5248 = vmatpush1.msra.mxu0 0.0
    %5249 = vmatprep.subr.mxu0 0.0
    %5250 = vmatpush1.msra.mxu0 0.0
    %5251 = vmatprep.subr.mxu0 0.0
    %5252 = vmatpush1.msra.mxu0 0.0
    %5253 = vmatprep.subr.mxu0 0.0
    %5254 = vmatpush1.msra.mxu0 0.0
    %5255 = vmatprep.subr.mxu0 0.0
    %5256 = vmatpush1.msra.mxu0 0.0
    %5257 = vmatprep.subr.mxu0 0.0
    %5258 = vmatpush1.msra.mxu0 0.0
    %5259 = vmatprep.subr.mxu0 0.0
    %5260 = vmatpush1.msra.mxu0 0.0
    %5261 = vmatprep.subr.mxu0 0.0
    %5262 = vmatpush1.msra.mxu0 0.0
    %5263 = vmatprep.subr.mxu0 0.0
    %5264 = vmatpush1.msra.mxu0 0.0
    %5265 = vmatprep.subr.mxu0 0.0
    %5266 = vmatpush1.msra.mxu0 0.0
    %5267 = vmatprep.subr.mxu0 0.0
    %5268 = vmatpush1.msra.mxu0 0.0
    %5269 = vmatprep.subr.mxu0 0.0
    %5270 = vmatpush1.msra.mxu0 0.0
    %5271 = vmatprep.subr.mxu0 0.0
    %5272 = vmatpush1.msra.mxu0 0.0
    %5273 = vmatprep.subr.mxu0 0.0
    %5274 = vmatpush1.msra.mxu0 0.0
    %5275 = vmatprep.subr.mxu0 0.0
    %5276 = vmatpush1.msra.mxu0 0.0
    %5277 = vmatprep.subr.mxu0 0.0
    %5278 = vmatpush1.msra.mxu0 0.0
    %5279 = vmatprep.subr.mxu0 0.0
    %5280 = vmatpush1.msra.mxu0 0.0
    %5281 = vmatprep.subr.mxu0 0.0
    %5282 = vmatpush1.msra.mxu0 0.0
    %5283 = vmatprep.subr.mxu0 0.0
    %5284 = vmatpush1.msra.mxu0 0.0
    %5285 = vmatprep.subr.mxu0 0.0
    %5286 = vmatpush1.msra.mxu0 0.0
    %5287 = vmatprep.subr.mxu0 0.0
    %5288 = vmatpush1.msra.mxu0 0.0
    %5289 = vmatprep.subr.mxu0 0.0
    %5290 = vmatpush1.msra.mxu0 0.0
    %5291 = vmatprep.subr.mxu0 0.0
    %5292 = vmatpush1.msra.mxu0 0.0
    %5293 = vmatprep.subr.mxu0 0.0
    %5294 = vmatpush1.msra.mxu0 0.0
    %5295 = vmatprep.subr.mxu0 0.0
    %5296 = vmatpush1.msra.mxu0 0.0
    %5297 = vmatprep.subr.mxu0 0.0
    %5298 = vmatpush1.msra.mxu0 0.0
    %5299 = vmatprep.mubr.f32.mxu0 0.0
    %5300 = vmatmul.mubr.f32.gmra.mrb[0].mxu0 %v5233
    %v5301 = vpop.f32.mrb[0].mxu0
    %v5302 = vadd.f32 %v4832, %v5301
    %v5303 = vpop.f32.mrb[0].mxu0
    %5304 = vdwg.mxu0
    %v5305 = vxor.u32 %v5302, 2147483648
    %v5306 = vmul.f32 %v5305, 1.442695
    %v5307 = vpow.pop %v5306
    %v5308 = vadd.f32 %v5307, 1.0
    %v5309 = vrcp.pop %v5308
    %v5310 = vmul.f32 1.0, %v5309
    %v5311 = vtanh.pop %v5302
    %v5312 = vmul.f32 %v5310, %v4299
    %5314 = vrot.lane.b32.xlu0 %v5311, 64
    %v5315 = vpop.permute.xlu0 %5314
    %v5317 = vmul.f32 %v5310, %v5315
    %5319 = vrot.lane.b32.xlu0 %v5317, 32
    %v5320 = vpop.permute.xlu0 %5319
    %v5322 = vadd.f32 %v5312, %v5320
    %v5323 = vtanh.pop %v5322
    %5325 = vrot.lane.b32.xlu0 %v5323, 64
    %v5326 = vpop.permute.xlu0 %5325
    %v5328 = vmul.f32 %v5310, %v5326
    %5330 = vrot.lane.b32.xlu0 %v5328, 32
    %v5331 = vpop.permute.xlu0 %5330
    %v5332 = vsel %vm783, %v5331, 0
    %5334 = vmatprep.subr.mxu0 0.0
    %5335 = vmatpush1.msra.mxu0 %v1209
    %5336 = vmatprep.subr.mxu0 0.0
    %5337 = vmatpush1.msra.mxu0 %v1210
    %5338 = vmatprep.subr.mxu0 0.0
    %5339 = vmatpush1.msra.mxu0 %v1211
    %5340 = vmatprep.subr.mxu0 0.0
    %5341 = vmatpush1.msra.mxu0 %v1212
    %5342 = vmatprep.subr.mxu0 0.0
    %5343 = vmatpush1.msra.mxu0 0.0
    %5344 = vmatprep.subr.mxu0 0.0
    %5345 = vmatpush1.msra.mxu0 0.0
    %5346 = vmatprep.subr.mxu0 0.0
    %5347 = vmatpush1.msra.mxu0 0.0
    %5348 = vmatprep.subr.mxu0 0.0
    %5349 = vmatpush1.msra.mxu0 0.0
    %5350 = vmatprep.subr.mxu0 0.0
    %5351 = vmatpush1.msra.mxu0 0.0
    %5352 = vmatprep.subr.mxu0 0.0
    %5353 = vmatpush1.msra.mxu0 0.0
    %5354 = vmatprep.subr.mxu0 0.0
    %5355 = vmatpush1.msra.mxu0 0.0
    %5356 = vmatprep.subr.mxu0 0.0
    %5357 = vmatpush1.msra.mxu0 0.0
    %5358 = vmatprep.subr.mxu0 0.0
    %5359 = vmatpush1.msra.mxu0 0.0
    %5360 = vmatprep.subr.mxu0 0.0
    %5361 = vmatpush1.msra.mxu0 0.0
    %5362 = vmatprep.subr.mxu0 0.0
    %5363 = vmatpush1.msra.mxu0 0.0
    %5364 = vmatprep.subr.mxu0 0.0
    %5365 = vmatpush1.msra.mxu0 0.0
    %5366 = vmatprep.subr.mxu0 0.0
    %5367 = vmatpush1.msra.mxu0 0.0
    %5368 = vmatprep.subr.mxu0 0.0
    %5369 = vmatpush1.msra.mxu0 0.0
    %5370 = vmatprep.subr.mxu0 0.0
    %5371 = vmatpush1.msra.mxu0 0.0
    %5372 = vmatprep.subr.mxu0 0.0
    %5373 = vmatpush1.msra.mxu0 0.0
    %5374 = vmatprep.subr.mxu0 0.0
    %5375 = vmatpush1.msra.mxu0 0.0
    %5376 = vmatprep.subr.mxu0 0.0
    %5377 = vmatpush1.msra.mxu0 0.0
    %5378 = vmatprep.subr.mxu0 0.0
    %5379 = vmatpush1.msra.mxu0 0.0
    %5380 = vmatprep.subr.mxu0 0.0
    %5381 = vmatpush1.msra.mxu0 0.0
    %5382 = vmatprep.subr.mxu0 0.0
    %5383 = vmatpush1.msra.mxu0 0.0
    %5384 = vmatprep.subr.mxu0 0.0
    %5385 = vmatpush1.msra.mxu0 0.0
    %5386 = vmatprep.subr.mxu0 0.0
    %5387 = vmatpush1.msra.mxu0 0.0
    %5388 = vmatprep.subr.mxu0 0.0
    %5389 = vmatpush1.msra.mxu0 0.0
    %5390 = vmatprep.subr.mxu0 0.0
    %5391 = vmatpush1.msra.mxu0 0.0
    %5392 = vmatprep.subr.mxu0 0.0
    %5393 = vmatpush1.msra.mxu0 0.0
    %5394 = vmatprep.subr.mxu0 0.0
    %5395 = vmatpush1.msra.mxu0 0.0
    %5396 = vmatprep.subr.mxu0 0.0
    %5397 = vmatpush1.msra.mxu0 0.0
    %5398 = vmatprep.mubr.f32.mxu0 0.0
    %5399 = vmatmul.mubr.f32.gmra.mrb[0].mxu0 %v5332
    %v5400 = vpop.f32.mrb[0].mxu0
    %v5401 = vadd.f32 %v4834, %v5400
    %v5402 = vpop.f32.mrb[0].mxu0
    %5403 = vdwg.mxu0
    %v5404 = vxor.u32 %v5401, 2147483648
    %v5405 = vmul.f32 %v5404, 1.442695
    %v5406 = vpow.pop %v5405
    %v5407 = vadd.f32 %v5406, 1.0
    %v5408 = vrcp.pop %v5407
    %v5409 = vmul.f32 1.0, %v5408
    %v5410 = vtanh.pop %v5401
    %v5411 = vmul.f32 %v5409, %v4398
    %5413 = vrot.lane.b32.xlu0 %v5410, 64
    %v5414 = vpop.permute.xlu0 %5413
    %v5416 = vmul.f32 %v5409, %v5414
    %5418 = vrot.lane.b32.xlu0 %v5416, 32
    %v5419 = vpop.permute.xlu0 %5418
    %v5421 = vadd.f32 %v5411, %v5419
    %v5422 = vtanh.pop %v5421
    %5424 = vrot.lane.b32.xlu0 %v5422, 64
    %v5425 = vpop.permute.xlu0 %5424
    %v5427 = vmul.f32 %v5409, %v5425
    %5429 = vrot.lane.b32.xlu0 %v5427, 32
    %v5430 = vpop.permute.xlu0 %5429
    %v5431 = vsel %vm783, %v5430, 0
    %5433 = vmatprep.subr.mxu0 0.0
    %5434 = vmatpush1.msra.mxu0 %v1317
    %5435 = vmatprep.subr.mxu0 0.0
    %5436 = vmatpush1.msra.mxu0 %v1318
    %5437 = vmatprep.subr.mxu0 0.0
    %5438 = vmatpush1.msra.mxu0 %v1319
    %5439 = vmatprep.subr.mxu0 0.0
    %5440 = vmatpush1.msra.mxu0 %v1320
    %5441 = vmatprep.subr.mxu0 0.0
    %5442 = vmatpush1.msra.mxu0 0.0
    %5443 = vmatprep.subr.mxu0 0.0
    %5444 = vmatpush1.msra.mxu0 0.0
    %5445 = vmatprep.subr.mxu0 0.0
    %5446 = vmatpush1.msra.mxu0 0.0
    %5447 = vmatprep.subr.mxu0 0.0
    %5448 = vmatpush1.msra.mxu0 0.0
    %5449 = vmatprep.subr.mxu0 0.0
    %5450 = vmatpush1.msra.mxu0 0.0
    %5451 = vmatprep.subr.mxu0 0.0
    %5452 = vmatpush1.msra.mxu0 0.0
    %5453 = vmatprep.subr.mxu0 0.0
    %5454 = vmatpush1.msra.mxu0 0.0
    %5455 = vmatprep.subr.mxu0 0.0
    %5456 = vmatpush1.msra.mxu0 0.0
    %5457 = vmatprep.subr.mxu0 0.0
    %5458 = vmatpush1.msra.mxu0 0.0
    %5459 = vmatprep.subr.mxu0 0.0
    %5460 = vmatpush1.msra.mxu0 0.0
    %5461 = vmatprep.subr.mxu0 0.0
    %5462 = vmatpush1.msra.mxu0 0.0
    %5463 = vmatprep.subr.mxu0 0.0
    %5464 = vmatpush1.msra.mxu0 0.0
    %5465 = vmatprep.subr.mxu0 0.0
    %5466 = vmatpush1.msra.mxu0 0.0
    %5467 = vmatprep.subr.mxu0 0.0
    %5468 = vmatpush1.msra.mxu0 0.0
    %5469 = vmatprep.subr.mxu0 0.0
    %5470 = vmatpush1.msra.mxu0 0.0
    %5471 = vmatprep.subr.mxu0 0.0
    %5472 = vmatpush1.msra.mxu0 0.0
    %5473 = vmatprep.subr.mxu0 0.0
    %5474 = vmatpush1.msra.mxu0 0.0
    %5475 = vmatprep.subr.mxu0 0.0
    %5476 = vmatpush1.msra.mxu0 0.0
    %5477 = vmatprep.subr.mxu0 0.0
    %5478 = vmatpush1.msra.mxu0 0.0
    %5479 = vmatprep.subr.mxu0 0.0
    %5480 = vmatpush1.msra.mxu0 0.0
    %5481 = vmatprep.subr.mxu0 0.0
    %5482 = vmatpush1.msra.mxu0 0.0
    %5483 = vmatprep.subr.mxu0 0.0
    %5484 = vmatpush1.msra.mxu0 0.0
    %5485 = vmatprep.subr.mxu0 0.0
    %5486 = vmatpush1.msra.mxu0 0.0
    %5487 = vmatprep.subr.mxu0 0.0
    %5488 = vmatpush1.msra.mxu0 0.0
    %5489 = vmatprep.subr.mxu0 0.0
    %5490 = vmatpush1.msra.mxu0 0.0
    %5491 = vmatprep.subr.mxu0 0.0
    %5492 = vmatpush1.msra.mxu0 0.0
    %5493 = vmatprep.subr.mxu0 0.0
    %5494 = vmatpush1.msra.mxu0 0.0
    %5495 = vmatprep.subr.mxu0 0.0
    %5496 = vmatpush1.msra.mxu0 0.0
    %5497 = vmatprep.mubr.f32.mxu0 0.0
    %5498 = vmatmul.mubr.f32.gmra.mrb[0].mxu0 %v5431
    %v5499 = vpop.f32.mrb[0].mxu0
    %v5500 = vadd.f32 %v4903, %v5499
    %v5501 = vpop.f32.mrb[0].mxu0
    %5502 = vdwg.mxu0
    %v5503 = vxor.u32 %v5500, 2147483648
    %v5504 = vmul.f32 %v5503, 1.442695
    %v5505 = vpow.pop %v5504
    %v5506 = vadd.f32 %v5505, 1.0
    %v5507 = vrcp.pop %v5506
    %v5508 = vmul.f32 1.0, %v5507
    %v5509 = vtanh.pop %v5500
    %v5510 = vmul.f32 %v5508, %v4497
    %5512 = vrot.lane.b32.xlu0 %v5509, 64
    %v5513 = vpop.permute.xlu0 %5512
    %v5515 = vmul.f32 %v5508, %v5513
    %5517 = vrot.lane.b32.xlu0 %v5515, 32
    %v5518 = vpop.permute.xlu0 %5517
    %v5520 = vadd.f32 %v5510, %v5518
    %v5521 = vtanh.pop %v5520
    %5523 = vrot.lane.b32.xlu0 %v5521, 64
    %v5524 = vpop.permute.xlu0 %5523
    %v5526 = vmul.f32 %v5508, %v5524
    %5528 = vrot.lane.b32.xlu0 %v5526, 32
    %v5529 = vpop.permute.xlu0 %5528
    %v5530 = vsel %vm783, %v5529, 0
    %5532 = vmatprep.subr.mxu0 0.0
    %5533 = vmatpush1.msra.mxu0 %v1425
    %5534 = vmatprep.subr.mxu0 0.0
    %5535 = vmatpush1.msra.mxu0 %v1426
    %5536 = vmatprep.subr.mxu0 0.0
    %5537 = vmatpush1.msra.mxu0 %v1427
    %5538 = vmatprep.subr.mxu0 0.0
    %5539 = vmatpush1.msra.mxu0 %v1428
    %5540 = vmatprep.subr.mxu0 0.0
    %5541 = vmatpush1.msra.mxu0 0.0
    %5542 = vmatprep.subr.mxu0 0.0
    %5543 = vmatpush1.msra.mxu0 0.0
    %5544 = vmatprep.subr.mxu0 0.0
    %5545 = vmatpush1.msra.mxu0 0.0
    %5546 = vmatprep.subr.mxu0 0.0
    %5547 = vmatpush1.msra.mxu0 0.0
    %5548 = vmatprep.subr.mxu0 0.0
    %5549 = vmatpush1.msra.mxu0 0.0
    %5550 = vmatprep.subr.mxu0 0.0
    %5551 = vmatpush1.msra.mxu0 0.0
    %5552 = vmatprep.subr.mxu0 0.0
    %5553 = vmatpush1.msra.mxu0 0.0
    %5554 = vmatprep.subr.mxu0 0.0
    %5555 = vmatpush1.msra.mxu0 0.0
    %5556 = vmatprep.subr.mxu0 0.0
    %5557 = vmatpush1.msra.mxu0 0.0
    %5558 = vmatprep.subr.mxu0 0.0
    %5559 = vmatpush1.msra.mxu0 0.0
    %5560 = vmatprep.subr.mxu0 0.0
    %5561 = vmatpush1.msra.mxu0 0.0
    %5562 = vmatprep.subr.mxu0 0.0
    %5563 = vmatpush1.msra.mxu0 0.0
    %5564 = vmatprep.subr.mxu0 0.0
    %5565 = vmatpush1.msra.mxu0 0.0
    %5566 = vmatprep.subr.mxu0 0.0
    %5567 = vmatpush1.msra.mxu0 0.0
    %5568 = vmatprep.subr.mxu0 0.0
    %5569 = vmatpush1.msra.mxu0 0.0
    %5570 = vmatprep.subr.mxu0 0.0
    %5571 = vmatpush1.msra.mxu0 0.0
    %5572 = vmatprep.subr.mxu0 0.0
    %5573 = vmatpush1.msra.mxu0 0.0
    %5574 = vmatprep.subr.mxu0 0.0
    %5575 = vmatpush1.msra.mxu0 0.0
    %5576 = vmatprep.subr.mxu0 0.0
    %5577 = vmatpush1.msra.mxu0 0.0
    %5578 = vmatprep.subr.mxu0 0.0
    %5579 = vmatpush1.msra.mxu0 0.0
    %5580 = vmatprep.subr.mxu0 0.0
    %5581 = vmatpush1.msra.mxu0 0.0
    %5582 = vmatprep.subr.mxu0 0.0
    %5583 = vmatpush1.msra.mxu0 0.0
    %5584 = vmatprep.subr.mxu0 0.0
    %5585 = vmatpush1.msra.mxu0 0.0
    %5586 = vmatprep.subr.mxu0 0.0
    %5587 = vmatpush1.msra.mxu0 0.0
    %5588 = vmatprep.subr.mxu0 0.0
    %5589 = vmatpush1.msra.mxu0 0.0
    %5590 = vmatprep.subr.mxu0 0.0
    %5591 = vmatpush1.msra.mxu0 0.0
    %5592 = vmatprep.subr.mxu0 0.0
    %5593 = vmatpush1.msra.mxu0 0.0
    %5594 = vmatprep.subr.mxu0 0.0
    %5595 = vmatpush1.msra.mxu0 0.0
    %5596 = vmatprep.mubr.f32.mxu0 0.0
    %5597 = vmatmul.mubr.f32.gmra.mrb[0].mxu0 %v5530
    %v5598 = vpop.f32.mrb[0].mxu0
    %v5599 = vadd.f32 %v4905, %v5598
    %v5600 = vpop.f32.mrb[0].mxu0
    %5601 = vdwg.mxu0
    %v5602 = vxor.u32 %v5599, 2147483648
    %v5603 = vmul.f32 %v5602, 1.442695
    %v5604 = vpow.pop %v5603
    %v5605 = vadd.f32 %v5604, 1.0
    %v5606 = vrcp.pop %v5605
    %v5607 = vmul.f32 1.0, %v5606
    %v5608 = vtanh.pop %v5599
    %v5609 = vmul.f32 %v5607, %v4596
    %5611 = vrot.lane.b32.xlu0 %v5608, 64
    %v5612 = vpop.permute.xlu0 %5611
    %v5614 = vmul.f32 %v5607, %v5612
    %5616 = vrot.lane.b32.xlu0 %v5614, 32
    %v5617 = vpop.permute.xlu0 %5616
    %v5619 = vadd.f32 %v5609, %v5617
    %v5620 = vtanh.pop %v5619
    %5622 = vrot.lane.b32.xlu0 %v5620, 64
    %v5623 = vpop.permute.xlu0 %5622
    %v5625 = vmul.f32 %v5607, %v5623
    %5627 = vrot.lane.b32.xlu0 %v5031, 64
    %v5628 = vpop.permute.xlu0 %5627
    %5630 = vrot.lane.b32.xlu0 %v5130, 96
    %v5631 = vpop.permute.xlu0 %5630
    %5634 = vrot.lane.b32.xlu0 %v5427, 64
    %v5635 = vpop.permute.xlu0 %5634
    %5637 = vrot.lane.b32.xlu0 %v5526, 96
    %v5638 = vpop.permute.xlu0 %5637
    %v5640 = vsel %vm783, %v4935, %v5628
    %v5641 = vsel %vm1547, %v5640, %v5631
    %v5642 = vsel %vm1549, %v5641, %v5229
    %v5643 = vsel %vm783, %v5331, %v5635
    %v5644 = vsel %vm1547, %v5643, %v5638
    %v5645 = vsel %vm1549, %v5644, %v5625
    %5646 = vmatprep.subr.mxu0 %v149
    %5647 = vmatpush1.msra.mxu0 %v148
    %5648 = vmatprep.subr.mxu0 %v157
    %5649 = vmatpush1.msra.mxu0 %v156
    %5650 = vmatprep.subr.mxu0 %v165
    %5651 = vmatpush1.msra.mxu0 %v164
    %5652 = vmatprep.subr.mxu0 %v173
    %5653 = vmatpush1.msra.mxu0 %v172
    %5654 = vmatprep.subr.mxu0 %v181
    %5655 = vmatpush1.msra.mxu0 %v180
    %5656 = vmatprep.subr.mxu0 %v189
    %5657 = vmatpush1.msra.mxu0 %v188
    %5658 = vmatprep.subr.mxu0 %v197
    %5659 = vmatpush1.msra.mxu0 %v196
    %5660 = vmatprep.subr.mxu0 %v205
    %5661 = vmatpush1.msra.mxu0 %v204
    %5662 = vmatprep.subr.mxu0 %v213
    %5663 = vmatpush1.msra.mxu0 %v212
    %5664 = vmatprep.subr.mxu0 %v221
    %5665 = vmatpush1.msra.mxu0 %v220
    %5666 = vmatprep.subr.mxu0 %v229
    %5667 = vmatpush1.msra.mxu0 %v228
    %5668 = vmatprep.subr.mxu0 %v237
    %5669 = vmatpush1.msra.mxu0 %v236
    %5670 = vmatprep.subr.mxu0 %v245
    %5671 = vmatpush1.msra.mxu0 %v244
    %5672 = vmatprep.subr.mxu0 %v253
    %5673 = vmatpush1.msra.mxu0 %v252
    %5674 = vmatprep.subr.mxu0 %v261
    %5675 = vmatpush1.msra.mxu0 %v260
    %5676 = vmatprep.subr.mxu0 %v269
    %5677 = vmatpush1.msra.mxu0 %v268
    %5678 = vmatprep.subr.mxu0 %v277
    %5679 = vmatpush1.msra.mxu0 %v276
    %5680 = vmatprep.subr.mxu0 %v285
    %5681 = vmatpush1.msra.mxu0 %v284
    %5682 = vmatprep.subr.mxu0 %v293
    %5683 = vmatpush1.msra.mxu0 %v292
    %5684 = vmatprep.subr.mxu0 %v301
    %5685 = vmatpush1.msra.mxu0 %v300
    %5686 = vmatprep.subr.mxu0 %v309
    %5687 = vmatpush1.msra.mxu0 %v308
    %5688 = vmatprep.subr.mxu0 %v317
    %5689 = vmatpush1.msra.mxu0 %v316
    %5690 = vmatprep.subr.mxu0 %v325
    %5691 = vmatpush1.msra.mxu0 %v324
    %5692 = vmatprep.subr.mxu0 %v333
    %5693 = vmatpush1.msra.mxu0 %v332
    %5694 = vmatprep.subr.mxu0 %v341
    %5695 = vmatpush1.msra.mxu0 %v340
    %5696 = vmatprep.subr.mxu0 %v349
    %5697 = vmatpush1.msra.mxu0 %v348
    %5698 = vmatprep.subr.mxu0 %v357
    %5699 = vmatpush1.msra.mxu0 %v356
    %5700 = vmatprep.subr.mxu0 %v365
    %5701 = vmatpush1.msra.mxu0 %v364
    %5702 = vmatprep.subr.mxu0 %v373
    %5703 = vmatpush1.msra.mxu0 %v372
    %5704 = vmatprep.subr.mxu0 %v381
    %5705 = vmatpush1.msra.mxu0 %v380
    %5706 = vmatprep.subr.mxu0 %v389
    %5707 = vmatpush1.msra.mxu0 %v388
    %5708 = vmatprep.subr.mxu0 %v397
    %5709 = vmatpush1.msra.mxu0 %v396
    %5710 = vmatprep.mubr.f32.mxu0 %v5645
    %5711 = vmatmul.mubr.f32.gmra.mrb[0].mxu0 %v5642
    %v5712 = vpop.f32.mrb[0].mxu0
    %v5713 = vadd.f32 %v408, %v5712
    %v5714 = vpop.f32.mrb[0].mxu0
    %v5715 = vadd.f32 %v412, %v5714
    %5716 = vdwg.mxu0
    %5717 = vmatprep.subr.mxu0 %v151
    %5718 = vmatpush1.msra.mxu0 %v150
    %5719 = vmatprep.subr.mxu0 %v159
    %5720 = vmatpush1.msra.mxu0 %v158
    %5721 = vmatprep.subr.mxu0 %v167
    %5722 = vmatpush1.msra.mxu0 %v166
    %5723 = vmatprep.subr.mxu0 %v175
    %5724 = vmatpush1.msra.mxu0 %v174
    %5725 = vmatprep.subr.mxu0 %v183
    %5726 = vmatpush1.msra.mxu0 %v182
    %5727 = vmatprep.subr.mxu0 %v191
    %5728 = vmatpush1.msra.mxu0 %v190
    %5729 = vmatprep.subr.mxu0 %v199
    %5730 = vmatpush1.msra.mxu0 %v198
    %5731 = vmatprep.subr.mxu0 %v207
    %5732 = vmatpush1.msra.mxu0 %v206
    %5733 = vmatprep.subr.mxu0 %v215
    %5734 = vmatpush1.msra.mxu0 %v214
    %5735 = vmatprep.subr.mxu0 %v223
    %5736 = vmatpush1.msra.mxu0 %v222
    %5737 = vmatprep.subr.mxu0 %v231
    %5738 = vmatpush1.msra.mxu0 %v230
    %5739 = vmatprep.subr.mxu0 %v239
    %5740 = vmatpush1.msra.mxu0 %v238
    %5741 = vmatprep.subr.mxu0 %v247
    %5742 = vmatpush1.msra.mxu0 %v246
    %5743 = vmatprep.subr.mxu0 %v255
    %5744 = vmatpush1.msra.mxu0 %v254
    %5745 = vmatprep.subr.mxu0 %v263
    %5746 = vmatpush1.msra.mxu0 %v262
    %5747 = vmatprep.subr.mxu0 %v271
    %5748 = vmatpush1.msra.mxu0 %v270
    %5749 = vmatprep.subr.mxu0 %v279
    %5750 = vmatpush1.msra.mxu0 %v278
    %5751 = vmatprep.subr.mxu0 %v287
    %5752 = vmatpush1.msra.mxu0 %v286
    %5753 = vmatprep.subr.mxu0 %v295
    %5754 = vmatpush1.msra.mxu0 %v294
    %5755 = vmatprep.subr.mxu0 %v303
    %5756 = vmatpush1.msra.mxu0 %v302
    %5757 = vmatprep.subr.mxu0 %v311
    %5758 = vmatpush1.msra.mxu0 %v310
    %5759 = vmatprep.subr.mxu0 %v319
    %5760 = vmatpush1.msra.mxu0 %v318
    %5761 = vmatprep.subr.mxu0 %v327
    %5762 = vmatpush1.msra.mxu0 %v326
    %5763 = vmatprep.subr.mxu0 %v335
    %5764 = vmatpush1.msra.mxu0 %v334
    %5765 = vmatprep.subr.mxu0 %v343
    %5766 = vmatpush1.msra.mxu0 %v342
    %5767 = vmatprep.subr.mxu0 %v351
    %5768 = vmatpush1.msra.mxu0 %v350
    %5769 = vmatprep.subr.mxu0 %v359
    %5770 = vmatpush1.msra.mxu0 %v358
    %5771 = vmatprep.subr.mxu0 %v367
    %5772 = vmatpush1.msra.mxu0 %v366
    %5773 = vmatprep.subr.mxu0 %v375
    %5774 = vmatpush1.msra.mxu0 %v374
    %5775 = vmatprep.subr.mxu0 %v383
    %5776 = vmatpush1.msra.mxu0 %v382
    %5777 = vmatprep.subr.mxu0 %v391
    %5778 = vmatpush1.msra.mxu0 %v390
    %5779 = vmatprep.subr.mxu0 %v399
    %5780 = vmatpush1.msra.mxu0 %v398
    %5781 = vmatprep.mubr.f32.mxu0 %v5645
    %5782 = vmatmul.mubr.f32.gmra.mrb[0].mxu0 %v5642
    %v5783 = vpop.f32.mrb[0].mxu0
    %v5784 = vadd.f32 %v416, %v5783
    %v5785 = vpop.f32.mrb[0].mxu0
    %v5786 = vadd.f32 %v420, %v5785
    %5787 = vdwg.mxu0
    %5788 = vmatprep.subr.mxu0 %v153
    %5789 = vmatpush1.msra.mxu0 %v152
    %5790 = vmatprep.subr.mxu0 %v161
    %5791 = vmatpush1.msra.mxu0 %v160
    %5792 = vmatprep.subr.mxu0 %v169
    %5793 = vmatpush1.msra.mxu0 %v168
    %5794 = vmatprep.subr.mxu0 %v177
    %5795 = vmatpush1.msra.mxu0 %v176
    %5796 = vmatprep.subr.mxu0 %v185
    %5797 = vmatpush1.msra.mxu0 %v184
    %5798 = vmatprep.subr.mxu0 %v193
    %5799 = vmatpush1.msra.mxu0 %v192
    %5800 = vmatprep.subr.mxu0 %v201
    %5801 = vmatpush1.msra.mxu0 %v200
    %5802 = vmatprep.subr.mxu0 %v209
    %5803 = vmatpush1.msra.mxu0 %v208
    %5804 = vmatprep.subr.mxu0 %v217
    %5805 = vmatpush1.msra.mxu0 %v216
    %5806 = vmatprep.subr.mxu0 %v225
    %5807 = vmatpush1.msra.mxu0 %v224
    %5808 = vmatprep.subr.mxu0 %v233
    %5809 = vmatpush1.msra.mxu0 %v232
    %5810 = vmatprep.subr.mxu0 %v241
    %5811 = vmatpush1.msra.mxu0 %v240
    %5812 = vmatprep.subr.mxu0 %v249
    %5813 = vmatpush1.msra.mxu0 %v248
    %5814 = vmatprep.subr.mxu0 %v257
    %5815 = vmatpush1.msra.mxu0 %v256
    %5816 = vmatprep.subr.mxu0 %v265
    %5817 = vmatpush1.msra.mxu0 %v264
    %5818 = vmatprep.subr.mxu0 %v273
    %5819 = vmatpush1.msra.mxu0 %v272
    %5820 = vmatprep.subr.mxu0 %v281
    %5821 = vmatpush1.msra.mxu0 %v280
    %5822 = vmatprep.subr.mxu0 %v289
    %5823 = vmatpush1.msra.mxu0 %v288
    %5824 = vmatprep.subr.mxu0 %v297
    %5825 = vmatpush1.msra.mxu0 %v296
    %5826 = vmatprep.subr.mxu0 %v305
    %5827 = vmatpush1.msra.mxu0 %v304
    %5828 = vmatprep.subr.mxu0 %v313
    %5829 = vmatpush1.msra.mxu0 %v312
    %5830 = vmatprep.subr.mxu0 %v321
    %5831 = vmatpush1.msra.mxu0 %v320
    %5832 = vmatprep.subr.mxu0 %v329
    %5833 = vmatpush1.msra.mxu0 %v328
    %5834 = vmatprep.subr.mxu0 %v337
    %5835 = vmatpush1.msra.mxu0 %v336
    %5836 = vmatprep.subr.mxu0 %v345
    %5837 = vmatpush1.msra.mxu0 %v344
    %5838 = vmatprep.subr.mxu0 %v353
    %5839 = vmatpush1.msra.mxu0 %v352
    %5840 = vmatprep.subr.mxu0 %v361
    %5841 = vmatpush1.msra.mxu0 %v360
    %5842 = vmatprep.subr.mxu0 %v369
    %5843 = vmatpush1.msra.mxu0 %v368
    %5844 = vmatprep.subr.mxu0 %v377
    %5845 = vmatpush1.msra.mxu0 %v376
    %5846 = vmatprep.subr.mxu0 %v385
    %5847 = vmatpush1.msra.mxu0 %v384
    %5848 = vmatprep.subr.mxu0 %v393
    %5849 = vmatpush1.msra.mxu0 %v392
    %5850 = vmatprep.subr.mxu0 %v401
    %5851 = vmatpush1.msra.mxu0 %v400
    %5852 = vmatprep.mubr.f32.mxu0 %v5645
    %5853 = vmatmul.mubr.f32.gmra.mrb[0].mxu0 %v5642
    %v5854 = vpop.f32.mrb[0].mxu0
    %v5855 = vadd.f32 %v424, %v5854
    %v5856 = vpop.f32.mrb[0].mxu0
    %v5857 = vadd.f32 %v428, %v5856
    %5858 = vdwg.mxu0
    %5859 = vmatprep.subr.mxu0 %v155
    %5860 = vmatpush1.msra.mxu0 %v154
    %5861 = vmatprep.subr.mxu0 %v163
    %5862 = vmatpush1.msra.mxu0 %v162
    %5863 = vmatprep.subr.mxu0 %v171
    %5864 = vmatpush1.msra.mxu0 %v170
    %5865 = vmatprep.subr.mxu0 %v179
    %5866 = vmatpush1.msra.mxu0 %v178
    %5867 = vmatprep.subr.mxu0 %v187
    %5868 = vmatpush1.msra.mxu0 %v186
    %5869 = vmatprep.subr.mxu0 %v195
    %5870 = vmatpush1.msra.mxu0 %v194
    %5871 = vmatprep.subr.mxu0 %v203
    %5872 = vmatpush1.msra.mxu0 %v202
    %5873 = vmatprep.subr.mxu0 %v211
    %5874 = vmatpush1.msra.mxu0 %v210
    %5875 = vmatprep.subr.mxu0 %v219
    %5876 = vmatpush1.msra.mxu0 %v218
    %5877 = vmatprep.subr.mxu0 %v227
    %5878 = vmatpush1.msra.mxu0 %v226
    %5879 = vmatprep.subr.mxu0 %v235
    %5880 = vmatpush1.msra.mxu0 %v234
    %5881 = vmatprep.subr.mxu0 %v243
    %5882 = vmatpush1.msra.mxu0 %v242
    %5883 = vmatprep.subr.mxu0 %v251
    %5884 = vmatpush1.msra.mxu0 %v250
    %5885 = vmatprep.subr.mxu0 %v259
    %5886 = vmatpush1.msra.mxu0 %v258
    %5887 = vmatprep.subr.mxu0 %v267
    %5888 = vmatpush1.msra.mxu0 %v266
    %5889 = vmatprep.subr.mxu0 %v275
    %5890 = vmatpush1.msra.mxu0 %v274
    %5891 = vmatprep.subr.mxu0 %v283
    %5892 = vmatpush1.msra.mxu0 %v282
    %5893 = vmatprep.subr.mxu0 %v291
    %5894 = vmatpush1.msra.mxu0 %v290
    %5895 = vmatprep.subr.mxu0 %v299
    %5896 = vmatpush1.msra.mxu0 %v298
    %5897 = vmatprep.subr.mxu0 %v307
    %5898 = vmatpush1.msra.mxu0 %v306
    %5899 = vmatprep.subr.mxu0 %v315
    %5900 = vmatpush1.msra.mxu0 %v314
    %5901 = vmatprep.subr.mxu0 %v323
    %5902 = vmatpush1.msra.mxu0 %v322
    %5903 = vmatprep.subr.mxu0 %v331
    %5904 = vmatpush1.msra.mxu0 %v330
    %5905 = vmatprep.subr.mxu0 %v339
    %5906 = vmatpush1.msra.mxu0 %v338
    %5907 = vmatprep.subr.mxu0 %v347
    %5908 = vmatpush1.msra.mxu0 %v346
    %5909 = vmatprep.subr.mxu0 %v355
    %5910 = vmatpush1.msra.mxu0 %v354
    %5911 = vmatprep.subr.mxu0 %v363
    %5912 = vmatpush1.msra.mxu0 %v362
    %5913 = vmatprep.subr.mxu0 %v371
    %5914 = vmatpush1.msra.mxu0 %v370
    %5915 = vmatprep.subr.mxu0 %v379
    %5916 = vmatpush1.msra.mxu0 %v378
    %5917 = vmatprep.subr.mxu0 %v387
    %5918 = vmatpush1.msra.mxu0 %v386
    %5919 = vmatprep.subr.mxu0 %v395
    %5920 = vmatpush1.msra.mxu0 %v394
    %5921 = vmatprep.subr.mxu0 %v403
    %5922 = vmatpush1.msra.mxu0 %v402
    %5923 = vmatprep.mubr.f32.mxu0 %v5645
    %5924 = vmatmul.mubr.f32.gmra.mrb[0].mxu0 %v5642
    %v5925 = vpop.f32.mrb[0].mxu0
    %v5926 = vadd.f32 %v432, %v5925
    %v5927 = vpop.f32.mrb[0].mxu0
    %v5928 = vadd.f32 %v436, %v5927
    %5929 = vdwg.mxu0
    %v5930 = vmul.f32 %v123, %v744
    %v5931 = vadd.f32 %v5930, %v5713
    %v5932 = vxor.u32 %v5931, 2147483648
    %v5933 = vmul.f32 %v5932, 1.442695
    %v5934 = vpow.pop %v5933
    %v5935 = vadd.f32 %v5934, 1.0
    %v5936 = vrcp.pop %v5935
    %v5937 = vmul.f32 1.0, %v5936
    %v5938 = vtanh.pop %v5931
    %v5939 = vmul.f32 %v5937, %v4926
    %5941 = vrot.lane.b32.xlu0 %v5938, 64
    %v5942 = vpop.permute.xlu0 %5941
    %v5944 = vmul.f32 %v5937, %v5942
    %5946 = vrot.lane.b32.xlu0 %v5944, 32
    %v5947 = vpop.permute.xlu0 %5946
    %v5949 = vadd.f32 %v5939, %v5947
    %v5950 = vtanh.pop %v5949
    %5952 = vrot.lane.b32.xlu0 %v5950, 64
    %v5953 = vpop.permute.xlu0 %5952
    %v5955 = vmul.f32 %v5937, %v5953
    %5957 = vrot.lane.b32.xlu0 %v5955, 32
    %v5958 = vpop.permute.xlu0 %5957
    %v5959 = vsel %vm783, %v5958, 0
    %5961 = vmatprep.subr.mxu0 0.0
    %5962 = vmatpush1.msra.mxu0 %v776
    %5963 = vmatprep.subr.mxu0 0.0
    %5964 = vmatpush1.msra.mxu0 %v777
    %5965 = vmatprep.subr.mxu0 0.0
    %5966 = vmatpush1.msra.mxu0 %v778
    %5967 = vmatprep.subr.mxu0 0.0
    %5968 = vmatpush1.msra.mxu0 %v779
    %5969 = vmatprep.subr.mxu0 0.0
    %5970 = vmatpush1.msra.mxu0 0.0
    %5971 = vmatprep.subr.mxu0 0.0
    %5972 = vmatpush1.msra.mxu0 0.0
    %5973 = vmatprep.subr.mxu0 0.0
    %5974 = vmatpush1.msra.mxu0 0.0
    %5975 = vmatprep.subr.mxu0 0.0
    %5976 = vmatpush1.msra.mxu0 0.0
    %5977 = vmatprep.subr.mxu0 0.0
    %5978 = vmatpush1.msra.mxu0 0.0
    %5979 = vmatprep.subr.mxu0 0.0
    %5980 = vmatpush1.msra.mxu0 0.0
    %5981 = vmatprep.subr.mxu0 0.0
    %5982 = vmatpush1.msra.mxu0 0.0
    %5983 = vmatprep.subr.mxu0 0.0
    %5984 = vmatpush1.msra.mxu0 0.0
    %5985 = vmatprep.subr.mxu0 0.0
    %5986 = vmatpush1.msra.mxu0 0.0
    %5987 = vmatprep.subr.mxu0 0.0
    %5988 = vmatpush1.msra.mxu0 0.0
    %5989 = vmatprep.subr.mxu0 0.0
    %5990 = vmatpush1.msra.mxu0 0.0
    %5991 = vmatprep.subr.mxu0 0.0
    %5992 = vmatpush1.msra.mxu0 0.0
    %5993 = vmatprep.subr.mxu0 0.0
    %5994 = vmatpush1.msra.mxu0 0.0
    %5995 = vmatprep.subr.mxu0 0.0
    %5996 = vmatpush1.msra.mxu0 0.0
    %5997 = vmatprep.subr.mxu0 0.0
    %5998 = vmatpush1.msra.mxu0 0.0
    %5999 = vmatprep.subr.mxu0 0.0
    %6000 = vmatpush1.msra.mxu0 0.0
    %6001 = vmatprep.subr.mxu0 0.0
    %6002 = vmatpush1.msra.mxu0 0.0
    %6003 = vmatprep.subr.mxu0 0.0
    %6004 = vmatpush1.msra.mxu0 0.0
    %6005 = vmatprep.subr.mxu0 0.0
    %6006 = vmatpush1.msra.mxu0 0.0
    %6007 = vmatprep.subr.mxu0 0.0
    %6008 = vmatpush1.msra.mxu0 0.0
    %6009 = vmatprep.subr.mxu0 0.0
    %6010 = vmatpush1.msra.mxu0 0.0
    %6011 = vmatprep.subr.mxu0 0.0
    %6012 = vmatpush1.msra.mxu0 0.0
    %6013 = vmatprep.subr.mxu0 0.0
    %6014 = vmatpush1.msra.mxu0 0.0
    %6015 = vmatprep.subr.mxu0 0.0
    %6016 = vmatpush1.msra.mxu0 0.0
    %6017 = vmatprep.subr.mxu0 0.0
    %6018 = vmatpush1.msra.mxu0 0.0
    %6019 = vmatprep.subr.mxu0 0.0
    %6020 = vmatpush1.msra.mxu0 0.0
    %6021 = vmatprep.subr.mxu0 0.0
    %6022 = vmatpush1.msra.mxu0 0.0
    %6023 = vmatprep.subr.mxu0 0.0
    %6024 = vmatpush1.msra.mxu0 0.0
    %6025 = vmatprep.mubr.f32.mxu0 0.0
    %6026 = vmatmul.mubr.f32.gmra.mrb[0].mxu0 %v5959
    %v6027 = vpop.f32.mrb[0].mxu0
    %v6028 = vadd.f32 %v5715, %v6027
    %v6029 = vpop.f32.mrb[0].mxu0
    %6030 = vdwg.mxu0
    %v6031 = vxor.u32 %v6028, 2147483648
    %v6032 = vmul.f32 %v6031, 1.442695
    %v6033 = vpow.pop %v6032
    %v6034 = vadd.f32 %v6033, 1.0
    %v6035 = vrcp.pop %v6034
    %v6036 = vmul.f32 1.0, %v6035
    %v6037 = vtanh.pop %v6028
    %v6038 = vmul.f32 %v6036, %v5025
    %6040 = vrot.lane.b32.xlu0 %v6037, 64
    %v6041 = vpop.permute.xlu0 %6040
    %v6043 = vmul.f32 %v6036, %v6041
    %6045 = vrot.lane.b32.xlu0 %v6043, 32
    %v6046 = vpop.permute.xlu0 %6045
    %v6048 = vadd.f32 %v6038, %v6046
    %v6049 = vtanh.pop %v6048
    %6051 = vrot.lane.b32.xlu0 %v6049, 64
    %v6052 = vpop.permute.xlu0 %6051
    %v6054 = vmul.f32 %v6036, %v6052
    %6056 = vrot.lane.b32.xlu0 %v6054, 32
    %v6057 = vpop.permute.xlu0 %6056
    %v6058 = vsel %vm783, %v6057, 0
    %6060 = vmatprep.subr.mxu0 0.0
    %6061 = vmatpush1.msra.mxu0 %v885
    %6062 = vmatprep.subr.mxu0 0.0
    %6063 = vmatpush1.msra.mxu0 %v886
    %6064 = vmatprep.subr.mxu0 0.0
    %6065 = vmatpush1.msra.mxu0 %v887
    %6066 = vmatprep.subr.mxu0 0.0
    %6067 = vmatpush1.msra.mxu0 %v888
    %6068 = vmatprep.subr.mxu0 0.0
    %6069 = vmatpush1.msra.mxu0 0.0
    %6070 = vmatprep.subr.mxu0 0.0
    %6071 = vmatpush1.msra.mxu0 0.0
    %6072 = vmatprep.subr.mxu0 0.0
    %6073 = vmatpush1.msra.mxu0 0.0
    %6074 = vmatprep.subr.mxu0 0.0
    %6075 = vmatpush1.msra.mxu0 0.0
    %6076 = vmatprep.subr.mxu0 0.0
    %6077 = vmatpush1.msra.mxu0 0.0
    %6078 = vmatprep.subr.mxu0 0.0
    %6079 = vmatpush1.msra.mxu0 0.0
    %6080 = vmatprep.subr.mxu0 0.0
    %6081 = vmatpush1.msra.mxu0 0.0
    %6082 = vmatprep.subr.mxu0 0.0
    %6083 = vmatpush1.msra.mxu0 0.0
    %6084 = vmatprep.subr.mxu0 0.0
    %6085 = vmatpush1.msra.mxu0 0.0
    %6086 = vmatprep.subr.mxu0 0.0
    %6087 = vmatpush1.msra.mxu0 0.0
    %6088 = vmatprep.subr.mxu0 0.0
    %6089 = vmatpush1.msra.mxu0 0.0
    %6090 = vmatprep.subr.mxu0 0.0
    %6091 = vmatpush1.msra.mxu0 0.0
    %6092 = vmatprep.subr.mxu0 0.0
    %6093 = vmatpush1.msra.mxu0 0.0
    %6094 = vmatprep.subr.mxu0 0.0
    %6095 = vmatpush1.msra.mxu0 0.0
    %6096 = vmatprep.subr.mxu0 0.0
    %6097 = vmatpush1.msra.mxu0 0.0
    %6098 = vmatprep.subr.mxu0 0.0
    %6099 = vmatpush1.msra.mxu0 0.0
    %6100 = vmatprep.subr.mxu0 0.0
    %6101 = vmatpush1.msra.mxu0 0.0
    %6102 = vmatprep.subr.mxu0 0.0
    %6103 = vmatpush1.msra.mxu0 0.0
    %6104 = vmatprep.subr.mxu0 0.0
    %6105 = vmatpush1.msra.mxu0 0.0
    %6106 = vmatprep.subr.mxu0 0.0
    %6107 = vmatpush1.msra.mxu0 0.0
    %6108 = vmatprep.subr.mxu0 0.0
    %6109 = vmatpush1.msra.mxu0 0.0
    %6110 = vmatprep.subr.mxu0 0.0
    %6111 = vmatpush1.msra.mxu0 0.0
    %6112 = vmatprep.subr.mxu0 0.0
    %6113 = vmatpush1.msra.mxu0 0.0
    %6114 = vmatprep.subr.mxu0 0.0
    %6115 = vmatpush1.msra.mxu0 0.0
    %6116 = vmatprep.subr.mxu0 0.0
    %6117 = vmatpush1.msra.mxu0 0.0
    %6118 = vmatprep.subr.mxu0 0.0
    %6119 = vmatpush1.msra.mxu0 0.0
    %6120 = vmatprep.subr.mxu0 0.0
    %6121 = vmatpush1.msra.mxu0 0.0
    %6122 = vmatprep.subr.mxu0 0.0
    %6123 = vmatpush1.msra.mxu0 0.0
    %6124 = vmatprep.mubr.f32.mxu0 0.0
    %6125 = vmatmul.mubr.f32.gmra.mrb[0].mxu0 %v6058
    %v6126 = vpop.f32.mrb[0].mxu0
    %v6127 = vadd.f32 %v5784, %v6126
    %v6128 = vpop.f32.mrb[0].mxu0
    %6129 = vdwg.mxu0
    %v6130 = vxor.u32 %v6127, 2147483648
    %v6131 = vmul.f32 %v6130, 1.442695
    %v6132 = vpow.pop %v6131
    %v6133 = vadd.f32 %v6132, 1.0
    %v6134 = vrcp.pop %v6133
    %v6135 = vmul.f32 1.0, %v6134
    %v6136 = vtanh.pop %v6127
    %v6137 = vmul.f32 %v6135, %v5124
    %6139 = vrot.lane.b32.xlu0 %v6136, 64
    %v6140 = vpop.permute.xlu0 %6139
    %v6142 = vmul.f32 %v6135, %v6140
    %6144 = vrot.lane.b32.xlu0 %v6142, 32
    %v6145 = vpop.permute.xlu0 %6144
    %v6147 = vadd.f32 %v6137, %v6145
    %v6148 = vtanh.pop %v6147
    %6150 = vrot.lane.b32.xlu0 %v6148, 64
    %v6151 = vpop.permute.xlu0 %6150
    %v6153 = vmul.f32 %v6135, %v6151
    %6155 = vrot.lane.b32.xlu0 %v6153, 32
    %v6156 = vpop.permute.xlu0 %6155
    %v6157 = vsel %vm783, %v6156, 0
    %6159 = vmatprep.subr.mxu0 0.0
    %6160 = vmatpush1.msra.mxu0 %v993
    %6161 = vmatprep.subr.mxu0 0.0
    %6162 = vmatpush1.msra.mxu0 %v994
    %6163 = vmatprep.subr.mxu0 0.0
    %6164 = vmatpush1.msra.mxu0 %v995
    %6165 = vmatprep.subr.mxu0 0.0
    %6166 = vmatpush1.msra.mxu0 %v996
    %6167 = vmatprep.subr.mxu0 0.0
    %6168 = vmatpush1.msra.mxu0 0.0
    %6169 = vmatprep.subr.mxu0 0.0
    %6170 = vmatpush1.msra.mxu0 0.0
    %6171 = vmatprep.subr.mxu0 0.0
    %6172 = vmatpush1.msra.mxu0 0.0
    %6173 = vmatprep.subr.mxu0 0.0
    %6174 = vmatpush1.msra.mxu0 0.0
    %6175 = vmatprep.subr.mxu0 0.0
    %6176 = vmatpush1.msra.mxu0 0.0
    %6177 = vmatprep.subr.mxu0 0.0
    %6178 = vmatpush1.msra.mxu0 0.0
    %6179 = vmatprep.subr.mxu0 0.0
    %6180 = vmatpush1.msra.mxu0 0.0
    %6181 = vmatprep.subr.mxu0 0.0
    %6182 = vmatpush1.msra.mxu0 0.0
    %6183 = vmatprep.subr.mxu0 0.0
    %6184 = vmatpush1.msra.mxu0 0.0
    %6185 = vmatprep.subr.mxu0 0.0
    %6186 = vmatpush1.msra.mxu0 0.0
    %6187 = vmatprep.subr.mxu0 0.0
    %6188 = vmatpush1.msra.mxu0 0.0
    %6189 = vmatprep.subr.mxu0 0.0
    %6190 = vmatpush1.msra.mxu0 0.0
    %6191 = vmatprep.subr.mxu0 0.0
    %6192 = vmatpush1.msra.mxu0 0.0
    %6193 = vmatprep.subr.mxu0 0.0
    %6194 = vmatpush1.msra.mxu0 0.0
    %6195 = vmatprep.subr.mxu0 0.0
    %6196 = vmatpush1.msra.mxu0 0.0
    %6197 = vmatprep.subr.mxu0 0.0
    %6198 = vmatpush1.msra.mxu0 0.0
    %6199 = vmatprep.subr.mxu0 0.0
    %6200 = vmatpush1.msra.mxu0 0.0
    %6201 = vmatprep.subr.mxu0 0.0
    %6202 = vmatpush1.msra.mxu0 0.0
    %6203 = vmatprep.subr.mxu0 0.0
    %6204 = vmatpush1.msra.mxu0 0.0
    %6205 = vmatprep.subr.mxu0 0.0
    %6206 = vmatpush1.msra.mxu0 0.0
    %6207 = vmatprep.subr.mxu0 0.0
    %6208 = vmatpush1.msra.mxu0 0.0
    %6209 = vmatprep.subr.mxu0 0.0
    %6210 = vmatpush1.msra.mxu0 0.0
    %6211 = vmatprep.subr.mxu0 0.0
    %6212 = vmatpush1.msra.mxu0 0.0
    %6213 = vmatprep.subr.mxu0 0.0
    %6214 = vmatpush1.msra.mxu0 0.0
    %6215 = vmatprep.subr.mxu0 0.0
    %6216 = vmatpush1.msra.mxu0 0.0
    %6217 = vmatprep.subr.mxu0 0.0
    %6218 = vmatpush1.msra.mxu0 0.0
    %6219 = vmatprep.subr.mxu0 0.0
    %6220 = vmatpush1.msra.mxu0 0.0
    %6221 = vmatprep.subr.mxu0 0.0
    %6222 = vmatpush1.msra.mxu0 0.0
    %6223 = vmatprep.mubr.f32.mxu0 0.0
    %6224 = vmatmul.mubr.f32.gmra.mrb[0].mxu0 %v6157
    %v6225 = vpop.f32.mrb[0].mxu0
    %v6226 = vadd.f32 %v5786, %v6225
    %v6227 = vpop.f32.mrb[0].mxu0
    %6228 = vdwg.mxu0
    %v6229 = vxor.u32 %v6226, 2147483648
    %v6230 = vmul.f32 %v6229, 1.442695
    %v6231 = vpow.pop %v6230
    %v6232 = vadd.f32 %v6231, 1.0
    %v6233 = vrcp.pop %v6232
    %v6234 = vmul.f32 1.0, %v6233
    %v6235 = vtanh.pop %v6226
    %v6236 = vmul.f32 %v6234, %v5223
    %6238 = vrot.lane.b32.xlu0 %v6235, 64
    %v6239 = vpop.permute.xlu0 %6238
    %v6241 = vmul.f32 %v6234, %v6239
    %6243 = vrot.lane.b32.xlu0 %v6241, 32
    %v6244 = vpop.permute.xlu0 %6243
    %v6246 = vadd.f32 %v6236, %v6244
    %v6247 = vtanh.pop %v6246
    %6249 = vrot.lane.b32.xlu0 %v6247, 64
    %v6250 = vpop.permute.xlu0 %6249
    %v6252 = vmul.f32 %v6234, %v6250
    %6254 = vrot.lane.b32.xlu0 %v6252, 32
    %v6255 = vpop.permute.xlu0 %6254
    %v6256 = vsel %vm783, %v6255, 0
    %6258 = vmatprep.subr.mxu0 0.0
    %6259 = vmatpush1.msra.mxu0 %v1101
    %6260 = vmatprep.subr.mxu0 0.0
    %6261 = vmatpush1.msra.mxu0 %v1102
    %6262 = vmatprep.subr.mxu0 0.0
    %6263 = vmatpush1.msra.mxu0 %v1103
    %6264 = vmatprep.subr.mxu0 0.0
    %6265 = vmatpush1.msra.mxu0 %v1104
    %6266 = vmatprep.subr.mxu0 0.0
    %6267 = vmatpush1.msra.mxu0 0.0
    %6268 = vmatprep.subr.mxu0 0.0
    %6269 = vmatpush1.msra.mxu0 0.0
    %6270 = vmatprep.subr.mxu0 0.0
    %6271 = vmatpush1.msra.mxu0 0.0
    %6272 = vmatprep.subr.mxu0 0.0
    %6273 = vmatpush1.msra.mxu0 0.0
    %6274 = vmatprep.subr.mxu0 0.0
    %6275 = vmatpush1.msra.mxu0 0.0
    %6276 = vmatprep.subr.mxu0 0.0
    %6277 = vmatpush1.msra.mxu0 0.0
    %6278 = vmatprep.subr.mxu0 0.0
    %6279 = vmatpush1.msra.mxu0 0.0
    %6280 = vmatprep.subr.mxu0 0.0
    %6281 = vmatpush1.msra.mxu0 0.0
    %6282 = vmatprep.subr.mxu0 0.0
    %6283 = vmatpush1.msra.mxu0 0.0
    %6284 = vmatprep.subr.mxu0 0.0
    %6285 = vmatpush1.msra.mxu0 0.0
    %6286 = vmatprep.subr.mxu0 0.0
    %6287 = vmatpush1.msra.mxu0 0.0
    %6288 = vmatprep.subr.mxu0 0.0
    %6289 = vmatpush1.msra.mxu0 0.0
    %6290 = vmatprep.subr.mxu0 0.0
    %6291 = vmatpush1.msra.mxu0 0.0
    %6292 = vmatprep.subr.mxu0 0.0
    %6293 = vmatpush1.msra.mxu0 0.0
    %6294 = vmatprep.subr.mxu0 0.0
    %6295 = vmatpush1.msra.mxu0 0.0
    %6296 = vmatprep.subr.mxu0 0.0
    %6297 = vmatpush1.msra.mxu0 0.0
    %6298 = vmatprep.subr.mxu0 0.0
    %6299 = vmatpush1.msra.mxu0 0.0
    %6300 = vmatprep.subr.mxu0 0.0
    %6301 = vmatpush1.msra.mxu0 0.0
    %6302 = vmatprep.subr.mxu0 0.0
    %6303 = vmatpush1.msra.mxu0 0.0
    %6304 = vmatprep.subr.mxu0 0.0
    %6305 = vmatpush1.msra.mxu0 0.0
    %6306 = vmatprep.subr.mxu0 0.0
    %6307 = vmatpush1.msra.mxu0 0.0
    %6308 = vmatprep.subr.mxu0 0.0
    %6309 = vmatpush1.msra.mxu0 0.0
    %6310 = vmatprep.subr.mxu0 0.0
    %6311 = vmatpush1.msra.mxu0 0.0
    %6312 = vmatprep.subr.mxu0 0.0
    %6313 = vmatpush1.msra.mxu0 0.0
    %6314 = vmatprep.subr.mxu0 0.0
    %6315 = vmatpush1.msra.mxu0 0.0
    %6316 = vmatprep.subr.mxu0 0.0
    %6317 = vmatpush1.msra.mxu0 0.0
    %6318 = vmatprep.subr.mxu0 0.0
    %6319 = vmatpush1.msra.mxu0 0.0
    %6320 = vmatprep.subr.mxu0 0.0
    %6321 = vmatpush1.msra.mxu0 0.0
    %6322 = vmatprep.mubr.f32.mxu0 0.0
    %6323 = vmatmul.mubr.f32.gmra.mrb[0].mxu0 %v6256
    %v6324 = vpop.f32.mrb[0].mxu0
    %v6325 = vadd.f32 %v5855, %v6324
    %v6326 = vpop.f32.mrb[0].mxu0
    %6327 = vdwg.mxu0
    %v6328 = vxor.u32 %v6325, 2147483648
    %v6329 = vmul.f32 %v6328, 1.442695
    %v6330 = vpow.pop %v6329
    %v6331 = vadd.f32 %v6330, 1.0
    %v6332 = vrcp.pop %v6331
    %v6333 = vmul.f32 1.0, %v6332
    %v6334 = vtanh.pop %v6325
    %v6335 = vmul.f32 %v6333, %v5322
    %6337 = vrot.lane.b32.xlu0 %v6334, 64
    %v6338 = vpop.permute.xlu0 %6337
    %v6340 = vmul.f32 %v6333, %v6338
    %6342 = vrot.lane.b32.xlu0 %v6340, 32
    %v6343 = vpop.permute.xlu0 %6342
    %v6345 = vadd.f32 %v6335, %v6343
    %v6346 = vtanh.pop %v6345
    %6348 = vrot.lane.b32.xlu0 %v6346, 64
    %v6349 = vpop.permute.xlu0 %6348
    %v6351 = vmul.f32 %v6333, %v6349
    %6353 = vrot.lane.b32.xlu0 %v6351, 32
    %v6354 = vpop.permute.xlu0 %6353
    %v6355 = vsel %vm783, %v6354, 0
    %6357 = vmatprep.subr.mxu0 0.0
    %6358 = vmatpush1.msra.mxu0 %v1209
    %6359 = vmatprep.subr.mxu0 0.0
    %6360 = vmatpush1.msra.mxu0 %v1210
    %6361 = vmatprep.subr.mxu0 0.0
    %6362 = vmatpush1.msra.mxu0 %v1211
    %6363 = vmatprep.subr.mxu0 0.0
    %6364 = vmatpush1.msra.mxu0 %v1212
    %6365 = vmatprep.subr.mxu0 0.0
    %6366 = vmatpush1.msra.mxu0 0.0
    %6367 = vmatprep.subr.mxu0 0.0
    %6368 = vmatpush1.msra.mxu0 0.0
    %6369 = vmatprep.subr.mxu0 0.0
    %6370 = vmatpush1.msra.mxu0 0.0
    %6371 = vmatprep.subr.mxu0 0.0
    %6372 = vmatpush1.msra.mxu0 0.0
    %6373 = vmatprep.subr.mxu0 0.0
    %6374 = vmatpush1.msra.mxu0 0.0
    %6375 = vmatprep.subr.mxu0 0.0
    %6376 = vmatpush1.msra.mxu0 0.0
    %6377 = vmatprep.subr.mxu0 0.0
    %6378 = vmatpush1.msra.mxu0 0.0
    %6379 = vmatprep.subr.mxu0 0.0
    %6380 = vmatpush1.msra.mxu0 0.0
    %6381 = vmatprep.subr.mxu0 0.0
    %6382 = vmatpush1.msra.mxu0 0.0
    %6383 = vmatprep.subr.mxu0 0.0
    %6384 = vmatpush1.msra.mxu0 0.0
    %6385 = vmatprep.subr.mxu0 0.0
    %6386 = vmatpush1.msra.mxu0 0.0
    %6387 = vmatprep.subr.mxu0 0.0
    %6388 = vmatpush1.msra.mxu0 0.0
    %6389 = vmatprep.subr.mxu0 0.0
    %6390 = vmatpush1.msra.mxu0 0.0
    %6391 = vmatprep.subr.mxu0 0.0
    %6392 = vmatpush1.msra.mxu0 0.0
    %6393 = vmatprep.subr.mxu0 0.0
    %6394 = vmatpush1.msra.mxu0 0.0
    %6395 = vmatprep.subr.mxu0 0.0
    %6396 = vmatpush1.msra.mxu0 0.0
    %6397 = vmatprep.subr.mxu0 0.0
    %6398 = vmatpush1.msra.mxu0 0.0
    %6399 = vmatprep.subr.mxu0 0.0
    %6400 = vmatpush1.msra.mxu0 0.0
    %6401 = vmatprep.subr.mxu0 0.0
    %6402 = vmatpush1.msra.mxu0 0.0
    %6403 = vmatprep.subr.mxu0 0.0
    %6404 = vmatpush1.msra.mxu0 0.0
    %6405 = vmatprep.subr.mxu0 0.0
    %6406 = vmatpush1.msra.mxu0 0.0
    %6407 = vmatprep.subr.mxu0 0.0
    %6408 = vmatpush1.msra.mxu0 0.0
    %6409 = vmatprep.subr.mxu0 0.0
    %6410 = vmatpush1.msra.mxu0 0.0
    %6411 = vmatprep.subr.mxu0 0.0
    %6412 = vmatpush1.msra.mxu0 0.0
    %6413 = vmatprep.subr.mxu0 0.0
    %6414 = vmatpush1.msra.mxu0 0.0
    %6415 = vmatprep.subr.mxu0 0.0
    %6416 = vmatpush1.msra.mxu0 0.0
    %6417 = vmatprep.subr.mxu0 0.0
    %6418 = vmatpush1.msra.mxu0 0.0
    %6419 = vmatprep.subr.mxu0 0.0
    %6420 = vmatpush1.msra.mxu0 0.0
    %6421 = vmatprep.mubr.f32.mxu0 0.0
    %6422 = vmatmul.mubr.f32.gmra.mrb[0].mxu0 %v6355
    %v6423 = vpop.f32.mrb[0].mxu0
    %v6424 = vadd.f32 %v5857, %v6423
    %v6425 = vpop.f32.mrb[0].mxu0
    %6426 = vdwg.mxu0
    %v6427 = vxor.u32 %v6424, 2147483648
    %v6428 = vmul.f32 %v6427, 1.442695
    %v6429 = vpow.pop %v6428
    %v6430 = vadd.f32 %v6429, 1.0
    %v6431 = vrcp.pop %v6430
    %v6432 = vmul.f32 1.0, %v6431
    %v6433 = vtanh.pop %v6424
    %v6434 = vmul.f32 %v6432, %v5421
    %6436 = vrot.lane.b32.xlu0 %v6433, 64
    %v6437 = vpop.permute.xlu0 %6436
    %v6439 = vmul.f32 %v6432, %v6437
    %6441 = vrot.lane.b32.xlu0 %v6439, 32
    %v6442 = vpop.permute.xlu0 %6441
    %v6444 = vadd.f32 %v6434, %v6442
    %v6445 = vtanh.pop %v6444
    %6447 = vrot.lane.b32.xlu0 %v6445, 64
    %v6448 = vpop.permute.xlu0 %6447
    %v6450 = vmul.f32 %v6432, %v6448
    %6452 = vrot.lane.b32.xlu0 %v6450, 32
    %v6453 = vpop.permute.xlu0 %6452
    %v6454 = vsel %vm783, %v6453, 0
    %6456 = vmatprep.subr.mxu0 0.0
    %6457 = vmatpush1.msra.mxu0 %v1317
    %6458 = vmatprep.subr.mxu0 0.0
    %6459 = vmatpush1.msra.mxu0 %v1318
    %6460 = vmatprep.subr.mxu0 0.0
    %6461 = vmatpush1.msra.mxu0 %v1319
    %6462 = vmatprep.subr.mxu0 0.0
    %6463 = vmatpush1.msra.mxu0 %v1320
    %6464 = vmatprep.subr.mxu0 0.0
    %6465 = vmatpush1.msra.mxu0 0.0
    %6466 = vmatprep.subr.mxu0 0.0
    %6467 = vmatpush1.msra.mxu0 0.0
    %6468 = vmatprep.subr.mxu0 0.0
    %6469 = vmatpush1.msra.mxu0 0.0
    %6470 = vmatprep.subr.mxu0 0.0
    %6471 = vmatpush1.msra.mxu0 0.0
    %6472 = vmatprep.subr.mxu0 0.0
    %6473 = vmatpush1.msra.mxu0 0.0
    %6474 = vmatprep.subr.mxu0 0.0
    %6475 = vmatpush1.msra.mxu0 0.0
    %6476 = vmatprep.subr.mxu0 0.0
    %6477 = vmatpush1.msra.mxu0 0.0
    %6478 = vmatprep.subr.mxu0 0.0
    %6479 = vmatpush1.msra.mxu0 0.0
    %6480 = vmatprep.subr.mxu0 0.0
    %6481 = vmatpush1.msra.mxu0 0.0
    %6482 = vmatprep.subr.mxu0 0.0
    %6483 = vmatpush1.msra.mxu0 0.0
    %6484 = vmatprep.subr.mxu0 0.0
    %6485 = vmatpush1.msra.mxu0 0.0
    %6486 = vmatprep.subr.mxu0 0.0
    %6487 = vmatpush1.msra.mxu0 0.0
    %6488 = vmatprep.subr.mxu0 0.0
    %6489 = vmatpush1.msra.mxu0 0.0
    %6490 = vmatprep.subr.mxu0 0.0
    %6491 = vmatpush1.msra.mxu0 0.0
    %6492 = vmatprep.subr.mxu0 0.0
    %6493 = vmatpush1.msra.mxu0 0.0
    %6494 = vmatprep.subr.mxu0 0.0
    %6495 = vmatpush1.msra.mxu0 0.0
    %6496 = vmatprep.subr.mxu0 0.0
    %6497 = vmatpush1.msra.mxu0 0.0
    %6498 = vmatprep.subr.mxu0 0.0
    %6499 = vmatpush1.msra.mxu0 0.0
    %6500 = vmatprep.subr.mxu0 0.0
    %6501 = vmatpush1.msra.mxu0 0.0
    %6502 = vmatprep.subr.mxu0 0.0
    %6503 = vmatpush1.msra.mxu0 0.0
    %6504 = vmatprep.subr.mxu0 0.0
    %6505 = vmatpush1.msra.mxu0 0.0
    %6506 = vmatprep.subr.mxu0 0.0
    %6507 = vmatpush1.msra.mxu0 0.0
    %6508 = vmatprep.subr.mxu0 0.0
    %6509 = vmatpush1.msra.mxu0 0.0
    %6510 = vmatprep.subr.mxu0 0.0
    %6511 = vmatpush1.msra.mxu0 0.0
    %6512 = vmatprep.subr.mxu0 0.0
    %6513 = vmatpush1.msra.mxu0 0.0
    %6514 = vmatprep.subr.mxu0 0.0
    %6515 = vmatpush1.msra.mxu0 0.0
    %6516 = vmatprep.subr.mxu0 0.0
    %6517 = vmatpush1.msra.mxu0 0.0
    %6518 = vmatprep.subr.mxu0 0.0
    %6519 = vmatpush1.msra.mxu0 0.0
    %6520 = vmatprep.mubr.f32.mxu0 0.0
    %6521 = vmatmul.mubr.f32.gmra.mrb[0].mxu0 %v6454
    %v6522 = vpop.f32.mrb[0].mxu0
    %v6523 = vadd.f32 %v5926, %v6522
    %v6524 = vpop.f32.mrb[0].mxu0
    %6525 = vdwg.mxu0
    %v6526 = vxor.u32 %v6523, 2147483648
    %v6527 = vmul.f32 %v6526, 1.442695
    %v6528 = vpow.pop %v6527
    %v6529 = vadd.f32 %v6528, 1.0
    %v6530 = vrcp.pop %v6529
    %v6531 = vmul.f32 1.0, %v6530
    %v6532 = vtanh.pop %v6523
    %v6533 = vmul.f32 %v6531, %v5520
    %6535 = vrot.lane.b32.xlu0 %v6532, 64
    %v6536 = vpop.permute.xlu0 %6535
    %v6538 = vmul.f32 %v6531, %v6536
    %6540 = vrot.lane.b32.xlu0 %v6538, 32
    %v6541 = vpop.permute.xlu0 %6540
    %v6543 = vadd.f32 %v6533, %v6541
    %v6544 = vtanh.pop %v6543
    %6546 = vrot.lane.b32.xlu0 %v6544, 64
    %v6547 = vpop.permute.xlu0 %6546
    %v6549 = vmul.f32 %v6531, %v6547
    %6551 = vrot.lane.b32.xlu0 %v6549, 32
    %v6552 = vpop.permute.xlu0 %6551
    %v6553 = vsel %vm783, %v6552, 0
    %6555 = vmatprep.subr.mxu0 0.0
    %6556 = vmatpush1.msra.mxu0 %v1425
    %6557 = vmatprep.subr.mxu0 0.0
    %6558 = vmatpush1.msra.mxu0 %v1426
    %6559 = vmatprep.subr.mxu0 0.0
    %6560 = vmatpush1.msra.mxu0 %v1427
    %6561 = vmatprep.subr.mxu0 0.0
    %6562 = vmatpush1.msra.mxu0 %v1428
    %6563 = vmatprep.subr.mxu0 0.0
    %6564 = vmatpush1.msra.mxu0 0.0
    %6565 = vmatprep.subr.mxu0 0.0
    %6566 = vmatpush1.msra.mxu0 0.0
    %6567 = vmatprep.subr.mxu0 0.0
    %6568 = vmatpush1.msra.mxu0 0.0
    %6569 = vmatprep.subr.mxu0 0.0
    %6570 = vmatpush1.msra.mxu0 0.0
    %6571 = vmatprep.subr.mxu0 0.0
    %6572 = vmatpush1.msra.mxu0 0.0
    %6573 = vmatprep.subr.mxu0 0.0
    %6574 = vmatpush1.msra.mxu0 0.0
    %6575 = vmatprep.subr.mxu0 0.0
    %6576 = vmatpush1.msra.mxu0 0.0
    %6577 = vmatprep.subr.mxu0 0.0
    %6578 = vmatpush1.msra.mxu0 0.0
    %6579 = vmatprep.subr.mxu0 0.0
    %6580 = vmatpush1.msra.mxu0 0.0
    %6581 = vmatprep.subr.mxu0 0.0
    %6582 = vmatpush1.msra.mxu0 0.0
    %6583 = vmatprep.subr.mxu0 0.0
    %6584 = vmatpush1.msra.mxu0 0.0
    %6585 = vmatprep.subr.mxu0 0.0
    %6586 = vmatpush1.msra.mxu0 0.0
    %6587 = vmatprep.subr.mxu0 0.0
    %6588 = vmatpush1.msra.mxu0 0.0
    %6589 = vmatprep.subr.mxu0 0.0
    %6590 = vmatpush1.msra.mxu0 0.0
    %6591 = vmatprep.subr.mxu0 0.0
    %6592 = vmatpush1.msra.mxu0 0.0
    %6593 = vmatprep.subr.mxu0 0.0
    %6594 = vmatpush1.msra.mxu0 0.0
    %6595 = vmatprep.subr.mxu0 0.0
    %6596 = vmatpush1.msra.mxu0 0.0
    %6597 = vmatprep.subr.mxu0 0.0
    %6598 = vmatpush1.msra.mxu0 0.0
    %6599 = vmatprep.subr.mxu0 0.0
    %6600 = vmatpush1.msra.mxu0 0.0
    %6601 = vmatprep.subr.mxu0 0.0
    %6602 = vmatpush1.msra.mxu0 0.0
    %6603 = vmatprep.subr.mxu0 0.0
    %6604 = vmatpush1.msra.mxu0 0.0
    %6605 = vmatprep.subr.mxu0 0.0
    %6606 = vmatpush1.msra.mxu0 0.0
    %6607 = vmatprep.subr.mxu0 0.0
    %6608 = vmatpush1.msra.mxu0 0.0
    %6609 = vmatprep.subr.mxu0 0.0
    %6610 = vmatpush1.msra.mxu0 0.0
    %6611 = vmatprep.subr.mxu0 0.0
    %6612 = vmatpush1.msra.mxu0 0.0
    %6613 = vmatprep.subr.mxu0 0.0
    %6614 = vmatpush1.msra.mxu0 0.0
    %6615 = vmatprep.subr.mxu0 0.0
    %6616 = vmatpush1.msra.mxu0 0.0
    %6617 = vmatprep.subr.mxu0 0.0
    %6618 = vmatpush1.msra.mxu0 0.0
    %6619 = vmatprep.mubr.f32.mxu0 0.0
    %6620 = vmatmul.mubr.f32.gmra.mrb[0].mxu0 %v6553
    %v6621 = vpop.f32.mrb[0].mxu0
    %v6622 = vadd.f32 %v5928, %v6621
    %v6623 = vpop.f32.mrb[0].mxu0
    %6624 = vdwg.mxu0
    %v6625 = vxor.u32 %v6622, 2147483648
    %v6626 = vmul.f32 %v6625, 1.442695
    %v6627 = vpow.pop %v6626
    %v6628 = vadd.f32 %v6627, 1.0
    %v6629 = vrcp.pop %v6628
    %v6630 = vmul.f32 1.0, %v6629
    %v6631 = vtanh.pop %v6622
    %v6632 = vmul.f32 %v6630, %v5619
    %6634 = vrot.lane.b32.xlu0 %v6631, 64
    %v6635 = vpop.permute.xlu0 %6634
    %v6637 = vmul.f32 %v6630, %v6635
    %6639 = vrot.lane.b32.xlu0 %v6637, 32
    %v6640 = vpop.permute.xlu0 %6639
    %v6642 = vadd.f32 %v6632, %v6640
    %v6643 = vtanh.pop %v6642
    %6645 = vrot.lane.b32.xlu0 %v6643, 64
    %v6646 = vpop.permute.xlu0 %6645
    %v6648 = vmul.f32 %v6630, %v6646
    %6650 = vrot.lane.b32.xlu0 %v6054, 64
    %v6651 = vpop.permute.xlu0 %6650
    %6653 = vrot.lane.b32.xlu0 %v6153, 96
    %v6654 = vpop.permute.xlu0 %6653
    %6657 = vrot.lane.b32.xlu0 %v6450, 64
    %v6658 = vpop.permute.xlu0 %6657
    %6660 = vrot.lane.b32.xlu0 %v6549, 96
    %v6661 = vpop.permute.xlu0 %6660
    %v6663 = vsel %vm783, %v5958, %v6651
    %v6664 = vsel %vm1547, %v6663, %v6654
    %v6665 = vsel %vm1549, %v6664, %v6252
    %v6666 = vsel %vm783, %v6354, %v6658
    %v6667 = vsel %vm1547, %v6666, %v6661
    %v6668 = vsel %vm1549, %v6667, %v6648
    %6669 = vmatprep.subr.mxu0 %v149
    %6670 = vmatpush1.msra.mxu0 %v148
    %6671 = vmatprep.subr.mxu0 %v157
    %6672 = vmatpush1.msra.mxu0 %v156
    %6673 = vmatprep.subr.mxu0 %v165
    %6674 = vmatpush1.msra.mxu0 %v164
    %6675 = vmatprep.subr.mxu0 %v173
    %6676 = vmatpush1.msra.mxu0 %v172
    %6677 = vmatprep.subr.mxu0 %v181
    %6678 = vmatpush1.msra.mxu0 %v180
    %6679 = vmatprep.subr.mxu0 %v189
    %6680 = vmatpush1.msra.mxu0 %v188
    %6681 = vmatprep.subr.mxu0 %v197
    %6682 = vmatpush1.msra.mxu0 %v196
    %6683 = vmatprep.subr.mxu0 %v205
    %6684 = vmatpush1.msra.mxu0 %v204
    %6685 = vmatprep.subr.mxu0 %v213
    %6686 = vmatpush1.msra.mxu0 %v212
    %6687 = vmatprep.subr.mxu0 %v221
    %6688 = vmatpush1.msra.mxu0 %v220
    %6689 = vmatprep.subr.mxu0 %v229
    %6690 = vmatpush1.msra.mxu0 %v228
    %6691 = vmatprep.subr.mxu0 %v237
    %6692 = vmatpush1.msra.mxu0 %v236
    %6693 = vmatprep.subr.mxu0 %v245
    %6694 = vmatpush1.msra.mxu0 %v244
    %6695 = vmatprep.subr.mxu0 %v253
    %6696 = vmatpush1.msra.mxu0 %v252
    %6697 = vmatprep.subr.mxu0 %v261
    %6698 = vmatpush1.msra.mxu0 %v260
    %6699 = vmatprep.subr.mxu0 %v269
    %6700 = vmatpush1.msra.mxu0 %v268
    %6701 = vmatprep.subr.mxu0 %v277
    %6702 = vmatpush1.msra.mxu0 %v276
    %6703 = vmatprep.subr.mxu0 %v285
    %6704 = vmatpush1.msra.mxu0 %v284
    %6705 = vmatprep.subr.mxu0 %v293
    %6706 = vmatpush1.msra.mxu0 %v292
    %6707 = vmatprep.subr.mxu0 %v301
    %6708 = vmatpush1.msra.mxu0 %v300
    %6709 = vmatprep.subr.mxu0 %v309
    %6710 = vmatpush1.msra.mxu0 %v308
    %6711 = vmatprep.subr.mxu0 %v317
    %6712 = vmatpush1.msra.mxu0 %v316
    %6713 = vmatprep.subr.mxu0 %v325
    %6714 = vmatpush1.msra.mxu0 %v324
    %6715 = vmatprep.subr.mxu0 %v333
    %6716 = vmatpush1.msra.mxu0 %v332
    %6717 = vmatprep.subr.mxu0 %v341
    %6718 = vmatpush1.msra.mxu0 %v340
    %6719 = vmatprep.subr.mxu0 %v349
    %6720 = vmatpush1.msra.mxu0 %v348
    %6721 = vmatprep.subr.mxu0 %v357
    %6722 = vmatpush1.msra.mxu0 %v356
    %6723 = vmatprep.subr.mxu0 %v365
    %6724 = vmatpush1.msra.mxu0 %v364
    %6725 = vmatprep.subr.mxu0 %v373
    %6726 = vmatpush1.msra.mxu0 %v372
    %6727 = vmatprep.subr.mxu0 %v381
    %6728 = vmatpush1.msra.mxu0 %v380
    %6729 = vmatprep.subr.mxu0 %v389
    %6730 = vmatpush1.msra.mxu0 %v388
    %6731 = vmatprep.subr.mxu0 %v397
    %6732 = vmatpush1.msra.mxu0 %v396
    %6733 = vmatprep.mubr.f32.mxu0 %v6668
    %6734 = vmatmul.mubr.f32.gmra.mrb[0].mxu0 %v6665
    %v6735 = vpop.f32.mrb[0].mxu0
    %v6736 = vadd.f32 %v408, %v6735
    %v6737 = vpop.f32.mrb[0].mxu0
    %v6738 = vadd.f32 %v412, %v6737
    %6739 = vdwg.mxu0
    %6740 = vmatprep.subr.mxu0 %v151
    %6741 = vmatpush1.msra.mxu0 %v150
    %6742 = vmatprep.subr.mxu0 %v159
    %6743 = vmatpush1.msra.mxu0 %v158
    %6744 = vmatprep.subr.mxu0 %v167
    %6745 = vmatpush1.msra.mxu0 %v166
    %6746 = vmatprep.subr.mxu0 %v175
    %6747 = vmatpush1.msra.mxu0 %v174
    %6748 = vmatprep.subr.mxu0 %v183
    %6749 = vmatpush1.msra.mxu0 %v182
    %6750 = vmatprep.subr.mxu0 %v191
    %6751 = vmatpush1.msra.mxu0 %v190
    %6752 = vmatprep.subr.mxu0 %v199
    %6753 = vmatpush1.msra.mxu0 %v198
    %6754 = vmatprep.subr.mxu0 %v207
    %6755 = vmatpush1.msra.mxu0 %v206
    %6756 = vmatprep.subr.mxu0 %v215
    %6757 = vmatpush1.msra.mxu0 %v214
    %6758 = vmatprep.subr.mxu0 %v223
    %6759 = vmatpush1.msra.mxu0 %v222
    %6760 = vmatprep.subr.mxu0 %v231
    %6761 = vmatpush1.msra.mxu0 %v230
    %6762 = vmatprep.subr.mxu0 %v239
    %6763 = vmatpush1.msra.mxu0 %v238
    %6764 = vmatprep.subr.mxu0 %v247
    %6765 = vmatpush1.msra.mxu0 %v246
    %6766 = vmatprep.subr.mxu0 %v255
    %6767 = vmatpush1.msra.mxu0 %v254
    %6768 = vmatprep.subr.mxu0 %v263
    %6769 = vmatpush1.msra.mxu0 %v262
    %6770 = vmatprep.subr.mxu0 %v271
    %6771 = vmatpush1.msra.mxu0 %v270
    %6772 = vmatprep.subr.mxu0 %v279
    %6773 = vmatpush1.msra.mxu0 %v278
    %6774 = vmatprep.subr.mxu0 %v287
    %6775 = vmatpush1.msra.mxu0 %v286
    %6776 = vmatprep.subr.mxu0 %v295
    %6777 = vmatpush1.msra.mxu0 %v294
    %6778 = vmatprep.subr.mxu0 %v303
    %6779 = vmatpush1.msra.mxu0 %v302
    %6780 = vmatprep.subr.mxu0 %v311
    %6781 = vmatpush1.msra.mxu0 %v310
    %6782 = vmatprep.subr.mxu0 %v319
    %6783 = vmatpush1.msra.mxu0 %v318
    %6784 = vmatprep.subr.mxu0 %v327
    %6785 = vmatpush1.msra.mxu0 %v326
    %6786 = vmatprep.subr.mxu0 %v335
    %6787 = vmatpush1.msra.mxu0 %v334
    %6788 = vmatprep.subr.mxu0 %v343
    %6789 = vmatpush1.msra.mxu0 %v342
    %6790 = vmatprep.subr.mxu0 %v351
    %6791 = vmatpush1.msra.mxu0 %v350
    %6792 = vmatprep.subr.mxu0 %v359
    %6793 = vmatpush1.msra.mxu0 %v358
    %6794 = vmatprep.subr.mxu0 %v367
    %6795 = vmatpush1.msra.mxu0 %v366
    %6796 = vmatprep.subr.mxu0 %v375
    %6797 = vmatpush1.msra.mxu0 %v374
    %6798 = vmatprep.subr.mxu0 %v383
    %6799 = vmatpush1.msra.mxu0 %v382
    %6800 = vmatprep.subr.mxu0 %v391
    %6801 = vmatpush1.msra.mxu0 %v390
    %6802 = vmatprep.subr.mxu0 %v399
    %6803 = vmatpush1.msra.mxu0 %v398
    %6804 = vmatprep.mubr.f32.mxu0 %v6668
    %6805 = vmatmul.mubr.f32.gmra.mrb[0].mxu0 %v6665
    %v6806 = vpop.f32.mrb[0].mxu0
    %v6807 = vadd.f32 %v416, %v6806
    %v6808 = vpop.f32.mrb[0].mxu0
    %v6809 = vadd.f32 %v420, %v6808
    %6810 = vdwg.mxu0
    %6811 = vmatprep.subr.mxu0 %v153
    %6812 = vmatpush1.msra.mxu0 %v152
    %6813 = vmatprep.subr.mxu0 %v161
    %6814 = vmatpush1.msra.mxu0 %v160
    %6815 = vmatprep.subr.mxu0 %v169
    %6816 = vmatpush1.msra.mxu0 %v168
    %6817 = vmatprep.subr.mxu0 %v177
    %6818 = vmatpush1.msra.mxu0 %v176
    %6819 = vmatprep.subr.mxu0 %v185
    %6820 = vmatpush1.msra.mxu0 %v184
    %6821 = vmatprep.subr.mxu0 %v193
    %6822 = vmatpush1.msra.mxu0 %v192
    %6823 = vmatprep.subr.mxu0 %v201
    %6824 = vmatpush1.msra.mxu0 %v200
    %6825 = vmatprep.subr.mxu0 %v209
    %6826 = vmatpush1.msra.mxu0 %v208
    %6827 = vmatprep.subr.mxu0 %v217
    %6828 = vmatpush1.msra.mxu0 %v216
    %6829 = vmatprep.subr.mxu0 %v225
    %6830 = vmatpush1.msra.mxu0 %v224
    %6831 = vmatprep.subr.mxu0 %v233
    %6832 = vmatpush1.msra.mxu0 %v232
    %6833 = vmatprep.subr.mxu0 %v241
    %6834 = vmatpush1.msra.mxu0 %v240
    %6835 = vmatprep.subr.mxu0 %v249
    %6836 = vmatpush1.msra.mxu0 %v248
    %6837 = vmatprep.subr.mxu0 %v257
    %6838 = vmatpush1.msra.mxu0 %v256
    %6839 = vmatprep.subr.mxu0 %v265
    %6840 = vmatpush1.msra.mxu0 %v264
    %6841 = vmatprep.subr.mxu0 %v273
    %6842 = vmatpush1.msra.mxu0 %v272
    %6843 = vmatprep.subr.mxu0 %v281
    %6844 = vmatpush1.msra.mxu0 %v280
    %6845 = vmatprep.subr.mxu0 %v289
    %6846 = vmatpush1.msra.mxu0 %v288
    %6847 = vmatprep.subr.mxu0 %v297
    %6848 = vmatpush1.msra.mxu0 %v296
    %6849 = vmatprep.subr.mxu0 %v305
    %6850 = vmatpush1.msra.mxu0 %v304
    %6851 = vmatprep.subr.mxu0 %v313
    %6852 = vmatpush1.msra.mxu0 %v312
    %6853 = vmatprep.subr.mxu0 %v321
    %6854 = vmatpush1.msra.mxu0 %v320
    %6855 = vmatprep.subr.mxu0 %v329
    %6856 = vmatpush1.msra.mxu0 %v328
    %6857 = vmatprep.subr.mxu0 %v337
    %6858 = vmatpush1.msra.mxu0 %v336
    %6859 = vmatprep.subr.mxu0 %v345
    %6860 = vmatpush1.msra.mxu0 %v344
    %6861 = vmatprep.subr.mxu0 %v353
    %6862 = vmatpush1.msra.mxu0 %v352
    %6863 = vmatprep.subr.mxu0 %v361
    %6864 = vmatpush1.msra.mxu0 %v360
    %6865 = vmatprep.subr.mxu0 %v369
    %6866 = vmatpush1.msra.mxu0 %v368
    %6867 = vmatprep.subr.mxu0 %v377
    %6868 = vmatpush1.msra.mxu0 %v376
    %6869 = vmatprep.subr.mxu0 %v385
    %6870 = vmatpush1.msra.mxu0 %v384
    %6871 = vmatprep.subr.mxu0 %v393
    %6872 = vmatpush1.msra.mxu0 %v392
    %6873 = vmatprep.subr.mxu0 %v401
    %6874 = vmatpush1.msra.mxu0 %v400
    %6875 = vmatprep.mubr.f32.mxu0 %v6668
    %6876 = vmatmul.mubr.f32.gmra.mrb[0].mxu0 %v6665
    %v6877 = vpop.f32.mrb[0].mxu0
    %v6878 = vadd.f32 %v424, %v6877
    %v6879 = vpop.f32.mrb[0].mxu0
    %v6880 = vadd.f32 %v428, %v6879
    %6881 = vdwg.mxu0
    %6882 = vmatprep.subr.mxu0 %v155
    %6883 = vmatpush1.msra.mxu0 %v154
    %6884 = vmatprep.subr.mxu0 %v163
    %6885 = vmatpush1.msra.mxu0 %v162
    %6886 = vmatprep.subr.mxu0 %v171
    %6887 = vmatpush1.msra.mxu0 %v170
    %6888 = vmatprep.subr.mxu0 %v179
    %6889 = vmatpush1.msra.mxu0 %v178
    %6890 = vmatprep.subr.mxu0 %v187
    %6891 = vmatpush1.msra.mxu0 %v186
    %6892 = vmatprep.subr.mxu0 %v195
    %6893 = vmatpush1.msra.mxu0 %v194
    %6894 = vmatprep.subr.mxu0 %v203
    %6895 = vmatpush1.msra.mxu0 %v202
    %6896 = vmatprep.subr.mxu0 %v211
    %6897 = vmatpush1.msra.mxu0 %v210
    %6898 = vmatprep.subr.mxu0 %v219
    %6899 = vmatpush1.msra.mxu0 %v218
    %6900 = vmatprep.subr.mxu0 %v227
    %6901 = vmatpush1.msra.mxu0 %v226
    %6902 = vmatprep.subr.mxu0 %v235
    %6903 = vmatpush1.msra.mxu0 %v234
    %6904 = vmatprep.subr.mxu0 %v243
    %6905 = vmatpush1.msra.mxu0 %v242
    %6906 = vmatprep.subr.mxu0 %v251
    %6907 = vmatpush1.msra.mxu0 %v250
    %6908 = vmatprep.subr.mxu0 %v259
    %6909 = vmatpush1.msra.mxu0 %v258
    %6910 = vmatprep.subr.mxu0 %v267
    %6911 = vmatpush1.msra.mxu0 %v266
    %6912 = vmatprep.subr.mxu0 %v275
    %6913 = vmatpush1.msra.mxu0 %v274
    %6914 = vmatprep.subr.mxu0 %v283
    %6915 = vmatpush1.msra.mxu0 %v282
    %6916 = vmatprep.subr.mxu0 %v291
    %6917 = vmatpush1.msra.mxu0 %v290
    %6918 = vmatprep.subr.mxu0 %v299
    %6919 = vmatpush1.msra.mxu0 %v298
    %6920 = vmatprep.subr.mxu0 %v307
    %6921 = vmatpush1.msra.mxu0 %v306
    %6922 = vmatprep.subr.mxu0 %v315
    %6923 = vmatpush1.msra.mxu0 %v314
    %6924 = vmatprep.subr.mxu0 %v323
    %6925 = vmatpush1.msra.mxu0 %v322
    %6926 = vmatprep.subr.mxu0 %v331
    %6927 = vmatpush1.msra.mxu0 %v330
    %6928 = vmatprep.subr.mxu0 %v339
    %6929 = vmatpush1.msra.mxu0 %v338
    %6930 = vmatprep.subr.mxu0 %v347
    %6931 = vmatpush1.msra.mxu0 %v346
    %6932 = vmatprep.subr.mxu0 %v355
    %6933 = vmatpush1.msra.mxu0 %v354
    %6934 = vmatprep.subr.mxu0 %v363
    %6935 = vmatpush1.msra.mxu0 %v362
    %6936 = vmatprep.subr.mxu0 %v371
    %6937 = vmatpush1.msra.mxu0 %v370
    %6938 = vmatprep.subr.mxu0 %v379
    %6939 = vmatpush1.msra.mxu0 %v378
    %6940 = vmatprep.subr.mxu0 %v387
    %6941 = vmatpush1.msra.mxu0 %v386
    %6942 = vmatprep.subr.mxu0 %v395
    %6943 = vmatpush1.msra.mxu0 %v394
    %6944 = vmatprep.subr.mxu0 %v403
    %6945 = vmatpush1.msra.mxu0 %v402
    %6946 = vmatprep.mubr.f32.mxu0 %v6668
    %6947 = vmatmul.mubr.f32.gmra.mrb[0].mxu0 %v6665
    %v6948 = vpop.f32.mrb[0].mxu0
    %v6949 = vadd.f32 %v432, %v6948
    %v6950 = vpop.f32.mrb[0].mxu0
    %v6951 = vadd.f32 %v436, %v6950
    %6952 = vdwg.mxu0
    %v6953 = vmul.f32 %v127, %v744
    %v6954 = vadd.f32 %v6953, %v6736
    %v6955 = vxor.u32 %v6954, 2147483648
    %v6956 = vmul.f32 %v6955, 1.442695
    %v6957 = vpow.pop %v6956
    %v6958 = vadd.f32 %v6957, 1.0
    %v6959 = vrcp.pop %v6958
    %v6960 = vmul.f32 1.0, %v6959
    %v6961 = vtanh.pop %v6954
    %v6962 = vmul.f32 %v6960, %v5949
    %6964 = vrot.lane.b32.xlu0 %v6961, 64
    %v6965 = vpop.permute.xlu0 %6964
    %v6967 = vmul.f32 %v6960, %v6965
    %6969 = vrot.lane.b32.xlu0 %v6967, 32
    %v6970 = vpop.permute.xlu0 %6969
    %v6972 = vadd.f32 %v6962, %v6970
    %v6973 = vtanh.pop %v6972
    %6975 = vrot.lane.b32.xlu0 %v6973, 64
    %v6976 = vpop.permute.xlu0 %6975
    %v6978 = vmul.f32 %v6960, %v6976
    %6980 = vrot.lane.b32.xlu0 %v6978, 32
    %v6981 = vpop.permute.xlu0 %6980
    %v6982 = vsel %vm783, %v6981, 0
    %6984 = vmatprep.subr.mxu0 0.0
    %6985 = vmatpush1.msra.mxu0 %v776
    %6986 = vmatprep.subr.mxu0 0.0
    %6987 = vmatpush1.msra.mxu0 %v777
    %6988 = vmatprep.subr.mxu0 0.0
    %6989 = vmatpush1.msra.mxu0 %v778
    %6990 = vmatprep.subr.mxu0 0.0
    %6991 = vmatpush1.msra.mxu0 %v779
    %6992 = vmatprep.subr.mxu0 0.0
    %6993 = vmatpush1.msra.mxu0 0.0
    %6994 = vmatprep.subr.mxu0 0.0
    %6995 = vmatpush1.msra.mxu0 0.0
    %6996 = vmatprep.subr.mxu0 0.0
    %6997 = vmatpush1.msra.mxu0 0.0
    %6998 = vmatprep.subr.mxu0 0.0
    %6999 = vmatpush1.msra.mxu0 0.0
    %7000 = vmatprep.subr.mxu0 0.0
    %7001 = vmatpush1.msra.mxu0 0.0
    %7002 = vmatprep.subr.mxu0 0.0
    %7003 = vmatpush1.msra.mxu0 0.0
    %7004 = vmatprep.subr.mxu0 0.0
    %7005 = vmatpush1.msra.mxu0 0.0
    %7006 = vmatprep.subr.mxu0 0.0
    %7007 = vmatpush1.msra.mxu0 0.0
    %7008 = vmatprep.subr.mxu0 0.0
    %7009 = vmatpush1.msra.mxu0 0.0
    %7010 = vmatprep.subr.mxu0 0.0
    %7011 = vmatpush1.msra.mxu0 0.0
    %7012 = vmatprep.subr.mxu0 0.0
    %7013 = vmatpush1.msra.mxu0 0.0
    %7014 = vmatprep.subr.mxu0 0.0
    %7015 = vmatpush1.msra.mxu0 0.0
    %7016 = vmatprep.subr.mxu0 0.0
    %7017 = vmatpush1.msra.mxu0 0.0
    %7018 = vmatprep.subr.mxu0 0.0
    %7019 = vmatpush1.msra.mxu0 0.0
    %7020 = vmatprep.subr.mxu0 0.0
    %7021 = vmatpush1.msra.mxu0 0.0
    %7022 = vmatprep.subr.mxu0 0.0
    %7023 = vmatpush1.msra.mxu0 0.0
    %7024 = vmatprep.subr.mxu0 0.0
    %7025 = vmatpush1.msra.mxu0 0.0
    %7026 = vmatprep.subr.mxu0 0.0
    %7027 = vmatpush1.msra.mxu0 0.0
    %7028 = vmatprep.subr.mxu0 0.0
    %7029 = vmatpush1.msra.mxu0 0.0
    %7030 = vmatprep.subr.mxu0 0.0
    %7031 = vmatpush1.msra.mxu0 0.0
    %7032 = vmatprep.subr.mxu0 0.0
    %7033 = vmatpush1.msra.mxu0 0.0
    %7034 = vmatprep.subr.mxu0 0.0
    %7035 = vmatpush1.msra.mxu0 0.0
    %7036 = vmatprep.subr.mxu0 0.0
    %7037 = vmatpush1.msra.mxu0 0.0
    %7038 = vmatprep.subr.mxu0 0.0
    %7039 = vmatpush1.msra.mxu0 0.0
    %7040 = vmatprep.subr.mxu0 0.0
    %7041 = vmatpush1.msra.mxu0 0.0
    %7042 = vmatprep.subr.mxu0 0.0
    %7043 = vmatpush1.msra.mxu0 0.0
    %7044 = vmatprep.subr.mxu0 0.0
    %7045 = vmatpush1.msra.mxu0 0.0
    %7046 = vmatprep.subr.mxu0 0.0
    %7047 = vmatpush1.msra.mxu0 0.0
    %7048 = vmatprep.mubr.f32.mxu0 0.0
    %7049 = vmatmul.mubr.f32.gmra.mrb[0].mxu0 %v6982
    %v7050 = vpop.f32.mrb[0].mxu0
    %v7051 = vadd.f32 %v6738, %v7050
    %v7052 = vpop.f32.mrb[0].mxu0
    %7053 = vdwg.mxu0
    %v7054 = vxor.u32 %v7051, 2147483648
    %v7055 = vmul.f32 %v7054, 1.442695
    %v7056 = vpow.pop %v7055
    %v7057 = vadd.f32 %v7056, 1.0
    %v7058 = vrcp.pop %v7057
    %v7059 = vmul.f32 1.0, %v7058
    %v7060 = vtanh.pop %v7051
    %v7061 = vmul.f32 %v7059, %v6048
    %7063 = vrot.lane.b32.xlu0 %v7060, 64
    %v7064 = vpop.permute.xlu0 %7063
    %v7066 = vmul.f32 %v7059, %v7064
    %7068 = vrot.lane.b32.xlu0 %v7066, 32
    %v7069 = vpop.permute.xlu0 %7068
    %v7071 = vadd.f32 %v7061, %v7069
    %v7072 = vtanh.pop %v7071
    %7074 = vrot.lane.b32.xlu0 %v7072, 64
    %v7075 = vpop.permute.xlu0 %7074
    %v7077 = vmul.f32 %v7059, %v7075
    %7079 = vrot.lane.b32.xlu0 %v7077, 32
    %v7080 = vpop.permute.xlu0 %7079
    %v7081 = vsel %vm783, %v7080, 0
    %7083 = vmatprep.subr.mxu0 0.0
    %7084 = vmatpush1.msra.mxu0 %v885
    %7085 = vmatprep.subr.mxu0 0.0
    %7086 = vmatpush1.msra.mxu0 %v886
    %7087 = vmatprep.subr.mxu0 0.0
    %7088 = vmatpush1.msra.mxu0 %v887
    %7089 = vmatprep.subr.mxu0 0.0
    %7090 = vmatpush1.msra.mxu0 %v888
    %7091 = vmatprep.subr.mxu0 0.0
    %7092 = vmatpush1.msra.mxu0 0.0
    %7093 = vmatprep.subr.mxu0 0.0
    %7094 = vmatpush1.msra.mxu0 0.0
    %7095 = vmatprep.subr.mxu0 0.0
    %7096 = vmatpush1.msra.mxu0 0.0
    %7097 = vmatprep.subr.mxu0 0.0
    %7098 = vmatpush1.msra.mxu0 0.0
    %7099 = vmatprep.subr.mxu0 0.0
    %7100 = vmatpush1.msra.mxu0 0.0
    %7101 = vmatprep.subr.mxu0 0.0
    %7102 = vmatpush1.msra.mxu0 0.0
    %7103 = vmatprep.subr.mxu0 0.0
    %7104 = vmatpush1.msra.mxu0 0.0
    %7105 = vmatprep.subr.mxu0 0.0
    %7106 = vmatpush1.msra.mxu0 0.0
    %7107 = vmatprep.subr.mxu0 0.0
    %7108 = vmatpush1.msra.mxu0 0.0
    %7109 = vmatprep.subr.mxu0 0.0
    %7110 = vmatpush1.msra.mxu0 0.0
    %7111 = vmatprep.subr.mxu0 0.0
    %7112 = vmatpush1.msra.mxu0 0.0
    %7113 = vmatprep.subr.mxu0 0.0
    %7114 = vmatpush1.msra.mxu0 0.0
    %7115 = vmatprep.subr.mxu0 0.0
    %7116 = vmatpush1.msra.mxu0 0.0
    %7117 = vmatprep.subr.mxu0 0.0
    %7118 = vmatpush1.msra.mxu0 0.0
    %7119 = vmatprep.subr.mxu0 0.0
    %7120 = vmatpush1.msra.mxu0 0.0
    %7121 = vmatprep.subr.mxu0 0.0
    %7122 = vmatpush1.msra.mxu0 0.0
    %7123 = vmatprep.subr.mxu0 0.0
    %7124 = vmatpush1.msra.mxu0 0.0
    %7125 = vmatprep.subr.mxu0 0.0
    %7126 = vmatpush1.msra.mxu0 0.0
    %7127 = vmatprep.subr.mxu0 0.0
    %7128 = vmatpush1.msra.mxu0 0.0
    %7129 = vmatprep.subr.mxu0 0.0
    %7130 = vmatpush1.msra.mxu0 0.0
    %7131 = vmatprep.subr.mxu0 0.0
    %7132 = vmatpush1.msra.mxu0 0.0
    %7133 = vmatprep.subr.mxu0 0.0
    %7134 = vmatpush1.msra.mxu0 0.0
    %7135 = vmatprep.subr.mxu0 0.0
    %7136 = vmatpush1.msra.mxu0 0.0
    %7137 = vmatprep.subr.mxu0 0.0
    %7138 = vmatpush1.msra.mxu0 0.0
    %7139 = vmatprep.subr.mxu0 0.0
    %7140 = vmatpush1.msra.mxu0 0.0
    %7141 = vmatprep.subr.mxu0 0.0
    %7142 = vmatpush1.msra.mxu0 0.0
    %7143 = vmatprep.subr.mxu0 0.0
    %7144 = vmatpush1.msra.mxu0 0.0
    %7145 = vmatprep.subr.mxu0 0.0
    %7146 = vmatpush1.msra.mxu0 0.0
    %7147 = vmatprep.mubr.f32.mxu0 0.0
    %7148 = vmatmul.mubr.f32.gmra.mrb[0].mxu0 %v7081
    %v7149 = vpop.f32.mrb[0].mxu0
    %v7150 = vadd.f32 %v6807, %v7149
    %v7151 = vpop.f32.mrb[0].mxu0
    %7152 = vdwg.mxu0
    %v7153 = vxor.u32 %v7150, 2147483648
    %v7154 = vmul.f32 %v7153, 1.442695
    %v7155 = vpow.pop %v7154
    %v7156 = vadd.f32 %v7155, 1.0
    %v7157 = vrcp.pop %v7156
    %v7158 = vmul.f32 1.0, %v7157
    %v7159 = vtanh.pop %v7150
    %v7160 = vmul.f32 %v7158, %v6147
    %7162 = vrot.lane.b32.xlu0 %v7159, 64
    %v7163 = vpop.permute.xlu0 %7162
    %v7165 = vmul.f32 %v7158, %v7163
    %7167 = vrot.lane.b32.xlu0 %v7165, 32
    %v7168 = vpop.permute.xlu0 %7167
    %v7170 = vadd.f32 %v7160, %v7168
    %v7171 = vtanh.pop %v7170
    %7173 = vrot.lane.b32.xlu0 %v7171, 64
    %v7174 = vpop.permute.xlu0 %7173
    %v7176 = vmul.f32 %v7158, %v7174
    %7178 = vrot.lane.b32.xlu0 %v7176, 32
    %v7179 = vpop.permute.xlu0 %7178
    %v7180 = vsel %vm783, %v7179, 0
    %7182 = vmatprep.subr.mxu0 0.0
    %7183 = vmatpush1.msra.mxu0 %v993
    %7184 = vmatprep.subr.mxu0 0.0
    %7185 = vmatpush1.msra.mxu0 %v994
    %7186 = vmatprep.subr.mxu0 0.0
    %7187 = vmatpush1.msra.mxu0 %v995
    %7188 = vmatprep.subr.mxu0 0.0
    %7189 = vmatpush1.msra.mxu0 %v996
    %7190 = vmatprep.subr.mxu0 0.0
    %7191 = vmatpush1.msra.mxu0 0.0
    %7192 = vmatprep.subr.mxu0 0.0
    %7193 = vmatpush1.msra.mxu0 0.0
    %7194 = vmatprep.subr.mxu0 0.0
    %7195 = vmatpush1.msra.mxu0 0.0
    %7196 = vmatprep.subr.mxu0 0.0
    %7197 = vmatpush1.msra.mxu0 0.0
    %7198 = vmatprep.subr.mxu0 0.0
    %7199 = vmatpush1.msra.mxu0 0.0
    %7200 = vmatprep.subr.mxu0 0.0
    %7201 = vmatpush1.msra.mxu0 0.0
    %7202 = vmatprep.subr.mxu0 0.0
    %7203 = vmatpush1.msra.mxu0 0.0
    %7204 = vmatprep.subr.mxu0 0.0
    %7205 = vmatpush1.msra.mxu0 0.0
    %7206 = vmatprep.subr.mxu0 0.0
    %7207 = vmatpush1.msra.mxu0 0.0
    %7208 = vmatprep.subr.mxu0 0.0
    %7209 = vmatpush1.msra.mxu0 0.0
    %7210 = vmatprep.subr.mxu0 0.0
    %7211 = vmatpush1.msra.mxu0 0.0
    %7212 = vmatprep.subr.mxu0 0.0
    %7213 = vmatpush1.msra.mxu0 0.0
    %7214 = vmatprep.subr.mxu0 0.0
    %7215 = vmatpush1.msra.mxu0 0.0
    %7216 = vmatprep.subr.mxu0 0.0
    %7217 = vmatpush1.msra.mxu0 0.0
    %7218 = vmatprep.subr.mxu0 0.0
    %7219 = vmatpush1.msra.mxu0 0.0
    %7220 = vmatprep.subr.mxu0 0.0
    %7221 = vmatpush1.msra.mxu0 0.0
    %7222 = vmatprep.subr.mxu0 0.0
    %7223 = vmatpush1.msra.mxu0 0.0
    %7224 = vmatprep.subr.mxu0 0.0
    %7225 = vmatpush1.msra.mxu0 0.0
    %7226 = vmatprep.subr.mxu0 0.0
    %7227 = vmatpush1.msra.mxu0 0.0
    %7228 = vmatprep.subr.mxu0 0.0
    %7229 = vmatpush1.msra.mxu0 0.0
    %7230 = vmatprep.subr.mxu0 0.0
    %7231 = vmatpush1.msra.mxu0 0.0
    %7232 = vmatprep.subr.mxu0 0.0
    %7233 = vmatpush1.msra.mxu0 0.0
    %7234 = vmatprep.subr.mxu0 0.0
    %7235 = vmatpush1.msra.mxu0 0.0
    %7236 = vmatprep.subr.mxu0 0.0
    %7237 = vmatpush1.msra.mxu0 0.0
    %7238 = vmatprep.subr.mxu0 0.0
    %7239 = vmatpush1.msra.mxu0 0.0
    %7240 = vmatprep.subr.mxu0 0.0
    %7241 = vmatpush1.msra.mxu0 0.0
    %7242 = vmatprep.subr.mxu0 0.0
    %7243 = vmatpush1.msra.mxu0 0.0
    %7244 = vmatprep.subr.mxu0 0.0
    %7245 = vmatpush1.msra.mxu0 0.0
    %7246 = vmatprep.mubr.f32.mxu0 0.0
    %7247 = vmatmul.mubr.f32.gmra.mrb[0].mxu0 %v7180
    %v7248 = vpop.f32.mrb[0].mxu0
    %v7249 = vadd.f32 %v6809, %v7248
    %v7250 = vpop.f32.mrb[0].mxu0
    %7251 = vdwg.mxu0
    %v7252 = vxor.u32 %v7249, 2147483648
    %v7253 = vmul.f32 %v7252, 1.442695
    %v7254 = vpow.pop %v7253
    %v7255 = vadd.f32 %v7254, 1.0
    %v7256 = vrcp.pop %v7255
    %v7257 = vmul.f32 1.0, %v7256
    %v7258 = vtanh.pop %v7249
    %v7259 = vmul.f32 %v7257, %v6246
    %7261 = vrot.lane.b32.xlu0 %v7258, 64
    %v7262 = vpop.permute.xlu0 %7261
    %v7264 = vmul.f32 %v7257, %v7262
    %7266 = vrot.lane.b32.xlu0 %v7264, 32
    %v7267 = vpop.permute.xlu0 %7266
    %v7269 = vadd.f32 %v7259, %v7267
    %v7270 = vtanh.pop %v7269
    %7272 = vrot.lane.b32.xlu0 %v7270, 64
    %v7273 = vpop.permute.xlu0 %7272
    %v7275 = vmul.f32 %v7257, %v7273
    %7277 = vrot.lane.b32.xlu0 %v7275, 32
    %v7278 = vpop.permute.xlu0 %7277
    %v7279 = vsel %vm783, %v7278, 0
    %7281 = vmatprep.subr.mxu0 0.0
    %7282 = vmatpush1.msra.mxu0 %v1101
    %7283 = vmatprep.subr.mxu0 0.0
    %7284 = vmatpush1.msra.mxu0 %v1102
    %7285 = vmatprep.subr.mxu0 0.0
    %7286 = vmatpush1.msra.mxu0 %v1103
    %7287 = vmatprep.subr.mxu0 0.0
    %7288 = vmatpush1.msra.mxu0 %v1104
    %7289 = vmatprep.subr.mxu0 0.0
    %7290 = vmatpush1.msra.mxu0 0.0
    %7291 = vmatprep.subr.mxu0 0.0
    %7292 = vmatpush1.msra.mxu0 0.0
    %7293 = vmatprep.subr.mxu0 0.0
    %7294 = vmatpush1.msra.mxu0 0.0
    %7295 = vmatprep.subr.mxu0 0.0
    %7296 = vmatpush1.msra.mxu0 0.0
    %7297 = vmatprep.subr.mxu0 0.0
    %7298 = vmatpush1.msra.mxu0 0.0
    %7299 = vmatprep.subr.mxu0 0.0
    %7300 = vmatpush1.msra.mxu0 0.0
    %7301 = vmatprep.subr.mxu0 0.0
    %7302 = vmatpush1.msra.mxu0 0.0
    %7303 = vmatprep.subr.mxu0 0.0
    %7304 = vmatpush1.msra.mxu0 0.0
    %7305 = vmatprep.subr.mxu0 0.0
    %7306 = vmatpush1.msra.mxu0 0.0
    %7307 = vmatprep.subr.mxu0 0.0
    %7308 = vmatpush1.msra.mxu0 0.0
    %7309 = vmatprep.subr.mxu0 0.0
    %7310 = vmatpush1.msra.mxu0 0.0
    %7311 = vmatprep.subr.mxu0 0.0
    %7312 = vmatpush1.msra.mxu0 0.0
    %7313 = vmatprep.subr.mxu0 0.0
    %7314 = vmatpush1.msra.mxu0 0.0
    %7315 = vmatprep.subr.mxu0 0.0
    %7316 = vmatpush1.msra.mxu0 0.0
    %7317 = vmatprep.subr.mxu0 0.0
    %7318 = vmatpush1.msra.mxu0 0.0
    %7319 = vmatprep.subr.mxu0 0.0
    %7320 = vmatpush1.msra.mxu0 0.0
    %7321 = vmatprep.subr.mxu0 0.0
    %7322 = vmatpush1.msra.mxu0 0.0
    %7323 = vmatprep.subr.mxu0 0.0
    %7324 = vmatpush1.msra.mxu0 0.0
    %7325 = vmatprep.subr.mxu0 0.0
    %7326 = vmatpush1.msra.mxu0 0.0
    %7327 = vmatprep.subr.mxu0 0.0
    %7328 = vmatpush1.msra.mxu0 0.0
    %7329 = vmatprep.subr.mxu0 0.0
    %7330 = vmatpush1.msra.mxu0 0.0
    %7331 = vmatprep.subr.mxu0 0.0
    %7332 = vmatpush1.msra.mxu0 0.0
    %7333 = vmatprep.subr.mxu0 0.0
    %7334 = vmatpush1.msra.mxu0 0.0
    %7335 = vmatprep.subr.mxu0 0.0
    %7336 = vmatpush1.msra.mxu0 0.0
    %7337 = vmatprep.subr.mxu0 0.0
    %7338 = vmatpush1.msra.mxu0 0.0
    %7339 = vmatprep.subr.mxu0 0.0
    %7340 = vmatpush1.msra.mxu0 0.0
    %7341 = vmatprep.subr.mxu0 0.0
    %7342 = vmatpush1.msra.mxu0 0.0
    %7343 = vmatprep.subr.mxu0 0.0
    %7344 = vmatpush1.msra.mxu0 0.0
    %7345 = vmatprep.mubr.f32.mxu0 0.0
    %7346 = vmatmul.mubr.f32.gmra.mrb[0].mxu0 %v7279
    %v7347 = vpop.f32.mrb[0].mxu0
    %v7348 = vadd.f32 %v6878, %v7347
    %v7349 = vpop.f32.mrb[0].mxu0
    %7350 = vdwg.mxu0
    %v7351 = vxor.u32 %v7348, 2147483648
    %v7352 = vmul.f32 %v7351, 1.442695
    %v7353 = vpow.pop %v7352
    %v7354 = vadd.f32 %v7353, 1.0
    %v7355 = vrcp.pop %v7354
    %v7356 = vmul.f32 1.0, %v7355
    %v7357 = vtanh.pop %v7348
    %v7358 = vmul.f32 %v7356, %v6345
    %7360 = vrot.lane.b32.xlu0 %v7357, 64
    %v7361 = vpop.permute.xlu0 %7360
    %v7363 = vmul.f32 %v7356, %v7361
    %7365 = vrot.lane.b32.xlu0 %v7363, 32
    %v7366 = vpop.permute.xlu0 %7365
    %v7368 = vadd.f32 %v7358, %v7366
    %v7369 = vtanh.pop %v7368
    %7371 = vrot.lane.b32.xlu0 %v7369, 64
    %v7372 = vpop.permute.xlu0 %7371
    %v7374 = vmul.f32 %v7356, %v7372
    %7376 = vrot.lane.b32.xlu0 %v7374, 32
    %v7377 = vpop.permute.xlu0 %7376
    %v7378 = vsel %vm783, %v7377, 0
    %7380 = vmatprep.subr.mxu0 0.0
    %7381 = vmatpush1.msra.mxu0 %v1209
    %7382 = vmatprep.subr.mxu0 0.0
    %7383 = vmatpush1.msra.mxu0 %v1210
    %7384 = vmatprep.subr.mxu0 0.0
    %7385 = vmatpush1.msra.mxu0 %v1211
    %7386 = vmatprep.subr.mxu0 0.0
    %7387 = vmatpush1.msra.mxu0 %v1212
    %7388 = vmatprep.subr.mxu0 0.0
    %7389 = vmatpush1.msra.mxu0 0.0
    %7390 = vmatprep.subr.mxu0 0.0
    %7391 = vmatpush1.msra.mxu0 0.0
    %7392 = vmatprep.subr.mxu0 0.0
    %7393 = vmatpush1.msra.mxu0 0.0
    %7394 = vmatprep.subr.mxu0 0.0
    %7395 = vmatpush1.msra.mxu0 0.0
    %7396 = vmatprep.subr.mxu0 0.0
    %7397 = vmatpush1.msra.mxu0 0.0
    %7398 = vmatprep.subr.mxu0 0.0
    %7399 = vmatpush1.msra.mxu0 0.0
    %7400 = vmatprep.subr.mxu0 0.0
    %7401 = vmatpush1.msra.mxu0 0.0
    %7402 = vmatprep.subr.mxu0 0.0
    %7403 = vmatpush1.msra.mxu0 0.0
    %7404 = vmatprep.subr.mxu0 0.0
    %7405 = vmatpush1.msra.mxu0 0.0
    %7406 = vmatprep.subr.mxu0 0.0
    %7407 = vmatpush1.msra.mxu0 0.0
    %7408 = vmatprep.subr.mxu0 0.0
    %7409 = vmatpush1.msra.mxu0 0.0
    %7410 = vmatprep.subr.mxu0 0.0
    %7411 = vmatpush1.msra.mxu0 0.0
    %7412 = vmatprep.subr.mxu0 0.0
    %7413 = vmatpush1.msra.mxu0 0.0
    %7414 = vmatprep.subr.mxu0 0.0
    %7415 = vmatpush1.msra.mxu0 0.0
    %7416 = vmatprep.subr.mxu0 0.0
    %7417 = vmatpush1.msra.mxu0 0.0
    %7418 = vmatprep.subr.mxu0 0.0
    %7419 = vmatpush1.msra.mxu0 0.0
    %7420 = vmatprep.subr.mxu0 0.0
    %7421 = vmatpush1.msra.mxu0 0.0
    %7422 = vmatprep.subr.mxu0 0.0
    %7423 = vmatpush1.msra.mxu0 0.0
    %7424 = vmatprep.subr.mxu0 0.0
    %7425 = vmatpush1.msra.mxu0 0.0
    %7426 = vmatprep.subr.mxu0 0.0
    %7427 = vmatpush1.msra.mxu0 0.0
    %7428 = vmatprep.subr.mxu0 0.0
    %7429 = vmatpush1.msra.mxu0 0.0
    %7430 = vmatprep.subr.mxu0 0.0
    %7431 = vmatpush1.msra.mxu0 0.0
    %7432 = vmatprep.subr.mxu0 0.0
    %7433 = vmatpush1.msra.mxu0 0.0
    %7434 = vmatprep.subr.mxu0 0.0
    %7435 = vmatpush1.msra.mxu0 0.0
    %7436 = vmatprep.subr.mxu0 0.0
    %7437 = vmatpush1.msra.mxu0 0.0
    %7438 = vmatprep.subr.mxu0 0.0
    %7439 = vmatpush1.msra.mxu0 0.0
    %7440 = vmatprep.subr.mxu0 0.0
    %7441 = vmatpush1.msra.mxu0 0.0
    %7442 = vmatprep.subr.mxu0 0.0
    %7443 = vmatpush1.msra.mxu0 0.0
    %7444 = vmatprep.mubr.f32.mxu0 0.0
    %7445 = vmatmul.mubr.f32.gmra.mrb[0].mxu0 %v7378
    %v7446 = vpop.f32.mrb[0].mxu0
    %v7447 = vadd.f32 %v6880, %v7446
    %v7448 = vpop.f32.mrb[0].mxu0
    %7449 = vdwg.mxu0
    %v7450 = vxor.u32 %v7447, 2147483648
    %v7451 = vmul.f32 %v7450, 1.442695
    %v7452 = vpow.pop %v7451
    %v7453 = vadd.f32 %v7452, 1.0
    %v7454 = vrcp.pop %v7453
    %v7455 = vmul.f32 1.0, %v7454
    %v7456 = vtanh.pop %v7447
    %v7457 = vmul.f32 %v7455, %v6444
    %7459 = vrot.lane.b32.xlu0 %v7456, 64
    %v7460 = vpop.permute.xlu0 %7459
    %v7462 = vmul.f32 %v7455, %v7460
    %7464 = vrot.lane.b32.xlu0 %v7462, 32
    %v7465 = vpop.permute.xlu0 %7464
    %v7467 = vadd.f32 %v7457, %v7465
    %v7468 = vtanh.pop %v7467
    %7470 = vrot.lane.b32.xlu0 %v7468, 64
    %v7471 = vpop.permute.xlu0 %7470
    %v7473 = vmul.f32 %v7455, %v7471
    %7475 = vrot.lane.b32.xlu0 %v7473, 32
    %v7476 = vpop.permute.xlu0 %7475
    %v7477 = vsel %vm783, %v7476, 0
    %7479 = vmatprep.subr.mxu0 0.0
    %7480 = vmatpush1.msra.mxu0 %v1317
    %7481 = vmatprep.subr.mxu0 0.0
    %7482 = vmatpush1.msra.mxu0 %v1318
    %7483 = vmatprep.subr.mxu0 0.0
    %7484 = vmatpush1.msra.mxu0 %v1319
    %7485 = vmatprep.subr.mxu0 0.0
    %7486 = vmatpush1.msra.mxu0 %v1320
    %7487 = vmatprep.subr.mxu0 0.0
    %7488 = vmatpush1.msra.mxu0 0.0
    %7489 = vmatprep.subr.mxu0 0.0
    %7490 = vmatpush1.msra.mxu0 0.0
    %7491 = vmatprep.subr.mxu0 0.0
    %7492 = vmatpush1.msra.mxu0 0.0
    %7493 = vmatprep.subr.mxu0 0.0
    %7494 = vmatpush1.msra.mxu0 0.0
    %7495 = vmatprep.subr.mxu0 0.0
    %7496 = vmatpush1.msra.mxu0 0.0
    %7497 = vmatprep.subr.mxu0 0.0
    %7498 = vmatpush1.msra.mxu0 0.0
    %7499 = vmatprep.subr.mxu0 0.0
    %7500 = vmatpush1.msra.mxu0 0.0
    %7501 = vmatprep.subr.mxu0 0.0
    %7502 = vmatpush1.msra.mxu0 0.0
    %7503 = vmatprep.subr.mxu0 0.0
    %7504 = vmatpush1.msra.mxu0 0.0
    %7505 = vmatprep.subr.mxu0 0.0
    %7506 = vmatpush1.msra.mxu0 0.0
    %7507 = vmatprep.subr.mxu0 0.0
    %7508 = vmatpush1.msra.mxu0 0.0
    %7509 = vmatprep.subr.mxu0 0.0
    %7510 = vmatpush1.msra.mxu0 0.0
    %7511 = vmatprep.subr.mxu0 0.0
    %7512 = vmatpush1.msra.mxu0 0.0
    %7513 = vmatprep.subr.mxu0 0.0
    %7514 = vmatpush1.msra.mxu0 0.0
    %7515 = vmatprep.subr.mxu0 0.0
    %7516 = vmatpush1.msra.mxu0 0.0
    %7517 = vmatprep.subr.mxu0 0.0
    %7518 = vmatpush1.msra.mxu0 0.0
    %7519 = vmatprep.subr.mxu0 0.0
    %7520 = vmatpush1.msra.mxu0 0.0
    %7521 = vmatprep.subr.mxu0 0.0
    %7522 = vmatpush1.msra.mxu0 0.0
    %7523 = vmatprep.subr.mxu0 0.0
    %7524 = vmatpush1.msra.mxu0 0.0
    %7525 = vmatprep.subr.mxu0 0.0
    %7526 = vmatpush1.msra.mxu0 0.0
    %7527 = vmatprep.subr.mxu0 0.0
    %7528 = vmatpush1.msra.mxu0 0.0
    %7529 = vmatprep.subr.mxu0 0.0
    %7530 = vmatpush1.msra.mxu0 0.0
    %7531 = vmatprep.subr.mxu0 0.0
    %7532 = vmatpush1.msra.mxu0 0.0
    %7533 = vmatprep.subr.mxu0 0.0
    %7534 = vmatpush1.msra.mxu0 0.0
    %7535 = vmatprep.subr.mxu0 0.0
    %7536 = vmatpush1.msra.mxu0 0.0
    %7537 = vmatprep.subr.mxu0 0.0
    %7538 = vmatpush1.msra.mxu0 0.0
    %7539 = vmatprep.subr.mxu0 0.0
    %7540 = vmatpush1.msra.mxu0 0.0
    %7541 = vmatprep.subr.mxu0 0.0
    %7542 = vmatpush1.msra.mxu0 0.0
    %7543 = vmatprep.mubr.f32.mxu0 0.0
    %7544 = vmatmul.mubr.f32.gmra.mrb[0].mxu0 %v7477
    %v7545 = vpop.f32.mrb[0].mxu0
    %v7546 = vadd.f32 %v6949, %v7545
    %v7547 = vpop.f32.mrb[0].mxu0
    %7548 = vdwg.mxu0
    %v7549 = vxor.u32 %v7546, 2147483648
    %v7550 = vmul.f32 %v7549, 1.442695
    %v7551 = vpow.pop %v7550
    %v7552 = vadd.f32 %v7551, 1.0
    %v7553 = vrcp.pop %v7552
    %v7554 = vmul.f32 1.0, %v7553
    %v7555 = vtanh.pop %v7546
    %v7556 = vmul.f32 %v7554, %v6543
    %7558 = vrot.lane.b32.xlu0 %v7555, 64
    %v7559 = vpop.permute.xlu0 %7558
    %v7561 = vmul.f32 %v7554, %v7559
    %7563 = vrot.lane.b32.xlu0 %v7561, 32
    %v7564 = vpop.permute.xlu0 %7563
    %v7566 = vadd.f32 %v7556, %v7564
    %v7567 = vtanh.pop %v7566
    %7569 = vrot.lane.b32.xlu0 %v7567, 64
    %v7570 = vpop.permute.xlu0 %7569
    %v7572 = vmul.f32 %v7554, %v7570
    %7574 = vrot.lane.b32.xlu0 %v7572, 32
    %v7575 = vpop.permute.xlu0 %7574
    %v7576 = vsel %vm783, %v7575, 0
    %7578 = vmatprep.subr.mxu0 0.0
    %7579 = vmatpush1.msra.mxu0 %v1425
    %7580 = vmatprep.subr.mxu0 0.0
    %7581 = vmatpush1.msra.mxu0 %v1426
    %7582 = vmatprep.subr.mxu0 0.0
    %7583 = vmatpush1.msra.mxu0 %v1427
    %7584 = vmatprep.subr.mxu0 0.0
    %7585 = vmatpush1.msra.mxu0 %v1428
    %7586 = vmatprep.subr.mxu0 0.0
    %7587 = vmatpush1.msra.mxu0 0.0
    %7588 = vmatprep.subr.mxu0 0.0
    %7589 = vmatpush1.msra.mxu0 0.0
    %7590 = vmatprep.subr.mxu0 0.0
    %7591 = vmatpush1.msra.mxu0 0.0
    %7592 = vmatprep.subr.mxu0 0.0
    %7593 = vmatpush1.msra.mxu0 0.0
    %7594 = vmatprep.subr.mxu0 0.0
    %7595 = vmatpush1.msra.mxu0 0.0
    %7596 = vmatprep.subr.mxu0 0.0
    %7597 = vmatpush1.msra.mxu0 0.0
    %7598 = vmatprep.subr.mxu0 0.0
    %7599 = vmatpush1.msra.mxu0 0.0
    %7600 = vmatprep.subr.mxu0 0.0
    %7601 = vmatpush1.msra.mxu0 0.0
    %7602 = vmatprep.subr.mxu0 0.0
    %7603 = vmatpush1.msra.mxu0 0.0
    %7604 = vmatprep.subr.mxu0 0.0
    %7605 = vmatpush1.msra.mxu0 0.0
    %7606 = vmatprep.subr.mxu0 0.0
    %7607 = vmatpush1.msra.mxu0 0.0
    %7608 = vmatprep.subr.mxu0 0.0
    %7609 = vmatpush1.msra.mxu0 0.0
    %7610 = vmatprep.subr.mxu0 0.0
    %7611 = vmatpush1.msra.mxu0 0.0
    %7612 = vmatprep.subr.mxu0 0.0
    %7613 = vmatpush1.msra.mxu0 0.0
    %7614 = vmatprep.subr.mxu0 0.0
    %7615 = vmatpush1.msra.mxu0 0.0
    %7616 = vmatprep.subr.mxu0 0.0
    %7617 = vmatpush1.msra.mxu0 0.0
    %7618 = vmatprep.subr.mxu0 0.0
    %7619 = vmatpush1.msra.mxu0 0.0
    %7620 = vmatprep.subr.mxu0 0.0
    %7621 = vmatpush1.msra.mxu0 0.0
    %7622 = vmatprep.subr.mxu0 0.0
    %7623 = vmatpush1.msra.mxu0 0.0
    %7624 = vmatprep.subr.mxu0 0.0
    %7625 = vmatpush1.msra.mxu0 0.0
    %7626 = vmatprep.subr.mxu0 0.0
    %7627 = vmatpush1.msra.mxu0 0.0
    %7628 = vmatprep.subr.mxu0 0.0
    %7629 = vmatpush1.msra.mxu0 0.0
    %7630 = vmatprep.subr.mxu0 0.0
    %7631 = vmatpush1.msra.mxu0 0.0
    %7632 = vmatprep.subr.mxu0 0.0
    %7633 = vmatpush1.msra.mxu0 0.0
    %7634 = vmatprep.subr.mxu0 0.0
    %7635 = vmatpush1.msra.mxu0 0.0
    %7636 = vmatprep.subr.mxu0 0.0
    %7637 = vmatpush1.msra.mxu0 0.0
    %7638 = vmatprep.subr.mxu0 0.0
    %7639 = vmatpush1.msra.mxu0 0.0
    %7640 = vmatprep.subr.mxu0 0.0
    %7641 = vmatpush1.msra.mxu0 0.0
    %7642 = vmatprep.mubr.f32.mxu0 0.0
    %7643 = vmatmul.mubr.f32.gmra.mrb[0].mxu0 %v7576
    %v7644 = vpop.f32.mrb[0].mxu0
    %v7645 = vadd.f32 %v6951, %v7644
    %v7646 = vpop.f32.mrb[0].mxu0
    %7647 = vdwg.mxu0
    %v7648 = vxor.u32 %v7645, 2147483648
    %v7649 = vmul.f32 %v7648, 1.442695
    %v7650 = vpow.pop %v7649
    %v7651 = vadd.f32 %v7650, 1.0
    %v7652 = vrcp.pop %v7651
    %v7653 = vmul.f32 1.0, %v7652
    %v7654 = vtanh.pop %v7645
    %v7655 = vmul.f32 %v7653, %v6642
    %7657 = vrot.lane.b32.xlu0 %v7654, 64
    %v7658 = vpop.permute.xlu0 %7657
    %v7660 = vmul.f32 %v7653, %v7658
    %7662 = vrot.lane.b32.xlu0 %v7660, 32
    %v7663 = vpop.permute.xlu0 %7662
    %v7665 = vadd.f32 %v7655, %v7663
    %v7666 = vtanh.pop %v7665
    %7668 = vrot.lane.b32.xlu0 %v7666, 64
    %v7669 = vpop.permute.xlu0 %7668
    %v7671 = vmul.f32 %v7653, %v7669
    %7673 = vrot.lane.b32.xlu0 %v7077, 64
    %v7674 = vpop.permute.xlu0 %7673
    %7676 = vrot.lane.b32.xlu0 %v7176, 96
    %v7677 = vpop.permute.xlu0 %7676
    %7680 = vrot.lane.b32.xlu0 %v7473, 64
    %v7681 = vpop.permute.xlu0 %7680
    %7683 = vrot.lane.b32.xlu0 %v7572, 96
    %v7684 = vpop.permute.xlu0 %7683
    %v7686 = vsel %vm783, %v6981, %v7674
    %v7687 = vsel %vm1547, %v7686, %v7677
    %v7688 = vsel %vm1549, %v7687, %v7275
    %v7689 = vsel %vm783, %v7377, %v7681
    %v7690 = vsel %vm1547, %v7689, %v7684
    %v7691 = vsel %vm1549, %v7690, %v7671
    %7692 = vmatprep.subr.mxu0 %v149
    %7693 = vmatpush1.msra.mxu0 %v148
    %7694 = vmatprep.subr.mxu0 %v157
    %7695 = vmatpush1.msra.mxu0 %v156
    %7696 = vmatprep.subr.mxu0 %v165
    %7697 = vmatpush1.msra.mxu0 %v164
    %7698 = vmatprep.subr.mxu0 %v173
    %7699 = vmatpush1.msra.mxu0 %v172
    %7700 = vmatprep.subr.mxu0 %v181
    %7701 = vmatpush1.msra.mxu0 %v180
    %7702 = vmatprep.subr.mxu0 %v189
    %7703 = vmatpush1.msra.mxu0 %v188
    %7704 = vmatprep.subr.mxu0 %v197
    %7705 = vmatpush1.msra.mxu0 %v196
    %7706 = vmatprep.subr.mxu0 %v205
    %7707 = vmatpush1.msra.mxu0 %v204
    %7708 = vmatprep.subr.mxu0 %v213
    %7709 = vmatpush1.msra.mxu0 %v212
    %7710 = vmatprep.subr.mxu0 %v221
    %7711 = vmatpush1.msra.mxu0 %v220
    %7712 = vmatprep.subr.mxu0 %v229
    %7713 = vmatpush1.msra.mxu0 %v228
    %7714 = vmatprep.subr.mxu0 %v237
    %7715 = vmatpush1.msra.mxu0 %v236
    %7716 = vmatprep.subr.mxu0 %v245
    %7717 = vmatpush1.msra.mxu0 %v244
    %7718 = vmatprep.subr.mxu0 %v253
    %7719 = vmatpush1.msra.mxu0 %v252
    %7720 = vmatprep.subr.mxu0 %v261
    %7721 = vmatpush1.msra.mxu0 %v260
    %7722 = vmatprep.subr.mxu0 %v269
    %7723 = vmatpush1.msra.mxu0 %v268
    %7724 = vmatprep.subr.mxu0 %v277
    %7725 = vmatpush1.msra.mxu0 %v276
    %7726 = vmatprep.subr.mxu0 %v285
    %7727 = vmatpush1.msra.mxu0 %v284
    %7728 = vmatprep.subr.mxu0 %v293
    %7729 = vmatpush1.msra.mxu0 %v292
    %7730 = vmatprep.subr.mxu0 %v301
    %7731 = vmatpush1.msra.mxu0 %v300
    %7732 = vmatprep.subr.mxu0 %v309
    %7733 = vmatpush1.msra.mxu0 %v308
    %7734 = vmatprep.subr.mxu0 %v317
    %7735 = vmatpush1.msra.mxu0 %v316
    %7736 = vmatprep.subr.mxu0 %v325
    %7737 = vmatpush1.msra.mxu0 %v324
    %7738 = vmatprep.subr.mxu0 %v333
    %7739 = vmatpush1.msra.mxu0 %v332
    %7740 = vmatprep.subr.mxu0 %v341
    %7741 = vmatpush1.msra.mxu0 %v340
    %7742 = vmatprep.subr.mxu0 %v349
    %7743 = vmatpush1.msra.mxu0 %v348
    %7744 = vmatprep.subr.mxu0 %v357
    %7745 = vmatpush1.msra.mxu0 %v356
    %7746 = vmatprep.subr.mxu0 %v365
    %7747 = vmatpush1.msra.mxu0 %v364
    %7748 = vmatprep.subr.mxu0 %v373
    %7749 = vmatpush1.msra.mxu0 %v372
    %7750 = vmatprep.subr.mxu0 %v381
    %7751 = vmatpush1.msra.mxu0 %v380
    %7752 = vmatprep.subr.mxu0 %v389
    %7753 = vmatpush1.msra.mxu0 %v388
    %7754 = vmatprep.subr.mxu0 %v397
    %7755 = vmatpush1.msra.mxu0 %v396
    %7756 = vmatprep.mubr.f32.mxu0 %v7691
    %7757 = vmatmul.mubr.f32.gmra.mrb[0].mxu0 %v7688
    %v7758 = vpop.f32.mrb[0].mxu0
    %v7759 = vadd.f32 %v408, %v7758
    %v7760 = vpop.f32.mrb[0].mxu0
    %v7761 = vadd.f32 %v412, %v7760
    %7762 = vdwg.mxu0
    %7763 = vmatprep.subr.mxu0 %v151
    %7764 = vmatpush1.msra.mxu0 %v150
    %7765 = vmatprep.subr.mxu0 %v159
    %7766 = vmatpush1.msra.mxu0 %v158
    %7767 = vmatprep.subr.mxu0 %v167
    %7768 = vmatpush1.msra.mxu0 %v166
    %7769 = vmatprep.subr.mxu0 %v175
    %7770 = vmatpush1.msra.mxu0 %v174
    %7771 = vmatprep.subr.mxu0 %v183
    %7772 = vmatpush1.msra.mxu0 %v182
    %7773 = vmatprep.subr.mxu0 %v191
    %7774 = vmatpush1.msra.mxu0 %v190
    %7775 = vmatprep.subr.mxu0 %v199
    %7776 = vmatpush1.msra.mxu0 %v198
    %7777 = vmatprep.subr.mxu0 %v207
    %7778 = vmatpush1.msra.mxu0 %v206
    %7779 = vmatprep.subr.mxu0 %v215
    %7780 = vmatpush1.msra.mxu0 %v214
    %7781 = vmatprep.subr.mxu0 %v223
    %7782 = vmatpush1.msra.mxu0 %v222
    %7783 = vmatprep.subr.mxu0 %v231
    %7784 = vmatpush1.msra.mxu0 %v230
    %7785 = vmatprep.subr.mxu0 %v239
    %7786 = vmatpush1.msra.mxu0 %v238
    %7787 = vmatprep.subr.mxu0 %v247
    %7788 = vmatpush1.msra.mxu0 %v246
    %7789 = vmatprep.subr.mxu0 %v255
    %7790 = vmatpush1.msra.mxu0 %v254
    %7791 = vmatprep.subr.mxu0 %v263
    %7792 = vmatpush1.msra.mxu0 %v262
    %7793 = vmatprep.subr.mxu0 %v271
    %7794 = vmatpush1.msra.mxu0 %v270
    %7795 = vmatprep.subr.mxu0 %v279
    %7796 = vmatpush1.msra.mxu0 %v278
    %7797 = vmatprep.subr.mxu0 %v287
    %7798 = vmatpush1.msra.mxu0 %v286
    %7799 = vmatprep.subr.mxu0 %v295
    %7800 = vmatpush1.msra.mxu0 %v294
    %7801 = vmatprep.subr.mxu0 %v303
    %7802 = vmatpush1.msra.mxu0 %v302
    %7803 = vmatprep.subr.mxu0 %v311
    %7804 = vmatpush1.msra.mxu0 %v310
    %7805 = vmatprep.subr.mxu0 %v319
    %7806 = vmatpush1.msra.mxu0 %v318
    %7807 = vmatprep.subr.mxu0 %v327
    %7808 = vmatpush1.msra.mxu0 %v326
    %7809 = vmatprep.subr.mxu0 %v335
    %7810 = vmatpush1.msra.mxu0 %v334
    %7811 = vmatprep.subr.mxu0 %v343
    %7812 = vmatpush1.msra.mxu0 %v342
    %7813 = vmatprep.subr.mxu0 %v351
    %7814 = vmatpush1.msra.mxu0 %v350
    %7815 = vmatprep.subr.mxu0 %v359
    %7816 = vmatpush1.msra.mxu0 %v358
    %7817 = vmatprep.subr.mxu0 %v367
    %7818 = vmatpush1.msra.mxu0 %v366
    %7819 = vmatprep.subr.mxu0 %v375
    %7820 = vmatpush1.msra.mxu0 %v374
    %7821 = vmatprep.subr.mxu0 %v383
    %7822 = vmatpush1.msra.mxu0 %v382
    %7823 = vmatprep.subr.mxu0 %v391
    %7824 = vmatpush1.msra.mxu0 %v390
    %7825 = vmatprep.subr.mxu0 %v399
    %7826 = vmatpush1.msra.mxu0 %v398
    %7827 = vmatprep.mubr.f32.mxu0 %v7691
    %7828 = vmatmul.mubr.f32.gmra.mrb[0].mxu0 %v7688
    %v7829 = vpop.f32.mrb[0].mxu0
    %v7830 = vadd.f32 %v416, %v7829
    %v7831 = vpop.f32.mrb[0].mxu0
    %v7832 = vadd.f32 %v420, %v7831
    %7833 = vdwg.mxu0
    %7834 = vmatprep.subr.mxu0 %v153
    %7835 = vmatpush1.msra.mxu0 %v152
    %7836 = vmatprep.subr.mxu0 %v161
    %7837 = vmatpush1.msra.mxu0 %v160
    %7838 = vmatprep.subr.mxu0 %v169
    %7839 = vmatpush1.msra.mxu0 %v168
    %7840 = vmatprep.subr.mxu0 %v177
    %7841 = vmatpush1.msra.mxu0 %v176
    %7842 = vmatprep.subr.mxu0 %v185
    %7843 = vmatpush1.msra.mxu0 %v184
    %7844 = vmatprep.subr.mxu0 %v193
    %7845 = vmatpush1.msra.mxu0 %v192
    %7846 = vmatprep.subr.mxu0 %v201
    %7847 = vmatpush1.msra.mxu0 %v200
    %7848 = vmatprep.subr.mxu0 %v209
    %7849 = vmatpush1.msra.mxu0 %v208
    %7850 = vmatprep.subr.mxu0 %v217
    %7851 = vmatpush1.msra.mxu0 %v216
    %7852 = vmatprep.subr.mxu0 %v225
    %7853 = vmatpush1.msra.mxu0 %v224
    %7854 = vmatprep.subr.mxu0 %v233
    %7855 = vmatpush1.msra.mxu0 %v232
    %7856 = vmatprep.subr.mxu0 %v241
    %7857 = vmatpush1.msra.mxu0 %v240
    %7858 = vmatprep.subr.mxu0 %v249
    %7859 = vmatpush1.msra.mxu0 %v248
    %7860 = vmatprep.subr.mxu0 %v257
    %7861 = vmatpush1.msra.mxu0 %v256
    %7862 = vmatprep.subr.mxu0 %v265
    %7863 = vmatpush1.msra.mxu0 %v264
    %7864 = vmatprep.subr.mxu0 %v273
    %7865 = vmatpush1.msra.mxu0 %v272
    %7866 = vmatprep.subr.mxu0 %v281
    %7867 = vmatpush1.msra.mxu0 %v280
    %7868 = vmatprep.subr.mxu0 %v289
    %7869 = vmatpush1.msra.mxu0 %v288
    %7870 = vmatprep.subr.mxu0 %v297
    %7871 = vmatpush1.msra.mxu0 %v296
    %7872 = vmatprep.subr.mxu0 %v305
    %7873 = vmatpush1.msra.mxu0 %v304
    %7874 = vmatprep.subr.mxu0 %v313
    %7875 = vmatpush1.msra.mxu0 %v312
    %7876 = vmatprep.subr.mxu0 %v321
    %7877 = vmatpush1.msra.mxu0 %v320
    %7878 = vmatprep.subr.mxu0 %v329
    %7879 = vmatpush1.msra.mxu0 %v328
    %7880 = vmatprep.subr.mxu0 %v337
    %7881 = vmatpush1.msra.mxu0 %v336
    %7882 = vmatprep.subr.mxu0 %v345
    %7883 = vmatpush1.msra.mxu0 %v344
    %7884 = vmatprep.subr.mxu0 %v353
    %7885 = vmatpush1.msra.mxu0 %v352
    %7886 = vmatprep.subr.mxu0 %v361
    %7887 = vmatpush1.msra.mxu0 %v360
    %7888 = vmatprep.subr.mxu0 %v369
    %7889 = vmatpush1.msra.mxu0 %v368
    %7890 = vmatprep.subr.mxu0 %v377
    %7891 = vmatpush1.msra.mxu0 %v376
    %7892 = vmatprep.subr.mxu0 %v385
    %7893 = vmatpush1.msra.mxu0 %v384
    %7894 = vmatprep.subr.mxu0 %v393
    %7895 = vmatpush1.msra.mxu0 %v392
    %7896 = vmatprep.subr.mxu0 %v401
    %7897 = vmatpush1.msra.mxu0 %v400
    %7898 = vmatprep.mubr.f32.mxu0 %v7691
    %7899 = vmatmul.mubr.f32.gmra.mrb[0].mxu0 %v7688
    %v7900 = vpop.f32.mrb[0].mxu0
    %v7901 = vadd.f32 %v424, %v7900
    %v7902 = vpop.f32.mrb[0].mxu0
    %v7903 = vadd.f32 %v428, %v7902
    %7904 = vdwg.mxu0
    %7905 = vmatprep.subr.mxu0 %v155
    %7906 = vmatpush1.msra.mxu0 %v154
    %7907 = vmatprep.subr.mxu0 %v163
    %7908 = vmatpush1.msra.mxu0 %v162
    %7909 = vmatprep.subr.mxu0 %v171
    %7910 = vmatpush1.msra.mxu0 %v170
    %7911 = vmatprep.subr.mxu0 %v179
    %7912 = vmatpush1.msra.mxu0 %v178
    %7913 = vmatprep.subr.mxu0 %v187
    %7914 = vmatpush1.msra.mxu0 %v186
    %7915 = vmatprep.subr.mxu0 %v195
    %7916 = vmatpush1.msra.mxu0 %v194
    %7917 = vmatprep.subr.mxu0 %v203
    %7918 = vmatpush1.msra.mxu0 %v202
    %7919 = vmatprep.subr.mxu0 %v211
    %7920 = vmatpush1.msra.mxu0 %v210
    %7921 = vmatprep.subr.mxu0 %v219
    %7922 = vmatpush1.msra.mxu0 %v218
    %7923 = vmatprep.subr.mxu0 %v227
    %7924 = vmatpush1.msra.mxu0 %v226
    %7925 = vmatprep.subr.mxu0 %v235
    %7926 = vmatpush1.msra.mxu0 %v234
    %7927 = vmatprep.subr.mxu0 %v243
    %7928 = vmatpush1.msra.mxu0 %v242
    %7929 = vmatprep.subr.mxu0 %v251
    %7930 = vmatpush1.msra.mxu0 %v250
    %7931 = vmatprep.subr.mxu0 %v259
    %7932 = vmatpush1.msra.mxu0 %v258
    %7933 = vmatprep.subr.mxu0 %v267
    %7934 = vmatpush1.msra.mxu0 %v266
    %7935 = vmatprep.subr.mxu0 %v275
    %7936 = vmatpush1.msra.mxu0 %v274
    %7937 = vmatprep.subr.mxu0 %v283
    %7938 = vmatpush1.msra.mxu0 %v282
    %7939 = vmatprep.subr.mxu0 %v291
    %7940 = vmatpush1.msra.mxu0 %v290
    %7941 = vmatprep.subr.mxu0 %v299
    %7942 = vmatpush1.msra.mxu0 %v298
    %7943 = vmatprep.subr.mxu0 %v307
    %7944 = vmatpush1.msra.mxu0 %v306
    %7945 = vmatprep.subr.mxu0 %v315
    %7946 = vmatpush1.msra.mxu0 %v314
    %7947 = vmatprep.subr.mxu0 %v323
    %7948 = vmatpush1.msra.mxu0 %v322
    %7949 = vmatprep.subr.mxu0 %v331
    %7950 = vmatpush1.msra.mxu0 %v330
    %7951 = vmatprep.subr.mxu0 %v339
    %7952 = vmatpush1.msra.mxu0 %v338
    %7953 = vmatprep.subr.mxu0 %v347
    %7954 = vmatpush1.msra.mxu0 %v346
    %7955 = vmatprep.subr.mxu0 %v355
    %7956 = vmatpush1.msra.mxu0 %v354
    %7957 = vmatprep.subr.mxu0 %v363
    %7958 = vmatpush1.msra.mxu0 %v362
    %7959 = vmatprep.subr.mxu0 %v371
    %7960 = vmatpush1.msra.mxu0 %v370
    %7961 = vmatprep.subr.mxu0 %v379
    %7962 = vmatpush1.msra.mxu0 %v378
    %7963 = vmatprep.subr.mxu0 %v387
    %7964 = vmatpush1.msra.mxu0 %v386
    %7965 = vmatprep.subr.mxu0 %v395
    %7966 = vmatpush1.msra.mxu0 %v394
    %7967 = vmatprep.subr.mxu0 %v403
    %7968 = vmatpush1.msra.mxu0 %v402
    %7969 = vmatprep.mubr.f32.mxu0 %v7691
    %7970 = vmatmul.mubr.f32.gmra.mrb[0].mxu0 %v7688
    %v7971 = vpop.f32.mrb[0].mxu0
    %v7972 = vadd.f32 %v432, %v7971
    %v7973 = vpop.f32.mrb[0].mxu0
    %v7974 = vadd.f32 %v436, %v7973
    %7975 = vdwg.mxu0
    %v7976 = vmul.f32 %v131, %v744
    %v7977 = vadd.f32 %v7976, %v7759
    %v7978 = vxor.u32 %v7977, 2147483648
    %v7979 = vmul.f32 %v7978, 1.442695
    %v7980 = vpow.pop %v7979
    %v7981 = vadd.f32 %v7980, 1.0
    %v7982 = vrcp.pop %v7981
    %v7983 = vmul.f32 1.0, %v7982
    %v7984 = vtanh.pop %v7977
    %v7985 = vmul.f32 %v7983, %v6972
    %7987 = vrot.lane.b32.xlu0 %v7984, 64
    %v7988 = vpop.permute.xlu0 %7987
    %v7990 = vmul.f32 %v7983, %v7988
    %7992 = vrot.lane.b32.xlu0 %v7990, 32
    %v7993 = vpop.permute.xlu0 %7992
    %v7995 = vadd.f32 %v7985, %v7993
    %v7996 = vtanh.pop %v7995
    %7998 = vrot.lane.b32.xlu0 %v7996, 64
    %v7999 = vpop.permute.xlu0 %7998
    %v8001 = vmul.f32 %v7983, %v7999
    %8003 = vrot.lane.b32.xlu0 %v8001, 32
    %v8004 = vpop.permute.xlu0 %8003
    %v8005 = vsel %vm783, %v8004, 0
    %8007 = vmatprep.subr.mxu0 0.0
    %8008 = vmatpush1.msra.mxu0 %v776
    %8009 = vmatprep.subr.mxu0 0.0
    %8010 = vmatpush1.msra.mxu0 %v777
    %8011 = vmatprep.subr.mxu0 0.0
    %8012 = vmatpush1.msra.mxu0 %v778
    %8013 = vmatprep.subr.mxu0 0.0
    %8014 = vmatpush1.msra.mxu0 %v779
    %8015 = vmatprep.subr.mxu0 0.0
    %8016 = vmatpush1.msra.mxu0 0.0
    %8017 = vmatprep.subr.mxu0 0.0
    %8018 = vmatpush1.msra.mxu0 0.0
    %8019 = vmatprep.subr.mxu0 0.0
    %8020 = vmatpush1.msra.mxu0 0.0
    %8021 = vmatprep.subr.mxu0 0.0
    %8022 = vmatpush1.msra.mxu0 0.0
    %8023 = vmatprep.subr.mxu0 0.0
    %8024 = vmatpush1.msra.mxu0 0.0
    %8025 = vmatprep.subr.mxu0 0.0
    %8026 = vmatpush1.msra.mxu0 0.0
    %8027 = vmatprep.subr.mxu0 0.0
    %8028 = vmatpush1.msra.mxu0 0.0
    %8029 = vmatprep.subr.mxu0 0.0
    %8030 = vmatpush1.msra.mxu0 0.0
    %8031 = vmatprep.subr.mxu0 0.0
    %8032 = vmatpush1.msra.mxu0 0.0
    %8033 = vmatprep.subr.mxu0 0.0
    %8034 = vmatpush1.msra.mxu0 0.0
    %8035 = vmatprep.subr.mxu0 0.0
    %8036 = vmatpush1.msra.mxu0 0.0
    %8037 = vmatprep.subr.mxu0 0.0
    %8038 = vmatpush1.msra.mxu0 0.0
    %8039 = vmatprep.subr.mxu0 0.0
    %8040 = vmatpush1.msra.mxu0 0.0
    %8041 = vmatprep.subr.mxu0 0.0
    %8042 = vmatpush1.msra.mxu0 0.0
    %8043 = vmatprep.subr.mxu0 0.0
    %8044 = vmatpush1.msra.mxu0 0.0
    %8045 = vmatprep.subr.mxu0 0.0
    %8046 = vmatpush1.msra.mxu0 0.0
    %8047 = vmatprep.subr.mxu0 0.0
    %8048 = vmatpush1.msra.mxu0 0.0
    %8049 = vmatprep.subr.mxu0 0.0
    %8050 = vmatpush1.msra.mxu0 0.0
    %8051 = vmatprep.subr.mxu0 0.0
    %8052 = vmatpush1.msra.mxu0 0.0
    %8053 = vmatprep.subr.mxu0 0.0
    %8054 = vmatpush1.msra.mxu0 0.0
    %8055 = vmatprep.subr.mxu0 0.0
    %8056 = vmatpush1.msra.mxu0 0.0
    %8057 = vmatprep.subr.mxu0 0.0
    %8058 = vmatpush1.msra.mxu0 0.0
    %8059 = vmatprep.subr.mxu0 0.0
    %8060 = vmatpush1.msra.mxu0 0.0
    %8061 = vmatprep.subr.mxu0 0.0
    %8062 = vmatpush1.msra.mxu0 0.0
    %8063 = vmatprep.subr.mxu0 0.0
    %8064 = vmatpush1.msra.mxu0 0.0
    %8065 = vmatprep.subr.mxu0 0.0
    %8066 = vmatpush1.msra.mxu0 0.0
    %8067 = vmatprep.subr.mxu0 0.0
    %8068 = vmatpush1.msra.mxu0 0.0
    %8069 = vmatprep.subr.mxu0 0.0
    %8070 = vmatpush1.msra.mxu0 0.0
    %8071 = vmatprep.mubr.f32.mxu0 0.0
    %8072 = vmatmul.mubr.f32.gmra.mrb[0].mxu0 %v8005
    %v8073 = vpop.f32.mrb[0].mxu0
    %v8074 = vadd.f32 %v7761, %v8073
    %v8075 = vpop.f32.mrb[0].mxu0
    %8076 = vdwg.mxu0
    %v8077 = vxor.u32 %v8074, 2147483648
    %v8078 = vmul.f32 %v8077, 1.442695
    %v8079 = vpow.pop %v8078
    %v8080 = vadd.f32 %v8079, 1.0
    %v8081 = vrcp.pop %v8080
    %v8082 = vmul.f32 1.0, %v8081
    %v8083 = vtanh.pop %v8074
    %v8084 = vmul.f32 %v8082, %v7071
    %8086 = vrot.lane.b32.xlu0 %v8083, 64
    %v8087 = vpop.permute.xlu0 %8086
    %v8089 = vmul.f32 %v8082, %v8087
    %8091 = vrot.lane.b32.xlu0 %v8089, 32
    %v8092 = vpop.permute.xlu0 %8091
    %v8094 = vadd.f32 %v8084, %v8092
    %v8095 = vtanh.pop %v8094
    %8097 = vrot.lane.b32.xlu0 %v8095, 64
    %v8098 = vpop.permute.xlu0 %8097
    %v8100 = vmul.f32 %v8082, %v8098
    %8102 = vrot.lane.b32.xlu0 %v8100, 32
    %v8103 = vpop.permute.xlu0 %8102
    %v8104 = vsel %vm783, %v8103, 0
    %8106 = vmatprep.subr.mxu0 0.0
    %8107 = vmatpush1.msra.mxu0 %v885
    %8108 = vmatprep.subr.mxu0 0.0
    %8109 = vmatpush1.msra.mxu0 %v886
    %8110 = vmatprep.subr.mxu0 0.0
    %8111 = vmatpush1.msra.mxu0 %v887
    %8112 = vmatprep.subr.mxu0 0.0
    %8113 = vmatpush1.msra.mxu0 %v888
    %8114 = vmatprep.subr.mxu0 0.0
    %8115 = vmatpush1.msra.mxu0 0.0
    %8116 = vmatprep.subr.mxu0 0.0
    %8117 = vmatpush1.msra.mxu0 0.0
    %8118 = vmatprep.subr.mxu0 0.0
    %8119 = vmatpush1.msra.mxu0 0.0
    %8120 = vmatprep.subr.mxu0 0.0
    %8121 = vmatpush1.msra.mxu0 0.0
    %8122 = vmatprep.subr.mxu0 0.0
    %8123 = vmatpush1.msra.mxu0 0.0
    %8124 = vmatprep.subr.mxu0 0.0
    %8125 = vmatpush1.msra.mxu0 0.0
    %8126 = vmatprep.subr.mxu0 0.0
    %8127 = vmatpush1.msra.mxu0 0.0
    %8128 = vmatprep.subr.mxu0 0.0
    %8129 = vmatpush1.msra.mxu0 0.0
    %8130 = vmatprep.subr.mxu0 0.0
    %8131 = vmatpush1.msra.mxu0 0.0
    %8132 = vmatprep.subr.mxu0 0.0
    %8133 = vmatpush1.msra.mxu0 0.0
    %8134 = vmatprep.subr.mxu0 0.0
    %8135 = vmatpush1.msra.mxu0 0.0
    %8136 = vmatprep.subr.mxu0 0.0
    %8137 = vmatpush1.msra.mxu0 0.0
    %8138 = vmatprep.subr.mxu0 0.0
    %8139 = vmatpush1.msra.mxu0 0.0
    %8140 = vmatprep.subr.mxu0 0.0
    %8141 = vmatpush1.msra.mxu0 0.0
    %8142 = vmatprep.subr.mxu0 0.0
    %8143 = vmatpush1.msra.mxu0 0.0
    %8144 = vmatprep.subr.mxu0 0.0
    %8145 = vmatpush1.msra.mxu0 0.0
    %8146 = vmatprep.subr.mxu0 0.0
    %8147 = vmatpush1.msra.mxu0 0.0
    %8148 = vmatprep.subr.mxu0 0.0
    %8149 = vmatpush1.msra.mxu0 0.0
    %8150 = vmatprep.subr.mxu0 0.0
    %8151 = vmatpush1.msra.mxu0 0.0
    %8152 = vmatprep.subr.mxu0 0.0
    %8153 = vmatpush1.msra.mxu0 0.0
    %8154 = vmatprep.subr.mxu0 0.0
    %8155 = vmatpush1.msra.mxu0 0.0
    %8156 = vmatprep.subr.mxu0 0.0
    %8157 = vmatpush1.msra.mxu0 0.0
    %8158 = vmatprep.subr.mxu0 0.0
    %8159 = vmatpush1.msra.mxu0 0.0
    %8160 = vmatprep.subr.mxu0 0.0
    %8161 = vmatpush1.msra.mxu0 0.0
    %8162 = vmatprep.subr.mxu0 0.0
    %8163 = vmatpush1.msra.mxu0 0.0
    %8164 = vmatprep.subr.mxu0 0.0
    %8165 = vmatpush1.msra.mxu0 0.0
    %8166 = vmatprep.subr.mxu0 0.0
    %8167 = vmatpush1.msra.mxu0 0.0
    %8168 = vmatprep.subr.mxu0 0.0
    %8169 = vmatpush1.msra.mxu0 0.0
    %8170 = vmatprep.mubr.f32.mxu0 0.0
    %8171 = vmatmul.mubr.f32.gmra.mrb[0].mxu0 %v8104
    %v8172 = vpop.f32.mrb[0].mxu0
    %v8173 = vadd.f32 %v7830, %v8172
    %v8174 = vpop.f32.mrb[0].mxu0
    %8175 = vdwg.mxu0
    %v8176 = vxor.u32 %v8173, 2147483648
    %v8177 = vmul.f32 %v8176, 1.442695
    %v8178 = vpow.pop %v8177
    %v8179 = vadd.f32 %v8178, 1.0
    %v8180 = vrcp.pop %v8179
    %v8181 = vmul.f32 1.0, %v8180
    %v8182 = vtanh.pop %v8173
    %v8183 = vmul.f32 %v8181, %v7170
    %8185 = vrot.lane.b32.xlu0 %v8182, 64
    %v8186 = vpop.permute.xlu0 %8185
    %v8188 = vmul.f32 %v8181, %v8186
    %8190 = vrot.lane.b32.xlu0 %v8188, 32
    %v8191 = vpop.permute.xlu0 %8190
    %v8193 = vadd.f32 %v8183, %v8191
    %v8194 = vtanh.pop %v8193
    %8196 = vrot.lane.b32.xlu0 %v8194, 64
    %v8197 = vpop.permute.xlu0 %8196
    %v8199 = vmul.f32 %v8181, %v8197
    %8201 = vrot.lane.b32.xlu0 %v8199, 32
    %v8202 = vpop.permute.xlu0 %8201
    %v8203 = vsel %vm783, %v8202, 0
    %8205 = vmatprep.subr.mxu0 0.0
    %8206 = vmatpush1.msra.mxu0 %v993
    %8207 = vmatprep.subr.mxu0 0.0
    %8208 = vmatpush1.msra.mxu0 %v994
    %8209 = vmatprep.subr.mxu0 0.0
    %8210 = vmatpush1.msra.mxu0 %v995
    %8211 = vmatprep.subr.mxu0 0.0
    %8212 = vmatpush1.msra.mxu0 %v996
    %8213 = vmatprep.subr.mxu0 0.0
    %8214 = vmatpush1.msra.mxu0 0.0
    %8215 = vmatprep.subr.mxu0 0.0
    %8216 = vmatpush1.msra.mxu0 0.0
    %8217 = vmatprep.subr.mxu0 0.0
    %8218 = vmatpush1.msra.mxu0 0.0
    %8219 = vmatprep.subr.mxu0 0.0
    %8220 = vmatpush1.msra.mxu0 0.0
    %8221 = vmatprep.subr.mxu0 0.0
    %8222 = vmatpush1.msra.mxu0 0.0
    %8223 = vmatprep.subr.mxu0 0.0
    %8224 = vmatpush1.msra.mxu0 0.0
    %8225 = vmatprep.subr.mxu0 0.0
    %8226 = vmatpush1.msra.mxu0 0.0
    %8227 = vmatprep.subr.mxu0 0.0
    %8228 = vmatpush1.msra.mxu0 0.0
    %8229 = vmatprep.subr.mxu0 0.0
    %8230 = vmatpush1.msra.mxu0 0.0
    %8231 = vmatprep.subr.mxu0 0.0
    %8232 = vmatpush1.msra.mxu0 0.0
    %8233 = vmatprep.subr.mxu0 0.0
    %8234 = vmatpush1.msra.mxu0 0.0
    %8235 = vmatprep.subr.mxu0 0.0
    %8236 = vmatpush1.msra.mxu0 0.0
    %8237 = vmatprep.subr.mxu0 0.0
    %8238 = vmatpush1.msra.mxu0 0.0
    %8239 = vmatprep.subr.mxu0 0.0
    %8240 = vmatpush1.msra.mxu0 0.0
    %8241 = vmatprep.subr.mxu0 0.0
    %8242 = vmatpush1.msra.mxu0 0.0
    %8243 = vmatprep.subr.mxu0 0.0
    %8244 = vmatpush1.msra.mxu0 0.0
    %8245 = vmatprep.subr.mxu0 0.0
    %8246 = vmatpush1.msra.mxu0 0.0
    %8247 = vmatprep.subr.mxu0 0.0
    %8248 = vmatpush1.msra.mxu0 0.0
    %8249 = vmatprep.subr.mxu0 0.0
    %8250 = vmatpush1.msra.mxu0 0.0
    %8251 = vmatprep.subr.mxu0 0.0
    %8252 = vmatpush1.msra.mxu0 0.0
    %8253 = vmatprep.subr.mxu0 0.0
    %8254 = vmatpush1.msra.mxu0 0.0
    %8255 = vmatprep.subr.mxu0 0.0
    %8256 = vmatpush1.msra.mxu0 0.0
    %8257 = vmatprep.subr.mxu0 0.0
    %8258 = vmatpush1.msra.mxu0 0.0
    %8259 = vmatprep.subr.mxu0 0.0
    %8260 = vmatpush1.msra.mxu0 0.0
    %8261 = vmatprep.subr.mxu0 0.0
    %8262 = vmatpush1.msra.mxu0 0.0
    %8263 = vmatprep.subr.mxu0 0.0
    %8264 = vmatpush1.msra.mxu0 0.0
    %8265 = vmatprep.subr.mxu0 0.0
    %8266 = vmatpush1.msra.mxu0 0.0
    %8267 = vmatprep.subr.mxu0 0.0
    %8268 = vmatpush1.msra.mxu0 0.0
    %8269 = vmatprep.mubr.f32.mxu0 0.0
    %8270 = vmatmul.mubr.f32.gmra.mrb[0].mxu0 %v8203
    %v8271 = vpop.f32.mrb[0].mxu0
    %v8272 = vadd.f32 %v7832, %v8271
    %v8273 = vpop.f32.mrb[0].mxu0
    %8274 = vdwg.mxu0
    %v8275 = vxor.u32 %v8272, 2147483648
    %v8276 = vmul.f32 %v8275, 1.442695
    %v8277 = vpow.pop %v8276
    %v8278 = vadd.f32 %v8277, 1.0
    %v8279 = vrcp.pop %v8278
    %v8280 = vmul.f32 1.0, %v8279
    %v8281 = vtanh.pop %v8272
    %v8282 = vmul.f32 %v8280, %v7269
    %8284 = vrot.lane.b32.xlu0 %v8281, 64
    %v8285 = vpop.permute.xlu0 %8284
    %v8287 = vmul.f32 %v8280, %v8285
    %8289 = vrot.lane.b32.xlu0 %v8287, 32
    %v8290 = vpop.permute.xlu0 %8289
    %v8292 = vadd.f32 %v8282, %v8290
    %v8293 = vtanh.pop %v8292
    %8295 = vrot.lane.b32.xlu0 %v8293, 64
    %v8296 = vpop.permute.xlu0 %8295
    %v8298 = vmul.f32 %v8280, %v8296
    %8300 = vrot.lane.b32.xlu0 %v8298, 32
    %v8301 = vpop.permute.xlu0 %8300
    %v8302 = vsel %vm783, %v8301, 0
    %8304 = vmatprep.subr.mxu0 0.0
    %8305 = vmatpush1.msra.mxu0 %v1101
    %8306 = vmatprep.subr.mxu0 0.0
    %8307 = vmatpush1.msra.mxu0 %v1102
    %8308 = vmatprep.subr.mxu0 0.0
    %8309 = vmatpush1.msra.mxu0 %v1103
    %8310 = vmatprep.subr.mxu0 0.0
    %8311 = vmatpush1.msra.mxu0 %v1104
    %8312 = vmatprep.subr.mxu0 0.0
    %8313 = vmatpush1.msra.mxu0 0.0
    %8314 = vmatprep.subr.mxu0 0.0
    %8315 = vmatpush1.msra.mxu0 0.0
    %8316 = vmatprep.subr.mxu0 0.0
    %8317 = vmatpush1.msra.mxu0 0.0
    %8318 = vmatprep.subr.mxu0 0.0
    %8319 = vmatpush1.msra.mxu0 0.0
    %8320 = vmatprep.subr.mxu0 0.0
    %8321 = vmatpush1.msra.mxu0 0.0
    %8322 = vmatprep.subr.mxu0 0.0
    %8323 = vmatpush1.msra.mxu0 0.0
    %8324 = vmatprep.subr.mxu0 0.0
    %8325 = vmatpush1.msra.mxu0 0.0
    %8326 = vmatprep.subr.mxu0 0.0
    %8327 = vmatpush1.msra.mxu0 0.0
    %8328 = vmatprep.subr.mxu0 0.0
    %8329 = vmatpush1.msra.mxu0 0.0
    %8330 = vmatprep.subr.mxu0 0.0
    %8331 = vmatpush1.msra.mxu0 0.0
    %8332 = vmatprep.subr.mxu0 0.0
    %8333 = vmatpush1.msra.mxu0 0.0
    %8334 = vmatprep.subr.mxu0 0.0
    %8335 = vmatpush1.msra.mxu0 0.0
    %8336 = vmatprep.subr.mxu0 0.0
    %8337 = vmatpush1.msra.mxu0 0.0
    %8338 = vmatprep.subr.mxu0 0.0
    %8339 = vmatpush1.msra.mxu0 0.0
    %8340 = vmatprep.subr.mxu0 0.0
    %8341 = vmatpush1.msra.mxu0 0.0
    %8342 = vmatprep.subr.mxu0 0.0
    %8343 = vmatpush1.msra.mxu0 0.0
    %8344 = vmatprep.subr.mxu0 0.0
    %8345 = vmatpush1.msra.mxu0 0.0
    %8346 = vmatprep.subr.mxu0 0.0
    %8347 = vmatpush1.msra.mxu0 0.0
    %8348 = vmatprep.subr.mxu0 0.0
    %8349 = vmatpush1.msra.mxu0 0.0
    %8350 = vmatprep.subr.mxu0 0.0
    %8351 = vmatpush1.msra.mxu0 0.0
    %8352 = vmatprep.subr.mxu0 0.0
    %8353 = vmatpush1.msra.mxu0 0.0
    %8354 = vmatprep.subr.mxu0 0.0
    %8355 = vmatpush1.msra.mxu0 0.0
    %8356 = vmatprep.subr.mxu0 0.0
    %8357 = vmatpush1.msra.mxu0 0.0
    %8358 = vmatprep.subr.mxu0 0.0
    %8359 = vmatpush1.msra.mxu0 0.0
    %8360 = vmatprep.subr.mxu0 0.0
    %8361 = vmatpush1.msra.mxu0 0.0
    %8362 = vmatprep.subr.mxu0 0.0
    %8363 = vmatpush1.msra.mxu0 0.0
    %8364 = vmatprep.subr.mxu0 0.0
    %8365 = vmatpush1.msra.mxu0 0.0
    %8366 = vmatprep.subr.mxu0 0.0
    %8367 = vmatpush1.msra.mxu0 0.0
    %8368 = vmatprep.mubr.f32.mxu0 0.0
    %8369 = vmatmul.mubr.f32.gmra.mrb[0].mxu0 %v8302
    %v8370 = vpop.f32.mrb[0].mxu0
    %v8371 = vadd.f32 %v7901, %v8370
    %v8372 = vpop.f32.mrb[0].mxu0
    %8373 = vdwg.mxu0
    %v8374 = vxor.u32 %v8371, 2147483648
    %v8375 = vmul.f32 %v8374, 1.442695
    %v8376 = vpow.pop %v8375
    %v8377 = vadd.f32 %v8376, 1.0
    %v8378 = vrcp.pop %v8377
    %v8379 = vmul.f32 1.0, %v8378
    %v8380 = vtanh.pop %v8371
    %v8381 = vmul.f32 %v8379, %v7368
    %8383 = vrot.lane.b32.xlu0 %v8380, 64
    %v8384 = vpop.permute.xlu0 %8383
    %v8386 = vmul.f32 %v8379, %v8384
    %8388 = vrot.lane.b32.xlu0 %v8386, 32
    %v8389 = vpop.permute.xlu0 %8388
    %v8391 = vadd.f32 %v8381, %v8389
    %v8392 = vtanh.pop %v8391
    %8394 = vrot.lane.b32.xlu0 %v8392, 64
    %v8395 = vpop.permute.xlu0 %8394
    %v8397 = vmul.f32 %v8379, %v8395
    %8399 = vrot.lane.b32.xlu0 %v8397, 32
    %v8400 = vpop.permute.xlu0 %8399
    %v8401 = vsel %vm783, %v8400, 0
    %8403 = vmatprep.subr.mxu0 0.0
    %8404 = vmatpush1.msra.mxu0 %v1209
    %8405 = vmatprep.subr.mxu0 0.0
    %8406 = vmatpush1.msra.mxu0 %v1210
    %8407 = vmatprep.subr.mxu0 0.0
    %8408 = vmatpush1.msra.mxu0 %v1211
    %8409 = vmatprep.subr.mxu0 0.0
    %8410 = vmatpush1.msra.mxu0 %v1212
    %8411 = vmatprep.subr.mxu0 0.0
    %8412 = vmatpush1.msra.mxu0 0.0
    %8413 = vmatprep.subr.mxu0 0.0
    %8414 = vmatpush1.msra.mxu0 0.0
    %8415 = vmatprep.subr.mxu0 0.0
    %8416 = vmatpush1.msra.mxu0 0.0
    %8417 = vmatprep.subr.mxu0 0.0
    %8418 = vmatpush1.msra.mxu0 0.0
    %8419 = vmatprep.subr.mxu0 0.0
    %8420 = vmatpush1.msra.mxu0 0.0
    %8421 = vmatprep.subr.mxu0 0.0
    %8422 = vmatpush1.msra.mxu0 0.0
    %8423 = vmatprep.subr.mxu0 0.0
    %8424 = vmatpush1.msra.mxu0 0.0
    %8425 = vmatprep.subr.mxu0 0.0
    %8426 = vmatpush1.msra.mxu0 0.0
    %8427 = vmatprep.subr.mxu0 0.0
    %8428 = vmatpush1.msra.mxu0 0.0
    %8429 = vmatprep.subr.mxu0 0.0
    %8430 = vmatpush1.msra.mxu0 0.0
    %8431 = vmatprep.subr.mxu0 0.0
    %8432 = vmatpush1.msra.mxu0 0.0
    %8433 = vmatprep.subr.mxu0 0.0
    %8434 = vmatpush1.msra.mxu0 0.0
    %8435 = vmatprep.subr.mxu0 0.0
    %8436 = vmatpush1.msra.mxu0 0.0
    %8437 = vmatprep.subr.mxu0 0.0
    %8438 = vmatpush1.msra.mxu0 0.0
    %8439 = vmatprep.subr.mxu0 0.0
    %8440 = vmatpush1.msra.mxu0 0.0
    %8441 = vmatprep.subr.mxu0 0.0
    %8442 = vmatpush1.msra.mxu0 0.0
    %8443 = vmatprep.subr.mxu0 0.0
    %8444 = vmatpush1.msra.mxu0 0.0
    %8445 = vmatprep.subr.mxu0 0.0
    %8446 = vmatpush1.msra.mxu0 0.0
    %8447 = vmatprep.subr.mxu0 0.0
    %8448 = vmatpush1.msra.mxu0 0.0
    %8449 = vmatprep.subr.mxu0 0.0
    %8450 = vmatpush1.msra.mxu0 0.0
    %8451 = vmatprep.subr.mxu0 0.0
    %8452 = vmatpush1.msra.mxu0 0.0
    %8453 = vmatprep.subr.mxu0 0.0
    %8454 = vmatpush1.msra.mxu0 0.0
    %8455 = vmatprep.subr.mxu0 0.0
    %8456 = vmatpush1.msra.mxu0 0.0
    %8457 = vmatprep.subr.mxu0 0.0
    %8458 = vmatpush1.msra.mxu0 0.0
    %8459 = vmatprep.subr.mxu0 0.0
    %8460 = vmatpush1.msra.mxu0 0.0
    %8461 = vmatprep.subr.mxu0 0.0
    %8462 = vmatpush1.msra.mxu0 0.0
    %8463 = vmatprep.subr.mxu0 0.0
    %8464 = vmatpush1.msra.mxu0 0.0
    %8465 = vmatprep.subr.mxu0 0.0
    %8466 = vmatpush1.msra.mxu0 0.0
    %8467 = vmatprep.mubr.f32.mxu0 0.0
    %8468 = vmatmul.mubr.f32.gmra.mrb[0].mxu0 %v8401
    %v8469 = vpop.f32.mrb[0].mxu0
    %v8470 = vadd.f32 %v7903, %v8469
    %v8471 = vpop.f32.mrb[0].mxu0
    %8472 = vdwg.mxu0
    %v8473 = vxor.u32 %v8470, 2147483648
    %v8474 = vmul.f32 %v8473, 1.442695
    %v8475 = vpow.pop %v8474
    %v8476 = vadd.f32 %v8475, 1.0
    %v8477 = vrcp.pop %v8476
    %v8478 = vmul.f32 1.0, %v8477
    %v8479 = vtanh.pop %v8470
    %v8480 = vmul.f32 %v8478, %v7467
    %8482 = vrot.lane.b32.xlu0 %v8479, 64
    %v8483 = vpop.permute.xlu0 %8482
    %v8485 = vmul.f32 %v8478, %v8483
    %8487 = vrot.lane.b32.xlu0 %v8485, 32
    %v8488 = vpop.permute.xlu0 %8487
    %v8490 = vadd.f32 %v8480, %v8488
    %v8491 = vtanh.pop %v8490
    %8493 = vrot.lane.b32.xlu0 %v8491, 64
    %v8494 = vpop.permute.xlu0 %8493
    %v8496 = vmul.f32 %v8478, %v8494
    %8498 = vrot.lane.b32.xlu0 %v8496, 32
    %v8499 = vpop.permute.xlu0 %8498
    %v8500 = vsel %vm783, %v8499, 0
    %8502 = vmatprep.subr.mxu0 0.0
    %8503 = vmatpush1.msra.mxu0 %v1317
    %8504 = vmatprep.subr.mxu0 0.0
    %8505 = vmatpush1.msra.mxu0 %v1318
    %8506 = vmatprep.subr.mxu0 0.0
    %8507 = vmatpush1.msra.mxu0 %v1319
    %8508 = vmatprep.subr.mxu0 0.0
    %8509 = vmatpush1.msra.mxu0 %v1320
    %8510 = vmatprep.subr.mxu0 0.0
    %8511 = vmatpush1.msra.mxu0 0.0
    %8512 = vmatprep.subr.mxu0 0.0
    %8513 = vmatpush1.msra.mxu0 0.0
    %8514 = vmatprep.subr.mxu0 0.0
    %8515 = vmatpush1.msra.mxu0 0.0
    %8516 = vmatprep.subr.mxu0 0.0
    %8517 = vmatpush1.msra.mxu0 0.0
    %8518 = vmatprep.subr.mxu0 0.0
    %8519 = vmatpush1.msra.mxu0 0.0
    %8520 = vmatprep.subr.mxu0 0.0
    %8521 = vmatpush1.msra.mxu0 0.0
    %8522 = vmatprep.subr.mxu0 0.0
    %8523 = vmatpush1.msra.mxu0 0.0
    %8524 = vmatprep.subr.mxu0 0.0
    %8525 = vmatpush1.msra.mxu0 0.0
    %8526 = vmatprep.subr.mxu0 0.0
    %8527 = vmatpush1.msra.mxu0 0.0
    %8528 = vmatprep.subr.mxu0 0.0
    %8529 = vmatpush1.msra.mxu0 0.0
    %8530 = vmatprep.subr.mxu0 0.0
    %8531 = vmatpush1.msra.mxu0 0.0
    %8532 = vmatprep.subr.mxu0 0.0
    %8533 = vmatpush1.msra.mxu0 0.0
    %8534 = vmatprep.subr.mxu0 0.0
    %8535 = vmatpush1.msra.mxu0 0.0
    %8536 = vmatprep.subr.mxu0 0.0
    %8537 = vmatpush1.msra.mxu0 0.0
    %8538 = vmatprep.subr.mxu0 0.0
    %8539 = vmatpush1.msra.mxu0 0.0
    %8540 = vmatprep.subr.mxu0 0.0
    %8541 = vmatpush1.msra.mxu0 0.0
    %8542 = vmatprep.subr.mxu0 0.0
    %8543 = vmatpush1.msra.mxu0 0.0
    %8544 = vmatprep.subr.mxu0 0.0
    %8545 = vmatpush1.msra.mxu0 0.0
    %8546 = vmatprep.subr.mxu0 0.0
    %8547 = vmatpush1.msra.mxu0 0.0
    %8548 = vmatprep.subr.mxu0 0.0
    %8549 = vmatpush1.msra.mxu0 0.0
    %8550 = vmatprep.subr.mxu0 0.0
    %8551 = vmatpush1.msra.mxu0 0.0
    %8552 = vmatprep.subr.mxu0 0.0
    %8553 = vmatpush1.msra.mxu0 0.0
    %8554 = vmatprep.subr.mxu0 0.0
    %8555 = vmatpush1.msra.mxu0 0.0
    %8556 = vmatprep.subr.mxu0 0.0
    %8557 = vmatpush1.msra.mxu0 0.0
    %8558 = vmatprep.subr.mxu0 0.0
    %8559 = vmatpush1.msra.mxu0 0.0
    %8560 = vmatprep.subr.mxu0 0.0
    %8561 = vmatpush1.msra.mxu0 0.0
    %8562 = vmatprep.subr.mxu0 0.0
    %8563 = vmatpush1.msra.mxu0 0.0
    %8564 = vmatprep.subr.mxu0 0.0
    %8565 = vmatpush1.msra.mxu0 0.0
    %8566 = vmatprep.mubr.f32.mxu0 0.0
    %8567 = vmatmul.mubr.f32.gmra.mrb[0].mxu0 %v8500
    %v8568 = vpop.f32.mrb[0].mxu0
    %v8569 = vadd.f32 %v7972, %v8568
    %v8570 = vpop.f32.mrb[0].mxu0
    %8571 = vdwg.mxu0
    %v8572 = vxor.u32 %v8569, 2147483648
    %v8573 = vmul.f32 %v8572, 1.442695
    %v8574 = vpow.pop %v8573
    %v8575 = vadd.f32 %v8574, 1.0
    %v8576 = vrcp.pop %v8575
    %v8577 = vmul.f32 1.0, %v8576
    %v8578 = vtanh.pop %v8569
    %v8579 = vmul.f32 %v8577, %v7566
    %8581 = vrot.lane.b32.xlu0 %v8578, 64
    %v8582 = vpop.permute.xlu0 %8581
    %v8584 = vmul.f32 %v8577, %v8582
    %8586 = vrot.lane.b32.xlu0 %v8584, 32
    %v8587 = vpop.permute.xlu0 %8586
    %v8589 = vadd.f32 %v8579, %v8587
    %v8590 = vtanh.pop %v8589
    %8592 = vrot.lane.b32.xlu0 %v8590, 64
    %v8593 = vpop.permute.xlu0 %8592
    %v8595 = vmul.f32 %v8577, %v8593
    %8597 = vrot.lane.b32.xlu0 %v8595, 32
    %v8598 = vpop.permute.xlu0 %8597
    %v8599 = vsel %vm783, %v8598, 0
    %8601 = vmatprep.subr.mxu0 0.0
    %8602 = vmatpush1.msra.mxu0 %v1425
    %8603 = vmatprep.subr.mxu0 0.0
    %8604 = vmatpush1.msra.mxu0 %v1426
    %8605 = vmatprep.subr.mxu0 0.0
    %8606 = vmatpush1.msra.mxu0 %v1427
    %8607 = vmatprep.subr.mxu0 0.0
    %8608 = vmatpush1.msra.mxu0 %v1428
    %8609 = vmatprep.subr.mxu0 0.0
    %8610 = vmatpush1.msra.mxu0 0.0
    %8611 = vmatprep.subr.mxu0 0.0
    %8612 = vmatpush1.msra.mxu0 0.0
    %8613 = vmatprep.subr.mxu0 0.0
    %8614 = vmatpush1.msra.mxu0 0.0
    %8615 = vmatprep.subr.mxu0 0.0
    %8616 = vmatpush1.msra.mxu0 0.0
    %8617 = vmatprep.subr.mxu0 0.0
    %8618 = vmatpush1.msra.mxu0 0.0
    %8619 = vmatprep.subr.mxu0 0.0
    %8620 = vmatpush1.msra.mxu0 0.0
    %8621 = vmatprep.subr.mxu0 0.0
    %8622 = vmatpush1.msra.mxu0 0.0
    %8623 = vmatprep.subr.mxu0 0.0
    %8624 = vmatpush1.msra.mxu0 0.0
    %8625 = vmatprep.subr.mxu0 0.0
    %8626 = vmatpush1.msra.mxu0 0.0
    %8627 = vmatprep.subr.mxu0 0.0
    %8628 = vmatpush1.msra.mxu0 0.0
    %8629 = vmatprep.subr.mxu0 0.0
    %8630 = vmatpush1.msra.mxu0 0.0
    %8631 = vmatprep.subr.mxu0 0.0
    %8632 = vmatpush1.msra.mxu0 0.0
    %8633 = vmatprep.subr.mxu0 0.0
    %8634 = vmatpush1.msra.mxu0 0.0
    %8635 = vmatprep.subr.mxu0 0.0
    %8636 = vmatpush1.msra.mxu0 0.0
    %8637 = vmatprep.subr.mxu0 0.0
    %8638 = vmatpush1.msra.mxu0 0.0
    %8639 = vmatprep.subr.mxu0 0.0
    %8640 = vmatpush1.msra.mxu0 0.0
    %8641 = vmatprep.subr.mxu0 0.0
    %8642 = vmatpush1.msra.mxu0 0.0
    %8643 = vmatprep.subr.mxu0 0.0
    %8644 = vmatpush1.msra.mxu0 0.0
    %8645 = vmatprep.subr.mxu0 0.0
    %8646 = vmatpush1.msra.mxu0 0.0
    %8647 = vmatprep.subr.mxu0 0.0
    %8648 = vmatpush1.msra.mxu0 0.0
    %8649 = vmatprep.subr.mxu0 0.0
    %8650 = vmatpush1.msra.mxu0 0.0
    %8651 = vmatprep.subr.mxu0 0.0
    %8652 = vmatpush1.msra.mxu0 0.0
    %8653 = vmatprep.subr.mxu0 0.0
    %8654 = vmatpush1.msra.mxu0 0.0
    %8655 = vmatprep.subr.mxu0 0.0
    %8656 = vmatpush1.msra.mxu0 0.0
    %8657 = vmatprep.subr.mxu0 0.0
    %8658 = vmatpush1.msra.mxu0 0.0
    %8659 = vmatprep.subr.mxu0 0.0
    %8660 = vmatpush1.msra.mxu0 0.0
    %8661 = vmatprep.subr.mxu0 0.0
    %8662 = vmatpush1.msra.mxu0 0.0
    %8663 = vmatprep.subr.mxu0 0.0
    %8664 = vmatpush1.msra.mxu0 0.0
    %8665 = vmatprep.mubr.f32.mxu0 0.0
    %8666 = vmatmul.mubr.f32.gmra.mrb[0].mxu0 %v8599
    %v8667 = vpop.f32.mrb[0].mxu0
    %v8668 = vadd.f32 %v7974, %v8667
    %v8669 = vpop.f32.mrb[0].mxu0
    %8670 = vdwg.mxu0
    %v8671 = vxor.u32 %v8668, 2147483648
    %v8672 = vmul.f32 %v8671, 1.442695
    %v8673 = vpow.pop %v8672
    %v8674 = vadd.f32 %v8673, 1.0
    %v8675 = vrcp.pop %v8674
    %v8676 = vmul.f32 1.0, %v8675
    %v8677 = vtanh.pop %v8668
    %v8678 = vmul.f32 %v8676, %v7665
    %8680 = vrot.lane.b32.xlu0 %v8677, 64
    %v8681 = vpop.permute.xlu0 %8680
    %v8683 = vmul.f32 %v8676, %v8681
    %8685 = vrot.lane.b32.xlu0 %v8683, 32
    %v8686 = vpop.permute.xlu0 %8685
    %v8688 = vadd.f32 %v8678, %v8686
    %v8689 = vtanh.pop %v8688
    %8691 = vrot.lane.b32.xlu0 %v8689, 64
    %v8692 = vpop.permute.xlu0 %8691
    %v8694 = vmul.f32 %v8676, %v8692
    %8696 = vrot.lane.b32.xlu0 %v1531, 32
    %v8697 = vpop.permute.xlu0 %8696
    %8700 = vrot.lane.b32.xlu0 %v2556, 64
    %v8701 = vpop.permute.xlu0 %8700
    %8704 = vrot.lane.b32.xlu0 %v3579, 96
    %v8705 = vpop.permute.xlu0 %8704
    %8708 = vrot.lane.b32.xlu0 %v5625, 32
    %v8709 = vpop.permute.xlu0 %8708
    %8712 = vrot.lane.b32.xlu0 %v6648, 64
    %v8713 = vpop.permute.xlu0 %8712
    %8716 = vrot.lane.b32.xlu0 %v7671, 96
    %v8717 = vpop.permute.xlu0 %8716
    %v8719 = vsel %vm783, %v8697, %v8701
    %v8720 = vsel %vm1547, %v8719, %v8705
    %v8721 = vsel %vm1549, %v8720, %v4602
    %v8722 = vsel %vm783, %v8709, %v8713
    %v8723 = vsel %vm1547, %v8722, %v8717
    %v8724 = vsel %vm1549, %v8723, %v8694
    %v8725 = vld [vmem:[#allocation10] sm:$0xff]
    %v8726 = vld [vmem:[#allocation10 + $0x8] sm:$0xff]
    %v8727 = vld [vmem:[#allocation10 + $0x10] sm:$0xff]
    %v8728 = vld [vmem:[#allocation10 + $0x18] sm:$0xff]
    %v8729 = vld [vmem:[#allocation10 + $0x20] sm:$0xff]
    %v8730 = vld [vmem:[#allocation10 + $0x28] sm:$0xff]
    %v8731 = vld [vmem:[#allocation10 + $0x30] sm:$0xff]
    %v8732 = vld [vmem:[#allocation10 + $0x38] sm:$0xff]
    %v8733 = vld [vmem:[#allocation10 + $0x40] sm:$0xff]
    %v8734 = vld [vmem:[#allocation10 + $0x48] sm:$0xff]
    %v8735 = vld [vmem:[#allocation10 + $0x50] sm:$0xff]
    %v8736 = vld [vmem:[#allocation10 + $0x58] sm:$0xff]
    %v8737 = vld [vmem:[#allocation10 + $0x60] sm:$0xff]
    %v8738 = vld [vmem:[#allocation10 + $0x68] sm:$0xff]
    %v8739 = vld [vmem:[#allocation10 + $0x70] sm:$0xff]
    %v8740 = vld [vmem:[#allocation10 + $0x78] sm:$0xff]
    %v8741 = vld [vmem:[#allocation10 + $0x80] sm:$0xff]
    %v8742 = vld [vmem:[#allocation10 + $0x88] sm:$0xff]
    %v8743 = vld [vmem:[#allocation10 + $0x90] sm:$0xff]
    %v8744 = vld [vmem:[#allocation10 + $0x98] sm:$0xff]
    %v8745 = vld [vmem:[#allocation10 + $0xa0] sm:$0xff]
    %v8746 = vld [vmem:[#allocation10 + $0xa8] sm:$0xff]
    %v8747 = vld [vmem:[#allocation10 + $0xb0] sm:$0xff]
    %v8748 = vld [vmem:[#allocation10 + $0xb8] sm:$0xff]
    %v8749 = vld [vmem:[#allocation10 + $0xc0] sm:$0xff]
    %v8750 = vld [vmem:[#allocation10 + $0xc8] sm:$0xff]
    %v8751 = vld [vmem:[#allocation10 + $0xd0] sm:$0xff]
    %v8752 = vld [vmem:[#allocation10 + $0xd8] sm:$0xff]
    %v8753 = vld [vmem:[#allocation10 + $0xe0] sm:$0xff]
    %v8754 = vld [vmem:[#allocation10 + $0xe8] sm:$0xff]
    %v8755 = vld [vmem:[#allocation10 + $0xf0] sm:$0xff]
    %v8756 = vld [vmem:[#allocation10 + $0xf8] sm:$0xff]
    %v8757 = vld [vmem:[#allocation10 + $0x100] sm:$0xff]
    %v8758 = vld [vmem:[#allocation10 + $0x108] sm:$0xff]
    %v8759 = vld [vmem:[#allocation10 + $0x110] sm:$0xff]
    %v8760 = vld [vmem:[#allocation10 + $0x118] sm:$0xff]
    %v8761 = vld [vmem:[#allocation10 + $0x120] sm:$0xff]
    %v8762 = vld [vmem:[#allocation10 + $0x128] sm:$0xff]
    %v8763 = vld [vmem:[#allocation10 + $0x130] sm:$0xff]
    %v8764 = vld [vmem:[#allocation10 + $0x138] sm:$0xff]
    %v8765 = vld [vmem:[#allocation10 + $0x140] sm:$0xff]
    %v8766 = vld [vmem:[#allocation10 + $0x148] sm:$0xff]
    %v8767 = vld [vmem:[#allocation10 + $0x150] sm:$0xff]
    %v8768 = vld [vmem:[#allocation10 + $0x158] sm:$0xff]
    %v8769 = vld [vmem:[#allocation10 + $0x160] sm:$0xff]
    %v8770 = vld [vmem:[#allocation10 + $0x168] sm:$0xff]
    %v8771 = vld [vmem:[#allocation10 + $0x170] sm:$0xff]
    %v8772 = vld [vmem:[#allocation10 + $0x178] sm:$0xff]
    %v8773 = vld [vmem:[#allocation10 + $0x180] sm:$0xff]
    %v8774 = vld [vmem:[#allocation10 + $0x188] sm:$0xff]
    %v8775 = vld [vmem:[#allocation10 + $0x190] sm:$0xff]
    %v8776 = vld [vmem:[#allocation10 + $0x198] sm:$0xff]
    %v8777 = vld [vmem:[#allocation10 + $0x1a0] sm:$0xff]
    %v8778 = vld [vmem:[#allocation10 + $0x1a8] sm:$0xff]
    %v8779 = vld [vmem:[#allocation10 + $0x1b0] sm:$0xff]
    %v8780 = vld [vmem:[#allocation10 + $0x1b8] sm:$0xff]
    %v8781 = vld [vmem:[#allocation10 + $0x1c0] sm:$0xff]
    %v8782 = vld [vmem:[#allocation10 + $0x1c8] sm:$0xff]
    %v8783 = vld [vmem:[#allocation10 + $0x1d0] sm:$0xff]
    %v8784 = vld [vmem:[#allocation10 + $0x1d8] sm:$0xff]
    %v8785 = vld [vmem:[#allocation10 + $0x1e0] sm:$0xff]
    %v8786 = vld [vmem:[#allocation10 + $0x1e8] sm:$0xff]
    %v8787 = vld [vmem:[#allocation10 + $0x1f0] sm:$0xff]
    %v8788 = vld [vmem:[#allocation10 + $0x1f8] sm:$0xff]
    %v8789 = vld [vmem:[#allocation10 + $0x200] sm:$0xff]
    %v8790 = vld [vmem:[#allocation10 + $0x208] sm:$0xff]
    %v8791 = vld [vmem:[#allocation10 + $0x210] sm:$0xff]
    %v8792 = vld [vmem:[#allocation10 + $0x218] sm:$0xff]
    %v8793 = vld [vmem:[#allocation10 + $0x220] sm:$0xff]
    %v8794 = vld [vmem:[#allocation10 + $0x228] sm:$0xff]
    %v8795 = vld [vmem:[#allocation10 + $0x230] sm:$0xff]
    %v8796 = vld [vmem:[#allocation10 + $0x238] sm:$0xff]
    %v8797 = vld [vmem:[#allocation10 + $0x240] sm:$0xff]
    %v8798 = vld [vmem:[#allocation10 + $0x248] sm:$0xff]
    %v8799 = vld [vmem:[#allocation10 + $0x250] sm:$0xff]
    %v8800 = vld [vmem:[#allocation10 + $0x258] sm:$0xff]
    %v8801 = vld [vmem:[#allocation10 + $0x260] sm:$0xff]
    %v8802 = vld [vmem:[#allocation10 + $0x268] sm:$0xff]
    %v8803 = vld [vmem:[#allocation10 + $0x270] sm:$0xff]
    %v8804 = vld [vmem:[#allocation10 + $0x278] sm:$0xff]
    %v8805 = vld [vmem:[#allocation10 + $0x280] sm:$0xff]
    %v8806 = vld [vmem:[#allocation10 + $0x288] sm:$0xff]
    %v8807 = vld [vmem:[#allocation10 + $0x290] sm:$0xff]
    %v8808 = vld [vmem:[#allocation10 + $0x298] sm:$0xff]
    %v8809 = vld [vmem:[#allocation10 + $0x2a0] sm:$0xff]
    %v8810 = vld [vmem:[#allocation10 + $0x2a8] sm:$0xff]
    %v8811 = vld [vmem:[#allocation10 + $0x2b0] sm:$0xff]
    %v8812 = vld [vmem:[#allocation10 + $0x2b8] sm:$0xff]
    %v8813 = vld [vmem:[#allocation10 + $0x2c0] sm:$0xff]
    %v8814 = vld [vmem:[#allocation10 + $0x2c8] sm:$0xff]
    %v8815 = vld [vmem:[#allocation10 + $0x2d0] sm:$0xff]
    %v8816 = vld [vmem:[#allocation10 + $0x2d8] sm:$0xff]
    %v8817 = vld [vmem:[#allocation10 + $0x2e0] sm:$0xff]
    %v8818 = vld [vmem:[#allocation10 + $0x2e8] sm:$0xff]
    %v8819 = vld [vmem:[#allocation10 + $0x2f0] sm:$0xff]
    %v8820 = vld [vmem:[#allocation10 + $0x2f8] sm:$0xff]
    %v8821 = vld [vmem:[#allocation10 + $0x300] sm:$0xff]
    %v8822 = vld [vmem:[#allocation10 + $0x308] sm:$0xff]
    %v8823 = vld [vmem:[#allocation10 + $0x310] sm:$0xff]
    %v8824 = vld [vmem:[#allocation10 + $0x318] sm:$0xff]
    %v8825 = vld [vmem:[#allocation10 + $0x320] sm:$0xff]
    %v8826 = vld [vmem:[#allocation10 + $0x328] sm:$0xff]
    %v8827 = vld [vmem:[#allocation10 + $0x330] sm:$0xff]
    %v8828 = vld [vmem:[#allocation10 + $0x338] sm:$0xff]
    %v8829 = vld [vmem:[#allocation10 + $0x340] sm:$0xff]
    %v8830 = vld [vmem:[#allocation10 + $0x348] sm:$0xff]
    %v8831 = vld [vmem:[#allocation10 + $0x350] sm:$0xff]
    %v8832 = vld [vmem:[#allocation10 + $0x358] sm:$0xff]
    %v8833 = vld [vmem:[#allocation10 + $0x360] sm:$0xff]
    %v8834 = vld [vmem:[#allocation10 + $0x368] sm:$0xff]
    %v8835 = vld [vmem:[#allocation10 + $0x370] sm:$0xff]
    %v8836 = vld [vmem:[#allocation10 + $0x378] sm:$0xff]
    %v8837 = vld [vmem:[#allocation10 + $0x380] sm:$0xff]
    %v8838 = vld [vmem:[#allocation10 + $0x388] sm:$0xff]
    %v8839 = vld [vmem:[#allocation10 + $0x390] sm:$0xff]
    %v8840 = vld [vmem:[#allocation10 + $0x398] sm:$0xff]
    %v8841 = vld [vmem:[#allocation10 + $0x3a0] sm:$0xff]
    %v8842 = vld [vmem:[#allocation10 + $0x3a8] sm:$0xff]
    %v8843 = vld [vmem:[#allocation10 + $0x3b0] sm:$0xff]
    %v8844 = vld [vmem:[#allocation10 + $0x3b8] sm:$0xff]
    %v8845 = vld [vmem:[#allocation10 + $0x3c0] sm:$0xff]
    %v8846 = vld [vmem:[#allocation10 + $0x3c8] sm:$0xff]
    %v8847 = vld [vmem:[#allocation10 + $0x3d0] sm:$0xff]
    %v8848 = vld [vmem:[#allocation10 + $0x3d8] sm:$0xff]
    %v8849 = vld [vmem:[#allocation10 + $0x3e0] sm:$0xff]
    %v8850 = vld [vmem:[#allocation10 + $0x3e8] sm:$0xff]
    %v8851 = vld [vmem:[#allocation10 + $0x3f0] sm:$0xff]
    %v8852 = vld [vmem:[#allocation10 + $0x3f8] sm:$0xff]
    %v8853 = vld [vmem:[%s8] sm:$0xf]
    %v8855 = vlaneseq
    %v8856 = vshrl.u32 %v8855, 7
    %v8857 = vsub.s32 0, %v8856
    %v8858 = vrot.slane %v8853, %v8857
    %v8859 = vlaneseq
    %v8860 = vshrl.u32 %v8859, 7
    %v8861 = vsub.s32 1, %v8860
    %v8862 = vrot.slane %v8853, %v8861
    %v8863 = vlaneseq
    %v8864 = vshrl.u32 %v8863, 7
    %v8865 = vsub.s32 2, %v8864
    %v8866 = vrot.slane %v8853, %v8865
    %v8867 = vlaneseq
    %v8868 = vshrl.u32 %v8867, 7
    %v8869 = vsub.s32 3, %v8868
    %v8870 = vrot.slane %v8853, %v8869
    %8875 = vmatprep.subr.mxu0 %v8726
    %8876 = vmatpush1.msra.mxu0 %v8725
    %8877 = vmatprep.subr.mxu0 %v8730
    %8878 = vmatpush1.msra.mxu0 %v8729
    %8879 = vmatprep.subr.mxu0 %v8734
    %8880 = vmatpush1.msra.mxu0 %v8733
    %8881 = vmatprep.subr.mxu0 %v8738
    %8882 = vmatpush1.msra.mxu0 %v8737
    %8883 = vmatprep.subr.mxu0 %v8742
    %8884 = vmatpush1.msra.mxu0 %v8741
    %8885 = vmatprep.subr.mxu0 %v8746
    %8886 = vmatpush1.msra.mxu0 %v8745
    %8887 = vmatprep.subr.mxu0 %v8750
    %8888 = vmatpush1.msra.mxu0 %v8749
    %8889 = vmatprep.subr.mxu0 %v8754
    %8890 = vmatpush1.msra.mxu0 %v8753
    %8891 = vmatprep.subr.mxu0 %v8758
    %8892 = vmatpush1.msra.mxu0 %v8757
    %8893 = vmatprep.subr.mxu0 %v8762
    %8894 = vmatpush1.msra.mxu0 %v8761
    %8895 = vmatprep.subr.mxu0 %v8766
    %8896 = vmatpush1.msra.mxu0 %v8765
    %8897 = vmatprep.subr.mxu0 %v8770
    %8898 = vmatpush1.msra.mxu0 %v8769
    %8899 = vmatprep.subr.mxu0 %v8774
    %8900 = vmatpush1.msra.mxu0 %v8773
    %8901 = vmatprep.subr.mxu0 %v8778
    %8902 = vmatpush1.msra.mxu0 %v8777
    %8903 = vmatprep.subr.mxu0 %v8782
    %8904 = vmatpush1.msra.mxu0 %v8781
    %8905 = vmatprep.subr.mxu0 %v8786
    %8906 = vmatpush1.msra.mxu0 %v8785
    %8907 = vmatprep.subr.mxu0 %v8790
    %8908 = vmatpush1.msra.mxu0 %v8789
    %8909 = vmatprep.subr.mxu0 %v8794
    %8910 = vmatpush1.msra.mxu0 %v8793
    %8911 = vmatprep.subr.mxu0 %v8798
    %8912 = vmatpush1.msra.mxu0 %v8797
    %8913 = vmatprep.subr.mxu0 %v8802
    %8914 = vmatpush1.msra.mxu0 %v8801
    %8915 = vmatprep.subr.mxu0 %v8806
    %8916 = vmatpush1.msra.mxu0 %v8805
    %8917 = vmatprep.subr.mxu0 %v8810
    %8918 = vmatpush1.msra.mxu0 %v8809
    %8919 = vmatprep.subr.mxu0 %v8814
    %8920 = vmatpush1.msra.mxu0 %v8813
    %8921 = vmatprep.subr.mxu0 %v8818
    %8922 = vmatpush1.msra.mxu0 %v8817
    %8923 = vmatprep.subr.mxu0 %v8822
    %8924 = vmatpush1.msra.mxu0 %v8821
    %8925 = vmatprep.subr.mxu0 %v8826
    %8926 = vmatpush1.msra.mxu0 %v8825
    %8927 = vmatprep.subr.mxu0 %v8830
    %8928 = vmatpush1.msra.mxu0 %v8829
    %8929 = vmatprep.subr.mxu0 %v8834
    %8930 = vmatpush1.msra.mxu0 %v8833
    %8931 = vmatprep.subr.mxu0 %v8838
    %8932 = vmatpush1.msra.mxu0 %v8837
    %8933 = vmatprep.subr.mxu0 %v8842
    %8934 = vmatpush1.msra.mxu0 %v8841
    %8935 = vmatprep.subr.mxu0 %v8846
    %8936 = vmatpush1.msra.mxu0 %v8845
    %8937 = vmatprep.subr.mxu0 %v8850
    %8938 = vmatpush1.msra.mxu0 %v8849
    %8939 = vmatprep.mubr.f32.mxu0 %v8724
    %8940 = vmatmul.mubr.f32.gmra.mrb[0].mxu0 %v8721
    %v8941 = vpop.f32.mrb[0].mxu0
    %v8942 = vadd.f32 %v8858, %v8941
    %v8943 = vpop.f32.mrb[0].mxu0
    %v8944 = vadd.f32 %v8862, %v8943
    %8945 = vdwg.mxu0
    %8946 = vmatprep.subr.mxu0 %v8728
    %8947 = vmatpush1.msra.mxu0 %v8727
    %8948 = vmatprep.subr.mxu0 %v8732
    %8949 = vmatpush1.msra.mxu0 %v8731
    %8950 = vmatprep.subr.mxu0 %v8736
    %8951 = vmatpush1.msra.mxu0 %v8735
    %8952 = vmatprep.subr.mxu0 %v8740
    %8953 = vmatpush1.msra.mxu0 %v8739
    %8954 = vmatprep.subr.mxu0 %v8744
    %8955 = vmatpush1.msra.mxu0 %v8743
    %8956 = vmatprep.subr.mxu0 %v8748
    %8957 = vmatpush1.msra.mxu0 %v8747
    %8958 = vmatprep.subr.mxu0 %v8752
    %8959 = vmatpush1.msra.mxu0 %v8751
    %8960 = vmatprep.subr.mxu0 %v8756
    %8961 = vmatpush1.msra.mxu0 %v8755
    %8962 = vmatprep.subr.mxu0 %v8760
    %8963 = vmatpush1.msra.mxu0 %v8759
    %8964 = vmatprep.subr.mxu0 %v8764
    %8965 = vmatpush1.msra.mxu0 %v8763
    %8966 = vmatprep.subr.mxu0 %v8768
    %8967 = vmatpush1.msra.mxu0 %v8767
    %8968 = vmatprep.subr.mxu0 %v8772
    %8969 = vmatpush1.msra.mxu0 %v8771
    %8970 = vmatprep.subr.mxu0 %v8776
    %8971 = vmatpush1.msra.mxu0 %v8775
    %8972 = vmatprep.subr.mxu0 %v8780
    %8973 = vmatpush1.msra.mxu0 %v8779
    %8974 = vmatprep.subr.mxu0 %v8784
    %8975 = vmatpush1.msra.mxu0 %v8783
    %8976 = vmatprep.subr.mxu0 %v8788
    %8977 = vmatpush1.msra.mxu0 %v8787
    %8978 = vmatprep.subr.mxu0 %v8792
    %8979 = vmatpush1.msra.mxu0 %v8791
    %8980 = vmatprep.subr.mxu0 %v8796
    %8981 = vmatpush1.msra.mxu0 %v8795
    %8982 = vmatprep.subr.mxu0 %v8800
    %8983 = vmatpush1.msra.mxu0 %v8799
    %8984 = vmatprep.subr.mxu0 %v8804
    %8985 = vmatpush1.msra.mxu0 %v8803
    %8986 = vmatprep.subr.mxu0 %v8808
    %8987 = vmatpush1.msra.mxu0 %v8807
    %8988 = vmatprep.subr.mxu0 %v8812
    %8989 = vmatpush1.msra.mxu0 %v8811
    %8990 = vmatprep.subr.mxu0 %v8816
    %8991 = vmatpush1.msra.mxu0 %v8815
    %8992 = vmatprep.subr.mxu0 %v8820
    %8993 = vmatpush1.msra.mxu0 %v8819
    %8994 = vmatprep.subr.mxu0 %v8824
    %8995 = vmatpush1.msra.mxu0 %v8823
    %8996 = vmatprep.subr.mxu0 %v8828
    %8997 = vmatpush1.msra.mxu0 %v8827
    %8998 = vmatprep.subr.mxu0 %v8832
    %8999 = vmatpush1.msra.mxu0 %v8831
    %9000 = vmatprep.subr.mxu0 %v8836
    %9001 = vmatpush1.msra.mxu0 %v8835
    %9002 = vmatprep.subr.mxu0 %v8840
    %9003 = vmatpush1.msra.mxu0 %v8839
    %9004 = vmatprep.subr.mxu0 %v8844
    %9005 = vmatpush1.msra.mxu0 %v8843
    %9006 = vmatprep.subr.mxu0 %v8848
    %9007 = vmatpush1.msra.mxu0 %v8847
    %9008 = vmatprep.subr.mxu0 %v8852
    %9009 = vmatpush1.msra.mxu0 %v8851
    %9010 = vmatprep.mubr.f32.mxu0 %v8724
    %9011 = vmatmul.mubr.f32.gmra.mrb[0].mxu0 %v8721
    %v9012 = vpop.f32.mrb[0].mxu0
    %v9013 = vadd.f32 %v8866, %v9012
    %v9014 = vpop.f32.mrb[0].mxu0
    %v9015 = vadd.f32 %v8870, %v9014
    %9016 = vdwg.mxu0
    %v9021 = vcombine.low %v8942, %v8944
    %v9022 = vcombine.low %v9013, %v9015
    %v9024 = vunpack.c.l.s4 1983009808
    %v9025 = vunpack.c.0.s8 %v9024
    %v9026 = vlaneseq
    %v9027 = vshrl.u32 %v9026, 7
    %v9028 = vsub.s32 %v9025, %v9027
    %v9029 = vrot.slane %v9021, %v9028
    %v9031 = vunpack.c.l.s4 1983009808
    %v9032 = vunpack.c.0.s8 %v9031
    %v9033 = vlaneseq
    %v9034 = vshrl.u32 %v9033, 7
    %v9035 = vsub.s32 %v9032, %v9034
    %v9036 = vrot.slane %v9022, %v9035
    %v9037 = vcombine.low %v9029, %v9036
    %9039 = vst [vmem:[#allocation11] sm:$0xff] %v9037
    // Predicated region
    $region58: #{tpu_custom_call.1} parent=1 // pred_check
      _
    $region59: #{tpu_custom_call.1} parent=1 // pred_check_branch
      %9041 = sbr.rel (0) target = $region61
    $region60: #{tpu_custom_call.1} parent=1 // pred_region
      %s9043 = ssub.s32 128, 128
      %9044 = vsyncadd [#allocation4], %s9043
      %s9046 = sshll.u32 [#allocation11], 4
      %s9047 = int_to_ptr.vmem [resolvable:$true] %s9046
      %9049 = dma.vmem_to_hbm [thread:$0]  %s9047, 128, %s9, [#allocation4]
    $region61: #{tpu_custom_call.1} parent=1 // pred_fallthru
      _
    // Predicated region
    $region62: #{tpu_custom_call.1} parent=1 // pred_check
      _
    $region63: #{tpu_custom_call.1} parent=1 // pred_check_branch
      %9051 = sbr.rel (0) target = $region65
    $region64: #{tpu_custom_call.1} parent=1 // pred_region
      %9052 = dma.done [#allocation4], 128
    $region65: #{tpu_custom_call.1} parent=1 // pred_fallthru
      _
    %9053 = vsyncpa [#allocation3], 1
    %9054 = vsyncpa [#allocation6], 1
    %9055 = vsyncpa [#allocation9], 1
    %9056 = vsyncpa [#allocation4], 1

</llo_original>
